<compile_context>
chip_gen: v6e
topology: v6e:2x2x1
jax: 0.10.0
libtpu: 0.0.40
codegen_flags: <defaults>
</compile_context>

<pallas_src>
import numpy as np
import jax
import jax.numpy as jnp
from jax import lax
from jax.experimental import pallas as pl
from jax.experimental.pallas import tpu as pltpu

FPAD = 128          # lane padding for every feature dim (1 / 2 / 8 -> 128)
HIDDEN = 8          # latent_size
NODE_FEAT = 1
EDGE_FEAT = 1
MP_STEPS = 3


def _round_up(x, m):
    return ((x + m - 1) // m) * m


def _pad2(a, rows, cols):
    a = np.asarray(a, dtype=np.float32)
    out = np.zeros((rows, cols), dtype=np.float32)
    if a.size:
        out[: a.shape[0], : a.shape[1]] = a
    return out


def _pad1(a, cols):
    a = np.asarray(a, dtype=np.float32)
    out = np.zeros((cols,), dtype=np.float32)
    out[: a.shape[0]] = a
    return out


# ----------------------------- fused Pallas kernel -----------------------------

def _make_fused_kernel(skip_flags):
    n_sub = len(skip_flags)

    def kernel(x0_ref, e0_ref, gat_row_ref, gat_col_ref,
               agg_row_ref, agg_col_ref, emask_ref, nmask_ref,
               diag_ref, valid_ref,
               w1e_xs_ref, w1e_xd_ref, w1e_e_ref, w1e_sk_ref, b1e_ref,
               w2e_ref, b2e_ref,
               w1n_x_ref, w1n_a_ref, b1n_ref, w2n_ref, b2n_ref,
               vals_ref, l1_ref):
        f32 = jnp.float32
        x = x0_ref[...]                           # (N_pad, FPAD) node embedding
        e = e0_ref[...]                           # (E_pad, FPAD) edge embedding
        a_edges = e                               # original lower-tri attrs (skip src)
        gat_row = gat_row_ref[...].astype(f32)    # (E_pad, N_pad) one-hot -> x[row]
        gat_col = gat_col_ref[...].astype(f32)    # (E_pad, N_pad) one-hot -> x[col]
        agg_row = agg_row_ref[...]                # (N_pad, E_pad) scatter-mean (1/deg)
        agg_col = agg_col_ref[...]
        emask = emask_ref[...]                    # (E_pad, 1) valid-edge rows
        nmask = nmask_ref[...]                    # (N_pad, 1) valid-node rows

        skip_idx = 0
        for s in range(n_sub):                    # statically unrolled: 2 * mp_steps
            if s % 2 == 0:   # l1: edge_index = (row, col); aggregate onto row
                g_src, g_dst, agg_m = gat_row, gat_col, agg_row
            else:            # l2: transposed edge_index; aggregate onto col
                g_src, g_dst, agg_m = gat_col, gat_row, agg_col

            # edge block: Linear(cat([x[src], x[dst], e, (skip)])) -> ReLU -> Linear
            # project node features first, then gather (identical math, fewer FLOPs)
            p_src = jnp.dot(x, w1e_xs_ref[s], preferred_element_type=f32)
            p_dst = jnp.dot(x, w1e_xd_ref[s], preferred_element_type=f32)
            pre_e = (jnp.dot(g_src, p_src, preferred_element_type=f32)
                     + jnp.dot(g_dst, p_dst, preferred_element_type=f32)
                     + jnp.dot(e, w1e_e_ref[s], preferred_element_type=f32)
                     + b1e_ref[s:s + 1, :])
            if skip_flags[s]:                     # static gating: no dead matmuls
                pre_e = pre_e + jnp.dot(a_edges, w1e_sk_ref[skip_idx],
                                        preferred_element_type=f32)
                skip_idx += 1
            h_e = jnp.maximum(pre_e, 0.0)
            e = (jnp.dot(h_e, w2e_ref[s], preferred_element_type=f32)
                 + b2e_ref[s:s + 1, :]) * emask

            # MeanAggregation (1/deg folded into agg_m) + node block
            agg = jnp.dot(agg_m, e, preferred_element_type=f32)
            pre_n = (jnp.dot(x, w1n_x_ref[s], preferred_element_type=f32)
                     + jnp.dot(agg, w1n_a_ref[s], preferred_element_type=f32)
                     + b1n_ref[s:s + 1, :])
            h_n = jnp.maximum(pre_n, 0.0)
            x = (jnp.dot(h_n, w2n_ref[s], preferred_element_type=f32)
                 + b2n_ref[s:s + 1, :]) * nmask

        # _transform_output: extract column 0 lane-dense via a one-hot matmul,
        # softplus(+0.001) on diagonal edges, L1 penalty.
        unit0 = (lax.broadcasted_iota(jnp.int32, (1, FPAD), 1) == 0).astype(f32)
        v = lax.dot_general(unit0, e, (((1,), (1,)), ((), ())),
                            preferred_element_type=f32)   # (1, E_pad): v[0,j]=e[j,0]
        sp = jnp.maximum(v, 0.0) + jnp.log1p(jnp.exp(-jnp.abs(v)))   # softplus
        out = jnp.where(diag_ref[...] > 0.5, sp + 0.001, v) * valid_ref[...]
        vals_ref[...] = out
        l1_ref[...] = jnp.sum(jnp.abs(out), axis=1, keepdims=True)

    return kernel


def _run_fused(args, skip_flags, E_pad):
    in_specs = [pl.BlockSpec(tuple(a.shape), lambda i, nd=a.ndim: (0,) * nd)
                for a in args]
    out_shape = (jax.ShapeDtypeStruct((1, E_pad), jnp.float32),
                 jax.ShapeDtypeStruct((1, 1), jnp.float32))
    out_specs = (pl.BlockSpec((1, E_pad), lambda i: (0, 0)),
                 pl.BlockSpec((1, 1), lambda i: (0, 0)))
    return pl.pallas_call(
        _make_fused_kernel(skip_flags),
        grid=(1,),
        in_specs=in_specs,
        out_specs=out_specs,
        out_shape=out_shape,
        compiler_params=pltpu.CompilerParams(
            dimension_semantics=("arbitrary",),
            vmem_limit_bytes=32 * 1024 * 1024),
    )(*args)


# ----------------------------- parameter init (deterministic) -----------------------------

def _linear_init(key, din, dout):
    # mimics torch.nn.Linear default init: U(-1/sqrt(in), 1/sqrt(in))
    kw, kb = jax.random.split(key)
    bound = 1.0 / np.sqrt(din)
    w = jax.random.uniform(kw, (din, dout), minval=-bound, maxval=bound,
                           dtype=jnp.float32)
    b = jax.random.uniform(kb, (dout,), minval=-bound, maxval=bound,
                           dtype=jnp.float32)
    return np.asarray(w), np.asarray(b)


def _graphnet_raw(key, nf, fe_in, skip, hidden, fe_out):
    k1, k2, k3, k4 = jax.random.split(key, 4)
    w1e, b1e = _linear_init(k1, 2 * nf + fe_in + skip, hidden)
    w2e, b2e = _linear_init(k2, hidden, fe_out)
    w1n, b1n = _linear_init(k3, nf + fe_out, hidden)
    w2n, b2n = _linear_init(k4, hidden, nf)
    return dict(w1e=w1e, b1e=b1e, w2e=w2e, b2e=b2e,
                w1n=w1n, b1n=b1n, w2n=w2n, b2n=b2n,
                nf=nf, fe_in=fe_in, skip=skip)


def init_neuralif_params(key, mp_steps=MP_STEPS, nf=NODE_FEAT, ef=EDGE_FEAT,
                         hidden=HIDDEN, skip_connections=True):
    """Returns per-sub-layer raw (unpadded) params + static skip flags."""
    raw, skip_flags = [], []
    keys = jax.random.split(key, mp_steps)
    for l in range(mp_steps):
        first, last = l == 0, l == mp_steps - 1
        k1, k2 = jax.random.split(keys[l])
        s1 = 1 if (not first and skip_connections) else 0
        raw.append(_graphnet_raw(k1, nf, 1 if first else ef, s1, hidden, ef))
        skip_flags.append(bool(s1))
        raw.append(_graphnet_raw(k2, nf, ef, 0, hidden, 1 if last else ef))
        skip_flags.append(False)
    return raw, tuple(skip_flags)


def pack_params(raw):
    """Pad weights to FPAD and stack them along a leading sub-layer dim."""
    cols = {k: [] for k in ('w1e_xs', 'w1e_xd', 'w1e_e', 'b1e', 'w2e', 'b2e',
                            'w1n_x', 'w1n_a', 'b1n', 'w2n', 'b2n')}
    sk = []
    for p in raw:
        nf, fe_in, skip = p['nf'], p['fe_in'], p['skip']
        w1e = p['w1e']   # row order: [x_src | x_dst | edge_attr | skip_attr]
        cols['w1e_xs'].append(_pad2(w1e[0:nf], FPAD, FPAD))
        cols['w1e_xd'].append(_pad2(w1e[nf:2 * nf], FPAD, FPAD))
        cols['w1e_e'].append(_pad2(w1e[2 * nf:2 * nf + fe_in], FPAD, FPAD))
        if skip:
            sk.append(_pad2(w1e[2 * nf + fe_in:], FPAD, FPAD))
        cols['b1e'].append(_pad1(p['b1e'], FPAD))
        cols['w2e'].append(_pad2(p['w2e'], FPAD, FPAD))
        cols['b2e'].append(_pad1(p['b2e'], FPAD))
        cols['w1n_x'].append(_pad2(p['w1n'][0:nf], FPAD, FPAD))
        cols['w1n_a'].append(_pad2(p['w1n'][nf:], FPAD, FPAD))
        cols['b1n'].append(_pad1(p['b1n'], FPAD))
        cols['w2n'].append(_pad2(p['w2n'], FPAD, FPAD))
        cols['b2n'].append(_pad1(p['b2n'], FPAD))
    packed = {k: jnp.asarray(np.stack(v)) for k, v in cols.items()}
    if not sk:
        sk = [np.zeros((FPAD, FPAD), np.float32)]
    packed['w1e_sk'] = jnp.asarray(np.stack(sk))
    return packed


# ----------------------------- NeuralIF forward -----------------------------

def neuralif_forward(x, edge_index, edge_attr, raw_params, skip_flags):
    x = np.asarray(x, np.float32)
    edge_index = np.asarray(edge_index)
    edge_attr = np.asarray(edge_attr, np.float32)
    if edge_attr.ndim == 1:
        edge_attr = edge_attr[:, None]
    N = x.shape[0]

    # ToLowerTriangular (host-side glue: dynamic-shape boolean filter)
    row, col = edge_index
    keep = row >= col
    row, col = row[keep], col[keep]
    edge_attr = edge_attr[keep]
    E = int(row.shape[0])

    N_pad = _round_up(max(N, 8), 128)
    E_pad = _round_up(max(E, 8), 128)

    # pre-transposed one-hot gather matrices (exact in bf16)
    gat_row = np.zeros((E_pad, N_pad), np.float32)
    gat_row[np.arange(E), row] = 1.0
    gat_col = np.zeros((E_pad, N_pad), np.float32)
    gat_col[np.arange(E), col] = 1.0

    # scatter-mean matrices with 1/degree folded in
    deg_row = np.zeros(N_pad, np.float32)
    np.add.at(deg_row, row, 1.0)
    deg_col = np.zeros(N_pad, np.float32)
    np.add.at(deg_col, col, 1.0)
    agg_row = np.zeros((N_pad, E_pad), np.float32)
    agg_row[row, np.arange(E)] = 1.0 / deg_row[row]
    agg_col = np.zeros((N_pad, E_pad), np.float32)
    agg_col[col, np.arange(E)] = 1.0 / deg_col[col]

    # small masks: padded-row zeroing + lane-dense diag/valid vectors
    emask = np.zeros((E_pad, 1), np.float32)
    emask[:E, 0] = 1.0
    nmask = np.zeros((N_pad, 1), np.float32)
    nmask[:N, 0] = 1.0
    diag = np.zeros((1, E_pad), np.float32)
    diag[0, np.arange(E)[row == col]] = 1.0
    valid = np.zeros((1, E_pad), np.float32)
    valid[0, :E] = 1.0

    p = pack_params(raw_params)
    args = (jnp.asarray(_pad2(x, N_pad, FPAD)),
            jnp.asarray(_pad2(edge_attr, E_pad, FPAD)),
            jnp.asarray(gat_row, dtype=jnp.bfloat16),
            jnp.asarray(gat_col, dtype=jnp.bfloat16),
            jnp.asarray(agg_row), jnp.asarray(agg_col),
            jnp.asarray(emask), jnp.asarray(nmask),
            jnp.asarray(diag), jnp.asarray(valid),
            p['w1e_xs'], p['w1e_xd'], p['w1e_e'], p['w1e_sk'], p['b1e'],
            p['w2e'], p['b2e'],
            p['w1n_x'], p['w1n_a'], p['b1n'], p['w2n'], p['b2n'])

    vals, l1_sum = _run_fused(args, skip_flags, E_pad)
    edge_values = vals[0, :E]
    l1_penalty = l1_sum[0, 0] / E

    # TODO(synk): torch.sparse_coo_tensor(...).coalesce() has no Pallas/JAX
    # equivalent; return (indices, values) pairs for L and U instead.
    L = (np.stack([row, col]), edge_values)
    U = (np.stack([col, row]), edge_values)
    return L, U, l1_penalty


# ----------------------------- pure-NumPy reference (PyTorch semantics) -----------------------------

def reference_forward(x, edge_index, edge_attr, raw_params, skip_flags):
    x = np.asarray(x, np.float64)
    edge_attr = np.asarray(edge_attr, np.float64)
    if edge_attr.ndim == 1:
        edge_attr = edge_attr[:, None]
    row, col = np.asarray(edge_index)
    keep = row >= col
    row, col, e = row[keep], col[keep], edge_attr[keep]
    N = x.shape[0]
    a = e.copy()
    for s, p in enumerate(raw_params):
        src, dst = (row, col) if s % 2 == 0 else (col, row)
        ein = [x[src], x[dst], e] + ([a] if skip_flags[s] else [])
        ein = np.concatenate(ein, axis=1)
        e = np.maximum(ein @ p['w1e'] + p['b1e'], 0.0) @ p['w2e'] + p['b2e']
        agg = np.zeros((N, e.shape[1]))
        np.add.at(agg, src, e)
        cnt = np.zeros(N)
        np.add.at(cnt, src, 1.0)
        agg = agg / np.maximum(cnt, 1.0)[:, None]
        nin = np.concatenate([x, agg], axis=1)
        x = np.maximum(nin @ p['w1n'] + p['b1n'], 0.0) @ p['w2n'] + p['b2n']
    v = e[:, 0]
    sp = np.maximum(v, 0.0) + np.log1p(np.exp(-np.abs(v)))
    v = np.where(row == col, sp + 0.001, v)
    return v.astype(np.float32), float(np.mean(np.abs(v)))


# ----------------------------- main -----------------------------

if __name__ == "__main__":
    key = jax.random.PRNGKey(0)
    k_x, k_e, k_p = jax.random.split(key, 3)

    # small banded symmetric sparse matrix: N=16 nodes, bandwidth 2 (incl. diag)
    N = 16
    rows, cols = [], []
    for i in range(N):
        for j in range(max(0, i - 2), min(N, i + 3)):
            rows.append(i)
            cols.append(j)
    edge_index = np.array([rows, cols], dtype=np.int32)     # (2, 74)
    E_full = edge_index.shape[1]

    x = np.asarray(jax.random.normal(k_x, (N, 1), dtype=jnp.float32))            # data.x
    edge_attr = np.asarray(jax.random.normal(k_e, (E_full, 1), dtype=jnp.float32))  # data.edge_attr

    raw_params, skip_flags = init_neuralif_params(k_p)
    (L_idx, L_val), (U_idx, U_val), l1 = neuralif_forward(
        x, edge_index, edge_attr, raw_params, skip_flags)

    jax.block_until_ready(L_val)
    jax.block_until_ready(l1)

    # verify against the PyTorch-equivalent NumPy reference
    ref_vals, ref_l1 = reference_forward(x, edge_index, edge_attr,
                                         raw_params, skip_flags)
    L_val_np = np.asarray(L_val)
    assert L_val_np.shape[0] == int(np.sum(edge_index[0] >= edge_index[1]))
    assert np.isfinite(L_val_np).all() and np.isfinite(float(l1))
    assert np.allclose(L_val_np, ref_vals, rtol=5e-3, atol=2e-3), \
        float(np.max(np.abs(L_val_np - ref_vals)))
    assert abs(float(l1) - ref_l1) < 5e-3
    print("KERNEL_OK")
</pallas_src>

<mosaic_0001>
module attributes {stable_mosaic.version = 11 : i64} {
  func.func @kernel(%arg0: i32, %arg1: memref<128x128xf32, #tpu.memory_space<vmem>>, %arg2: memref<128x128xf32, #tpu.memory_space<vmem>>, %arg3: memref<128x128xbf16, #tpu.memory_space<vmem>>, %arg4: memref<128x128xbf16, #tpu.memory_space<vmem>>, %arg5: memref<128x128xf32, #tpu.memory_space<vmem>>, %arg6: memref<128x128xf32, #tpu.memory_space<vmem>>, %arg7: memref<128x1xf32, #tpu.memory_space<vmem>>, %arg8: memref<128x1xf32, #tpu.memory_space<vmem>>, %arg9: memref<1x128xf32, #tpu.memory_space<vmem>>, %arg10: memref<1x128xf32, #tpu.memory_space<vmem>>, %arg11: memref<6x128x128xf32, #tpu.memory_space<vmem>>, %arg12: memref<6x128x128xf32, #tpu.memory_space<vmem>>, %arg13: memref<6x128x128xf32, #tpu.memory_space<vmem>>, %arg14: memref<2x128x128xf32, #tpu.memory_space<vmem>>, %arg15: memref<6x128xf32, #tpu.memory_space<vmem>>, %arg16: memref<6x128x128xf32, #tpu.memory_space<vmem>>, %arg17: memref<6x128xf32, #tpu.memory_space<vmem>>, %arg18: memref<6x128x128xf32, #tpu.memory_space<vmem>>, %arg19: memref<6x128x128xf32, #tpu.memory_space<vmem>>, %arg20: memref<6x128xf32, #tpu.memory_space<vmem>>, %arg21: memref<6x128x128xf32, #tpu.memory_space<vmem>>, %arg22: memref<6x128xf32, #tpu.memory_space<vmem>>, %arg23: memref<1x128xf32, #tpu.memory_space<vmem>>, %arg24: memref<1x1xf32, #tpu.memory_space<vmem>>) attributes {dimension_semantics = [#tpu.dimension_semantics<arbitrary>], iteration_bounds = array<i64: 1>, scalar_prefetch = 0 : i64, scratch_operands = 0 : i64, tpu.core_type = #tpu.core_type<tc>, window_params = [{pipeline_mode = #tpu.pipeline_mode<synchronous>, transform_indices = @transform_0, window_bounds = array<i64: 128, 128>}, {pipeline_mode = #tpu.pipeline_mode<synchronous>, transform_indices = @transform_1, window_bounds = array<i64: 128, 128>}, {pipeline_mode = #tpu.pipeline_mode<synchronous>, transform_indices = @transform_2, window_bounds = array<i64: 128, 128>}, {pipeline_mode = #tpu.pipeline_mode<synchronous>, transform_indices = @transform_3, window_bounds = array<i64: 128, 128>}, {pipeline_mode = #tpu.pipeline_mode<synchronous>, transform_indices = @transform_4, window_bounds = array<i64: 128, 128>}, {pipeline_mode = #tpu.pipeline_mode<synchronous>, transform_indices = @transform_5, window_bounds = array<i64: 128, 128>}, {pipeline_mode = #tpu.pipeline_mode<synchronous>, transform_indices = @transform_6, window_bounds = array<i64: 128, 1>}, {pipeline_mode = #tpu.pipeline_mode<synchronous>, transform_indices = @transform_7, window_bounds = array<i64: 128, 1>}, {pipeline_mode = #tpu.pipeline_mode<synchronous>, transform_indices = @transform_8, window_bounds = array<i64: 1, 128>}, {pipeline_mode = #tpu.pipeline_mode<synchronous>, transform_indices = @transform_9, window_bounds = array<i64: 1, 128>}, {pipeline_mode = #tpu.pipeline_mode<synchronous>, transform_indices = @transform_10, window_bounds = array<i64: 6, 128, 128>}, {pipeline_mode = #tpu.pipeline_mode<synchronous>, transform_indices = @transform_11, window_bounds = array<i64: 6, 128, 128>}, {pipeline_mode = #tpu.pipeline_mode<synchronous>, transform_indices = @transform_12, window_bounds = array<i64: 6, 128, 128>}, {pipeline_mode = #tpu.pipeline_mode<synchronous>, transform_indices = @transform_13, window_bounds = array<i64: 2, 128, 128>}, {pipeline_mode = #tpu.pipeline_mode<synchronous>, transform_indices = @transform_14, window_bounds = array<i64: 6, 128>}, {pipeline_mode = #tpu.pipeline_mode<synchronous>, transform_indices = @transform_15, window_bounds = array<i64: 6, 128, 128>}, {pipeline_mode = #tpu.pipeline_mode<synchronous>, transform_indices = @transform_16, window_bounds = array<i64: 6, 128>}, {pipeline_mode = #tpu.pipeline_mode<synchronous>, transform_indices = @transform_17, window_bounds = array<i64: 6, 128, 128>}, {pipeline_mode = #tpu.pipeline_mode<synchronous>, transform_indices = @transform_18, window_bounds = array<i64: 6, 128, 128>}, {pipeline_mode = #tpu.pipeline_mode<synchronous>, transform_indices = @transform_19, window_bounds = array<i64: 6, 128>}, {pipeline_mode = #tpu.pipeline_mode<synchronous>, transform_indices = @transform_20, window_bounds = array<i64: 6, 128, 128>}, {pipeline_mode = #tpu.pipeline_mode<synchronous>, transform_indices = @transform_21, window_bounds = array<i64: 6, 128>}, {pipeline_mode = #tpu.pipeline_mode<synchronous>, transform_indices = @transform_22, window_bounds = array<i64: 1, 128>}, {pipeline_mode = #tpu.pipeline_mode<synchronous>, transform_indices = @transform_23, window_bounds = array<i64: 1, 1>}]} {
    %c0 = arith.constant 0 : index
    %c0_0 = arith.constant 0 : index
    %0 = vector.load %arg1[%c0, %c0_0] : memref<128x128xf32, #tpu.memory_space<vmem>>, vector<128x128xf32>
    %c0_1 = arith.constant 0 : index
    %c0_2 = arith.constant 0 : index
    %1 = vector.load %arg2[%c0_1, %c0_2] : memref<128x128xf32, #tpu.memory_space<vmem>>, vector<128x128xf32>
    %c0_3 = arith.constant 0 : index
    %c0_4 = arith.constant 0 : index
    %2 = vector.load %arg3[%c0_3, %c0_4] : memref<128x128xbf16, #tpu.memory_space<vmem>>, vector<128x128xbf16>
    %3 = arith.extf %2 : vector<128x128xbf16> to vector<128x128xf32>
    %c0_5 = arith.constant 0 : index
    %c0_6 = arith.constant 0 : index
    %4 = vector.load %arg4[%c0_5, %c0_6] : memref<128x128xbf16, #tpu.memory_space<vmem>>, vector<128x128xbf16>
    %5 = arith.extf %4 : vector<128x128xbf16> to vector<128x128xf32>
    %c0_7 = arith.constant 0 : index
    %c0_8 = arith.constant 0 : index
    %6 = vector.load %arg5[%c0_7, %c0_8] : memref<128x128xf32, #tpu.memory_space<vmem>>, vector<128x128xf32>
    %c0_9 = arith.constant 0 : index
    %c0_10 = arith.constant 0 : index
    %7 = vector.load %arg6[%c0_9, %c0_10] : memref<128x128xf32, #tpu.memory_space<vmem>>, vector<128x128xf32>
    %c0_11 = arith.constant 0 : index
    %c0_12 = arith.constant 0 : index
    %8 = vector.load %arg7[%c0_11, %c0_12] : memref<128x1xf32, #tpu.memory_space<vmem>>, vector<128x1xf32>
    %c0_13 = arith.constant 0 : index
    %c0_14 = arith.constant 0 : index
    %9 = vector.load %arg8[%c0_13, %c0_14] : memref<128x1xf32, #tpu.memory_space<vmem>>, vector<128x1xf32>
    %c0_15 = arith.constant 0 : index
    %c0_16 = arith.constant 0 : index
    %c0_17 = arith.constant 0 : index
    %10 = vector.load %arg11[%c0_15, %c0_16, %c0_17] : memref<6x128x128xf32, #tpu.memory_space<vmem>>, vector<1x128x128xf32>
    %11 = vector.shape_cast %10 : vector<1x128x128xf32> to vector<128x128xf32>
    %cst = arith.constant dense<0.000000e+00> : vector<128x128xf32>
    %12 = tpu.matmul %0, %11, %cst {dimension_numbers = #tpu.dot_dimension_numbers<[1], [0], [0], [1], [0, 0, 1, 1], [], []>} : vector<128x128xf32>, vector<128x128xf32>, vector<128x128xf32> -> vector<128x128xf32>
    %c0_18 = arith.constant 0 : index
    %c0_19 = arith.constant 0 : index
    %c0_20 = arith.constant 0 : index
    %13 = vector.load %arg12[%c0_18, %c0_19, %c0_20] : memref<6x128x128xf32, #tpu.memory_space<vmem>>, vector<1x128x128xf32>
    %14 = vector.shape_cast %13 : vector<1x128x128xf32> to vector<128x128xf32>
    %cst_21 = arith.constant dense<0.000000e+00> : vector<128x128xf32>
    %15 = tpu.matmul %0, %14, %cst_21 {dimension_numbers = #tpu.dot_dimension_numbers<[1], [0], [0], [1], [0, 0, 1, 1], [], []>} : vector<128x128xf32>, vector<128x128xf32>, vector<128x128xf32> -> vector<128x128xf32>
    %cst_22 = arith.constant dense<0.000000e+00> : vector<128x128xf32>
    %16 = tpu.matmul %3, %12, %cst_22 {dimension_numbers = #tpu.dot_dimension_numbers<[1], [0], [0], [1], [0, 0, 1, 1], [], []>} : vector<128x128xf32>, vector<128x128xf32>, vector<128x128xf32> -> vector<128x128xf32>
    %cst_23 = arith.constant dense<0.000000e+00> : vector<128x128xf32>
    %17 = tpu.matmul %5, %15, %cst_23 {dimension_numbers = #tpu.dot_dimension_numbers<[1], [0], [0], [1], [0, 0, 1, 1], [], []>} : vector<128x128xf32>, vector<128x128xf32>, vector<128x128xf32> -> vector<128x128xf32>
    %18 = arith.addf %16, %17 : vector<128x128xf32>
    %c0_24 = arith.constant 0 : index
    %c0_25 = arith.constant 0 : index
    %c0_26 = arith.constant 0 : index
    %19 = vector.load %arg13[%c0_24, %c0_25, %c0_26] : memref<6x128x128xf32, #tpu.memory_space<vmem>>, vector<1x128x128xf32>
    %20 = vector.shape_cast %19 : vector<1x128x128xf32> to vector<128x128xf32>
    %cst_27 = arith.constant dense<0.000000e+00> : vector<128x128xf32>
    %21 = tpu.matmul %1, %20, %cst_27 {dimension_numbers = #tpu.dot_dimension_numbers<[1], [0], [0], [1], [0, 0, 1, 1], [], []>} : vector<128x128xf32>, vector<128x128xf32>, vector<128x128xf32> -> vector<128x128xf32>
    %22 = arith.addf %18, %21 : vector<128x128xf32>
    %c0_28 = arith.constant 0 : index
    %c0_29 = arith.constant 0 : index
    %23 = vector.load %arg15[%c0_28, %c0_29] : memref<6x128xf32, #tpu.memory_space<vmem>>, vector<1x128xf32>
    %24 = vector.broadcast %23 : vector<1x128xf32> to vector<128x128xf32>
    %25 = arith.addf %22, %24 : vector<128x128xf32>
    %cst_30 = arith.constant 0.000000e+00 : f32
    %26 = vector.broadcast %cst_30 : f32 to vector<128x128xf32>
    %27 = arith.maximumf %25, %26 : vector<128x128xf32>
    %c0_31 = arith.constant 0 : index
    %c0_32 = arith.constant 0 : index
    %c0_33 = arith.constant 0 : index
    %28 = vector.load %arg16[%c0_31, %c0_32, %c0_33] : memref<6x128x128xf32, #tpu.memory_space<vmem>>, vector<1x128x128xf32>
    %29 = vector.shape_cast %28 : vector<1x128x128xf32> to vector<128x128xf32>
    %cst_34 = arith.constant dense<0.000000e+00> : vector<128x128xf32>
    %30 = tpu.matmul %27, %29, %cst_34 {dimension_numbers = #tpu.dot_dimension_numbers<[1], [0], [0], [1], [0, 0, 1, 1], [], []>} : vector<128x128xf32>, vector<128x128xf32>, vector<128x128xf32> -> vector<128x128xf32>
    %c0_35 = arith.constant 0 : index
    %c0_36 = arith.constant 0 : index
    %31 = vector.load %arg17[%c0_35, %c0_36] : memref<6x128xf32, #tpu.memory_space<vmem>>, vector<1x128xf32>
    %32 = vector.broadcast %31 : vector<1x128xf32> to vector<128x128xf32>
    %33 = arith.addf %30, %32 : vector<128x128xf32>
    %34 = vector.broadcast %8 : vector<128x1xf32> to vector<128x128xf32>
    %35 = arith.mulf %33, %34 : vector<128x128xf32>
    %cst_37 = arith.constant dense<0.000000e+00> : vector<128x128xf32>
    %36 = tpu.matmul %6, %35, %cst_37 {dimension_numbers = #tpu.dot_dimension_numbers<[1], [0], [0], [1], [0, 0, 1, 1], [], []>} : vector<128x128xf32>, vector<128x128xf32>, vector<128x128xf32> -> vector<128x128xf32>
    %c0_38 = arith.constant 0 : index
    %c0_39 = arith.constant 0 : index
    %c0_40 = arith.constant 0 : index
    %37 = vector.load %arg18[%c0_38, %c0_39, %c0_40] : memref<6x128x128xf32, #tpu.memory_space<vmem>>, vector<1x128x128xf32>
    %38 = vector.shape_cast %37 : vector<1x128x128xf32> to vector<128x128xf32>
    %cst_41 = arith.constant dense<0.000000e+00> : vector<128x128xf32>
    %39 = tpu.matmul %0, %38, %cst_41 {dimension_numbers = #tpu.dot_dimension_numbers<[1], [0], [0], [1], [0, 0, 1, 1], [], []>} : vector<128x128xf32>, vector<128x128xf32>, vector<128x128xf32> -> vector<128x128xf32>
    %c0_42 = arith.constant 0 : index
    %c0_43 = arith.constant 0 : index
    %c0_44 = arith.constant 0 : index
    %40 = vector.load %arg19[%c0_42, %c0_43, %c0_44] : memref<6x128x128xf32, #tpu.memory_space<vmem>>, vector<1x128x128xf32>
    %41 = vector.shape_cast %40 : vector<1x128x128xf32> to vector<128x128xf32>
    %cst_45 = arith.constant dense<0.000000e+00> : vector<128x128xf32>
    %42 = tpu.matmul %36, %41, %cst_45 {dimension_numbers = #tpu.dot_dimension_numbers<[1], [0], [0], [1], [0, 0, 1, 1], [], []>} : vector<128x128xf32>, vector<128x128xf32>, vector<128x128xf32> -> vector<128x128xf32>
    %43 = arith.addf %39, %42 : vector<128x128xf32>
    %c0_46 = arith.constant 0 : index
    %c0_47 = arith.constant 0 : index
    %44 = vector.load %arg20[%c0_46, %c0_47] : memref<6x128xf32, #tpu.memory_space<vmem>>, vector<1x128xf32>
    %45 = vector.broadcast %44 : vector<1x128xf32> to vector<128x128xf32>
    %46 = arith.addf %43, %45 : vector<128x128xf32>
    %cst_48 = arith.constant 0.000000e+00 : f32
    %47 = vector.broadcast %cst_48 : f32 to vector<128x128xf32>
    %48 = arith.maximumf %46, %47 : vector<128x128xf32>
    %c0_49 = arith.constant 0 : index
    %c0_50 = arith.constant 0 : index
    %c0_51 = arith.constant 0 : index
    %49 = vector.load %arg21[%c0_49, %c0_50, %c0_51] : memref<6x128x128xf32, #tpu.memory_space<vmem>>, vector<1x128x128xf32>
    %50 = vector.shape_cast %49 : vector<1x128x128xf32> to vector<128x128xf32>
    %cst_52 = arith.constant dense<0.000000e+00> : vector<128x128xf32>
    %51 = tpu.matmul %48, %50, %cst_52 {dimension_numbers = #tpu.dot_dimension_numbers<[1], [0], [0], [1], [0, 0, 1, 1], [], []>} : vector<128x128xf32>, vector<128x128xf32>, vector<128x128xf32> -> vector<128x128xf32>
    %c0_53 = arith.constant 0 : index
    %c0_54 = arith.constant 0 : index
    %52 = vector.load %arg22[%c0_53, %c0_54] : memref<6x128xf32, #tpu.memory_space<vmem>>, vector<1x128xf32>
    %53 = vector.broadcast %52 : vector<1x128xf32> to vector<128x128xf32>
    %54 = arith.addf %51, %53 : vector<128x128xf32>
    %55 = vector.broadcast %9 : vector<128x1xf32> to vector<128x128xf32>
    %56 = arith.mulf %54, %55 : vector<128x128xf32>
    %c1 = arith.constant 1 : index
    %c0_55 = arith.constant 0 : index
    %c0_56 = arith.constant 0 : index
    %57 = vector.load %arg11[%c1, %c0_55, %c0_56] : memref<6x128x128xf32, #tpu.memory_space<vmem>>, vector<1x128x128xf32>
    %58 = vector.shape_cast %57 : vector<1x128x128xf32> to vector<128x128xf32>
    %cst_57 = arith.constant dense<0.000000e+00> : vector<128x128xf32>
    %59 = tpu.matmul %56, %58, %cst_57 {dimension_numbers = #tpu.dot_dimension_numbers<[1], [0], [0], [1], [0, 0, 1, 1], [], []>} : vector<128x128xf32>, vector<128x128xf32>, vector<128x128xf32> -> vector<128x128xf32>
    %c1_58 = arith.constant 1 : index
    %c0_59 = arith.constant 0 : index
    %c0_60 = arith.constant 0 : index
    %60 = vector.load %arg12[%c1_58, %c0_59, %c0_60] : memref<6x128x128xf32, #tpu.memory_space<vmem>>, vector<1x128x128xf32>
    %61 = vector.shape_cast %60 : vector<1x128x128xf32> to vector<128x128xf32>
    %cst_61 = arith.constant dense<0.000000e+00> : vector<128x128xf32>
    %62 = tpu.matmul %56, %61, %cst_61 {dimension_numbers = #tpu.dot_dimension_numbers<[1], [0], [0], [1], [0, 0, 1, 1], [], []>} : vector<128x128xf32>, vector<128x128xf32>, vector<128x128xf32> -> vector<128x128xf32>
    %cst_62 = arith.constant dense<0.000000e+00> : vector<128x128xf32>
    %63 = tpu.matmul %5, %59, %cst_62 {dimension_numbers = #tpu.dot_dimension_numbers<[1], [0], [0], [1], [0, 0, 1, 1], [], []>} : vector<128x128xf32>, vector<128x128xf32>, vector<128x128xf32> -> vector<128x128xf32>
    %cst_63 = arith.constant dense<0.000000e+00> : vector<128x128xf32>
    %64 = tpu.matmul %3, %62, %cst_63 {dimension_numbers = #tpu.dot_dimension_numbers<[1], [0], [0], [1], [0, 0, 1, 1], [], []>} : vector<128x128xf32>, vector<128x128xf32>, vector<128x128xf32> -> vector<128x128xf32>
    %65 = arith.addf %63, %64 : vector<128x128xf32>
    %c1_64 = arith.constant 1 : index
    %c0_65 = arith.constant 0 : index
    %c0_66 = arith.constant 0 : index
    %66 = vector.load %arg13[%c1_64, %c0_65, %c0_66] : memref<6x128x128xf32, #tpu.memory_space<vmem>>, vector<1x128x128xf32>
    %67 = vector.shape_cast %66 : vector<1x128x128xf32> to vector<128x128xf32>
    %cst_67 = arith.constant dense<0.000000e+00> : vector<128x128xf32>
    %68 = tpu.matmul %35, %67, %cst_67 {dimension_numbers = #tpu.dot_dimension_numbers<[1], [0], [0], [1], [0, 0, 1, 1], [], []>} : vector<128x128xf32>, vector<128x128xf32>, vector<128x128xf32> -> vector<128x128xf32>
    %69 = arith.addf %65, %68 : vector<128x128xf32>
    %c1_68 = arith.constant 1 : index
    %c0_69 = arith.constant 0 : index
    %70 = vector.load %arg15[%c1_68, %c0_69] : memref<6x128xf32, #tpu.memory_space<vmem>>, vector<1x128xf32>
    %71 = vector.broadcast %70 : vector<1x128xf32> to vector<128x128xf32>
    %72 = arith.addf %69, %71 : vector<128x128xf32>
    %cst_70 = arith.constant 0.000000e+00 : f32
    %73 = vector.broadcast %cst_70 : f32 to vector<128x128xf32>
    %74 = arith.maximumf %72, %73 : vector<128x128xf32>
    %c1_71 = arith.constant 1 : index
    %c0_72 = arith.constant 0 : index
    %c0_73 = arith.constant 0 : index
    %75 = vector.load %arg16[%c1_71, %c0_72, %c0_73] : memref<6x128x128xf32, #tpu.memory_space<vmem>>, vector<1x128x128xf32>
    %76 = vector.shape_cast %75 : vector<1x128x128xf32> to vector<128x128xf32>
    %cst_74 = arith.constant dense<0.000000e+00> : vector<128x128xf32>
    %77 = tpu.matmul %74, %76, %cst_74 {dimension_numbers = #tpu.dot_dimension_numbers<[1], [0], [0], [1], [0, 0, 1, 1], [], []>} : vector<128x128xf32>, vector<128x128xf32>, vector<128x128xf32> -> vector<128x128xf32>
    %c1_75 = arith.constant 1 : index
    %c0_76 = arith.constant 0 : index
    %78 = vector.load %arg17[%c1_75, %c0_76] : memref<6x128xf32, #tpu.memory_space<vmem>>, vector<1x128xf32>
    %79 = vector.broadcast %78 : vector<1x128xf32> to vector<128x128xf32>
    %80 = arith.addf %77, %79 : vector<128x128xf32>
    %81 = vector.broadcast %8 : vector<128x1xf32> to vector<128x128xf32>
    %82 = arith.mulf %80, %81 : vector<128x128xf32>
    %cst_77 = arith.constant dense<0.000000e+00> : vector<128x128xf32>
    %83 = tpu.matmul %7, %82, %cst_77 {dimension_numbers = #tpu.dot_dimension_numbers<[1], [0], [0], [1], [0, 0, 1, 1], [], []>} : vector<128x128xf32>, vector<128x128xf32>, vector<128x128xf32> -> vector<128x128xf32>
    %c1_78 = arith.constant 1 : index
    %c0_79 = arith.constant 0 : index
    %c0_80 = arith.constant 0 : index
    %84 = vector.load %arg18[%c1_78, %c0_79, %c0_80] : memref<6x128x128xf32, #tpu.memory_space<vmem>>, vector<1x128x128xf32>
    %85 = vector.shape_cast %84 : vector<1x128x128xf32> to vector<128x128xf32>
    %cst_81 = arith.constant dense<0.000000e+00> : vector<128x128xf32>
    %86 = tpu.matmul %56, %85, %cst_81 {dimension_numbers = #tpu.dot_dimension_numbers<[1], [0], [0], [1], [0, 0, 1, 1], [], []>} : vector<128x128xf32>, vector<128x128xf32>, vector<128x128xf32> -> vector<128x128xf32>
    %c1_82 = arith.constant 1 : index
    %c0_83 = arith.constant 0 : index
    %c0_84 = arith.constant 0 : index
    %87 = vector.load %arg19[%c1_82, %c0_83, %c0_84] : memref<6x128x128xf32, #tpu.memory_space<vmem>>, vector<1x128x128xf32>
    %88 = vector.shape_cast %87 : vector<1x128x128xf32> to vector<128x128xf32>
    %cst_85 = arith.constant dense<0.000000e+00> : vector<128x128xf32>
    %89 = tpu.matmul %83, %88, %cst_85 {dimension_numbers = #tpu.dot_dimension_numbers<[1], [0], [0], [1], [0, 0, 1, 1], [], []>} : vector<128x128xf32>, vector<128x128xf32>, vector<128x128xf32> -> vector<128x128xf32>
    %90 = arith.addf %86, %89 : vector<128x128xf32>
    %c1_86 = arith.constant 1 : index
    %c0_87 = arith.constant 0 : index
    %91 = vector.load %arg20[%c1_86, %c0_87] : memref<6x128xf32, #tpu.memory_space<vmem>>, vector<1x128xf32>
    %92 = vector.broadcast %91 : vector<1x128xf32> to vector<128x128xf32>
    %93 = arith.addf %90, %92 : vector<128x128xf32>
    %cst_88 = arith.constant 0.000000e+00 : f32
    %94 = vector.broadcast %cst_88 : f32 to vector<128x128xf32>
    %95 = arith.maximumf %93, %94 : vector<128x128xf32>
    %c1_89 = arith.constant 1 : index
    %c0_90 = arith.constant 0 : index
    %c0_91 = arith.constant 0 : index
    %96 = vector.load %arg21[%c1_89, %c0_90, %c0_91] : memref<6x128x128xf32, #tpu.memory_space<vmem>>, vector<1x128x128xf32>
    %97 = vector.shape_cast %96 : vector<1x128x128xf32> to vector<128x128xf32>
    %cst_92 = arith.constant dense<0.000000e+00> : vector<128x128xf32>
    %98 = tpu.matmul %95, %97, %cst_92 {dimension_numbers = #tpu.dot_dimension_numbers<[1], [0], [0], [1], [0, 0, 1, 1], [], []>} : vector<128x128xf32>, vector<128x128xf32>, vector<128x128xf32> -> vector<128x128xf32>
    %c1_93 = arith.constant 1 : index
    %c0_94 = arith.constant 0 : index
    %99 = vector.load %arg22[%c1_93, %c0_94] : memref<6x128xf32, #tpu.memory_space<vmem>>, vector<1x128xf32>
    %100 = vector.broadcast %99 : vector<1x128xf32> to vector<128x128xf32>
    %101 = arith.addf %98, %100 : vector<128x128xf32>
    %102 = vector.broadcast %9 : vector<128x1xf32> to vector<128x128xf32>
    %103 = arith.mulf %101, %102 : vector<128x128xf32>
    %c2 = arith.constant 2 : index
    %c0_95 = arith.constant 0 : index
    %c0_96 = arith.constant 0 : index
    %104 = vector.load %arg11[%c2, %c0_95, %c0_96] : memref<6x128x128xf32, #tpu.memory_space<vmem>>, vector<1x128x128xf32>
    %105 = vector.shape_cast %104 : vector<1x128x128xf32> to vector<128x128xf32>
    %cst_97 = arith.constant dense<0.000000e+00> : vector<128x128xf32>
    %106 = tpu.matmul %103, %105, %cst_97 {dimension_numbers = #tpu.dot_dimension_numbers<[1], [0], [0], [1], [0, 0, 1, 1], [], []>} : vector<128x128xf32>, vector<128x128xf32>, vector<128x128xf32> -> vector<128x128xf32>
    %c2_98 = arith.constant 2 : index
    %c0_99 = arith.constant 0 : index
    %c0_100 = arith.constant 0 : index
    %107 = vector.load %arg12[%c2_98, %c0_99, %c0_100] : memref<6x128x128xf32, #tpu.memory_space<vmem>>, vector<1x128x128xf32>
    %108 = vector.shape_cast %107 : vector<1x128x128xf32> to vector<128x128xf32>
    %cst_101 = arith.constant dense<0.000000e+00> : vector<128x128xf32>
    %109 = tpu.matmul %103, %108, %cst_101 {dimension_numbers = #tpu.dot_dimension_numbers<[1], [0], [0], [1], [0, 0, 1, 1], [], []>} : vector<128x128xf32>, vector<128x128xf32>, vector<128x128xf32> -> vector<128x128xf32>
    %cst_102 = arith.constant dense<0.000000e+00> : vector<128x128xf32>
    %110 = tpu.matmul %3, %106, %cst_102 {dimension_numbers = #tpu.dot_dimension_numbers<[1], [0], [0], [1], [0, 0, 1, 1], [], []>} : vector<128x128xf32>, vector<128x128xf32>, vector<128x128xf32> -> vector<128x128xf32>
    %cst_103 = arith.constant dense<0.000000e+00> : vector<128x128xf32>
    %111 = tpu.matmul %5, %109, %cst_103 {dimension_numbers = #tpu.dot_dimension_numbers<[1], [0], [0], [1], [0, 0, 1, 1], [], []>} : vector<128x128xf32>, vector<128x128xf32>, vector<128x128xf32> -> vector<128x128xf32>
    %112 = arith.addf %110, %111 : vector<128x128xf32>
    %c2_104 = arith.constant 2 : index
    %c0_105 = arith.constant 0 : index
    %c0_106 = arith.constant 0 : index
    %113 = vector.load %arg13[%c2_104, %c0_105, %c0_106] : memref<6x128x128xf32, #tpu.memory_space<vmem>>, vector<1x128x128xf32>
    %114 = vector.shape_cast %113 : vector<1x128x128xf32> to vector<128x128xf32>
    %cst_107 = arith.constant dense<0.000000e+00> : vector<128x128xf32>
    %115 = tpu.matmul %82, %114, %cst_107 {dimension_numbers = #tpu.dot_dimension_numbers<[1], [0], [0], [1], [0, 0, 1, 1], [], []>} : vector<128x128xf32>, vector<128x128xf32>, vector<128x128xf32> -> vector<128x128xf32>
    %116 = arith.addf %112, %115 : vector<128x128xf32>
    %c2_108 = arith.constant 2 : index
    %c0_109 = arith.constant 0 : index
    %117 = vector.load %arg15[%c2_108, %c0_109] : memref<6x128xf32, #tpu.memory_space<vmem>>, vector<1x128xf32>
    %118 = vector.broadcast %117 : vector<1x128xf32> to vector<128x128xf32>
    %119 = arith.addf %116, %118 : vector<128x128xf32>
    %c0_110 = arith.constant 0 : index
    %c0_111 = arith.constant 0 : index
    %c0_112 = arith.constant 0 : index
    %120 = vector.load %arg14[%c0_110, %c0_111, %c0_112] : memref<2x128x128xf32, #tpu.memory_space<vmem>>, vector<1x128x128xf32>
    %121 = vector.shape_cast %120 : vector<1x128x128xf32> to vector<128x128xf32>
    %cst_113 = arith.constant dense<0.000000e+00> : vector<128x128xf32>
    %122 = tpu.matmul %1, %121, %cst_113 {dimension_numbers = #tpu.dot_dimension_numbers<[1], [0], [0], [1], [0, 0, 1, 1], [], []>} : vector<128x128xf32>, vector<128x128xf32>, vector<128x128xf32> -> vector<128x128xf32>
    %123 = arith.addf %119, %122 : vector<128x128xf32>
    %cst_114 = arith.constant 0.000000e+00 : f32
    %124 = vector.broadcast %cst_114 : f32 to vector<128x128xf32>
    %125 = arith.maximumf %123, %124 : vector<128x128xf32>
    %c2_115 = arith.constant 2 : index
    %c0_116 = arith.constant 0 : index
    %c0_117 = arith.constant 0 : index
    %126 = vector.load %arg16[%c2_115, %c0_116, %c0_117] : memref<6x128x128xf32, #tpu.memory_space<vmem>>, vector<1x128x128xf32>
    %127 = vector.shape_cast %126 : vector<1x128x128xf32> to vector<128x128xf32>
    %cst_118 = arith.constant dense<0.000000e+00> : vector<128x128xf32>
    %128 = tpu.matmul %125, %127, %cst_118 {dimension_numbers = #tpu.dot_dimension_numbers<[1], [0], [0], [1], [0, 0, 1, 1], [], []>} : vector<128x128xf32>, vector<128x128xf32>, vector<128x128xf32> -> vector<128x128xf32>
    %c2_119 = arith.constant 2 : index
    %c0_120 = arith.constant 0 : index
    %129 = vector.load %arg17[%c2_119, %c0_120] : memref<6x128xf32, #tpu.memory_space<vmem>>, vector<1x128xf32>
    %130 = vector.broadcast %129 : vector<1x128xf32> to vector<128x128xf32>
    %131 = arith.addf %128, %130 : vector<128x128xf32>
    %132 = vector.broadcast %8 : vector<128x1xf32> to vector<128x128xf32>
    %133 = arith.mulf %131, %132 : vector<128x128xf32>
    %cst_121 = arith.constant dense<0.000000e+00> : vector<128x128xf32>
    %134 = tpu.matmul %6, %133, %cst_121 {dimension_numbers = #tpu.dot_dimension_numbers<[1], [0], [0], [1], [0, 0, 1, 1], [], []>} : vector<128x128xf32>, vector<128x128xf32>, vector<128x128xf32> -> vector<128x128xf32>
    %c2_122 = arith.constant 2 : index
    %c0_123 = arith.constant 0 : index
    %c0_124 = arith.constant 0 : index
    %135 = vector.load %arg18[%c2_122, %c0_123, %c0_124] : memref<6x128x128xf32, #tpu.memory_space<vmem>>, vector<1x128x128xf32>
    %136 = vector.shape_cast %135 : vector<1x128x128xf32> to vector<128x128xf32>
    %cst_125 = arith.constant dense<0.000000e+00> : vector<128x128xf32>
    %137 = tpu.matmul %103, %136, %cst_125 {dimension_numbers = #tpu.dot_dimension_numbers<[1], [0], [0], [1], [0, 0, 1, 1], [], []>} : vector<128x128xf32>, vector<128x128xf32>, vector<128x128xf32> -> vector<128x128xf32>
    %c2_126 = arith.constant 2 : index
    %c0_127 = arith.constant 0 : index
    %c0_128 = arith.constant 0 : index
    %138 = vector.load %arg19[%c2_126, %c0_127, %c0_128] : memref<6x128x128xf32, #tpu.memory_space<vmem>>, vector<1x128x128xf32>
    %139 = vector.shape_cast %138 : vector<1x128x128xf32> to vector<128x128xf32>
    %cst_129 = arith.constant dense<0.000000e+00> : vector<128x128xf32>
    %140 = tpu.matmul %134, %139, %cst_129 {dimension_numbers = #tpu.dot_dimension_numbers<[1], [0], [0], [1], [0, 0, 1, 1], [], []>} : vector<128x128xf32>, vector<128x128xf32>, vector<128x128xf32> -> vector<128x128xf32>
    %141 = arith.addf %137, %140 : vector<128x128xf32>
    %c2_130 = arith.constant 2 : index
    %c0_131 = arith.constant 0 : index
    %142 = vector.load %arg20[%c2_130, %c0_131] : memref<6x128xf32, #tpu.memory_space<vmem>>, vector<1x128xf32>
    %143 = vector.broadcast %142 : vector<1x128xf32> to vector<128x128xf32>
    %144 = arith.addf %141, %143 : vector<128x128xf32>
    %cst_132 = arith.constant 0.000000e+00 : f32
    %145 = vector.broadcast %cst_132 : f32 to vector<128x128xf32>
    %146 = arith.maximumf %144, %145 : vector<128x128xf32>
    %c2_133 = arith.constant 2 : index
    %c0_134 = arith.constant 0 : index
    %c0_135 = arith.constant 0 : index
    %147 = vector.load %arg21[%c2_133, %c0_134, %c0_135] : memref<6x128x128xf32, #tpu.memory_space<vmem>>, vector<1x128x128xf32>
    %148 = vector.shape_cast %147 : vector<1x128x128xf32> to vector<128x128xf32>
    %cst_136 = arith.constant dense<0.000000e+00> : vector<128x128xf32>
    %149 = tpu.matmul %146, %148, %cst_136 {dimension_numbers = #tpu.dot_dimension_numbers<[1], [0], [0], [1], [0, 0, 1, 1], [], []>} : vector<128x128xf32>, vector<128x128xf32>, vector<128x128xf32> -> vector<128x128xf32>
    %c2_137 = arith.constant 2 : index
    %c0_138 = arith.constant 0 : index
    %150 = vector.load %arg22[%c2_137, %c0_138] : memref<6x128xf32, #tpu.memory_space<vmem>>, vector<1x128xf32>
    %151 = vector.broadcast %150 : vector<1x128xf32> to vector<128x128xf32>
    %152 = arith.addf %149, %151 : vector<128x128xf32>
    %153 = vector.broadcast %9 : vector<128x1xf32> to vector<128x128xf32>
    %154 = arith.mulf %152, %153 : vector<128x128xf32>
    %c3 = arith.constant 3 : index
    %c0_139 = arith.constant 0 : index
    %c0_140 = arith.constant 0 : index
    %155 = vector.load %arg11[%c3, %c0_139, %c0_140] : memref<6x128x128xf32, #tpu.memory_space<vmem>>, vector<1x128x128xf32>
    %156 = vector.shape_cast %155 : vector<1x128x128xf32> to vector<128x128xf32>
    %cst_141 = arith.constant dense<0.000000e+00> : vector<128x128xf32>
    %157 = tpu.matmul %154, %156, %cst_141 {dimension_numbers = #tpu.dot_dimension_numbers<[1], [0], [0], [1], [0, 0, 1, 1], [], []>} : vector<128x128xf32>, vector<128x128xf32>, vector<128x128xf32> -> vector<128x128xf32>
    %c3_142 = arith.constant 3 : index
    %c0_143 = arith.constant 0 : index
    %c0_144 = arith.constant 0 : index
    %158 = vector.load %arg12[%c3_142, %c0_143, %c0_144] : memref<6x128x128xf32, #tpu.memory_space<vmem>>, vector<1x128x128xf32>
    %159 = vector.shape_cast %158 : vector<1x128x128xf32> to vector<128x128xf32>
    %cst_145 = arith.constant dense<0.000000e+00> : vector<128x128xf32>
    %160 = tpu.matmul %154, %159, %cst_145 {dimension_numbers = #tpu.dot_dimension_numbers<[1], [0], [0], [1], [0, 0, 1, 1], [], []>} : vector<128x128xf32>, vector<128x128xf32>, vector<128x128xf32> -> vector<128x128xf32>
    %cst_146 = arith.constant dense<0.000000e+00> : vector<128x128xf32>
    %161 = tpu.matmul %5, %157, %cst_146 {dimension_numbers = #tpu.dot_dimension_numbers<[1], [0], [0], [1], [0, 0, 1, 1], [], []>} : vector<128x128xf32>, vector<128x128xf32>, vector<128x128xf32> -> vector<128x128xf32>
    %cst_147 = arith.constant dense<0.000000e+00> : vector<128x128xf32>
    %162 = tpu.matmul %3, %160, %cst_147 {dimension_numbers = #tpu.dot_dimension_numbers<[1], [0], [0], [1], [0, 0, 1, 1], [], []>} : vector<128x128xf32>, vector<128x128xf32>, vector<128x128xf32> -> vector<128x128xf32>
    %163 = arith.addf %161, %162 : vector<128x128xf32>
    %c3_148 = arith.constant 3 : index
    %c0_149 = arith.constant 0 : index
    %c0_150 = arith.constant 0 : index
    %164 = vector.load %arg13[%c3_148, %c0_149, %c0_150] : memref<6x128x128xf32, #tpu.memory_space<vmem>>, vector<1x128x128xf32>
    %165 = vector.shape_cast %164 : vector<1x128x128xf32> to vector<128x128xf32>
    %cst_151 = arith.constant dense<0.000000e+00> : vector<128x128xf32>
    %166 = tpu.matmul %133, %165, %cst_151 {dimension_numbers = #tpu.dot_dimension_numbers<[1], [0], [0], [1], [0, 0, 1, 1], [], []>} : vector<128x128xf32>, vector<128x128xf32>, vector<128x128xf32> -> vector<128x128xf32>
    %167 = arith.addf %163, %166 : vector<128x128xf32>
    %c3_152 = arith.constant 3 : index
    %c0_153 = arith.constant 0 : index
    %168 = vector.load %arg15[%c3_152, %c0_153] : memref<6x128xf32, #tpu.memory_space<vmem>>, vector<1x128xf32>
    %169 = vector.broadcast %168 : vector<1x128xf32> to vector<128x128xf32>
    %170 = arith.addf %167, %169 : vector<128x128xf32>
    %cst_154 = arith.constant 0.000000e+00 : f32
    %171 = vector.broadcast %cst_154 : f32 to vector<128x128xf32>
    %172 = arith.maximumf %170, %171 : vector<128x128xf32>
    %c3_155 = arith.constant 3 : index
    %c0_156 = arith.constant 0 : index
    %c0_157 = arith.constant 0 : index
    %173 = vector.load %arg16[%c3_155, %c0_156, %c0_157] : memref<6x128x128xf32, #tpu.memory_space<vmem>>, vector<1x128x128xf32>
    %174 = vector.shape_cast %173 : vector<1x128x128xf32> to vector<128x128xf32>
    %cst_158 = arith.constant dense<0.000000e+00> : vector<128x128xf32>
    %175 = tpu.matmul %172, %174, %cst_158 {dimension_numbers = #tpu.dot_dimension_numbers<[1], [0], [0], [1], [0, 0, 1, 1], [], []>} : vector<128x128xf32>, vector<128x128xf32>, vector<128x128xf32> -> vector<128x128xf32>
    %c3_159 = arith.constant 3 : index
    %c0_160 = arith.constant 0 : index
    %176 = vector.load %arg17[%c3_159, %c0_160] : memref<6x128xf32, #tpu.memory_space<vmem>>, vector<1x128xf32>
    %177 = vector.broadcast %176 : vector<1x128xf32> to vector<128x128xf32>
    %178 = arith.addf %175, %177 : vector<128x128xf32>
    %179 = vector.broadcast %8 : vector<128x1xf32> to vector<128x128xf32>
    %180 = arith.mulf %178, %179 : vector<128x128xf32>
    %cst_161 = arith.constant dense<0.000000e+00> : vector<128x128xf32>
    %181 = tpu.matmul %7, %180, %cst_161 {dimension_numbers = #tpu.dot_dimension_numbers<[1], [0], [0], [1], [0, 0, 1, 1], [], []>} : vector<128x128xf32>, vector<128x128xf32>, vector<128x128xf32> -> vector<128x128xf32>
    %c3_162 = arith.constant 3 : index
    %c0_163 = arith.constant 0 : index
    %c0_164 = arith.constant 0 : index
    %182 = vector.load %arg18[%c3_162, %c0_163, %c0_164] : memref<6x128x128xf32, #tpu.memory_space<vmem>>, vector<1x128x128xf32>
    %183 = vector.shape_cast %182 : vector<1x128x128xf32> to vector<128x128xf32>
    %cst_165 = arith.constant dense<0.000000e+00> : vector<128x128xf32>
    %184 = tpu.matmul %154, %183, %cst_165 {dimension_numbers = #tpu.dot_dimension_numbers<[1], [0], [0], [1], [0, 0, 1, 1], [], []>} : vector<128x128xf32>, vector<128x128xf32>, vector<128x128xf32> -> vector<128x128xf32>
    %c3_166 = arith.constant 3 : index
    %c0_167 = arith.constant 0 : index
    %c0_168 = arith.constant 0 : index
    %185 = vector.load %arg19[%c3_166, %c0_167, %c0_168] : memref<6x128x128xf32, #tpu.memory_space<vmem>>, vector<1x128x128xf32>
    %186 = vector.shape_cast %185 : vector<1x128x128xf32> to vector<128x128xf32>
    %cst_169 = arith.constant dense<0.000000e+00> : vector<128x128xf32>
    %187 = tpu.matmul %181, %186, %cst_169 {dimension_numbers = #tpu.dot_dimension_numbers<[1], [0], [0], [1], [0, 0, 1, 1], [], []>} : vector<128x128xf32>, vector<128x128xf32>, vector<128x128xf32> -> vector<128x128xf32>
    %188 = arith.addf %184, %187 : vector<128x128xf32>
    %c3_170 = arith.constant 3 : index
    %c0_171 = arith.constant 0 : index
    %189 = vector.load %arg20[%c3_170, %c0_171] : memref<6x128xf32, #tpu.memory_space<vmem>>, vector<1x128xf32>
    %190 = vector.broadcast %189 : vector<1x128xf32> to vector<128x128xf32>
    %191 = arith.addf %188, %190 : vector<128x128xf32>
    %cst_172 = arith.constant 0.000000e+00 : f32
    %192 = vector.broadcast %cst_172 : f32 to vector<128x128xf32>
    %193 = arith.maximumf %191, %192 : vector<128x128xf32>
    %c3_173 = arith.constant 3 : index
    %c0_174 = arith.constant 0 : index
    %c0_175 = arith.constant 0 : index
    %194 = vector.load %arg21[%c3_173, %c0_174, %c0_175] : memref<6x128x128xf32, #tpu.memory_space<vmem>>, vector<1x128x128xf32>
    %195 = vector.shape_cast %194 : vector<1x128x128xf32> to vector<128x128xf32>
    %cst_176 = arith.constant dense<0.000000e+00> : vector<128x128xf32>
    %196 = tpu.matmul %193, %195, %cst_176 {dimension_numbers = #tpu.dot_dimension_numbers<[1], [0], [0], [1], [0, 0, 1, 1], [], []>} : vector<128x128xf32>, vector<128x128xf32>, vector<128x128xf32> -> vector<128x128xf32>
    %c3_177 = arith.constant 3 : index
    %c0_178 = arith.constant 0 : index
    %197 = vector.load %arg22[%c3_177, %c0_178] : memref<6x128xf32, #tpu.memory_space<vmem>>, vector<1x128xf32>
    %198 = vector.broadcast %197 : vector<1x128xf32> to vector<128x128xf32>
    %199 = arith.addf %196, %198 : vector<128x128xf32>
    %200 = vector.broadcast %9 : vector<128x1xf32> to vector<128x128xf32>
    %201 = arith.mulf %199, %200 : vector<128x128xf32>
    %c4 = arith.constant 4 : index
    %c0_179 = arith.constant 0 : index
    %c0_180 = arith.constant 0 : index
    %202 = vector.load %arg11[%c4, %c0_179, %c0_180] : memref<6x128x128xf32, #tpu.memory_space<vmem>>, vector<1x128x128xf32>
    %203 = vector.shape_cast %202 : vector<1x128x128xf32> to vector<128x128xf32>
    %cst_181 = arith.constant dense<0.000000e+00> : vector<128x128xf32>
    %204 = tpu.matmul %201, %203, %cst_181 {dimension_numbers = #tpu.dot_dimension_numbers<[1], [0], [0], [1], [0, 0, 1, 1], [], []>} : vector<128x128xf32>, vector<128x128xf32>, vector<128x128xf32> -> vector<128x128xf32>
    %c4_182 = arith.constant 4 : index
    %c0_183 = arith.constant 0 : index
    %c0_184 = arith.constant 0 : index
    %205 = vector.load %arg12[%c4_182, %c0_183, %c0_184] : memref<6x128x128xf32, #tpu.memory_space<vmem>>, vector<1x128x128xf32>
    %206 = vector.shape_cast %205 : vector<1x128x128xf32> to vector<128x128xf32>
    %cst_185 = arith.constant dense<0.000000e+00> : vector<128x128xf32>
    %207 = tpu.matmul %201, %206, %cst_185 {dimension_numbers = #tpu.dot_dimension_numbers<[1], [0], [0], [1], [0, 0, 1, 1], [], []>} : vector<128x128xf32>, vector<128x128xf32>, vector<128x128xf32> -> vector<128x128xf32>
    %cst_186 = arith.constant dense<0.000000e+00> : vector<128x128xf32>
    %208 = tpu.matmul %3, %204, %cst_186 {dimension_numbers = #tpu.dot_dimension_numbers<[1], [0], [0], [1], [0, 0, 1, 1], [], []>} : vector<128x128xf32>, vector<128x128xf32>, vector<128x128xf32> -> vector<128x128xf32>
    %cst_187 = arith.constant dense<0.000000e+00> : vector<128x128xf32>
    %209 = tpu.matmul %5, %207, %cst_187 {dimension_numbers = #tpu.dot_dimension_numbers<[1], [0], [0], [1], [0, 0, 1, 1], [], []>} : vector<128x128xf32>, vector<128x128xf32>, vector<128x128xf32> -> vector<128x128xf32>
    %210 = arith.addf %208, %209 : vector<128x128xf32>
    %c4_188 = arith.constant 4 : index
    %c0_189 = arith.constant 0 : index
    %c0_190 = arith.constant 0 : index
    %211 = vector.load %arg13[%c4_188, %c0_189, %c0_190] : memref<6x128x128xf32, #tpu.memory_space<vmem>>, vector<1x128x128xf32>
    %212 = vector.shape_cast %211 : vector<1x128x128xf32> to vector<128x128xf32>
    %cst_191 = arith.constant dense<0.000000e+00> : vector<128x128xf32>
    %213 = tpu.matmul %180, %212, %cst_191 {dimension_numbers = #tpu.dot_dimension_numbers<[1], [0], [0], [1], [0, 0, 1, 1], [], []>} : vector<128x128xf32>, vector<128x128xf32>, vector<128x128xf32> -> vector<128x128xf32>
    %214 = arith.addf %210, %213 : vector<128x128xf32>
    %c4_192 = arith.constant 4 : index
    %c0_193 = arith.constant 0 : index
    %215 = vector.load %arg15[%c4_192, %c0_193] : memref<6x128xf32, #tpu.memory_space<vmem>>, vector<1x128xf32>
    %216 = vector.broadcast %215 : vector<1x128xf32> to vector<128x128xf32>
    %217 = arith.addf %214, %216 : vector<128x128xf32>
    %c1_194 = arith.constant 1 : index
    %c0_195 = arith.constant 0 : index
    %c0_196 = arith.constant 0 : index
    %218 = vector.load %arg14[%c1_194, %c0_195, %c0_196] : memref<2x128x128xf32, #tpu.memory_space<vmem>>, vector<1x128x128xf32>
    %219 = vector.shape_cast %218 : vector<1x128x128xf32> to vector<128x128xf32>
    %cst_197 = arith.constant dense<0.000000e+00> : vector<128x128xf32>
    %220 = tpu.matmul %1, %219, %cst_197 {dimension_numbers = #tpu.dot_dimension_numbers<[1], [0], [0], [1], [0, 0, 1, 1], [], []>} : vector<128x128xf32>, vector<128x128xf32>, vector<128x128xf32> -> vector<128x128xf32>
    %221 = arith.addf %217, %220 : vector<128x128xf32>
    %cst_198 = arith.constant 0.000000e+00 : f32
    %222 = vector.broadcast %cst_198 : f32 to vector<128x128xf32>
    %223 = arith.maximumf %221, %222 : vector<128x128xf32>
    %c4_199 = arith.constant 4 : index
    %c0_200 = arith.constant 0 : index
    %c0_201 = arith.constant 0 : index
    %224 = vector.load %arg16[%c4_199, %c0_200, %c0_201] : memref<6x128x128xf32, #tpu.memory_space<vmem>>, vector<1x128x128xf32>
    %225 = vector.shape_cast %224 : vector<1x128x128xf32> to vector<128x128xf32>
    %cst_202 = arith.constant dense<0.000000e+00> : vector<128x128xf32>
    %226 = tpu.matmul %223, %225, %cst_202 {dimension_numbers = #tpu.dot_dimension_numbers<[1], [0], [0], [1], [0, 0, 1, 1], [], []>} : vector<128x128xf32>, vector<128x128xf32>, vector<128x128xf32> -> vector<128x128xf32>
    %c4_203 = arith.constant 4 : index
    %c0_204 = arith.constant 0 : index
    %227 = vector.load %arg17[%c4_203, %c0_204] : memref<6x128xf32, #tpu.memory_space<vmem>>, vector<1x128xf32>
    %228 = vector.broadcast %227 : vector<1x128xf32> to vector<128x128xf32>
    %229 = arith.addf %226, %228 : vector<128x128xf32>
    %230 = vector.broadcast %8 : vector<128x1xf32> to vector<128x128xf32>
    %231 = arith.mulf %229, %230 : vector<128x128xf32>
    %cst_205 = arith.constant dense<0.000000e+00> : vector<128x128xf32>
    %232 = tpu.matmul %6, %231, %cst_205 {dimension_numbers = #tpu.dot_dimension_numbers<[1], [0], [0], [1], [0, 0, 1, 1], [], []>} : vector<128x128xf32>, vector<128x128xf32>, vector<128x128xf32> -> vector<128x128xf32>
    %c4_206 = arith.constant 4 : index
    %c0_207 = arith.constant 0 : index
    %c0_208 = arith.constant 0 : index
    %233 = vector.load %arg18[%c4_206, %c0_207, %c0_208] : memref<6x128x128xf32, #tpu.memory_space<vmem>>, vector<1x128x128xf32>
    %234 = vector.shape_cast %233 : vector<1x128x128xf32> to vector<128x128xf32>
    %cst_209 = arith.constant dense<0.000000e+00> : vector<128x128xf32>
    %235 = tpu.matmul %201, %234, %cst_209 {dimension_numbers = #tpu.dot_dimension_numbers<[1], [0], [0], [1], [0, 0, 1, 1], [], []>} : vector<128x128xf32>, vector<128x128xf32>, vector<128x128xf32> -> vector<128x128xf32>
    %c4_210 = arith.constant 4 : index
    %c0_211 = arith.constant 0 : index
    %c0_212 = arith.constant 0 : index
    %236 = vector.load %arg19[%c4_210, %c0_211, %c0_212] : memref<6x128x128xf32, #tpu.memory_space<vmem>>, vector<1x128x128xf32>
    %237 = vector.shape_cast %236 : vector<1x128x128xf32> to vector<128x128xf32>
    %cst_213 = arith.constant dense<0.000000e+00> : vector<128x128xf32>
    %238 = tpu.matmul %232, %237, %cst_213 {dimension_numbers = #tpu.dot_dimension_numbers<[1], [0], [0], [1], [0, 0, 1, 1], [], []>} : vector<128x128xf32>, vector<128x128xf32>, vector<128x128xf32> -> vector<128x128xf32>
    %239 = arith.addf %235, %238 : vector<128x128xf32>
    %c4_214 = arith.constant 4 : index
    %c0_215 = arith.constant 0 : index
    %240 = vector.load %arg20[%c4_214, %c0_215] : memref<6x128xf32, #tpu.memory_space<vmem>>, vector<1x128xf32>
    %241 = vector.broadcast %240 : vector<1x128xf32> to vector<128x128xf32>
    %242 = arith.addf %239, %241 : vector<128x128xf32>
    %cst_216 = arith.constant 0.000000e+00 : f32
    %243 = vector.broadcast %cst_216 : f32 to vector<128x128xf32>
    %244 = arith.maximumf %242, %243 : vector<128x128xf32>
    %c4_217 = arith.constant 4 : index
    %c0_218 = arith.constant 0 : index
    %c0_219 = arith.constant 0 : index
    %245 = vector.load %arg21[%c4_217, %c0_218, %c0_219] : memref<6x128x128xf32, #tpu.memory_space<vmem>>, vector<1x128x128xf32>
    %246 = vector.shape_cast %245 : vector<1x128x128xf32> to vector<128x128xf32>
    %cst_220 = arith.constant dense<0.000000e+00> : vector<128x128xf32>
    %247 = tpu.matmul %244, %246, %cst_220 {dimension_numbers = #tpu.dot_dimension_numbers<[1], [0], [0], [1], [0, 0, 1, 1], [], []>} : vector<128x128xf32>, vector<128x128xf32>, vector<128x128xf32> -> vector<128x128xf32>
    %c4_221 = arith.constant 4 : index
    %c0_222 = arith.constant 0 : index
    %248 = vector.load %arg22[%c4_221, %c0_222] : memref<6x128xf32, #tpu.memory_space<vmem>>, vector<1x128xf32>
    %249 = vector.broadcast %248 : vector<1x128xf32> to vector<128x128xf32>
    %250 = arith.addf %247, %249 : vector<128x128xf32>
    %251 = vector.broadcast %9 : vector<128x1xf32> to vector<128x128xf32>
    %252 = arith.mulf %250, %251 : vector<128x128xf32>
    %c5 = arith.constant 5 : index
    %c0_223 = arith.constant 0 : index
    %c0_224 = arith.constant 0 : index
    %253 = vector.load %arg11[%c5, %c0_223, %c0_224] : memref<6x128x128xf32, #tpu.memory_space<vmem>>, vector<1x128x128xf32>
    %254 = vector.shape_cast %253 : vector<1x128x128xf32> to vector<128x128xf32>
    %cst_225 = arith.constant dense<0.000000e+00> : vector<128x128xf32>
    %255 = tpu.matmul %252, %254, %cst_225 {dimension_numbers = #tpu.dot_dimension_numbers<[1], [0], [0], [1], [0, 0, 1, 1], [], []>} : vector<128x128xf32>, vector<128x128xf32>, vector<128x128xf32> -> vector<128x128xf32>
    %c5_226 = arith.constant 5 : index
    %c0_227 = arith.constant 0 : index
    %c0_228 = arith.constant 0 : index
    %256 = vector.load %arg12[%c5_226, %c0_227, %c0_228] : memref<6x128x128xf32, #tpu.memory_space<vmem>>, vector<1x128x128xf32>
    %257 = vector.shape_cast %256 : vector<1x128x128xf32> to vector<128x128xf32>
    %cst_229 = arith.constant dense<0.000000e+00> : vector<128x128xf32>
    %258 = tpu.matmul %252, %257, %cst_229 {dimension_numbers = #tpu.dot_dimension_numbers<[1], [0], [0], [1], [0, 0, 1, 1], [], []>} : vector<128x128xf32>, vector<128x128xf32>, vector<128x128xf32> -> vector<128x128xf32>
    %cst_230 = arith.constant dense<0.000000e+00> : vector<128x128xf32>
    %259 = tpu.matmul %5, %255, %cst_230 {dimension_numbers = #tpu.dot_dimension_numbers<[1], [0], [0], [1], [0, 0, 1, 1], [], []>} : vector<128x128xf32>, vector<128x128xf32>, vector<128x128xf32> -> vector<128x128xf32>
    %cst_231 = arith.constant dense<0.000000e+00> : vector<128x128xf32>
    %260 = tpu.matmul %3, %258, %cst_231 {dimension_numbers = #tpu.dot_dimension_numbers<[1], [0], [0], [1], [0, 0, 1, 1], [], []>} : vector<128x128xf32>, vector<128x128xf32>, vector<128x128xf32> -> vector<128x128xf32>
    %261 = arith.addf %259, %260 : vector<128x128xf32>
    %c5_232 = arith.constant 5 : index
    %c0_233 = arith.constant 0 : index
    %c0_234 = arith.constant 0 : index
    %262 = vector.load %arg13[%c5_232, %c0_233, %c0_234] : memref<6x128x128xf32, #tpu.memory_space<vmem>>, vector<1x128x128xf32>
    %263 = vector.shape_cast %262 : vector<1x128x128xf32> to vector<128x128xf32>
    %cst_235 = arith.constant dense<0.000000e+00> : vector<128x128xf32>
    %264 = tpu.matmul %231, %263, %cst_235 {dimension_numbers = #tpu.dot_dimension_numbers<[1], [0], [0], [1], [0, 0, 1, 1], [], []>} : vector<128x128xf32>, vector<128x128xf32>, vector<128x128xf32> -> vector<128x128xf32>
    %265 = arith.addf %261, %264 : vector<128x128xf32>
    %c5_236 = arith.constant 5 : index
    %c0_237 = arith.constant 0 : index
    %266 = vector.load %arg15[%c5_236, %c0_237] : memref<6x128xf32, #tpu.memory_space<vmem>>, vector<1x128xf32>
    %267 = vector.broadcast %266 : vector<1x128xf32> to vector<128x128xf32>
    %268 = arith.addf %265, %267 : vector<128x128xf32>
    %cst_238 = arith.constant 0.000000e+00 : f32
    %269 = vector.broadcast %cst_238 : f32 to vector<128x128xf32>
    %270 = arith.maximumf %268, %269 : vector<128x128xf32>
    %c5_239 = arith.constant 5 : index
    %c0_240 = arith.constant 0 : index
    %c0_241 = arith.constant 0 : index
    %271 = vector.load %arg16[%c5_239, %c0_240, %c0_241] : memref<6x128x128xf32, #tpu.memory_space<vmem>>, vector<1x128x128xf32>
    %272 = vector.shape_cast %271 : vector<1x128x128xf32> to vector<128x128xf32>
    %cst_242 = arith.constant dense<0.000000e+00> : vector<128x128xf32>
    %273 = tpu.matmul %270, %272, %cst_242 {dimension_numbers = #tpu.dot_dimension_numbers<[1], [0], [0], [1], [0, 0, 1, 1], [], []>} : vector<128x128xf32>, vector<128x128xf32>, vector<128x128xf32> -> vector<128x128xf32>
    %c5_243 = arith.constant 5 : index
    %c0_244 = arith.constant 0 : index
    %274 = vector.load %arg17[%c5_243, %c0_244] : memref<6x128xf32, #tpu.memory_space<vmem>>, vector<1x128xf32>
    %275 = vector.broadcast %274 : vector<1x128xf32> to vector<128x128xf32>
    %276 = arith.addf %273, %275 : vector<128x128xf32>
    %277 = vector.broadcast %8 : vector<128x1xf32> to vector<128x128xf32>
    %278 = arith.mulf %276, %277 : vector<128x128xf32>
    %279 = tpu.iota {dimensions = array<i32: 1>} : vector<1x128xi32>
    %c0_i32 = arith.constant 0 : i32
    %280 = vector.broadcast %c0_i32 : i32 to vector<1x128xi32>
    %281 = arith.cmpi eq, %279, %280 : vector<1x128xi32>
    %282 = arith.extui %281 : vector<1x128xi1> to vector<1x128xi32>
    %283 = arith.sitofp %282 : vector<1x128xi32> to vector<1x128xf32>
    %cst_245 = arith.constant dense<0.000000e+00> : vector<1x128xf32>
    %284 = tpu.matmul %283, %278, %cst_245 {dimension_numbers = #tpu.dot_dimension_numbers<[1], [1], [0], [0], [0, 0, 1, 0], [], []>} : vector<1x128xf32>, vector<128x128xf32>, vector<1x128xf32> -> vector<1x128xf32>
    %cst_246 = arith.constant 0.000000e+00 : f32
    %285 = vector.broadcast %cst_246 : f32 to vector<1x128xf32>
    %286 = arith.maximumf %284, %285 : vector<1x128xf32>
    %287 = math.absf %284 : vector<1x128xf32>
    %cst_247 = arith.constant 0.000000e+00 : f32
    %288 = vector.broadcast %cst_247 : f32 to vector<1x128xf32>
    %289 = arith.subf %288, %287 : vector<1x128xf32>
    %290 = math.exp %289 : vector<1x128xf32>
    %291 = math.log1p %290 : vector<1x128xf32>
    %292 = arith.addf %286, %291 : vector<1x128xf32>
    %c0_248 = arith.constant 0 : index
    %c0_249 = arith.constant 0 : index
    %293 = vector.load %arg9[%c0_248, %c0_249] : memref<1x128xf32, #tpu.memory_space<vmem>>, vector<1x128xf32>
    %cst_250 = arith.constant 5.000000e-01 : f32
    %294 = vector.broadcast %cst_250 : f32 to vector<1x128xf32>
    %295 = arith.cmpf ogt, %293, %294 : vector<1x128xf32>
    %cst_251 = arith.constant 1.000000e-03 : f32
    %296 = vector.broadcast %cst_251 : f32 to vector<1x128xf32>
    %297 = arith.addf %292, %296 : vector<1x128xf32>
    %298 = arith.select %295, %297, %284 : vector<1x128xi1>, vector<1x128xf32>
    %c0_252 = arith.constant 0 : index
    %c0_253 = arith.constant 0 : index
    %299 = vector.load %arg10[%c0_252, %c0_253] : memref<1x128xf32, #tpu.memory_space<vmem>>, vector<1x128xf32>
    %300 = arith.mulf %298, %299 : vector<1x128xf32>
    %c0_254 = arith.constant 0 : index
    %c0_255 = arith.constant 0 : index
    %301 = vector.load %arg23[%c0_254, %c0_255] : memref<1x128xf32, #tpu.memory_space<vmem>>, vector<1x128xf32>
    tpu.vector_store %arg23[%c0_254, %c0_255], %300 {strides = array<i32>} : memref<1x128xf32, #tpu.memory_space<vmem>>, vector<1x128xf32>,
    %302 = math.absf %300 : vector<1x128xf32>
    %cst_256 = arith.constant dense<0.000000e+00> : vector<1xf32>
    %303 = vector.multi_reduction <add>, %302, %cst_256 [1] : vector<1x128xf32> to vector<1xf32>
    %304 = vector.shape_cast %303 : vector<1xf32> to vector<1x1xf32>
    %c0_257 = arith.constant 0 : index
    %c0_258 = arith.constant 0 : index
    %305 = vector.load %arg24[%c0_257, %c0_258] : memref<1x1xf32, #tpu.memory_space<vmem>>, vector<1x1xf32>
    tpu.vector_store %arg24[%c0_257, %c0_258], %304 {strides = array<i32>} : memref<1x1xf32, #tpu.memory_space<vmem>>, vector<1x1xf32>,
    return
  }
  func.func @transform_0(%arg0: i32) -> (i32, i32) {
    %c0_i32 = arith.constant 0 : i32
    %c0_i32_0 = arith.constant 0 : i32
    %c0_i32_1 = arith.constant 0 : i32
    return %c0_i32, %c0_i32_0 : i32, i32
  }
  func.func @transform_1(%arg0: i32) -> (i32, i32) {
    %c0_i32 = arith.constant 0 : i32
    %c0_i32_0 = arith.constant 0 : i32
    %c0_i32_1 = arith.constant 0 : i32
    return %c0_i32, %c0_i32_0 : i32, i32
  }
  func.func @transform_2(%arg0: i32) -> (i32, i32) {
    %c0_i32 = arith.constant 0 : i32
    %c0_i32_0 = arith.constant 0 : i32
    %c0_i32_1 = arith.constant 0 : i32
    return %c0_i32, %c0_i32_0 : i32, i32
  }
  func.func @transform_3(%arg0: i32) -> (i32, i32) {
    %c0_i32 = arith.constant 0 : i32
    %c0_i32_0 = arith.constant 0 : i32
    %c0_i32_1 = arith.constant 0 : i32
    return %c0_i32, %c0_i32_0 : i32, i32
  }
  func.func @transform_4(%arg0: i32) -> (i32, i32) {
    %c0_i32 = arith.constant 0 : i32
    %c0_i32_0 = arith.constant 0 : i32
    %c0_i32_1 = arith.constant 0 : i32
    return %c0_i32, %c0_i32_0 : i32, i32
  }
  func.func @transform_5(%arg0: i32) -> (i32, i32) {
    %c0_i32 = arith.constant 0 : i32
    %c0_i32_0 = arith.constant 0 : i32
    %c0_i32_1 = arith.constant 0 : i32
    return %c0_i32, %c0_i32_0 : i32, i32
  }
  func.func @transform_6(%arg0: i32) -> (i32, i32) {
    %c0_i32 = arith.constant 0 : i32
    %c0_i32_0 = arith.constant 0 : i32
    %c0_i32_1 = arith.constant 0 : i32
    return %c0_i32, %c0_i32_0 : i32, i32
  }
  func.func @transform_7(%arg0: i32) -> (i32, i32) {
    %c0_i32 = arith.constant 0 : i32
    %c0_i32_0 = arith.constant 0 : i32
    %c0_i32_1 = arith.constant 0 : i32
    return %c0_i32, %c0_i32_0 : i32, i32
  }
  func.func @transform_8(%arg0: i32) -> (i32, i32) {
    %c0_i32 = arith.constant 0 : i32
    %c0_i32_0 = arith.constant 0 : i32
    %c0_i32_1 = arith.constant 0 : i32
    return %c0_i32, %c0_i32_0 : i32, i32
  }
  func.func @transform_9(%arg0: i32) -> (i32, i32) {
    %c0_i32 = arith.constant 0 : i32
    %c0_i32_0 = arith.constant 0 : i32
    %c0_i32_1 = arith.constant 0 : i32
    return %c0_i32, %c0_i32_0 : i32, i32
  }
  func.func @transform_10(%arg0: i32) -> (i32, i32, i32) {
    %c0_i32 = arith.constant 0 : i32
    %c0_i32_0 = arith.constant 0 : i32
    %c0_i32_1 = arith.constant 0 : i32
    %c0_i32_2 = arith.constant 0 : i32
    return %c0_i32, %c0_i32_0, %c0_i32_1 : i32, i32, i32
  }
  func.func @transform_11(%arg0: i32) -> (i32, i32, i32) {
    %c0_i32 = arith.constant 0 : i32
    %c0_i32_0 = arith.constant 0 : i32
    %c0_i32_1 = arith.constant 0 : i32
    %c0_i32_2 = arith.constant 0 : i32
    return %c0_i32, %c0_i32_0, %c0_i32_1 : i32, i32, i32
  }
  func.func @transform_12(%arg0: i32) -> (i32, i32, i32) {
    %c0_i32 = arith.constant 0 : i32
    %c0_i32_0 = arith.constant 0 : i32
    %c0_i32_1 = arith.constant 0 : i32
    %c0_i32_2 = arith.constant 0 : i32
    return %c0_i32, %c0_i32_0, %c0_i32_1 : i32, i32, i32
  }
  func.func @transform_13(%arg0: i32) -> (i32, i32, i32) {
    %c0_i32 = arith.constant 0 : i32
    %c0_i32_0 = arith.constant 0 : i32
    %c0_i32_1 = arith.constant 0 : i32
    %c0_i32_2 = arith.constant 0 : i32
    return %c0_i32, %c0_i32_0, %c0_i32_1 : i32, i32, i32
  }
  func.func @transform_14(%arg0: i32) -> (i32, i32) {
    %c0_i32 = arith.constant 0 : i32
    %c0_i32_0 = arith.constant 0 : i32
    %c0_i32_1 = arith.constant 0 : i32
    return %c0_i32, %c0_i32_0 : i32, i32
  }
  func.func @transform_15(%arg0: i32) -> (i32, i32, i32) {
    %c0_i32 = arith.constant 0 : i32
    %c0_i32_0 = arith.constant 0 : i32
    %c0_i32_1 = arith.constant 0 : i32
    %c0_i32_2 = arith.constant 0 : i32
    return %c0_i32, %c0_i32_0, %c0_i32_1 : i32, i32, i32
  }
  func.func @transform_16(%arg0: i32) -> (i32, i32) {
    %c0_i32 = arith.constant 0 : i32
    %c0_i32_0 = arith.constant 0 : i32
    %c0_i32_1 = arith.constant 0 : i32
    return %c0_i32, %c0_i32_0 : i32, i32
  }
  func.func @transform_17(%arg0: i32) -> (i32, i32, i32) {
    %c0_i32 = arith.constant 0 : i32
    %c0_i32_0 = arith.constant 0 : i32
    %c0_i32_1 = arith.constant 0 : i32
    %c0_i32_2 = arith.constant 0 : i32
    return %c0_i32, %c0_i32_0, %c0_i32_1 : i32, i32, i32
  }
  func.func @transform_18(%arg0: i32) -> (i32, i32, i32) {
    %c0_i32 = arith.constant 0 : i32
    %c0_i32_0 = arith.constant 0 : i32
    %c0_i32_1 = arith.constant 0 : i32
    %c0_i32_2 = arith.constant 0 : i32
    return %c0_i32, %c0_i32_0, %c0_i32_1 : i32, i32, i32
  }
  func.func @transform_19(%arg0: i32) -> (i32, i32) {
    %c0_i32 = arith.constant 0 : i32
    %c0_i32_0 = arith.constant 0 : i32
    %c0_i32_1 = arith.constant 0 : i32
    return %c0_i32, %c0_i32_0 : i32, i32
  }
  func.func @transform_20(%arg0: i32) -> (i32, i32, i32) {
    %c0_i32 = arith.constant 0 : i32
    %c0_i32_0 = arith.constant 0 : i32
    %c0_i32_1 = arith.constant 0 : i32
    %c0_i32_2 = arith.constant 0 : i32
    return %c0_i32, %c0_i32_0, %c0_i32_1 : i32, i32, i32
  }
  func.func @transform_21(%arg0: i32) -> (i32, i32) {
    %c0_i32 = arith.constant 0 : i32
    %c0_i32_0 = arith.constant 0 : i32
    %c0_i32_1 = arith.constant 0 : i32
    return %c0_i32, %c0_i32_0 : i32, i32
  }
  func.func @transform_22(%arg0: i32) -> (i32, i32) {
    %c0_i32 = arith.constant 0 : i32
    %c0_i32_0 = arith.constant 0 : i32
    %c0_i32_1 = arith.constant 0 : i32
    return %c0_i32, %c0_i32_0 : i32, i32
  }
  func.func @transform_23(%arg0: i32) -> (i32, i32) {
    %c0_i32 = arith.constant 0 : i32
    %c0_i32_0 = arith.constant 0 : i32
    %c0_i32_1 = arith.constant 0 : i32
    return %c0_i32, %c0_i32_0 : i32, i32
  }
}

</mosaic_0001>

<llo_original>
// kernel: tpu_custom_call.1
$region0: #{tpu_custom_call.1}
  #allocation0 [shape = 'u32[]', space=smem, size = 0x4, offset = 0x4, fixed_abs, tag = 'smem constant byte address 0x4 - core index']
  #allocation1 [shape = 'u32[144,128]{1,0:T(1,128)}', space=vmem, size = 0x12000, scoped, tag = 'internal scratch']
  %s0 = inlined_call_operand.hbm [shape: f32[128,128], index: 0, kind: input, shape index: {}]
  %s1 = inlined_call_operand.hbm [shape: f32[128,128], index: 1, kind: input, shape index: {}]
  %s2 = inlined_call_operand.hbm [shape: bf16[128,128], index: 2, kind: input, shape index: {}]
  %s3 = inlined_call_operand.hbm [shape: bf16[128,128], index: 3, kind: input, shape index: {}]
  %s4 = inlined_call_operand.hbm [shape: f32[128,128], index: 4, kind: input, shape index: {}]
  %s5 = inlined_call_operand.hbm [shape: f32[128,128], index: 5, kind: input, shape index: {}]
  %s6 = inlined_call_operand.vmem [shape: f32[128,1], index: 6, kind: input, shape index: {}]
  %s7 = inlined_call_operand.vmem [shape: f32[128,1], index: 7, kind: input, shape index: {}]
  %s8 = inlined_call_operand.vmem [shape: f32[1,128], index: 8, kind: input, shape index: {}]
  %s9 = inlined_call_operand.hbm [shape: f32[1,128], index: 9, kind: input, shape index: {}]
  %s10 = inlined_call_operand.hbm [shape: f32[6,128,128], index: 10, kind: input, shape index: {}]
  %s11 = inlined_call_operand.hbm [shape: f32[6,128,128], index: 11, kind: input, shape index: {}]
  %s12 = inlined_call_operand.hbm [shape: f32[6,128,128], index: 12, kind: input, shape index: {}]
  %s13 = inlined_call_operand.vmem [shape: f32[2,128,128], index: 13, kind: input, shape index: {}]
  %s14 = inlined_call_operand.vmem [shape: f32[6,128], index: 14, kind: input, shape index: {}]
  %s15 = inlined_call_operand.hbm [shape: f32[6,128,128], index: 15, kind: input, shape index: {}]
  %s16 = inlined_call_operand.vmem [shape: f32[6,128], index: 16, kind: input, shape index: {}]
  %s17 = inlined_call_operand.hbm [shape: f32[6,128,128], index: 17, kind: input, shape index: {}]
  %s18 = inlined_call_operand.hbm [shape: f32[6,128,128], index: 18, kind: input, shape index: {}]
  %s19 = inlined_call_operand.vmem [shape: f32[6,128], index: 19, kind: input, shape index: {}]
  %s20 = inlined_call_operand.hbm [shape: f32[6,128,128], index: 20, kind: input, shape index: {}]
  %s21 = inlined_call_operand.vmem [shape: f32[6,128], index: 21, kind: input, shape index: {}]
  %s22 = inlined_call_operand.hbm [shape: f32[1,128], index: 22, kind: output, shape index: {0}]
  %s23 = inlined_call_operand.hbm [shape: f32[1,1], index: 23, kind: output, shape index: {1}]
  %24 = xla_tuple %s22, %s23
  %s25 = sld [smem:[#allocation0]]
  $region162: #{tpu_custom_call.1} parent=0
    _
  %s27 = ssub.s32 1, %s25
  %s28 = scalar_select 0, %s27, %s25
  $region1: #{tpu_custom_call.1} parent=0
    #allocation2 [shape = 'u8[65536]{0}', space=vmem, size = 0x10000, scoped, tag = 'input window, operand 0, single buffered']
    #allocation3 [shape = 's32[1]{0}', space=sflag, size = 0x4, scoped, tag = 'scoped memory for tpu_custom_call.1']
    #allocation4 [shape = 's32[1]{0}', space=sflag, size = 0x4, scoped, tag = 'scoped memory for tpu_custom_call.1']
    #allocation5 [shape = 'u8[65536]{0}', space=vmem, size = 0x10000, scoped, tag = 'input window, operand 1, single buffered']
    #allocation6 [shape = 's32[1]{0}', space=sflag, size = 0x4, scoped, tag = 'scoped memory for tpu_custom_call.1']
    #allocation7 [shape = 'u8[32768]{0}', space=vmem, size = 0x8000, scoped, tag = 'input window, operand 2, single buffered']
    #allocation8 [shape = 'u8[32768]{0}', space=vmem, size = 0x8000, scoped, tag = 'input window, operand 3, single buffered']
    #allocation9 [shape = 's32[1]{0}', space=sflag, size = 0x4, scoped, tag = 'scoped memory for tpu_custom_call.1']
    #allocation10 [shape = 'u8[65536]{0}', space=vmem, size = 0x10000, scoped, tag = 'input window, operand 4, single buffered']
    #allocation11 [shape = 'u8[65536]{0}', space=vmem, size = 0x10000, scoped, tag = 'input window, operand 5, single buffered']
    #allocation12 [shape = 's32[1]{0}', space=sflag, size = 0x4, scoped, tag = 'scoped memory for tpu_custom_call.1']
    #allocation13 [shape = 'u8[512]{0}', space=vmem, size = 0x400, scoped, tag = 'input window, operand 9, single buffered']
    #allocation14 [shape = 'u8[393216]{0}', space=vmem, size = 0x60000, scoped, tag = 'input window, operand 10, single buffered']
    #allocation15 [shape = 's32[1]{0}', space=sflag, size = 0x4, scoped, tag = 'scoped memory for tpu_custom_call.1']
    #allocation16 [shape = 'u8[393216]{0}', space=vmem, size = 0x60000, scoped, tag = 'input window, operand 11, single buffered']
    #allocation17 [shape = 'u8[393216]{0}', space=vmem, size = 0x60000, scoped, tag = 'input window, operand 12, single buffered']
    #allocation18 [shape = 's32[1]{0}', space=sflag, size = 0x4, scoped, tag = 'scoped memory for tpu_custom_call.1']
    #allocation19 [shape = 'u8[393216]{0}', space=vmem, size = 0x60000, scoped, tag = 'input window, operand 15, single buffered']
    #allocation20 [shape = 'u8[393216]{0}', space=vmem, size = 0x60000, scoped, tag = 'input window, operand 17, single buffered']
    #allocation21 [shape = 's32[1]{0}', space=sflag, size = 0x4, scoped, tag = 'scoped memory for tpu_custom_call.1']
    #allocation22 [shape = 'u8[393216]{0}', space=vmem, size = 0x60000, scoped, tag = 'input window, operand 18, single buffered']
    #allocation23 [shape = 'u8[393216]{0}', space=vmem, size = 0x60000, scoped, tag = 'input window, operand 20, single buffered']
    #allocation24 [shape = 's32[1]{0}', space=sflag, size = 0x4, scoped, tag = 'scoped memory for tpu_custom_call.1']
    #allocation25 [shape = 'u8[512]{0}', space=vmem, size = 0x400, scoped, tag = 'output window, operand 0, single buffered']
    #allocation26 [shape = 'u8[512]{0}', space=vmem, size = 0x400, scoped, tag = 'output window, operand 1, single buffered']
    #allocation27 [shape = 's32[1]{0}', space=sflag, size = 0x4, scoped, tag = 'scoped memory for tpu_custom_call.1']
    %29 = vsyncpa [#allocation3], 0
    %30 = vsyncpa [#allocation6], 0
    %31 = vsyncpa [#allocation9], 0
    %32 = vsyncpa [#allocation12], 0
    %33 = vsyncpa [#allocation15], 0
    %34 = vsyncpa [#allocation18], 0
    %35 = vsyncpa [#allocation21], 0
    %36 = vsyncpa [#allocation24], 0
    %37 = vsyncpa [#allocation4], 0
    %38 = vsyncpa [#allocation27], 0
    // Predicated region
    $region2: #{tpu_custom_call.1} parent=1 // pred_check
      _
    $region3: #{tpu_custom_call.1} parent=1 // pred_check_branch
      %40 = sbr.rel (0) target = $region5
    $region4: #{tpu_custom_call.1} parent=1 // pred_region
      %s42 = ssub.s32 2048, 2048
      %43 = vsyncadd [#allocation3], %s42
      %s44 = sshll.u32 [#allocation2], 4
      %s45 = int_to_ptr.vmem [resolvable:$true] %s44
      %50 = dma.hbm_to_vmem [thread:$0]  %s0, 2048, %s45, [#allocation3], 128, 128, 8
    $region5: #{tpu_custom_call.1} parent=1 // pred_fallthru
      _
    // Predicated region
    $region6: #{tpu_custom_call.1} parent=1 // pred_check
      _
    $region7: #{tpu_custom_call.1} parent=1 // pred_check_branch
      %52 = sbr.rel (0) target = $region9
    $region8: #{tpu_custom_call.1} parent=1 // pred_region
      %s54 = ssub.s32 2048, 2048
      %55 = vsyncadd [#allocation6], %s54
      %s56 = sshll.u32 [#allocation5], 4
      %s57 = int_to_ptr.vmem [resolvable:$true] %s56
      %62 = dma.hbm_to_vmem [thread:$0]  %s1, 2048, %s57, [#allocation6], 128, 128, 8
    $region9: #{tpu_custom_call.1} parent=1 // pred_fallthru
      _
    // Predicated region
    $region10: #{tpu_custom_call.1} parent=1 // pred_check
      _
    $region11: #{tpu_custom_call.1} parent=1 // pred_check_branch
      %64 = sbr.rel (0) target = $region13
    $region12: #{tpu_custom_call.1} parent=1 // pred_region
      %s66 = ssub.s32 1024, 1024
      %67 = vsyncadd [#allocation6], %s66
      %s68 = sshll.u32 [#allocation7], 4
      %s69 = int_to_ptr.vmem [resolvable:$true] %s68
      %74 = dma.hbm_to_vmem [thread:$0]  %s2, 1024, %s69, [#allocation6], 64, 64, 4
    $region13: #{tpu_custom_call.1} parent=1 // pred_fallthru
      _
    // Predicated region
    $region14: #{tpu_custom_call.1} parent=1 // pred_check
      _
    $region15: #{tpu_custom_call.1} parent=1 // pred_check_branch
      %76 = sbr.rel (0) target = $region17
    $region16: #{tpu_custom_call.1} parent=1 // pred_region
      %s78 = ssub.s32 1024, 1024
      %79 = vsyncadd [#allocation9], %s78
      %s80 = sshll.u32 [#allocation8], 4
      %s81 = int_to_ptr.vmem [resolvable:$true] %s80
      %86 = dma.hbm_to_vmem [thread:$0]  %s3, 1024, %s81, [#allocation9], 64, 64, 4
    $region17: #{tpu_custom_call.1} parent=1 // pred_fallthru
      _
    // Predicated region
    $region18: #{tpu_custom_call.1} parent=1 // pred_check
      _
    $region19: #{tpu_custom_call.1} parent=1 // pred_check_branch
      %88 = sbr.rel (0) target = $region21
    $region20: #{tpu_custom_call.1} parent=1 // pred_region
      %s90 = ssub.s32 2048, 2048
      %91 = vsyncadd [#allocation9], %s90
      %s92 = sshll.u32 [#allocation10], 4
      %s93 = int_to_ptr.vmem [resolvable:$true] %s92
      %98 = dma.hbm_to_vmem [thread:$0]  %s4, 2048, %s93, [#allocation9], 128, 128, 8
    $region21: #{tpu_custom_call.1} parent=1 // pred_fallthru
      _
    // Predicated region
    $region22: #{tpu_custom_call.1} parent=1 // pred_check
      _
    $region23: #{tpu_custom_call.1} parent=1 // pred_check_branch
      %100 = sbr.rel (0) target = $region25
    $region24: #{tpu_custom_call.1} parent=1 // pred_region
      %s102 = ssub.s32 2048, 2048
      %103 = vsyncadd [#allocation12], %s102
      %s104 = sshll.u32 [#allocation11], 4
      %s105 = int_to_ptr.vmem [resolvable:$true] %s104
      %110 = dma.hbm_to_vmem [thread:$0]  %s5, 2048, %s105, [#allocation12], 128, 128, 8
    $region25: #{tpu_custom_call.1} parent=1 // pred_fallthru
      _
    // Predicated region
    $region26: #{tpu_custom_call.1} parent=1 // pred_check
      _
    $region27: #{tpu_custom_call.1} parent=1 // pred_check_branch
      %112 = sbr.rel (0) target = $region29
    $region28: #{tpu_custom_call.1} parent=1 // pred_region
      _
    $region29: #{tpu_custom_call.1} parent=1 // pred_fallthru
      _
    // Predicated region
    $region30: #{tpu_custom_call.1} parent=1 // pred_check
      _
    $region31: #{tpu_custom_call.1} parent=1 // pred_check_branch
      %114 = sbr.rel (0) target = $region33
    $region32: #{tpu_custom_call.1} parent=1 // pred_region
      _
    $region33: #{tpu_custom_call.1} parent=1 // pred_fallthru
      _
    // Predicated region
    $region34: #{tpu_custom_call.1} parent=1 // pred_check
      _
    $region35: #{tpu_custom_call.1} parent=1 // pred_check_branch
      %116 = sbr.rel (0) target = $region37
    $region36: #{tpu_custom_call.1} parent=1 // pred_region
      _
    $region37: #{tpu_custom_call.1} parent=1 // pred_fallthru
      _
    // Predicated region
    $region38: #{tpu_custom_call.1} parent=1 // pred_check
      _
    $region39: #{tpu_custom_call.1} parent=1 // pred_check_branch
      %118 = sbr.rel (0) target = $region41
    $region40: #{tpu_custom_call.1} parent=1 // pred_region
      %s120 = ssub.s32 16, 16
      %121 = vsyncadd [#allocation12], %s120
      %s123 = sshll.u32 [#allocation13], 4
      %s124 = int_to_ptr.vmem [resolvable:$true] %s123
      %126 = dma.hbm_to_vmem [thread:$0]  %s9, 16, %s124, [#allocation12]
    $region41: #{tpu_custom_call.1} parent=1 // pred_fallthru
      _
    // Predicated region
    $region42: #{tpu_custom_call.1} parent=1 // pred_check
      _
    $region43: #{tpu_custom_call.1} parent=1 // pred_check_branch
      %128 = sbr.rel (0) target = $region45
    $region44: #{tpu_custom_call.1} parent=1 // pred_region
      %s130 = ssub.s32 12288, 12288
      %131 = vsyncadd [#allocation15], %s130
      %s132 = sshll.u32 [#allocation14], 4
      %s133 = int_to_ptr.vmem [resolvable:$true] %s132
      %138 = dma.hbm_to_vmem [thread:$0]  %s10, 12288, %s133, [#allocation15], 128, 128, 8
    $region45: #{tpu_custom_call.1} parent=1 // pred_fallthru
      _
    // Predicated region
    $region46: #{tpu_custom_call.1} parent=1 // pred_check
      _
    $region47: #{tpu_custom_call.1} parent=1 // pred_check_branch
      %140 = sbr.rel (0) target = $region49
    $region48: #{tpu_custom_call.1} parent=1 // pred_region
      %s142 = ssub.s32 12288, 12288
      %143 = vsyncadd [#allocation15], %s142
      %s144 = sshll.u32 [#allocation16], 4
      %s145 = int_to_ptr.vmem [resolvable:$true] %s144
      %150 = dma.hbm_to_vmem [thread:$0]  %s11, 12288, %s145, [#allocation15], 128, 128, 8
    $region49: #{tpu_custom_call.1} parent=1 // pred_fallthru
      _
    // Predicated region
    $region50: #{tpu_custom_call.1} parent=1 // pred_check
      _
    $region51: #{tpu_custom_call.1} parent=1 // pred_check_branch
      %152 = sbr.rel (0) target = $region53
    $region52: #{tpu_custom_call.1} parent=1 // pred_region
      %s154 = ssub.s32 12288, 12288
      %155 = vsyncadd [#allocation18], %s154
      %s156 = sshll.u32 [#allocation17], 4
      %s157 = int_to_ptr.vmem [resolvable:$true] %s156
      %162 = dma.hbm_to_vmem [thread:$0]  %s12, 12288, %s157, [#allocation18], 128, 128, 8
    $region53: #{tpu_custom_call.1} parent=1 // pred_fallthru
      _
    // Predicated region
    $region54: #{tpu_custom_call.1} parent=1 // pred_check
      _
    $region55: #{tpu_custom_call.1} parent=1 // pred_check_branch
      %164 = sbr.rel (0) target = $region57
    $region56: #{tpu_custom_call.1} parent=1 // pred_region
      _
    $region57: #{tpu_custom_call.1} parent=1 // pred_fallthru
      _
    // Predicated region
    $region58: #{tpu_custom_call.1} parent=1 // pred_check
      _
    $region59: #{tpu_custom_call.1} parent=1 // pred_check_branch
      %166 = sbr.rel (0) target = $region61
    $region60: #{tpu_custom_call.1} parent=1 // pred_region
      _
    $region61: #{tpu_custom_call.1} parent=1 // pred_fallthru
      _
    // Predicated region
    $region62: #{tpu_custom_call.1} parent=1 // pred_check
      _
    $region63: #{tpu_custom_call.1} parent=1 // pred_check_branch
      %168 = sbr.rel (0) target = $region65
    $region64: #{tpu_custom_call.1} parent=1 // pred_region
      %s170 = ssub.s32 12288, 12288
      %171 = vsyncadd [#allocation18], %s170
      %s172 = sshll.u32 [#allocation19], 4
      %s173 = int_to_ptr.vmem [resolvable:$true] %s172
      %178 = dma.hbm_to_vmem [thread:$0]  %s15, 12288, %s173, [#allocation18], 128, 128, 8
    $region65: #{tpu_custom_call.1} parent=1 // pred_fallthru
      _
    // Predicated region
    $region66: #{tpu_custom_call.1} parent=1 // pred_check
      _
    $region67: #{tpu_custom_call.1} parent=1 // pred_check_branch
      %180 = sbr.rel (0) target = $region69
    $region68: #{tpu_custom_call.1} parent=1 // pred_region
      _
    $region69: #{tpu_custom_call.1} parent=1 // pred_fallthru
      _
    // Predicated region
    $region70: #{tpu_custom_call.1} parent=1 // pred_check
      _
    $region71: #{tpu_custom_call.1} parent=1 // pred_check_branch
      %182 = sbr.rel (0) target = $region73
    $region72: #{tpu_custom_call.1} parent=1 // pred_region
      %s184 = ssub.s32 12288, 12288
      %185 = vsyncadd [#allocation21], %s184
      %s186 = sshll.u32 [#allocation20], 4
      %s187 = int_to_ptr.vmem [resolvable:$true] %s186
      %192 = dma.hbm_to_vmem [thread:$0]  %s17, 12288, %s187, [#allocation21], 128, 128, 8
    $region73: #{tpu_custom_call.1} parent=1 // pred_fallthru
      _
    // Predicated region
    $region74: #{tpu_custom_call.1} parent=1 // pred_check
      _
    $region75: #{tpu_custom_call.1} parent=1 // pred_check_branch
      %194 = sbr.rel (0) target = $region77
    $region76: #{tpu_custom_call.1} parent=1 // pred_region
      %s196 = ssub.s32 12288, 12288
      %197 = vsyncadd [#allocation21], %s196
      %s198 = sshll.u32 [#allocation22], 4
      %s199 = int_to_ptr.vmem [resolvable:$true] %s198
      %204 = dma.hbm_to_vmem [thread:$0]  %s18, 12288, %s199, [#allocation21], 128, 128, 8
    $region77: #{tpu_custom_call.1} parent=1 // pred_fallthru
      _
    // Predicated region
    $region78: #{tpu_custom_call.1} parent=1 // pred_check
      _
    $region79: #{tpu_custom_call.1} parent=1 // pred_check_branch
      %206 = sbr.rel (0) target = $region81
    $region80: #{tpu_custom_call.1} parent=1 // pred_region
      _
    $region81: #{tpu_custom_call.1} parent=1 // pred_fallthru
      _
    // Predicated region
    $region82: #{tpu_custom_call.1} parent=1 // pred_check
      _
    $region83: #{tpu_custom_call.1} parent=1 // pred_check_branch
      %208 = sbr.rel (0) target = $region85
    $region84: #{tpu_custom_call.1} parent=1 // pred_region
      %s210 = ssub.s32 12288, 12288
      %211 = vsyncadd [#allocation24], %s210
      %s212 = sshll.u32 [#allocation23], 4
      %s213 = int_to_ptr.vmem [resolvable:$true] %s212
      %218 = dma.hbm_to_vmem [thread:$0]  %s20, 12288, %s213, [#allocation24], 128, 128, 8
    $region85: #{tpu_custom_call.1} parent=1 // pred_fallthru
      _
    // Predicated region
    $region86: #{tpu_custom_call.1} parent=1 // pred_check
      _
    $region87: #{tpu_custom_call.1} parent=1 // pred_check_branch
      %220 = sbr.rel (0) target = $region89
    $region88: #{tpu_custom_call.1} parent=1 // pred_region
      _
    $region89: #{tpu_custom_call.1} parent=1 // pred_fallthru
      _
    // Predicated region
    $region90: #{tpu_custom_call.1} parent=1 // pred_check
      _
    $region91: #{tpu_custom_call.1} parent=1 // pred_check_branch
      %222 = sbr.rel (0) target = $region93
    $region92: #{tpu_custom_call.1} parent=1 // pred_region
      %223 = dma.done [#allocation3], 2048
    $region93: #{tpu_custom_call.1} parent=1 // pred_fallthru
      _
    // Predicated region
    $region94: #{tpu_custom_call.1} parent=1 // pred_check
      _
    $region95: #{tpu_custom_call.1} parent=1 // pred_check_branch
      %225 = sbr.rel (0) target = $region97
    $region96: #{tpu_custom_call.1} parent=1 // pred_region
      %226 = dma.done [#allocation6], 2048
    $region97: #{tpu_custom_call.1} parent=1 // pred_fallthru
      _
    // Predicated region
    $region98: #{tpu_custom_call.1} parent=1 // pred_check
      _
    $region99: #{tpu_custom_call.1} parent=1 // pred_check_branch
      %228 = sbr.rel (0) target = $region101
    $region100: #{tpu_custom_call.1} parent=1 // pred_region
      %229 = dma.done [#allocation6], 1024
    $region101: #{tpu_custom_call.1} parent=1 // pred_fallthru
      _
    // Predicated region
    $region102: #{tpu_custom_call.1} parent=1 // pred_check
      _
    $region103: #{tpu_custom_call.1} parent=1 // pred_check_branch
      %231 = sbr.rel (0) target = $region105
    $region104: #{tpu_custom_call.1} parent=1 // pred_region
      %232 = dma.done [#allocation9], 1024
    $region105: #{tpu_custom_call.1} parent=1 // pred_fallthru
      _
    // Predicated region
    $region106: #{tpu_custom_call.1} parent=1 // pred_check
      _
    $region107: #{tpu_custom_call.1} parent=1 // pred_check_branch
      %234 = sbr.rel (0) target = $region109
    $region108: #{tpu_custom_call.1} parent=1 // pred_region
      %235 = dma.done [#allocation9], 2048
    $region109: #{tpu_custom_call.1} parent=1 // pred_fallthru
      _
    // Predicated region
    $region110: #{tpu_custom_call.1} parent=1 // pred_check
      _
    $region111: #{tpu_custom_call.1} parent=1 // pred_check_branch
      %237 = sbr.rel (0) target = $region113
    $region112: #{tpu_custom_call.1} parent=1 // pred_region
      %238 = dma.done [#allocation12], 2048
    $region113: #{tpu_custom_call.1} parent=1 // pred_fallthru
      _
    // Predicated region
    $region114: #{tpu_custom_call.1} parent=1 // pred_check
      _
    $region115: #{tpu_custom_call.1} parent=1 // pred_check_branch
      %240 = sbr.rel (0) target = $region117
    $region116: #{tpu_custom_call.1} parent=1 // pred_region
      %241 = dma.done [#allocation12], 16
    $region117: #{tpu_custom_call.1} parent=1 // pred_fallthru
      _
    // Predicated region
    $region118: #{tpu_custom_call.1} parent=1 // pred_check
      _
    $region119: #{tpu_custom_call.1} parent=1 // pred_check_branch
      %243 = sbr.rel (0) target = $region121
    $region120: #{tpu_custom_call.1} parent=1 // pred_region
      %244 = dma.done [#allocation15], 12288
    $region121: #{tpu_custom_call.1} parent=1 // pred_fallthru
      _
    // Predicated region
    $region122: #{tpu_custom_call.1} parent=1 // pred_check
      _
    $region123: #{tpu_custom_call.1} parent=1 // pred_check_branch
      %246 = sbr.rel (0) target = $region125
    $region124: #{tpu_custom_call.1} parent=1 // pred_region
      %247 = dma.done [#allocation15], 12288
    $region125: #{tpu_custom_call.1} parent=1 // pred_fallthru
      _
    // Predicated region
    $region126: #{tpu_custom_call.1} parent=1 // pred_check
      _
    $region127: #{tpu_custom_call.1} parent=1 // pred_check_branch
      %249 = sbr.rel (0) target = $region129
    $region128: #{tpu_custom_call.1} parent=1 // pred_region
      %250 = dma.done [#allocation18], 12288
    $region129: #{tpu_custom_call.1} parent=1 // pred_fallthru
      _
    // Predicated region
    $region130: #{tpu_custom_call.1} parent=1 // pred_check
      _
    $region131: #{tpu_custom_call.1} parent=1 // pred_check_branch
      %252 = sbr.rel (0) target = $region133
    $region132: #{tpu_custom_call.1} parent=1 // pred_region
      %253 = dma.done [#allocation18], 12288
    $region133: #{tpu_custom_call.1} parent=1 // pred_fallthru
      _
    // Predicated region
    $region134: #{tpu_custom_call.1} parent=1 // pred_check
      _
    $region135: #{tpu_custom_call.1} parent=1 // pred_check_branch
      %255 = sbr.rel (0) target = $region137
    $region136: #{tpu_custom_call.1} parent=1 // pred_region
      %256 = dma.done [#allocation21], 12288
    $region137: #{tpu_custom_call.1} parent=1 // pred_fallthru
      _
    // Predicated region
    $region138: #{tpu_custom_call.1} parent=1 // pred_check
      _
    $region139: #{tpu_custom_call.1} parent=1 // pred_check_branch
      %258 = sbr.rel (0) target = $region141
    $region140: #{tpu_custom_call.1} parent=1 // pred_region
      %259 = dma.done [#allocation21], 12288
    $region141: #{tpu_custom_call.1} parent=1 // pred_fallthru
      _
    // Predicated region
    $region142: #{tpu_custom_call.1} parent=1 // pred_check
      _
    $region143: #{tpu_custom_call.1} parent=1 // pred_check_branch
      %261 = sbr.rel (0) target = $region145
    $region144: #{tpu_custom_call.1} parent=1 // pred_region
      %262 = dma.done [#allocation24], 12288
    $region145: #{tpu_custom_call.1} parent=1 // pred_fallthru
      _
    %v263 = vld [vmem:[#allocation2] sm:$0xff]
    %v264 = vld [vmem:[#allocation2 + $0x8] sm:$0xff]
    %v265 = vld [vmem:[#allocation2 + $0x10] sm:$0xff]
    %v266 = vld [vmem:[#allocation2 + $0x18] sm:$0xff]
    %v267 = vld [vmem:[#allocation2 + $0x20] sm:$0xff]
    %v268 = vld [vmem:[#allocation2 + $0x28] sm:$0xff]
    %v269 = vld [vmem:[#allocation2 + $0x30] sm:$0xff]
    %v270 = vld [vmem:[#allocation2 + $0x38] sm:$0xff]
    %v271 = vld [vmem:[#allocation2 + $0x40] sm:$0xff]
    %v272 = vld [vmem:[#allocation2 + $0x48] sm:$0xff]
    %v273 = vld [vmem:[#allocation2 + $0x50] sm:$0xff]
    %v274 = vld [vmem:[#allocation2 + $0x58] sm:$0xff]
    %v275 = vld [vmem:[#allocation2 + $0x60] sm:$0xff]
    %v276 = vld [vmem:[#allocation2 + $0x68] sm:$0xff]
    %v277 = vld [vmem:[#allocation2 + $0x70] sm:$0xff]
    %v278 = vld [vmem:[#allocation2 + $0x78] sm:$0xff]
    %v279 = vld [vmem:[#allocation5] sm:$0xff]
    %v280 = vld [vmem:[#allocation5 + $0x8] sm:$0xff]
    %v281 = vld [vmem:[#allocation5 + $0x10] sm:$0xff]
    %v282 = vld [vmem:[#allocation5 + $0x18] sm:$0xff]
    %v283 = vld [vmem:[#allocation5 + $0x20] sm:$0xff]
    %v284 = vld [vmem:[#allocation5 + $0x28] sm:$0xff]
    %v285 = vld [vmem:[#allocation5 + $0x30] sm:$0xff]
    %v286 = vld [vmem:[#allocation5 + $0x38] sm:$0xff]
    %v287 = vld [vmem:[#allocation5 + $0x40] sm:$0xff]
    %v288 = vld [vmem:[#allocation5 + $0x48] sm:$0xff]
    %v289 = vld [vmem:[#allocation5 + $0x50] sm:$0xff]
    %v290 = vld [vmem:[#allocation5 + $0x58] sm:$0xff]
    %v291 = vld [vmem:[#allocation5 + $0x60] sm:$0xff]
    %v292 = vld [vmem:[#allocation5 + $0x68] sm:$0xff]
    %v293 = vld [vmem:[#allocation5 + $0x70] sm:$0xff]
    %v294 = vld [vmem:[#allocation5 + $0x78] sm:$0xff]
    %v295 = vld [vmem:[#allocation7] sm:$0xf]
    %v296 = vld [vmem:[#allocation7 + $0x4] sm:$0xf]
    %v297 = vld [vmem:[#allocation7 + $0x8] sm:$0xf]
    %v298 = vld [vmem:[#allocation7 + $0xc] sm:$0xf]
    %v299 = vld [vmem:[#allocation7 + $0x10] sm:$0xf]
    %v300 = vld [vmem:[#allocation7 + $0x14] sm:$0xf]
    %v301 = vld [vmem:[#allocation7 + $0x18] sm:$0xf]
    %v302 = vld [vmem:[#allocation7 + $0x1c] sm:$0xf]
    %v303 = vld [vmem:[#allocation7 + $0x20] sm:$0xf]
    %v304 = vld [vmem:[#allocation7 + $0x24] sm:$0xf]
    %v305 = vld [vmem:[#allocation7 + $0x28] sm:$0xf]
    %v306 = vld [vmem:[#allocation7 + $0x2c] sm:$0xf]
    %v307 = vld [vmem:[#allocation7 + $0x30] sm:$0xf]
    %v308 = vld [vmem:[#allocation7 + $0x34] sm:$0xf]
    %v309 = vld [vmem:[#allocation7 + $0x38] sm:$0xf]
    %v310 = vld [vmem:[#allocation7 + $0x3c] sm:$0xf]
    %v311 = vunpack.c.l.bf16 %v295
    %v312 = vunpack.c.l.bf16 %v296
    %v313 = vunpack.c.l.bf16 %v297
    %v314 = vunpack.c.l.bf16 %v298
    %v315 = vunpack.c.l.bf16 %v299
    %v316 = vunpack.c.l.bf16 %v300
    %v317 = vunpack.c.l.bf16 %v301
    %v318 = vunpack.c.l.bf16 %v302
    %v319 = vunpack.c.l.bf16 %v303
    %v320 = vunpack.c.l.bf16 %v304
    %v321 = vunpack.c.l.bf16 %v305
    %v322 = vunpack.c.l.bf16 %v306
    %v323 = vunpack.c.l.bf16 %v307
    %v324 = vunpack.c.l.bf16 %v308
    %v325 = vunpack.c.l.bf16 %v309
    %v326 = vunpack.c.l.bf16 %v310
    %v327 = vld [vmem:[#allocation8] sm:$0xf]
    %v328 = vld [vmem:[#allocation8 + $0x4] sm:$0xf]
    %v329 = vld [vmem:[#allocation8 + $0x8] sm:$0xf]
    %v330 = vld [vmem:[#allocation8 + $0xc] sm:$0xf]
    %v331 = vld [vmem:[#allocation8 + $0x10] sm:$0xf]
    %v332 = vld [vmem:[#allocation8 + $0x14] sm:$0xf]
    %v333 = vld [vmem:[#allocation8 + $0x18] sm:$0xf]
    %v334 = vld [vmem:[#allocation8 + $0x1c] sm:$0xf]
    %v335 = vld [vmem:[#allocation8 + $0x20] sm:$0xf]
    %v336 = vld [vmem:[#allocation8 + $0x24] sm:$0xf]
    %v337 = vld [vmem:[#allocation8 + $0x28] sm:$0xf]
    %v338 = vld [vmem:[#allocation8 + $0x2c] sm:$0xf]
    %v339 = vld [vmem:[#allocation8 + $0x30] sm:$0xf]
    %v340 = vld [vmem:[#allocation8 + $0x34] sm:$0xf]
    %v341 = vld [vmem:[#allocation8 + $0x38] sm:$0xf]
    %v342 = vld [vmem:[#allocation8 + $0x3c] sm:$0xf]
    %v343 = vunpack.c.l.bf16 %v327
    %v344 = vunpack.c.l.bf16 %v328
    %v345 = vunpack.c.l.bf16 %v329
    %v346 = vunpack.c.l.bf16 %v330
    %v347 = vunpack.c.l.bf16 %v331
    %v348 = vunpack.c.l.bf16 %v332
    %v349 = vunpack.c.l.bf16 %v333
    %v350 = vunpack.c.l.bf16 %v334
    %v351 = vunpack.c.l.bf16 %v335
    %v352 = vunpack.c.l.bf16 %v336
    %v353 = vunpack.c.l.bf16 %v337
    %v354 = vunpack.c.l.bf16 %v338
    %v355 = vunpack.c.l.bf16 %v339
    %v356 = vunpack.c.l.bf16 %v340
    %v357 = vunpack.c.l.bf16 %v341
    %v358 = vunpack.c.l.bf16 %v342
    %v359 = vld [vmem:[#allocation10] sm:$0xff]
    %v360 = vld [vmem:[#allocation10 + $0x8] sm:$0xff]
    %v361 = vld [vmem:[#allocation10 + $0x10] sm:$0xff]
    %v362 = vld [vmem:[#allocation10 + $0x18] sm:$0xff]
    %v363 = vld [vmem:[#allocation10 + $0x20] sm:$0xff]
    %v364 = vld [vmem:[#allocation10 + $0x28] sm:$0xff]
    %v365 = vld [vmem:[#allocation10 + $0x30] sm:$0xff]
    %v366 = vld [vmem:[#allocation10 + $0x38] sm:$0xff]
    %v367 = vld [vmem:[#allocation10 + $0x40] sm:$0xff]
    %v368 = vld [vmem:[#allocation10 + $0x48] sm:$0xff]
    %v369 = vld [vmem:[#allocation10 + $0x50] sm:$0xff]
    %v370 = vld [vmem:[#allocation10 + $0x58] sm:$0xff]
    %v371 = vld [vmem:[#allocation10 + $0x60] sm:$0xff]
    %v372 = vld [vmem:[#allocation10 + $0x68] sm:$0xff]
    %v373 = vld [vmem:[#allocation10 + $0x70] sm:$0xff]
    %v374 = vld [vmem:[#allocation10 + $0x78] sm:$0xff]
    %v375 = vld [vmem:[#allocation11] sm:$0xff]
    %v376 = vld [vmem:[#allocation11 + $0x8] sm:$0xff]
    %v377 = vld [vmem:[#allocation11 + $0x10] sm:$0xff]
    %v378 = vld [vmem:[#allocation11 + $0x18] sm:$0xff]
    %v379 = vld [vmem:[#allocation11 + $0x20] sm:$0xff]
    %v380 = vld [vmem:[#allocation11 + $0x28] sm:$0xff]
    %v381 = vld [vmem:[#allocation11 + $0x30] sm:$0xff]
    %v382 = vld [vmem:[#allocation11 + $0x38] sm:$0xff]
    %v383 = vld [vmem:[#allocation11 + $0x40] sm:$0xff]
    %v384 = vld [vmem:[#allocation11 + $0x48] sm:$0xff]
    %v385 = vld [vmem:[#allocation11 + $0x50] sm:$0xff]
    %v386 = vld [vmem:[#allocation11 + $0x58] sm:$0xff]
    %v387 = vld [vmem:[#allocation11 + $0x60] sm:$0xff]
    %v388 = vld [vmem:[#allocation11 + $0x68] sm:$0xff]
    %v389 = vld [vmem:[#allocation11 + $0x70] sm:$0xff]
    %v390 = vld [vmem:[#allocation11 + $0x78] sm:$0xff]
    %v391 = vld [vmem:[%s6] sm:$0xff]
    %v392 = vld [vmem:[%s6 + $0x8] sm:$0xff]
    %v393 = vld [vmem:[%s6 + $0x10] sm:$0xff]
    %v394 = vld [vmem:[%s6 + $0x18] sm:$0xff]
    %v395 = vld [vmem:[%s6 + $0x20] sm:$0xff]
    %v396 = vld [vmem:[%s6 + $0x28] sm:$0xff]
    %v397 = vld [vmem:[%s6 + $0x30] sm:$0xff]
    %v398 = vld [vmem:[%s6 + $0x38] sm:$0xff]
    %v399 = vld [vmem:[%s6 + $0x40] sm:$0xff]
    %v400 = vld [vmem:[%s6 + $0x48] sm:$0xff]
    %v401 = vld [vmem:[%s6 + $0x50] sm:$0xff]
    %v402 = vld [vmem:[%s6 + $0x58] sm:$0xff]
    %v403 = vld [vmem:[%s6 + $0x60] sm:$0xff]
    %v404 = vld [vmem:[%s6 + $0x68] sm:$0xff]
    %v405 = vld [vmem:[%s6 + $0x70] sm:$0xff]
    %v406 = vld [vmem:[%s6 + $0x78] sm:$0xff]
    %v407 = vld [vmem:[%s7] sm:$0xff]
    %v408 = vld [vmem:[%s7 + $0x8] sm:$0xff]
    %v409 = vld [vmem:[%s7 + $0x10] sm:$0xff]
    %v410 = vld [vmem:[%s7 + $0x18] sm:$0xff]
    %v411 = vld [vmem:[%s7 + $0x20] sm:$0xff]
    %v412 = vld [vmem:[%s7 + $0x28] sm:$0xff]
    %v413 = vld [vmem:[%s7 + $0x30] sm:$0xff]
    %v414 = vld [vmem:[%s7 + $0x38] sm:$0xff]
    %v415 = vld [vmem:[%s7 + $0x40] sm:$0xff]
    %v416 = vld [vmem:[%s7 + $0x48] sm:$0xff]
    %v417 = vld [vmem:[%s7 + $0x50] sm:$0xff]
    %v418 = vld [vmem:[%s7 + $0x58] sm:$0xff]
    %v419 = vld [vmem:[%s7 + $0x60] sm:$0xff]
    %v420 = vld [vmem:[%s7 + $0x68] sm:$0xff]
    %v421 = vld [vmem:[%s7 + $0x70] sm:$0xff]
    %v422 = vld [vmem:[%s7 + $0x78] sm:$0xff]
    %v423 = vld [vmem:[#allocation14] sm:$0xff]
    %v424 = vld [vmem:[#allocation14 + $0x8] sm:$0xff]
    %v425 = vld [vmem:[#allocation14 + $0x10] sm:$0xff]
    %v426 = vld [vmem:[#allocation14 + $0x18] sm:$0xff]
    %v427 = vld [vmem:[#allocation14 + $0x20] sm:$0xff]
    %v428 = vld [vmem:[#allocation14 + $0x28] sm:$0xff]
    %v429 = vld [vmem:[#allocation14 + $0x30] sm:$0xff]
    %v430 = vld [vmem:[#allocation14 + $0x38] sm:$0xff]
    %v431 = vld [vmem:[#allocation14 + $0x40] sm:$0xff]
    %v432 = vld [vmem:[#allocation14 + $0x48] sm:$0xff]
    %v433 = vld [vmem:[#allocation14 + $0x50] sm:$0xff]
    %v434 = vld [vmem:[#allocation14 + $0x58] sm:$0xff]
    %v435 = vld [vmem:[#allocation14 + $0x60] sm:$0xff]
    %v436 = vld [vmem:[#allocation14 + $0x68] sm:$0xff]
    %v437 = vld [vmem:[#allocation14 + $0x70] sm:$0xff]
    %v438 = vld [vmem:[#allocation14 + $0x78] sm:$0xff]
    %439 = vmatprep.subr.mxu0 0.0
    %440 = vmatpush1.msra.mxu0 %v438
    %441 = vmatprep.subr.mxu0 0.0
    %442 = vmatpush1.msra.mxu0 %v437
    %443 = vmatprep.subr.mxu0 0.0
    %444 = vmatpush1.msra.mxu0 %v436
    %445 = vmatprep.subr.mxu0 0.0
    %446 = vmatpush1.msra.mxu0 %v435
    %447 = vmatprep.subr.mxu0 0.0
    %448 = vmatpush1.msra.mxu0 %v434
    %449 = vmatprep.subr.mxu0 0.0
    %450 = vmatpush1.msra.mxu0 %v433
    %451 = vmatprep.subr.mxu0 0.0
    %452 = vmatpush1.msra.mxu0 %v432
    %453 = vmatprep.subr.mxu0 0.0
    %454 = vmatpush1.msra.mxu0 %v431
    %455 = vmatprep.subr.mxu0 0.0
    %456 = vmatpush1.msra.mxu0 %v430
    %457 = vmatprep.subr.mxu0 0.0
    %458 = vmatpush1.msra.mxu0 %v429
    %459 = vmatprep.subr.mxu0 0.0
    %460 = vmatpush1.msra.mxu0 %v428
    %461 = vmatprep.subr.mxu0 0.0
    %462 = vmatpush1.msra.mxu0 %v427
    %463 = vmatprep.subr.mxu0 0.0
    %464 = vmatpush1.msra.mxu0 %v426
    %465 = vmatprep.subr.mxu0 0.0
    %466 = vmatpush1.msra.mxu0 %v425
    %467 = vmatprep.subr.mxu0 0.0
    %468 = vmatpush1.msra.mxu0 %v424
    %469 = vmatprep.subr.mxu0 0.0
    %470 = vmatpush1.msra.mxu0 %v423
    %471 = vmatprep.subr.mxu0 0.0
    %472 = vmatpush2.msra.mxu0 0.0
    %473 = vmatprep.subr.mxu0 0.0
    %474 = vmatpush2.msra.mxu0 0.0
    %475 = vmatprep.subr.mxu0 0.0
    %476 = vmatpush2.msra.mxu0 0.0
    %477 = vmatprep.subr.mxu0 0.0
    %478 = vmatpush2.msra.mxu0 0.0
    %479 = vmatprep.subr.mxu0 0.0
    %480 = vmatpush2.msra.mxu0 0.0
    %481 = vmatprep.subr.mxu0 0.0
    %482 = vmatpush2.msra.mxu0 0.0
    %483 = vmatprep.subr.mxu0 0.0
    %484 = vmatpush2.msra.mxu0 0.0
    %485 = vmatprep.subr.mxu0 0.0
    %486 = vmatpush2.msra.mxu0 0.0
    %487 = vmatprep.subr.mxu0 0.0
    %488 = vmatpush2.msra.mxu0 0.0
    %489 = vmatprep.subr.mxu0 0.0
    %490 = vmatpush2.msra.mxu0 0.0
    %491 = vmatprep.subr.mxu0 0.0
    %492 = vmatpush2.msra.mxu0 0.0
    %493 = vmatprep.subr.mxu0 0.0
    %494 = vmatpush2.msra.mxu0 0.0
    %495 = vmatprep.subr.mxu0 0.0
    %496 = vmatpush2.msra.mxu0 0.0
    %497 = vmatprep.subr.mxu0 0.0
    %498 = vmatpush2.msra.mxu0 0.0
    %499 = vmatprep.subr.mxu0 0.0
    %500 = vmatpush2.msra.mxu0 0.0
    %501 = vmatprep.subr.mxu0 0.0
    %502 = vmatpush2.msra.mxu0 0.0
    %503 = vmatprep.mubr.f32.mxu0 0.0
    %504 = vmatmul.mubr.f32.gmra.mxu0 %v263
    %v505 = vpop.f32.mrf.mxu0
    %v506 = vadd.f32 0.0, %v505
    %v507 = vpop.f32.mrf.mxu0
    %508 = vmatprep.mubr.f32.mxu0 0.0
    %509 = vmatmul.mubr.f32.gmra.mxu0 %v264
    %v510 = vpop.f32.mrf.mxu0
    %v511 = vadd.f32 0.0, %v510
    %v512 = vpop.f32.mrf.mxu0
    %513 = vmatprep.mubr.f32.mxu0 0.0
    %514 = vmatmul.mubr.f32.gmra.mxu0 %v265
    %v515 = vpop.f32.mrf.mxu0
    %v516 = vadd.f32 0.0, %v515
    %v517 = vpop.f32.mrf.mxu0
    %518 = vmatprep.mubr.f32.mxu0 0.0
    %519 = vmatmul.mubr.f32.gmra.mxu0 %v266
    %v520 = vpop.f32.mrf.mxu0
    %v521 = vadd.f32 0.0, %v520
    %v522 = vpop.f32.mrf.mxu0
    %523 = vmatprep.mubr.f32.mxu0 0.0
    %524 = vmatmul.mubr.f32.gmra.mxu0 %v267
    %v525 = vpop.f32.mrf.mxu0
    %v526 = vadd.f32 0.0, %v525
    %v527 = vpop.f32.mrf.mxu0
    %528 = vmatprep.mubr.f32.mxu0 0.0
    %529 = vmatmul.mubr.f32.gmra.mxu0 %v268
    %v530 = vpop.f32.mrf.mxu0
    %v531 = vadd.f32 0.0, %v530
    %v532 = vpop.f32.mrf.mxu0
    %533 = vmatprep.mubr.f32.mxu0 0.0
    %534 = vmatmul.mubr.f32.gmra.mxu0 %v269
    %v535 = vpop.f32.mrf.mxu0
    %v536 = vadd.f32 0.0, %v535
    %v537 = vpop.f32.mrf.mxu0
    %538 = vmatprep.mubr.f32.mxu0 0.0
    %539 = vmatmul.mubr.f32.gmra.mxu0 %v270
    %v540 = vpop.f32.mrf.mxu0
    %v541 = vadd.f32 0.0, %v540
    %v542 = vpop.f32.mrf.mxu0
    %543 = vmatprep.mubr.f32.mxu0 0.0
    %544 = vmatmul.mubr.f32.gmra.mxu0 %v271
    %v545 = vpop.f32.mrf.mxu0
    %v546 = vadd.f32 0.0, %v545
    %v547 = vpop.f32.mrf.mxu0
    %548 = vmatprep.mubr.f32.mxu0 0.0
    %549 = vmatmul.mubr.f32.gmra.mxu0 %v272
    %v550 = vpop.f32.mrf.mxu0
    %v551 = vadd.f32 0.0, %v550
    %v552 = vpop.f32.mrf.mxu0
    %553 = vmatprep.mubr.f32.mxu0 0.0
    %554 = vmatmul.mubr.f32.gmra.mxu0 %v273
    %v555 = vpop.f32.mrf.mxu0
    %v556 = vadd.f32 0.0, %v555
    %v557 = vpop.f32.mrf.mxu0
    %558 = vmatprep.mubr.f32.mxu0 0.0
    %559 = vmatmul.mubr.f32.gmra.mxu0 %v274
    %v560 = vpop.f32.mrf.mxu0
    %v561 = vadd.f32 0.0, %v560
    %v562 = vpop.f32.mrf.mxu0
    %563 = vmatprep.mubr.f32.mxu0 0.0
    %564 = vmatmul.mubr.f32.gmra.mxu0 %v275
    %v565 = vpop.f32.mrf.mxu0
    %v566 = vadd.f32 0.0, %v565
    %v567 = vpop.f32.mrf.mxu0
    %568 = vmatprep.mubr.f32.mxu0 0.0
    %569 = vmatmul.mubr.f32.gmra.mxu0 %v276
    %v570 = vpop.f32.mrf.mxu0
    %v571 = vadd.f32 0.0, %v570
    %v572 = vpop.f32.mrf.mxu0
    %573 = vmatprep.mubr.f32.mxu0 0.0
    %574 = vmatmul.mubr.f32.gmra.mxu0 %v277
    %v575 = vpop.f32.mrf.mxu0
    %v576 = vadd.f32 0.0, %v575
    %v577 = vpop.f32.mrf.mxu0
    %578 = vmatprep.mubr.f32.mxu0 0.0
    %579 = vmatmul.mubr.f32.gmra.mxu0 %v278
    %v580 = vpop.f32.mrf.mxu0
    %v581 = vadd.f32 0.0, %v580
    %v582 = vpop.f32.mrf.mxu0
    %583 = vdwg.mxu0
    %v584 = vld [vmem:[#allocation16] sm:$0xff]
    %v585 = vld [vmem:[#allocation16 + $0x8] sm:$0xff]
    %v586 = vld [vmem:[#allocation16 + $0x10] sm:$0xff]
    %v587 = vld [vmem:[#allocation16 + $0x18] sm:$0xff]
    %v588 = vld [vmem:[#allocation16 + $0x20] sm:$0xff]
    %v589 = vld [vmem:[#allocation16 + $0x28] sm:$0xff]
    %v590 = vld [vmem:[#allocation16 + $0x30] sm:$0xff]
    %v591 = vld [vmem:[#allocation16 + $0x38] sm:$0xff]
    %v592 = vld [vmem:[#allocation16 + $0x40] sm:$0xff]
    %v593 = vld [vmem:[#allocation16 + $0x48] sm:$0xff]
    %v594 = vld [vmem:[#allocation16 + $0x50] sm:$0xff]
    %v595 = vld [vmem:[#allocation16 + $0x58] sm:$0xff]
    %v596 = vld [vmem:[#allocation16 + $0x60] sm:$0xff]
    %v597 = vld [vmem:[#allocation16 + $0x68] sm:$0xff]
    %v598 = vld [vmem:[#allocation16 + $0x70] sm:$0xff]
    %v599 = vld [vmem:[#allocation16 + $0x78] sm:$0xff]
    %600 = vmatprep.subr.mxu0 0.0
    %601 = vmatpush1.msra.mxu0 %v599
    %602 = vmatprep.subr.mxu0 0.0
    %603 = vmatpush1.msra.mxu0 %v598
    %604 = vmatprep.subr.mxu0 0.0
    %605 = vmatpush1.msra.mxu0 %v597
    %606 = vmatprep.subr.mxu0 0.0
    %607 = vmatpush1.msra.mxu0 %v596
    %608 = vmatprep.subr.mxu0 0.0
    %609 = vmatpush1.msra.mxu0 %v595
    %610 = vmatprep.subr.mxu0 0.0
    %611 = vmatpush1.msra.mxu0 %v594
    %612 = vmatprep.subr.mxu0 0.0
    %613 = vmatpush1.msra.mxu0 %v593
    %614 = vmatprep.subr.mxu0 0.0
    %615 = vmatpush1.msra.mxu0 %v592
    %616 = vmatprep.subr.mxu0 0.0
    %617 = vmatpush1.msra.mxu0 %v591
    %618 = vmatprep.subr.mxu0 0.0
    %619 = vmatpush1.msra.mxu0 %v590
    %620 = vmatprep.subr.mxu0 0.0
    %621 = vmatpush1.msra.mxu0 %v589
    %622 = vmatprep.subr.mxu0 0.0
    %623 = vmatpush1.msra.mxu0 %v588
    %624 = vmatprep.subr.mxu0 0.0
    %625 = vmatpush1.msra.mxu0 %v587
    %626 = vmatprep.subr.mxu0 0.0
    %627 = vmatpush1.msra.mxu0 %v586
    %628 = vmatprep.subr.mxu0 0.0
    %629 = vmatpush1.msra.mxu0 %v585
    %630 = vmatprep.subr.mxu0 0.0
    %631 = vmatpush1.msra.mxu0 %v584
    %632 = vmatprep.subr.mxu0 0.0
    %633 = vmatpush2.msra.mxu0 0.0
    %634 = vmatprep.subr.mxu0 0.0
    %635 = vmatpush2.msra.mxu0 0.0
    %636 = vmatprep.subr.mxu0 0.0
    %637 = vmatpush2.msra.mxu0 0.0
    %638 = vmatprep.subr.mxu0 0.0
    %639 = vmatpush2.msra.mxu0 0.0
    %640 = vmatprep.subr.mxu0 0.0
    %641 = vmatpush2.msra.mxu0 0.0
    %642 = vmatprep.subr.mxu0 0.0
    %643 = vmatpush2.msra.mxu0 0.0
    %644 = vmatprep.subr.mxu0 0.0
    %645 = vmatpush2.msra.mxu0 0.0
    %646 = vmatprep.subr.mxu0 0.0
    %647 = vmatpush2.msra.mxu0 0.0
    %648 = vmatprep.subr.mxu0 0.0
    %649 = vmatpush2.msra.mxu0 0.0
    %650 = vmatprep.subr.mxu0 0.0
    %651 = vmatpush2.msra.mxu0 0.0
    %652 = vmatprep.subr.mxu0 0.0
    %653 = vmatpush2.msra.mxu0 0.0
    %654 = vmatprep.subr.mxu0 0.0
    %655 = vmatpush2.msra.mxu0 0.0
    %656 = vmatprep.subr.mxu0 0.0
    %657 = vmatpush2.msra.mxu0 0.0
    %658 = vmatprep.subr.mxu0 0.0
    %659 = vmatpush2.msra.mxu0 0.0
    %660 = vmatprep.subr.mxu0 0.0
    %661 = vmatpush2.msra.mxu0 0.0
    %662 = vmatprep.subr.mxu0 0.0
    %663 = vmatpush2.msra.mxu0 0.0
    %664 = vmatprep.mubr.f32.mxu0 0.0
    %665 = vmatmul.mubr.f32.gmra.mxu0 %v263
    %v666 = vpop.f32.mrf.mxu0
    %v667 = vadd.f32 0.0, %v666
    %v668 = vpop.f32.mrf.mxu0
    %669 = vmatprep.mubr.f32.mxu0 0.0
    %670 = vmatmul.mubr.f32.gmra.mxu0 %v264
    %v671 = vpop.f32.mrf.mxu0
    %v672 = vadd.f32 0.0, %v671
    %v673 = vpop.f32.mrf.mxu0
    %674 = vmatprep.mubr.f32.mxu0 0.0
    %675 = vmatmul.mubr.f32.gmra.mxu0 %v265
    %v676 = vpop.f32.mrf.mxu0
    %v677 = vadd.f32 0.0, %v676
    %v678 = vpop.f32.mrf.mxu0
    %679 = vmatprep.mubr.f32.mxu0 0.0
    %680 = vmatmul.mubr.f32.gmra.mxu0 %v266
    %v681 = vpop.f32.mrf.mxu0
    %v682 = vadd.f32 0.0, %v681
    %v683 = vpop.f32.mrf.mxu0
    %684 = vmatprep.mubr.f32.mxu0 0.0
    %685 = vmatmul.mubr.f32.gmra.mxu0 %v267
    %v686 = vpop.f32.mrf.mxu0
    %v687 = vadd.f32 0.0, %v686
    %v688 = vpop.f32.mrf.mxu0
    %689 = vmatprep.mubr.f32.mxu0 0.0
    %690 = vmatmul.mubr.f32.gmra.mxu0 %v268
    %v691 = vpop.f32.mrf.mxu0
    %v692 = vadd.f32 0.0, %v691
    %v693 = vpop.f32.mrf.mxu0
    %694 = vmatprep.mubr.f32.mxu0 0.0
    %695 = vmatmul.mubr.f32.gmra.mxu0 %v269
    %v696 = vpop.f32.mrf.mxu0
    %v697 = vadd.f32 0.0, %v696
    %v698 = vpop.f32.mrf.mxu0
    %699 = vmatprep.mubr.f32.mxu0 0.0
    %700 = vmatmul.mubr.f32.gmra.mxu0 %v270
    %v701 = vpop.f32.mrf.mxu0
    %v702 = vadd.f32 0.0, %v701
    %v703 = vpop.f32.mrf.mxu0
    %704 = vmatprep.mubr.f32.mxu0 0.0
    %705 = vmatmul.mubr.f32.gmra.mxu0 %v271
    %v706 = vpop.f32.mrf.mxu0
    %v707 = vadd.f32 0.0, %v706
    %v708 = vpop.f32.mrf.mxu0
    %709 = vmatprep.mubr.f32.mxu0 0.0
    %710 = vmatmul.mubr.f32.gmra.mxu0 %v272
    %v711 = vpop.f32.mrf.mxu0
    %v712 = vadd.f32 0.0, %v711
    %v713 = vpop.f32.mrf.mxu0
    %714 = vmatprep.mubr.f32.mxu0 0.0
    %715 = vmatmul.mubr.f32.gmra.mxu0 %v273
    %v716 = vpop.f32.mrf.mxu0
    %v717 = vadd.f32 0.0, %v716
    %v718 = vpop.f32.mrf.mxu0
    %719 = vmatprep.mubr.f32.mxu0 0.0
    %720 = vmatmul.mubr.f32.gmra.mxu0 %v274
    %v721 = vpop.f32.mrf.mxu0
    %v722 = vadd.f32 0.0, %v721
    %v723 = vpop.f32.mrf.mxu0
    %724 = vmatprep.mubr.f32.mxu0 0.0
    %725 = vmatmul.mubr.f32.gmra.mxu0 %v275
    %v726 = vpop.f32.mrf.mxu0
    %v727 = vadd.f32 0.0, %v726
    %v728 = vpop.f32.mrf.mxu0
    %729 = vmatprep.mubr.f32.mxu0 0.0
    %730 = vmatmul.mubr.f32.gmra.mxu0 %v276
    %v731 = vpop.f32.mrf.mxu0
    %v732 = vadd.f32 0.0, %v731
    %v733 = vpop.f32.mrf.mxu0
    %734 = vmatprep.mubr.f32.mxu0 0.0
    %735 = vmatmul.mubr.f32.gmra.mxu0 %v277
    %v736 = vpop.f32.mrf.mxu0
    %v737 = vadd.f32 0.0, %v736
    %v738 = vpop.f32.mrf.mxu0
    %739 = vmatprep.mubr.f32.mxu0 0.0
    %740 = vmatmul.mubr.f32.gmra.mxu0 %v278
    %v741 = vpop.f32.mrf.mxu0
    %v742 = vadd.f32 0.0, %v741
    %v743 = vpop.f32.mrf.mxu0
    %744 = vdwg.mxu0
    %745 = vmatprep.subr.mxu0 0.0
    %746 = vmatpush1.msra.mxu0 %v742
    %747 = vmatprep.subr.mxu0 0.0
    %748 = vmatpush1.msra.mxu0 %v737
    %749 = vmatprep.subr.mxu0 0.0
    %750 = vmatpush1.msra.mxu0 %v732
    %751 = vmatprep.subr.mxu0 0.0
    %752 = vmatpush1.msra.mxu0 %v727
    %753 = vmatprep.subr.mxu0 0.0
    %754 = vmatpush1.msra.mxu0 %v722
    %755 = vmatprep.subr.mxu0 0.0
    %756 = vmatpush1.msra.mxu0 %v717
    %757 = vmatprep.subr.mxu0 0.0
    %758 = vmatpush1.msra.mxu0 %v712
    %759 = vmatprep.subr.mxu0 0.0
    %760 = vmatpush1.msra.mxu0 %v707
    %761 = vmatprep.subr.mxu0 0.0
    %762 = vmatpush1.msra.mxu0 %v702
    %763 = vmatprep.subr.mxu0 0.0
    %764 = vmatpush1.msra.mxu0 %v697
    %765 = vmatprep.subr.mxu0 0.0
    %766 = vmatpush1.msra.mxu0 %v692
    %767 = vmatprep.subr.mxu0 0.0
    %768 = vmatpush1.msra.mxu0 %v687
    %769 = vmatprep.subr.mxu0 0.0
    %770 = vmatpush1.msra.mxu0 %v682
    %771 = vmatprep.subr.mxu0 0.0
    %772 = vmatpush1.msra.mxu0 %v677
    %773 = vmatprep.subr.mxu0 0.0
    %774 = vmatpush1.msra.mxu0 %v672
    %775 = vmatprep.subr.mxu0 0.0
    %776 = vmatpush1.msra.mxu0 %v667
    %777 = vmatprep.subr.mxu0 0.0
    %778 = vmatpush2.msra.mxu0 0.0
    %779 = vmatprep.subr.mxu0 0.0
    %780 = vmatpush2.msra.mxu0 0.0
    %781 = vmatprep.subr.mxu0 0.0
    %782 = vmatpush2.msra.mxu0 0.0
    %783 = vmatprep.subr.mxu0 0.0
    %784 = vmatpush2.msra.mxu0 0.0
    %785 = vmatprep.subr.mxu0 0.0
    %786 = vmatpush2.msra.mxu0 0.0
    %787 = vmatprep.subr.mxu0 0.0
    %788 = vmatpush2.msra.mxu0 0.0
    %789 = vmatprep.subr.mxu0 0.0
    %790 = vmatpush2.msra.mxu0 0.0
    %791 = vmatprep.subr.mxu0 0.0
    %792 = vmatpush2.msra.mxu0 0.0
    %793 = vmatprep.subr.mxu0 0.0
    %794 = vmatpush2.msra.mxu0 0.0
    %795 = vmatprep.subr.mxu0 0.0
    %796 = vmatpush2.msra.mxu0 0.0
    %797 = vmatprep.subr.mxu0 0.0
    %798 = vmatpush2.msra.mxu0 0.0
    %799 = vmatprep.subr.mxu0 0.0
    %800 = vmatpush2.msra.mxu0 0.0
    %801 = vmatprep.subr.mxu0 0.0
    %802 = vmatpush2.msra.mxu0 0.0
    %803 = vmatprep.subr.mxu0 0.0
    %804 = vmatpush2.msra.mxu0 0.0
    %805 = vmatprep.subr.mxu0 0.0
    %806 = vmatpush2.msra.mxu0 0.0
    %807 = vmatprep.subr.mxu0 0.0
    %808 = vmatpush2.msra.mxu0 0.0
    %809 = vmatprep.mubr.f32.mxu0 0.0
    %810 = vmatmul.mubr.f32.gmra.mxu0 %v343
    %v811 = vpop.f32.mrf.mxu0
    %v812 = vadd.f32 0.0, %v811
    %v813 = vpop.f32.mrf.mxu0
    %814 = vmatprep.mubr.f32.mxu0 0.0
    %815 = vmatmul.mubr.f32.gmra.mxu0 %v344
    %v816 = vpop.f32.mrf.mxu0
    %v817 = vadd.f32 0.0, %v816
    %v818 = vpop.f32.mrf.mxu0
    %819 = vmatprep.mubr.f32.mxu0 0.0
    %820 = vmatmul.mubr.f32.gmra.mxu0 %v345
    %v821 = vpop.f32.mrf.mxu0
    %v822 = vadd.f32 0.0, %v821
    %v823 = vpop.f32.mrf.mxu0
    %824 = vmatprep.mubr.f32.mxu0 0.0
    %825 = vmatmul.mubr.f32.gmra.mxu0 %v346
    %v826 = vpop.f32.mrf.mxu0
    %v827 = vadd.f32 0.0, %v826
    %v828 = vpop.f32.mrf.mxu0
    %829 = vmatprep.mubr.f32.mxu0 0.0
    %830 = vmatmul.mubr.f32.gmra.mxu0 %v347
    %v831 = vpop.f32.mrf.mxu0
    %v832 = vadd.f32 0.0, %v831
    %v833 = vpop.f32.mrf.mxu0
    %834 = vmatprep.mubr.f32.mxu0 0.0
    %835 = vmatmul.mubr.f32.gmra.mxu0 %v348
    %v836 = vpop.f32.mrf.mxu0
    %v837 = vadd.f32 0.0, %v836
    %v838 = vpop.f32.mrf.mxu0
    %839 = vmatprep.mubr.f32.mxu0 0.0
    %840 = vmatmul.mubr.f32.gmra.mxu0 %v349
    %v841 = vpop.f32.mrf.mxu0
    %v842 = vadd.f32 0.0, %v841
    %v843 = vpop.f32.mrf.mxu0
    %844 = vmatprep.mubr.f32.mxu0 0.0
    %845 = vmatmul.mubr.f32.gmra.mxu0 %v350
    %v846 = vpop.f32.mrf.mxu0
    %v847 = vadd.f32 0.0, %v846
    %v848 = vpop.f32.mrf.mxu0
    %849 = vmatprep.mubr.f32.mxu0 0.0
    %850 = vmatmul.mubr.f32.gmra.mxu0 %v351
    %v851 = vpop.f32.mrf.mxu0
    %v852 = vadd.f32 0.0, %v851
    %v853 = vpop.f32.mrf.mxu0
    %854 = vmatprep.mubr.f32.mxu0 0.0
    %855 = vmatmul.mubr.f32.gmra.mxu0 %v352
    %v856 = vpop.f32.mrf.mxu0
    %v857 = vadd.f32 0.0, %v856
    %v858 = vpop.f32.mrf.mxu0
    %859 = vmatprep.mubr.f32.mxu0 0.0
    %860 = vmatmul.mubr.f32.gmra.mxu0 %v353
    %v861 = vpop.f32.mrf.mxu0
    %v862 = vadd.f32 0.0, %v861
    %v863 = vpop.f32.mrf.mxu0
    %864 = vmatprep.mubr.f32.mxu0 0.0
    %865 = vmatmul.mubr.f32.gmra.mxu0 %v354
    %v866 = vpop.f32.mrf.mxu0
    %v867 = vadd.f32 0.0, %v866
    %v868 = vpop.f32.mrf.mxu0
    %869 = vmatprep.mubr.f32.mxu0 0.0
    %870 = vmatmul.mubr.f32.gmra.mxu0 %v355
    %v871 = vpop.f32.mrf.mxu0
    %v872 = vadd.f32 0.0, %v871
    %v873 = vpop.f32.mrf.mxu0
    %874 = vmatprep.mubr.f32.mxu0 0.0
    %875 = vmatmul.mubr.f32.gmra.mxu0 %v356
    %v876 = vpop.f32.mrf.mxu0
    %v877 = vadd.f32 0.0, %v876
    %v878 = vpop.f32.mrf.mxu0
    %879 = vmatprep.mubr.f32.mxu0 0.0
    %880 = vmatmul.mubr.f32.gmra.mxu0 %v357
    %v881 = vpop.f32.mrf.mxu0
    %v882 = vadd.f32 0.0, %v881
    %v883 = vpop.f32.mrf.mxu0
    %884 = vmatprep.mubr.f32.mxu0 0.0
    %885 = vmatmul.mubr.f32.gmra.mxu0 %v358
    %v886 = vpop.f32.mrf.mxu0
    %v887 = vadd.f32 0.0, %v886
    %v888 = vpop.f32.mrf.mxu0
    %889 = vdwg.mxu0
    %890 = vmatprep.subr.mxu0 0.0
    %891 = vmatpush1.msra.mxu0 %v581
    %892 = vmatprep.subr.mxu0 0.0
    %893 = vmatpush1.msra.mxu0 %v576
    %894 = vmatprep.subr.mxu0 0.0
    %895 = vmatpush1.msra.mxu0 %v571
    %896 = vmatprep.subr.mxu0 0.0
    %897 = vmatpush1.msra.mxu0 %v566
    %898 = vmatprep.subr.mxu0 0.0
    %899 = vmatpush1.msra.mxu0 %v561
    %900 = vmatprep.subr.mxu0 0.0
    %901 = vmatpush1.msra.mxu0 %v556
    %902 = vmatprep.subr.mxu0 0.0
    %903 = vmatpush1.msra.mxu0 %v551
    %904 = vmatprep.subr.mxu0 0.0
    %905 = vmatpush1.msra.mxu0 %v546
    %906 = vmatprep.subr.mxu0 0.0
    %907 = vmatpush1.msra.mxu0 %v541
    %908 = vmatprep.subr.mxu0 0.0
    %909 = vmatpush1.msra.mxu0 %v536
    %910 = vmatprep.subr.mxu0 0.0
    %911 = vmatpush1.msra.mxu0 %v531
    %912 = vmatprep.subr.mxu0 0.0
    %913 = vmatpush1.msra.mxu0 %v526
    %914 = vmatprep.subr.mxu0 0.0
    %915 = vmatpush1.msra.mxu0 %v521
    %916 = vmatprep.subr.mxu0 0.0
    %917 = vmatpush1.msra.mxu0 %v516
    %918 = vmatprep.subr.mxu0 0.0
    %919 = vmatpush1.msra.mxu0 %v511
    %920 = vmatprep.subr.mxu0 0.0
    %921 = vmatpush1.msra.mxu0 %v506
    %922 = vmatprep.subr.mxu0 0.0
    %923 = vmatpush2.msra.mxu0 0.0
    %924 = vmatprep.subr.mxu0 0.0
    %925 = vmatpush2.msra.mxu0 0.0
    %926 = vmatprep.subr.mxu0 0.0
    %927 = vmatpush2.msra.mxu0 0.0
    %928 = vmatprep.subr.mxu0 0.0
    %929 = vmatpush2.msra.mxu0 0.0
    %930 = vmatprep.subr.mxu0 0.0
    %931 = vmatpush2.msra.mxu0 0.0
    %932 = vmatprep.subr.mxu0 0.0
    %933 = vmatpush2.msra.mxu0 0.0
    %934 = vmatprep.subr.mxu0 0.0
    %935 = vmatpush2.msra.mxu0 0.0
    %936 = vmatprep.subr.mxu0 0.0
    %937 = vmatpush2.msra.mxu0 0.0
    %938 = vmatprep.subr.mxu0 0.0
    %939 = vmatpush2.msra.mxu0 0.0
    %940 = vmatprep.subr.mxu0 0.0
    %941 = vmatpush2.msra.mxu0 0.0
    %942 = vmatprep.subr.mxu0 0.0
    %943 = vmatpush2.msra.mxu0 0.0
    %944 = vmatprep.subr.mxu0 0.0
    %945 = vmatpush2.msra.mxu0 0.0
    %946 = vmatprep.subr.mxu0 0.0
    %947 = vmatpush2.msra.mxu0 0.0
    %948 = vmatprep.subr.mxu0 0.0
    %949 = vmatpush2.msra.mxu0 0.0
    %950 = vmatprep.subr.mxu0 0.0
    %951 = vmatpush2.msra.mxu0 0.0
    %952 = vmatprep.subr.mxu0 0.0
    %953 = vmatpush2.msra.mxu0 0.0
    %954 = vmatprep.mubr.f32.mxu0 0.0
    %955 = vmatmul.mubr.f32.gmra.mxu0 %v311
    %v956 = vpop.f32.mrf.mxu0
    %v957 = vadd.f32 %v812, %v956
    %v958 = vpop.f32.mrf.mxu0
    %959 = vmatprep.mubr.f32.mxu0 0.0
    %960 = vmatmul.mubr.f32.gmra.mxu0 %v312
    %v961 = vpop.f32.mrf.mxu0
    %v962 = vadd.f32 %v817, %v961
    %v963 = vpop.f32.mrf.mxu0
    %964 = vmatprep.mubr.f32.mxu0 0.0
    %965 = vmatmul.mubr.f32.gmra.mxu0 %v313
    %v966 = vpop.f32.mrf.mxu0
    %v967 = vadd.f32 %v822, %v966
    %v968 = vpop.f32.mrf.mxu0
    %969 = vmatprep.mubr.f32.mxu0 0.0
    %970 = vmatmul.mubr.f32.gmra.mxu0 %v314
    %v971 = vpop.f32.mrf.mxu0
    %v972 = vadd.f32 %v827, %v971
    %v973 = vpop.f32.mrf.mxu0
    %974 = vmatprep.mubr.f32.mxu0 0.0
    %975 = vmatmul.mubr.f32.gmra.mxu0 %v315
    %v976 = vpop.f32.mrf.mxu0
    %v977 = vadd.f32 %v832, %v976
    %v978 = vpop.f32.mrf.mxu0
    %979 = vmatprep.mubr.f32.mxu0 0.0
    %980 = vmatmul.mubr.f32.gmra.mxu0 %v316
    %v981 = vpop.f32.mrf.mxu0
    %v982 = vadd.f32 %v837, %v981
    %v983 = vpop.f32.mrf.mxu0
    %984 = vmatprep.mubr.f32.mxu0 0.0
    %985 = vmatmul.mubr.f32.gmra.mxu0 %v317
    %v986 = vpop.f32.mrf.mxu0
    %v987 = vadd.f32 %v842, %v986
    %v988 = vpop.f32.mrf.mxu0
    %989 = vmatprep.mubr.f32.mxu0 0.0
    %990 = vmatmul.mubr.f32.gmra.mxu0 %v318
    %v991 = vpop.f32.mrf.mxu0
    %v992 = vadd.f32 %v847, %v991
    %v993 = vpop.f32.mrf.mxu0
    %994 = vmatprep.mubr.f32.mxu0 0.0
    %995 = vmatmul.mubr.f32.gmra.mxu0 %v319
    %v996 = vpop.f32.mrf.mxu0
    %v997 = vadd.f32 %v852, %v996
    %v998 = vpop.f32.mrf.mxu0
    %999 = vmatprep.mubr.f32.mxu0 0.0
    %1000 = vmatmul.mubr.f32.gmra.mxu0 %v320
    %v1001 = vpop.f32.mrf.mxu0
    %v1002 = vadd.f32 %v857, %v1001
    %v1003 = vpop.f32.mrf.mxu0
    %1004 = vmatprep.mubr.f32.mxu0 0.0
    %1005 = vmatmul.mubr.f32.gmra.mxu0 %v321
    %v1006 = vpop.f32.mrf.mxu0
    %v1007 = vadd.f32 %v862, %v1006
    %v1008 = vpop.f32.mrf.mxu0
    %1009 = vmatprep.mubr.f32.mxu0 0.0
    %1010 = vmatmul.mubr.f32.gmra.mxu0 %v322
    %v1011 = vpop.f32.mrf.mxu0
    %v1012 = vadd.f32 %v867, %v1011
    %v1013 = vpop.f32.mrf.mxu0
    %1014 = vmatprep.mubr.f32.mxu0 0.0
    %1015 = vmatmul.mubr.f32.gmra.mxu0 %v323
    %v1016 = vpop.f32.mrf.mxu0
    %v1017 = vadd.f32 %v872, %v1016
    %v1018 = vpop.f32.mrf.mxu0
    %1019 = vmatprep.mubr.f32.mxu0 0.0
    %1020 = vmatmul.mubr.f32.gmra.mxu0 %v324
    %v1021 = vpop.f32.mrf.mxu0
    %v1022 = vadd.f32 %v877, %v1021
    %v1023 = vpop.f32.mrf.mxu0
    %1024 = vmatprep.mubr.f32.mxu0 0.0
    %1025 = vmatmul.mubr.f32.gmra.mxu0 %v325
    %v1026 = vpop.f32.mrf.mxu0
    %v1027 = vadd.f32 %v882, %v1026
    %v1028 = vpop.f32.mrf.mxu0
    %1029 = vmatprep.mubr.f32.mxu0 0.0
    %1030 = vmatmul.mubr.f32.gmra.mxu0 %v326
    %v1031 = vpop.f32.mrf.mxu0
    %v1032 = vadd.f32 %v887, %v1031
    %v1033 = vpop.f32.mrf.mxu0
    %1034 = vdwg.mxu0
    %v1035 = vld [vmem:[#allocation17] sm:$0xff]
    %v1036 = vld [vmem:[#allocation17 + $0x8] sm:$0xff]
    %v1037 = vld [vmem:[#allocation17 + $0x10] sm:$0xff]
    %v1038 = vld [vmem:[#allocation17 + $0x18] sm:$0xff]
    %v1039 = vld [vmem:[#allocation17 + $0x20] sm:$0xff]
    %v1040 = vld [vmem:[#allocation17 + $0x28] sm:$0xff]
    %v1041 = vld [vmem:[#allocation17 + $0x30] sm:$0xff]
    %v1042 = vld [vmem:[#allocation17 + $0x38] sm:$0xff]
    %v1043 = vld [vmem:[#allocation17 + $0x40] sm:$0xff]
    %v1044 = vld [vmem:[#allocation17 + $0x48] sm:$0xff]
    %v1045 = vld [vmem:[#allocation17 + $0x50] sm:$0xff]
    %v1046 = vld [vmem:[#allocation17 + $0x58] sm:$0xff]
    %v1047 = vld [vmem:[#allocation17 + $0x60] sm:$0xff]
    %v1048 = vld [vmem:[#allocation17 + $0x68] sm:$0xff]
    %v1049 = vld [vmem:[#allocation17 + $0x70] sm:$0xff]
    %v1050 = vld [vmem:[#allocation17 + $0x78] sm:$0xff]
    %1051 = vmatprep.subr.mxu0 0.0
    %1052 = vmatpush1.msra.mxu0 %v1050
    %1053 = vmatprep.subr.mxu0 0.0
    %1054 = vmatpush1.msra.mxu0 %v1049
    %1055 = vmatprep.subr.mxu0 0.0
    %1056 = vmatpush1.msra.mxu0 %v1048
    %1057 = vmatprep.subr.mxu0 0.0
    %1058 = vmatpush1.msra.mxu0 %v1047
    %1059 = vmatprep.subr.mxu0 0.0
    %1060 = vmatpush1.msra.mxu0 %v1046
    %1061 = vmatprep.subr.mxu0 0.0
    %1062 = vmatpush1.msra.mxu0 %v1045
    %1063 = vmatprep.subr.mxu0 0.0
    %1064 = vmatpush1.msra.mxu0 %v1044
    %1065 = vmatprep.subr.mxu0 0.0
    %1066 = vmatpush1.msra.mxu0 %v1043
    %1067 = vmatprep.subr.mxu0 0.0
    %1068 = vmatpush1.msra.mxu0 %v1042
    %1069 = vmatprep.subr.mxu0 0.0
    %1070 = vmatpush1.msra.mxu0 %v1041
    %1071 = vmatprep.subr.mxu0 0.0
    %1072 = vmatpush1.msra.mxu0 %v1040
    %1073 = vmatprep.subr.mxu0 0.0
    %1074 = vmatpush1.msra.mxu0 %v1039
    %1075 = vmatprep.subr.mxu0 0.0
    %1076 = vmatpush1.msra.mxu0 %v1038
    %1077 = vmatprep.subr.mxu0 0.0
    %1078 = vmatpush1.msra.mxu0 %v1037
    %1079 = vmatprep.subr.mxu0 0.0
    %1080 = vmatpush1.msra.mxu0 %v1036
    %1081 = vmatprep.subr.mxu0 0.0
    %1082 = vmatpush1.msra.mxu0 %v1035
    %1083 = vmatprep.subr.mxu0 0.0
    %1084 = vmatpush2.msra.mxu0 0.0
    %1085 = vmatprep.subr.mxu0 0.0
    %1086 = vmatpush2.msra.mxu0 0.0
    %1087 = vmatprep.subr.mxu0 0.0
    %1088 = vmatpush2.msra.mxu0 0.0
    %1089 = vmatprep.subr.mxu0 0.0
    %1090 = vmatpush2.msra.mxu0 0.0
    %1091 = vmatprep.subr.mxu0 0.0
    %1092 = vmatpush2.msra.mxu0 0.0
    %1093 = vmatprep.subr.mxu0 0.0
    %1094 = vmatpush2.msra.mxu0 0.0
    %1095 = vmatprep.subr.mxu0 0.0
    %1096 = vmatpush2.msra.mxu0 0.0
    %1097 = vmatprep.subr.mxu0 0.0
    %1098 = vmatpush2.msra.mxu0 0.0
    %1099 = vmatprep.subr.mxu0 0.0
    %1100 = vmatpush2.msra.mxu0 0.0
    %1101 = vmatprep.subr.mxu0 0.0
    %1102 = vmatpush2.msra.mxu0 0.0
    %1103 = vmatprep.subr.mxu0 0.0
    %1104 = vmatpush2.msra.mxu0 0.0
    %1105 = vmatprep.subr.mxu0 0.0
    %1106 = vmatpush2.msra.mxu0 0.0
    %1107 = vmatprep.subr.mxu0 0.0
    %1108 = vmatpush2.msra.mxu0 0.0
    %1109 = vmatprep.subr.mxu0 0.0
    %1110 = vmatpush2.msra.mxu0 0.0
    %1111 = vmatprep.subr.mxu0 0.0
    %1112 = vmatpush2.msra.mxu0 0.0
    %1113 = vmatprep.subr.mxu0 0.0
    %1114 = vmatpush2.msra.mxu0 0.0
    %1115 = vmatprep.mubr.f32.mxu0 0.0
    %1116 = vmatmul.mubr.f32.gmra.mxu0 %v279
    %v1117 = vpop.f32.mrf.mxu0
    %v1118 = vadd.f32 0.0, %v1117
    %v1119 = vpop.f32.mrf.mxu0
    %1120 = vmatprep.mubr.f32.mxu0 0.0
    %1121 = vmatmul.mubr.f32.gmra.mxu0 %v280
    %v1122 = vpop.f32.mrf.mxu0
    %v1123 = vadd.f32 0.0, %v1122
    %v1124 = vpop.f32.mrf.mxu0
    %1125 = vmatprep.mubr.f32.mxu0 0.0
    %1126 = vmatmul.mubr.f32.gmra.mxu0 %v281
    %v1127 = vpop.f32.mrf.mxu0
    %v1128 = vadd.f32 0.0, %v1127
    %v1129 = vpop.f32.mrf.mxu0
    %1130 = vmatprep.mubr.f32.mxu0 0.0
    %1131 = vmatmul.mubr.f32.gmra.mxu0 %v282
    %v1132 = vpop.f32.mrf.mxu0
    %v1133 = vadd.f32 0.0, %v1132
    %v1134 = vpop.f32.mrf.mxu0
    %1135 = vmatprep.mubr.f32.mxu0 0.0
    %1136 = vmatmul.mubr.f32.gmra.mxu0 %v283
    %v1137 = vpop.f32.mrf.mxu0
    %v1138 = vadd.f32 0.0, %v1137
    %v1139 = vpop.f32.mrf.mxu0
    %1140 = vmatprep.mubr.f32.mxu0 0.0
    %1141 = vmatmul.mubr.f32.gmra.mxu0 %v284
    %v1142 = vpop.f32.mrf.mxu0
    %v1143 = vadd.f32 0.0, %v1142
    %v1144 = vpop.f32.mrf.mxu0
    %1145 = vmatprep.mubr.f32.mxu0 0.0
    %1146 = vmatmul.mubr.f32.gmra.mxu0 %v285
    %v1147 = vpop.f32.mrf.mxu0
    %v1148 = vadd.f32 0.0, %v1147
    %v1149 = vpop.f32.mrf.mxu0
    %1150 = vmatprep.mubr.f32.mxu0 0.0
    %1151 = vmatmul.mubr.f32.gmra.mxu0 %v286
    %v1152 = vpop.f32.mrf.mxu0
    %v1153 = vadd.f32 0.0, %v1152
    %v1154 = vpop.f32.mrf.mxu0
    %1155 = vmatprep.mubr.f32.mxu0 0.0
    %1156 = vmatmul.mubr.f32.gmra.mxu0 %v287
    %v1157 = vpop.f32.mrf.mxu0
    %v1158 = vadd.f32 0.0, %v1157
    %v1159 = vpop.f32.mrf.mxu0
    %1160 = vmatprep.mubr.f32.mxu0 0.0
    %1161 = vmatmul.mubr.f32.gmra.mxu0 %v288
    %v1162 = vpop.f32.mrf.mxu0
    %v1163 = vadd.f32 0.0, %v1162
    %v1164 = vpop.f32.mrf.mxu0
    %1165 = vmatprep.mubr.f32.mxu0 0.0
    %1166 = vmatmul.mubr.f32.gmra.mxu0 %v289
    %v1167 = vpop.f32.mrf.mxu0
    %v1168 = vadd.f32 0.0, %v1167
    %v1169 = vpop.f32.mrf.mxu0
    %1170 = vmatprep.mubr.f32.mxu0 0.0
    %1171 = vmatmul.mubr.f32.gmra.mxu0 %v290
    %v1172 = vpop.f32.mrf.mxu0
    %v1173 = vadd.f32 0.0, %v1172
    %v1174 = vpop.f32.mrf.mxu0
    %1175 = vmatprep.mubr.f32.mxu0 0.0
    %1176 = vmatmul.mubr.f32.gmra.mxu0 %v291
    %v1177 = vpop.f32.mrf.mxu0
    %v1178 = vadd.f32 0.0, %v1177
    %v1179 = vpop.f32.mrf.mxu0
    %1180 = vmatprep.mubr.f32.mxu0 0.0
    %1181 = vmatmul.mubr.f32.gmra.mxu0 %v292
    %v1182 = vpop.f32.mrf.mxu0
    %v1183 = vadd.f32 0.0, %v1182
    %v1184 = vpop.f32.mrf.mxu0
    %1185 = vmatprep.mubr.f32.mxu0 0.0
    %1186 = vmatmul.mubr.f32.gmra.mxu0 %v293
    %v1187 = vpop.f32.mrf.mxu0
    %v1188 = vadd.f32 0.0, %v1187
    %v1189 = vpop.f32.mrf.mxu0
    %1190 = vmatprep.mubr.f32.mxu0 0.0
    %1191 = vmatmul.mubr.f32.gmra.mxu0 %v294
    %v1192 = vpop.f32.mrf.mxu0
    %v1193 = vadd.f32 0.0, %v1192
    %v1194 = vpop.f32.mrf.mxu0
    %1195 = vdwg.mxu0
    %v1196 = vadd.f32 %v957, %v1118
    %v1197 = vadd.f32 %v962, %v1123
    %v1198 = vadd.f32 %v967, %v1128
    %v1199 = vadd.f32 %v972, %v1133
    %v1200 = vadd.f32 %v977, %v1138
    %v1201 = vadd.f32 %v982, %v1143
    %v1202 = vadd.f32 %v987, %v1148
    %v1203 = vadd.f32 %v992, %v1153
    %v1204 = vadd.f32 %v997, %v1158
    %v1205 = vadd.f32 %v1002, %v1163
    %v1206 = vadd.f32 %v1007, %v1168
    %v1207 = vadd.f32 %v1012, %v1173
    %v1208 = vadd.f32 %v1017, %v1178
    %v1209 = vadd.f32 %v1022, %v1183
    %v1210 = vadd.f32 %v1027, %v1188
    %v1211 = vadd.f32 %v1032, %v1193
    %v1212 = vld [vmem:[%s14] sm:$0x1]
    %v1213 = vlaneseq
    %v1214 = vshrl.u32 %v1213, 7
    %v1215 = vsub.s32 0, %v1214
    %v1216 = vrot.slane %v1212, %v1215
    %v1217 = vadd.f32 %v1196, %v1216
    %v1218 = vadd.f32 %v1197, %v1216
    %v1219 = vadd.f32 %v1198, %v1216
    %v1220 = vadd.f32 %v1199, %v1216
    %v1221 = vadd.f32 %v1200, %v1216
    %v1222 = vadd.f32 %v1201, %v1216
    %v1223 = vadd.f32 %v1202, %v1216
    %v1224 = vadd.f32 %v1203, %v1216
    %v1225 = vadd.f32 %v1204, %v1216
    %v1226 = vadd.f32 %v1205, %v1216
    %v1227 = vadd.f32 %v1206, %v1216
    %v1228 = vadd.f32 %v1207, %v1216
    %v1229 = vadd.f32 %v1208, %v1216
    %v1230 = vadd.f32 %v1209, %v1216
    %v1231 = vadd.f32 %v1210, %v1216
    %v1232 = vadd.f32 %v1211, %v1216
    %v1233 = vmax.f32 %v1217, 0.0
    %v1234 = vmax.f32 %v1218, 0.0
    %v1235 = vmax.f32 %v1219, 0.0
    %v1236 = vmax.f32 %v1220, 0.0
    %v1237 = vmax.f32 %v1221, 0.0
    %v1238 = vmax.f32 %v1222, 0.0
    %v1239 = vmax.f32 %v1223, 0.0
    %v1240 = vmax.f32 %v1224, 0.0
    %v1241 = vmax.f32 %v1225, 0.0
    %v1242 = vmax.f32 %v1226, 0.0
    %v1243 = vmax.f32 %v1227, 0.0
    %v1244 = vmax.f32 %v1228, 0.0
    %v1245 = vmax.f32 %v1229, 0.0
    %v1246 = vmax.f32 %v1230, 0.0
    %v1247 = vmax.f32 %v1231, 0.0
    %v1248 = vmax.f32 %v1232, 0.0
    %v1249 = vld [vmem:[#allocation19] sm:$0xff]
    %v1250 = vld [vmem:[#allocation19 + $0x8] sm:$0xff]
    %v1251 = vld [vmem:[#allocation19 + $0x10] sm:$0xff]
    %v1252 = vld [vmem:[#allocation19 + $0x18] sm:$0xff]
    %v1253 = vld [vmem:[#allocation19 + $0x20] sm:$0xff]
    %v1254 = vld [vmem:[#allocation19 + $0x28] sm:$0xff]
    %v1255 = vld [vmem:[#allocation19 + $0x30] sm:$0xff]
    %v1256 = vld [vmem:[#allocation19 + $0x38] sm:$0xff]
    %v1257 = vld [vmem:[#allocation19 + $0x40] sm:$0xff]
    %v1258 = vld [vmem:[#allocation19 + $0x48] sm:$0xff]
    %v1259 = vld [vmem:[#allocation19 + $0x50] sm:$0xff]
    %v1260 = vld [vmem:[#allocation19 + $0x58] sm:$0xff]
    %v1261 = vld [vmem:[#allocation19 + $0x60] sm:$0xff]
    %v1262 = vld [vmem:[#allocation19 + $0x68] sm:$0xff]
    %v1263 = vld [vmem:[#allocation19 + $0x70] sm:$0xff]
    %v1264 = vld [vmem:[#allocation19 + $0x78] sm:$0xff]
    %v1265 = vld [vmem:[%s16] sm:$0x1]
    %v1266 = vlaneseq
    %v1267 = vshrl.u32 %v1266, 7
    %v1268 = vsub.s32 0, %v1267
    %v1269 = vrot.slane %v1265, %v1268
    %1270 = vmatprep.subr.mxu0 0.0
    %1271 = vmatpush1.msra.mxu0 %v1264
    %1272 = vmatprep.subr.mxu0 0.0
    %1273 = vmatpush1.msra.mxu0 %v1263
    %1274 = vmatprep.subr.mxu0 0.0
    %1275 = vmatpush1.msra.mxu0 %v1262
    %1276 = vmatprep.subr.mxu0 0.0
    %1277 = vmatpush1.msra.mxu0 %v1261
    %1278 = vmatprep.subr.mxu0 0.0
    %1279 = vmatpush1.msra.mxu0 %v1260
    %1280 = vmatprep.subr.mxu0 0.0
    %1281 = vmatpush1.msra.mxu0 %v1259
    %1282 = vmatprep.subr.mxu0 0.0
    %1283 = vmatpush1.msra.mxu0 %v1258
    %1284 = vmatprep.subr.mxu0 0.0
    %1285 = vmatpush1.msra.mxu0 %v1257
    %1286 = vmatprep.subr.mxu0 0.0
    %1287 = vmatpush1.msra.mxu0 %v1256
    %1288 = vmatprep.subr.mxu0 0.0
    %1289 = vmatpush1.msra.mxu0 %v1255
    %1290 = vmatprep.subr.mxu0 0.0
    %1291 = vmatpush1.msra.mxu0 %v1254
    %1292 = vmatprep.subr.mxu0 0.0
    %1293 = vmatpush1.msra.mxu0 %v1253
    %1294 = vmatprep.subr.mxu0 0.0
    %1295 = vmatpush1.msra.mxu0 %v1252
    %1296 = vmatprep.subr.mxu0 0.0
    %1297 = vmatpush1.msra.mxu0 %v1251
    %1298 = vmatprep.subr.mxu0 0.0
    %1299 = vmatpush1.msra.mxu0 %v1250
    %1300 = vmatprep.subr.mxu0 0.0
    %1301 = vmatpush1.msra.mxu0 %v1249
    %1302 = vmatprep.subr.mxu0 0.0
    %1303 = vmatpush2.msra.mxu0 0.0
    %1304 = vmatprep.subr.mxu0 0.0
    %1305 = vmatpush2.msra.mxu0 0.0
    %1306 = vmatprep.subr.mxu0 0.0
    %1307 = vmatpush2.msra.mxu0 0.0
    %1308 = vmatprep.subr.mxu0 0.0
    %1309 = vmatpush2.msra.mxu0 0.0
    %1310 = vmatprep.subr.mxu0 0.0
    %1311 = vmatpush2.msra.mxu0 0.0
    %1312 = vmatprep.subr.mxu0 0.0
    %1313 = vmatpush2.msra.mxu0 0.0
    %1314 = vmatprep.subr.mxu0 0.0
    %1315 = vmatpush2.msra.mxu0 0.0
    %1316 = vmatprep.subr.mxu0 0.0
    %1317 = vmatpush2.msra.mxu0 0.0
    %1318 = vmatprep.subr.mxu0 0.0
    %1319 = vmatpush2.msra.mxu0 0.0
    %1320 = vmatprep.subr.mxu0 0.0
    %1321 = vmatpush2.msra.mxu0 0.0
    %1322 = vmatprep.subr.mxu0 0.0
    %1323 = vmatpush2.msra.mxu0 0.0
    %1324 = vmatprep.subr.mxu0 0.0
    %1325 = vmatpush2.msra.mxu0 0.0
    %1326 = vmatprep.subr.mxu0 0.0
    %1327 = vmatpush2.msra.mxu0 0.0
    %1328 = vmatprep.subr.mxu0 0.0
    %1329 = vmatpush2.msra.mxu0 0.0
    %1330 = vmatprep.subr.mxu0 0.0
    %1331 = vmatpush2.msra.mxu0 0.0
    %1332 = vmatprep.subr.mxu0 0.0
    %1333 = vmatpush2.msra.mxu0 0.0
    %1334 = vmatprep.mubr.f32.mxu0 0.0
    %1335 = vmatmul.mubr.f32.gmra.mxu0 %v1233
    %v1336 = vpop.f32.mrf.mxu0
    %v1337 = vadd.f32 %v1269, %v1336
    %v1338 = vpop.f32.mrf.mxu0
    %1339 = vmatprep.mubr.f32.mxu0 0.0
    %1340 = vmatmul.mubr.f32.gmra.mxu0 %v1234
    %v1341 = vpop.f32.mrf.mxu0
    %v1342 = vadd.f32 %v1269, %v1341
    %v1343 = vpop.f32.mrf.mxu0
    %1344 = vmatprep.mubr.f32.mxu0 0.0
    %1345 = vmatmul.mubr.f32.gmra.mxu0 %v1235
    %v1346 = vpop.f32.mrf.mxu0
    %v1347 = vadd.f32 %v1269, %v1346
    %v1348 = vpop.f32.mrf.mxu0
    %1349 = vmatprep.mubr.f32.mxu0 0.0
    %1350 = vmatmul.mubr.f32.gmra.mxu0 %v1236
    %v1351 = vpop.f32.mrf.mxu0
    %v1352 = vadd.f32 %v1269, %v1351
    %v1353 = vpop.f32.mrf.mxu0
    %1354 = vmatprep.mubr.f32.mxu0 0.0
    %1355 = vmatmul.mubr.f32.gmra.mxu0 %v1237
    %v1356 = vpop.f32.mrf.mxu0
    %v1357 = vadd.f32 %v1269, %v1356
    %v1358 = vpop.f32.mrf.mxu0
    %1359 = vmatprep.mubr.f32.mxu0 0.0
    %1360 = vmatmul.mubr.f32.gmra.mxu0 %v1238
    %v1361 = vpop.f32.mrf.mxu0
    %v1362 = vadd.f32 %v1269, %v1361
    %v1363 = vpop.f32.mrf.mxu0
    %1364 = vmatprep.mubr.f32.mxu0 0.0
    %1365 = vmatmul.mubr.f32.gmra.mxu0 %v1239
    %v1366 = vpop.f32.mrf.mxu0
    %v1367 = vadd.f32 %v1269, %v1366
    %v1368 = vpop.f32.mrf.mxu0
    %1369 = vmatprep.mubr.f32.mxu0 0.0
    %1370 = vmatmul.mubr.f32.gmra.mxu0 %v1240
    %v1371 = vpop.f32.mrf.mxu0
    %v1372 = vadd.f32 %v1269, %v1371
    %v1373 = vpop.f32.mrf.mxu0
    %1374 = vmatprep.mubr.f32.mxu0 0.0
    %1375 = vmatmul.mubr.f32.gmra.mxu0 %v1241
    %v1376 = vpop.f32.mrf.mxu0
    %v1377 = vadd.f32 %v1269, %v1376
    %v1378 = vpop.f32.mrf.mxu0
    %1379 = vmatprep.mubr.f32.mxu0 0.0
    %1380 = vmatmul.mubr.f32.gmra.mxu0 %v1242
    %v1381 = vpop.f32.mrf.mxu0
    %v1382 = vadd.f32 %v1269, %v1381
    %v1383 = vpop.f32.mrf.mxu0
    %1384 = vmatprep.mubr.f32.mxu0 0.0
    %1385 = vmatmul.mubr.f32.gmra.mxu0 %v1243
    %v1386 = vpop.f32.mrf.mxu0
    %v1387 = vadd.f32 %v1269, %v1386
    %v1388 = vpop.f32.mrf.mxu0
    %1389 = vmatprep.mubr.f32.mxu0 0.0
    %1390 = vmatmul.mubr.f32.gmra.mxu0 %v1244
    %v1391 = vpop.f32.mrf.mxu0
    %v1392 = vadd.f32 %v1269, %v1391
    %v1393 = vpop.f32.mrf.mxu0
    %1394 = vmatprep.mubr.f32.mxu0 0.0
    %1395 = vmatmul.mubr.f32.gmra.mxu0 %v1245
    %v1396 = vpop.f32.mrf.mxu0
    %v1397 = vadd.f32 %v1269, %v1396
    %v1398 = vpop.f32.mrf.mxu0
    %1399 = vmatprep.mubr.f32.mxu0 0.0
    %1400 = vmatmul.mubr.f32.gmra.mxu0 %v1246
    %v1401 = vpop.f32.mrf.mxu0
    %v1402 = vadd.f32 %v1269, %v1401
    %v1403 = vpop.f32.mrf.mxu0
    %1404 = vmatprep.mubr.f32.mxu0 0.0
    %1405 = vmatmul.mubr.f32.gmra.mxu0 %v1247
    %v1406 = vpop.f32.mrf.mxu0
    %v1407 = vadd.f32 %v1269, %v1406
    %v1408 = vpop.f32.mrf.mxu0
    %1409 = vmatprep.mubr.f32.mxu0 0.0
    %1410 = vmatmul.mubr.f32.gmra.mxu0 %v1248
    %v1411 = vpop.f32.mrf.mxu0
    %v1412 = vadd.f32 %v1269, %v1411
    %v1413 = vpop.f32.mrf.mxu0
    %1414 = vdwg.mxu0
    %1416 = vset.pattern.permute.xlu0 0
    %1417 = vperm.xlu0 %1416, %v391
    %v1418 = vpop.permute.xlu0 %1417
    %1421 = vset.pattern.permute.xlu0 0
    %1422 = vperm.xlu0 %1421, %v392
    %v1423 = vpop.permute.xlu0 %1422
    %1426 = vset.pattern.permute.xlu0 0
    %1427 = vperm.xlu0 %1426, %v393
    %v1428 = vpop.permute.xlu0 %1427
    %1431 = vset.pattern.permute.xlu0 0
    %1432 = vperm.xlu0 %1431, %v394
    %v1433 = vpop.permute.xlu0 %1432
    %1436 = vset.pattern.permute.xlu0 0
    %1437 = vperm.xlu0 %1436, %v395
    %v1438 = vpop.permute.xlu0 %1437
    %1441 = vset.pattern.permute.xlu0 0
    %1442 = vperm.xlu0 %1441, %v396
    %v1443 = vpop.permute.xlu0 %1442
    %1446 = vset.pattern.permute.xlu0 0
    %1447 = vperm.xlu0 %1446, %v397
    %v1448 = vpop.permute.xlu0 %1447
    %1451 = vset.pattern.permute.xlu0 0
    %1452 = vperm.xlu0 %1451, %v398
    %v1453 = vpop.permute.xlu0 %1452
    %1456 = vset.pattern.permute.xlu0 0
    %1457 = vperm.xlu0 %1456, %v399
    %v1458 = vpop.permute.xlu0 %1457
    %1461 = vset.pattern.permute.xlu0 0
    %1462 = vperm.xlu0 %1461, %v400
    %v1463 = vpop.permute.xlu0 %1462
    %1466 = vset.pattern.permute.xlu0 0
    %1467 = vperm.xlu0 %1466, %v401
    %v1468 = vpop.permute.xlu0 %1467
    %1471 = vset.pattern.permute.xlu0 0
    %1472 = vperm.xlu0 %1471, %v402
    %v1473 = vpop.permute.xlu0 %1472
    %1476 = vset.pattern.permute.xlu0 0
    %1477 = vperm.xlu0 %1476, %v403
    %v1478 = vpop.permute.xlu0 %1477
    %1481 = vset.pattern.permute.xlu0 0
    %1482 = vperm.xlu0 %1481, %v404
    %v1483 = vpop.permute.xlu0 %1482
    %1486 = vset.pattern.permute.xlu0 0
    %1487 = vperm.xlu0 %1486, %v405
    %v1488 = vpop.permute.xlu0 %1487
    %1491 = vset.pattern.permute.xlu0 0
    %1492 = vperm.xlu0 %1491, %v406
    %v1493 = vpop.permute.xlu0 %1492
    %v1495 = vmul.f32 %v1337, %v1418
    %v1496 = vmul.f32 %v1342, %v1423
    %v1497 = vmul.f32 %v1347, %v1428
    %v1498 = vmul.f32 %v1352, %v1433
    %v1499 = vmul.f32 %v1357, %v1438
    %v1500 = vmul.f32 %v1362, %v1443
    %v1501 = vmul.f32 %v1367, %v1448
    %v1502 = vmul.f32 %v1372, %v1453
    %v1503 = vmul.f32 %v1377, %v1458
    %v1504 = vmul.f32 %v1382, %v1463
    %v1505 = vmul.f32 %v1387, %v1468
    %v1506 = vmul.f32 %v1392, %v1473
    %v1507 = vmul.f32 %v1397, %v1478
    %v1508 = vmul.f32 %v1402, %v1483
    %v1509 = vmul.f32 %v1407, %v1488
    %v1510 = vmul.f32 %v1412, %v1493
    %1511 = vmatprep.subr.mxu0 0.0
    %1512 = vmatpush1.msra.mxu0 %v1510
    %1513 = vmatprep.subr.mxu0 0.0
    %1514 = vmatpush1.msra.mxu0 %v1509
    %1515 = vmatprep.subr.mxu0 0.0
    %1516 = vmatpush1.msra.mxu0 %v1508
    %1517 = vmatprep.subr.mxu0 0.0
    %1518 = vmatpush1.msra.mxu0 %v1507
    %1519 = vmatprep.subr.mxu0 0.0
    %1520 = vmatpush1.msra.mxu0 %v1506
    %1521 = vmatprep.subr.mxu0 0.0
    %1522 = vmatpush1.msra.mxu0 %v1505
    %1523 = vmatprep.subr.mxu0 0.0
    %1524 = vmatpush1.msra.mxu0 %v1504
    %1525 = vmatprep.subr.mxu0 0.0
    %1526 = vmatpush1.msra.mxu0 %v1503
    %1527 = vmatprep.subr.mxu0 0.0
    %1528 = vmatpush1.msra.mxu0 %v1502
    %1529 = vmatprep.subr.mxu0 0.0
    %1530 = vmatpush1.msra.mxu0 %v1501
    %1531 = vmatprep.subr.mxu0 0.0
    %1532 = vmatpush1.msra.mxu0 %v1500
    %1533 = vmatprep.subr.mxu0 0.0
    %1534 = vmatpush1.msra.mxu0 %v1499
    %1535 = vmatprep.subr.mxu0 0.0
    %1536 = vmatpush1.msra.mxu0 %v1498
    %1537 = vmatprep.subr.mxu0 0.0
    %1538 = vmatpush1.msra.mxu0 %v1497
    %1539 = vmatprep.subr.mxu0 0.0
    %1540 = vmatpush1.msra.mxu0 %v1496
    %1541 = vmatprep.subr.mxu0 0.0
    %1542 = vmatpush1.msra.mxu0 %v1495
    %1543 = vmatprep.subr.mxu0 0.0
    %1544 = vmatpush2.msra.mxu0 0.0
    %1545 = vmatprep.subr.mxu0 0.0
    %1546 = vmatpush2.msra.mxu0 0.0
    %1547 = vmatprep.subr.mxu0 0.0
    %1548 = vmatpush2.msra.mxu0 0.0
    %1549 = vmatprep.subr.mxu0 0.0
    %1550 = vmatpush2.msra.mxu0 0.0
    %1551 = vmatprep.subr.mxu0 0.0
    %1552 = vmatpush2.msra.mxu0 0.0
    %1553 = vmatprep.subr.mxu0 0.0
    %1554 = vmatpush2.msra.mxu0 0.0
    %1555 = vmatprep.subr.mxu0 0.0
    %1556 = vmatpush2.msra.mxu0 0.0
    %1557 = vmatprep.subr.mxu0 0.0
    %1558 = vmatpush2.msra.mxu0 0.0
    %1559 = vmatprep.subr.mxu0 0.0
    %1560 = vmatpush2.msra.mxu0 0.0
    %1561 = vmatprep.subr.mxu0 0.0
    %1562 = vmatpush2.msra.mxu0 0.0
    %1563 = vmatprep.subr.mxu0 0.0
    %1564 = vmatpush2.msra.mxu0 0.0
    %1565 = vmatprep.subr.mxu0 0.0
    %1566 = vmatpush2.msra.mxu0 0.0
    %1567 = vmatprep.subr.mxu0 0.0
    %1568 = vmatpush2.msra.mxu0 0.0
    %1569 = vmatprep.subr.mxu0 0.0
    %1570 = vmatpush2.msra.mxu0 0.0
    %1571 = vmatprep.subr.mxu0 0.0
    %1572 = vmatpush2.msra.mxu0 0.0
    %1573 = vmatprep.subr.mxu0 0.0
    %1574 = vmatpush2.msra.mxu0 0.0
    %1575 = vmatprep.mubr.f32.mxu0 0.0
    %1576 = vmatmul.mubr.f32.gmra.mxu0 %v359
    %v1577 = vpop.f32.mrf.mxu0
    %v1578 = vadd.f32 0.0, %v1577
    %v1579 = vpop.f32.mrf.mxu0
    %1580 = vmatprep.mubr.f32.mxu0 0.0
    %1581 = vmatmul.mubr.f32.gmra.mxu0 %v360
    %v1582 = vpop.f32.mrf.mxu0
    %v1583 = vadd.f32 0.0, %v1582
    %v1584 = vpop.f32.mrf.mxu0
    %1585 = vmatprep.mubr.f32.mxu0 0.0
    %1586 = vmatmul.mubr.f32.gmra.mxu0 %v361
    %v1587 = vpop.f32.mrf.mxu0
    %v1588 = vadd.f32 0.0, %v1587
    %v1589 = vpop.f32.mrf.mxu0
    %1590 = vmatprep.mubr.f32.mxu0 0.0
    %1591 = vmatmul.mubr.f32.gmra.mxu0 %v362
    %v1592 = vpop.f32.mrf.mxu0
    %v1593 = vadd.f32 0.0, %v1592
    %v1594 = vpop.f32.mrf.mxu0
    %1595 = vmatprep.mubr.f32.mxu0 0.0
    %1596 = vmatmul.mubr.f32.gmra.mxu0 %v363
    %v1597 = vpop.f32.mrf.mxu0
    %v1598 = vadd.f32 0.0, %v1597
    %v1599 = vpop.f32.mrf.mxu0
    %1600 = vmatprep.mubr.f32.mxu0 0.0
    %1601 = vmatmul.mubr.f32.gmra.mxu0 %v364
    %v1602 = vpop.f32.mrf.mxu0
    %v1603 = vadd.f32 0.0, %v1602
    %v1604 = vpop.f32.mrf.mxu0
    %1605 = vmatprep.mubr.f32.mxu0 0.0
    %1606 = vmatmul.mubr.f32.gmra.mxu0 %v365
    %v1607 = vpop.f32.mrf.mxu0
    %v1608 = vadd.f32 0.0, %v1607
    %v1609 = vpop.f32.mrf.mxu0
    %1610 = vmatprep.mubr.f32.mxu0 0.0
    %1611 = vmatmul.mubr.f32.gmra.mxu0 %v366
    %v1612 = vpop.f32.mrf.mxu0
    %v1613 = vadd.f32 0.0, %v1612
    %v1614 = vpop.f32.mrf.mxu0
    %1615 = vmatprep.mubr.f32.mxu0 0.0
    %1616 = vmatmul.mubr.f32.gmra.mxu0 %v367
    %v1617 = vpop.f32.mrf.mxu0
    %v1618 = vadd.f32 0.0, %v1617
    %v1619 = vpop.f32.mrf.mxu0
    %1620 = vmatprep.mubr.f32.mxu0 0.0
    %1621 = vmatmul.mubr.f32.gmra.mxu0 %v368
    %v1622 = vpop.f32.mrf.mxu0
    %v1623 = vadd.f32 0.0, %v1622
    %v1624 = vpop.f32.mrf.mxu0
    %1625 = vmatprep.mubr.f32.mxu0 0.0
    %1626 = vmatmul.mubr.f32.gmra.mxu0 %v369
    %v1627 = vpop.f32.mrf.mxu0
    %v1628 = vadd.f32 0.0, %v1627
    %v1629 = vpop.f32.mrf.mxu0
    %1630 = vmatprep.mubr.f32.mxu0 0.0
    %1631 = vmatmul.mubr.f32.gmra.mxu0 %v370
    %v1632 = vpop.f32.mrf.mxu0
    %v1633 = vadd.f32 0.0, %v1632
    %v1634 = vpop.f32.mrf.mxu0
    %1635 = vmatprep.mubr.f32.mxu0 0.0
    %1636 = vmatmul.mubr.f32.gmra.mxu0 %v371
    %v1637 = vpop.f32.mrf.mxu0
    %v1638 = vadd.f32 0.0, %v1637
    %v1639 = vpop.f32.mrf.mxu0
    %1640 = vmatprep.mubr.f32.mxu0 0.0
    %1641 = vmatmul.mubr.f32.gmra.mxu0 %v372
    %v1642 = vpop.f32.mrf.mxu0
    %v1643 = vadd.f32 0.0, %v1642
    %v1644 = vpop.f32.mrf.mxu0
    %1645 = vmatprep.mubr.f32.mxu0 0.0
    %1646 = vmatmul.mubr.f32.gmra.mxu0 %v373
    %v1647 = vpop.f32.mrf.mxu0
    %v1648 = vadd.f32 0.0, %v1647
    %v1649 = vpop.f32.mrf.mxu0
    %1650 = vmatprep.mubr.f32.mxu0 0.0
    %1651 = vmatmul.mubr.f32.gmra.mxu0 %v374
    %v1652 = vpop.f32.mrf.mxu0
    %v1653 = vadd.f32 0.0, %v1652
    %v1654 = vpop.f32.mrf.mxu0
    %1655 = vdwg.mxu0
    %v1656 = vld [vmem:[#allocation20] sm:$0xff]
    %v1657 = vld [vmem:[#allocation20 + $0x8] sm:$0xff]
    %v1658 = vld [vmem:[#allocation20 + $0x10] sm:$0xff]
    %v1659 = vld [vmem:[#allocation20 + $0x18] sm:$0xff]
    %v1660 = vld [vmem:[#allocation20 + $0x20] sm:$0xff]
    %v1661 = vld [vmem:[#allocation20 + $0x28] sm:$0xff]
    %v1662 = vld [vmem:[#allocation20 + $0x30] sm:$0xff]
    %v1663 = vld [vmem:[#allocation20 + $0x38] sm:$0xff]
    %v1664 = vld [vmem:[#allocation20 + $0x40] sm:$0xff]
    %v1665 = vld [vmem:[#allocation20 + $0x48] sm:$0xff]
    %v1666 = vld [vmem:[#allocation20 + $0x50] sm:$0xff]
    %v1667 = vld [vmem:[#allocation20 + $0x58] sm:$0xff]
    %v1668 = vld [vmem:[#allocation20 + $0x60] sm:$0xff]
    %v1669 = vld [vmem:[#allocation20 + $0x68] sm:$0xff]
    %v1670 = vld [vmem:[#allocation20 + $0x70] sm:$0xff]
    %v1671 = vld [vmem:[#allocation20 + $0x78] sm:$0xff]
    %v1672 = vld [vmem:[#allocation22] sm:$0xff]
    %v1673 = vld [vmem:[#allocation22 + $0x8] sm:$0xff]
    %v1674 = vld [vmem:[#allocation22 + $0x10] sm:$0xff]
    %v1675 = vld [vmem:[#allocation22 + $0x18] sm:$0xff]
    %v1676 = vld [vmem:[#allocation22 + $0x20] sm:$0xff]
    %v1677 = vld [vmem:[#allocation22 + $0x28] sm:$0xff]
    %v1678 = vld [vmem:[#allocation22 + $0x30] sm:$0xff]
    %v1679 = vld [vmem:[#allocation22 + $0x38] sm:$0xff]
    %v1680 = vld [vmem:[#allocation22 + $0x40] sm:$0xff]
    %v1681 = vld [vmem:[#allocation22 + $0x48] sm:$0xff]
    %v1682 = vld [vmem:[#allocation22 + $0x50] sm:$0xff]
    %v1683 = vld [vmem:[#allocation22 + $0x58] sm:$0xff]
    %v1684 = vld [vmem:[#allocation22 + $0x60] sm:$0xff]
    %v1685 = vld [vmem:[#allocation22 + $0x68] sm:$0xff]
    %v1686 = vld [vmem:[#allocation22 + $0x70] sm:$0xff]
    %v1687 = vld [vmem:[#allocation22 + $0x78] sm:$0xff]
    %1688 = vmatprep.subr.mxu0 0.0
    %1689 = vmatpush1.msra.mxu0 %v1687
    %1690 = vmatprep.subr.mxu0 0.0
    %1691 = vmatpush1.msra.mxu0 %v1686
    %1692 = vmatprep.subr.mxu0 0.0
    %1693 = vmatpush1.msra.mxu0 %v1685
    %1694 = vmatprep.subr.mxu0 0.0
    %1695 = vmatpush1.msra.mxu0 %v1684
    %1696 = vmatprep.subr.mxu0 0.0
    %1697 = vmatpush1.msra.mxu0 %v1683
    %1698 = vmatprep.subr.mxu0 0.0
    %1699 = vmatpush1.msra.mxu0 %v1682
    %1700 = vmatprep.subr.mxu0 0.0
    %1701 = vmatpush1.msra.mxu0 %v1681
    %1702 = vmatprep.subr.mxu0 0.0
    %1703 = vmatpush1.msra.mxu0 %v1680
    %1704 = vmatprep.subr.mxu0 0.0
    %1705 = vmatpush1.msra.mxu0 %v1679
    %1706 = vmatprep.subr.mxu0 0.0
    %1707 = vmatpush1.msra.mxu0 %v1678
    %1708 = vmatprep.subr.mxu0 0.0
    %1709 = vmatpush1.msra.mxu0 %v1677
    %1710 = vmatprep.subr.mxu0 0.0
    %1711 = vmatpush1.msra.mxu0 %v1676
    %1712 = vmatprep.subr.mxu0 0.0
    %1713 = vmatpush1.msra.mxu0 %v1675
    %1714 = vmatprep.subr.mxu0 0.0
    %1715 = vmatpush1.msra.mxu0 %v1674
    %1716 = vmatprep.subr.mxu0 0.0
    %1717 = vmatpush1.msra.mxu0 %v1673
    %1718 = vmatprep.subr.mxu0 0.0
    %1719 = vmatpush1.msra.mxu0 %v1672
    %1720 = vmatprep.subr.mxu0 0.0
    %1721 = vmatpush2.msra.mxu0 0.0
    %1722 = vmatprep.subr.mxu0 0.0
    %1723 = vmatpush2.msra.mxu0 0.0
    %1724 = vmatprep.subr.mxu0 0.0
    %1725 = vmatpush2.msra.mxu0 0.0
    %1726 = vmatprep.subr.mxu0 0.0
    %1727 = vmatpush2.msra.mxu0 0.0
    %1728 = vmatprep.subr.mxu0 0.0
    %1729 = vmatpush2.msra.mxu0 0.0
    %1730 = vmatprep.subr.mxu0 0.0
    %1731 = vmatpush2.msra.mxu0 0.0
    %1732 = vmatprep.subr.mxu0 0.0
    %1733 = vmatpush2.msra.mxu0 0.0
    %1734 = vmatprep.subr.mxu0 0.0
    %1735 = vmatpush2.msra.mxu0 0.0
    %1736 = vmatprep.subr.mxu0 0.0
    %1737 = vmatpush2.msra.mxu0 0.0
    %1738 = vmatprep.subr.mxu0 0.0
    %1739 = vmatpush2.msra.mxu0 0.0
    %1740 = vmatprep.subr.mxu0 0.0
    %1741 = vmatpush2.msra.mxu0 0.0
    %1742 = vmatprep.subr.mxu0 0.0
    %1743 = vmatpush2.msra.mxu0 0.0
    %1744 = vmatprep.subr.mxu0 0.0
    %1745 = vmatpush2.msra.mxu0 0.0
    %1746 = vmatprep.subr.mxu0 0.0
    %1747 = vmatpush2.msra.mxu0 0.0
    %1748 = vmatprep.subr.mxu0 0.0
    %1749 = vmatpush2.msra.mxu0 0.0
    %1750 = vmatprep.subr.mxu0 0.0
    %1751 = vmatpush2.msra.mxu0 0.0
    %1752 = vmatprep.mubr.f32.mxu0 0.0
    %1753 = vmatmul.mubr.f32.gmra.mxu0 %v1578
    %v1754 = vpop.f32.mrf.mxu0
    %v1755 = vadd.f32 0.0, %v1754
    %v1756 = vpop.f32.mrf.mxu0
    %1757 = vmatprep.mubr.f32.mxu0 0.0
    %1758 = vmatmul.mubr.f32.gmra.mxu0 %v1583
    %v1759 = vpop.f32.mrf.mxu0
    %v1760 = vadd.f32 0.0, %v1759
    %v1761 = vpop.f32.mrf.mxu0
    %1762 = vmatprep.mubr.f32.mxu0 0.0
    %1763 = vmatmul.mubr.f32.gmra.mxu0 %v1588
    %v1764 = vpop.f32.mrf.mxu0
    %v1765 = vadd.f32 0.0, %v1764
    %v1766 = vpop.f32.mrf.mxu0
    %1767 = vmatprep.mubr.f32.mxu0 0.0
    %1768 = vmatmul.mubr.f32.gmra.mxu0 %v1593
    %v1769 = vpop.f32.mrf.mxu0
    %v1770 = vadd.f32 0.0, %v1769
    %v1771 = vpop.f32.mrf.mxu0
    %1772 = vmatprep.mubr.f32.mxu0 0.0
    %1773 = vmatmul.mubr.f32.gmra.mxu0 %v1598
    %v1774 = vpop.f32.mrf.mxu0
    %v1775 = vadd.f32 0.0, %v1774
    %v1776 = vpop.f32.mrf.mxu0
    %1777 = vmatprep.mubr.f32.mxu0 0.0
    %1778 = vmatmul.mubr.f32.gmra.mxu0 %v1603
    %v1779 = vpop.f32.mrf.mxu0
    %v1780 = vadd.f32 0.0, %v1779
    %v1781 = vpop.f32.mrf.mxu0
    %1782 = vmatprep.mubr.f32.mxu0 0.0
    %1783 = vmatmul.mubr.f32.gmra.mxu0 %v1608
    %v1784 = vpop.f32.mrf.mxu0
    %v1785 = vadd.f32 0.0, %v1784
    %v1786 = vpop.f32.mrf.mxu0
    %1787 = vmatprep.mubr.f32.mxu0 0.0
    %1788 = vmatmul.mubr.f32.gmra.mxu0 %v1613
    %v1789 = vpop.f32.mrf.mxu0
    %v1790 = vadd.f32 0.0, %v1789
    %v1791 = vpop.f32.mrf.mxu0
    %1792 = vmatprep.mubr.f32.mxu0 0.0
    %1793 = vmatmul.mubr.f32.gmra.mxu0 %v1618
    %v1794 = vpop.f32.mrf.mxu0
    %v1795 = vadd.f32 0.0, %v1794
    %v1796 = vpop.f32.mrf.mxu0
    %1797 = vmatprep.mubr.f32.mxu0 0.0
    %1798 = vmatmul.mubr.f32.gmra.mxu0 %v1623
    %v1799 = vpop.f32.mrf.mxu0
    %v1800 = vadd.f32 0.0, %v1799
    %v1801 = vpop.f32.mrf.mxu0
    %1802 = vmatprep.mubr.f32.mxu0 0.0
    %1803 = vmatmul.mubr.f32.gmra.mxu0 %v1628
    %v1804 = vpop.f32.mrf.mxu0
    %v1805 = vadd.f32 0.0, %v1804
    %v1806 = vpop.f32.mrf.mxu0
    %1807 = vmatprep.mubr.f32.mxu0 0.0
    %1808 = vmatmul.mubr.f32.gmra.mxu0 %v1633
    %v1809 = vpop.f32.mrf.mxu0
    %v1810 = vadd.f32 0.0, %v1809
    %v1811 = vpop.f32.mrf.mxu0
    %1812 = vmatprep.mubr.f32.mxu0 0.0
    %1813 = vmatmul.mubr.f32.gmra.mxu0 %v1638
    %v1814 = vpop.f32.mrf.mxu0
    %v1815 = vadd.f32 0.0, %v1814
    %v1816 = vpop.f32.mrf.mxu0
    %1817 = vmatprep.mubr.f32.mxu0 0.0
    %1818 = vmatmul.mubr.f32.gmra.mxu0 %v1643
    %v1819 = vpop.f32.mrf.mxu0
    %v1820 = vadd.f32 0.0, %v1819
    %v1821 = vpop.f32.mrf.mxu0
    %1822 = vmatprep.mubr.f32.mxu0 0.0
    %1823 = vmatmul.mubr.f32.gmra.mxu0 %v1648
    %v1824 = vpop.f32.mrf.mxu0
    %v1825 = vadd.f32 0.0, %v1824
    %v1826 = vpop.f32.mrf.mxu0
    %1827 = vmatprep.mubr.f32.mxu0 0.0
    %1828 = vmatmul.mubr.f32.gmra.mxu0 %v1653
    %v1829 = vpop.f32.mrf.mxu0
    %v1830 = vadd.f32 0.0, %v1829
    %v1831 = vpop.f32.mrf.mxu0
    %1832 = vdwg.mxu0
    %1833 = vmatprep.subr.mxu0 0.0
    %1834 = vmatpush1.msra.mxu0 %v1671
    %1835 = vmatprep.subr.mxu0 0.0
    %1836 = vmatpush1.msra.mxu0 %v1670
    %1837 = vmatprep.subr.mxu0 0.0
    %1838 = vmatpush1.msra.mxu0 %v1669
    %1839 = vmatprep.subr.mxu0 0.0
    %1840 = vmatpush1.msra.mxu0 %v1668
    %1841 = vmatprep.subr.mxu0 0.0
    %1842 = vmatpush1.msra.mxu0 %v1667
    %1843 = vmatprep.subr.mxu0 0.0
    %1844 = vmatpush1.msra.mxu0 %v1666
    %1845 = vmatprep.subr.mxu0 0.0
    %1846 = vmatpush1.msra.mxu0 %v1665
    %1847 = vmatprep.subr.mxu0 0.0
    %1848 = vmatpush1.msra.mxu0 %v1664
    %1849 = vmatprep.subr.mxu0 0.0
    %1850 = vmatpush1.msra.mxu0 %v1663
    %1851 = vmatprep.subr.mxu0 0.0
    %1852 = vmatpush1.msra.mxu0 %v1662
    %1853 = vmatprep.subr.mxu0 0.0
    %1854 = vmatpush1.msra.mxu0 %v1661
    %1855 = vmatprep.subr.mxu0 0.0
    %1856 = vmatpush1.msra.mxu0 %v1660
    %1857 = vmatprep.subr.mxu0 0.0
    %1858 = vmatpush1.msra.mxu0 %v1659
    %1859 = vmatprep.subr.mxu0 0.0
    %1860 = vmatpush1.msra.mxu0 %v1658
    %1861 = vmatprep.subr.mxu0 0.0
    %1862 = vmatpush1.msra.mxu0 %v1657
    %1863 = vmatprep.subr.mxu0 0.0
    %1864 = vmatpush1.msra.mxu0 %v1656
    %1865 = vmatprep.subr.mxu0 0.0
    %1866 = vmatpush2.msra.mxu0 0.0
    %1867 = vmatprep.subr.mxu0 0.0
    %1868 = vmatpush2.msra.mxu0 0.0
    %1869 = vmatprep.subr.mxu0 0.0
    %1870 = vmatpush2.msra.mxu0 0.0
    %1871 = vmatprep.subr.mxu0 0.0
    %1872 = vmatpush2.msra.mxu0 0.0
    %1873 = vmatprep.subr.mxu0 0.0
    %1874 = vmatpush2.msra.mxu0 0.0
    %1875 = vmatprep.subr.mxu0 0.0
    %1876 = vmatpush2.msra.mxu0 0.0
    %1877 = vmatprep.subr.mxu0 0.0
    %1878 = vmatpush2.msra.mxu0 0.0
    %1879 = vmatprep.subr.mxu0 0.0
    %1880 = vmatpush2.msra.mxu0 0.0
    %1881 = vmatprep.subr.mxu0 0.0
    %1882 = vmatpush2.msra.mxu0 0.0
    %1883 = vmatprep.subr.mxu0 0.0
    %1884 = vmatpush2.msra.mxu0 0.0
    %1885 = vmatprep.subr.mxu0 0.0
    %1886 = vmatpush2.msra.mxu0 0.0
    %1887 = vmatprep.subr.mxu0 0.0
    %1888 = vmatpush2.msra.mxu0 0.0
    %1889 = vmatprep.subr.mxu0 0.0
    %1890 = vmatpush2.msra.mxu0 0.0
    %1891 = vmatprep.subr.mxu0 0.0
    %1892 = vmatpush2.msra.mxu0 0.0
    %1893 = vmatprep.subr.mxu0 0.0
    %1894 = vmatpush2.msra.mxu0 0.0
    %1895 = vmatprep.subr.mxu0 0.0
    %1896 = vmatpush2.msra.mxu0 0.0
    %1897 = vmatprep.mubr.f32.mxu0 0.0
    %1898 = vmatmul.mubr.f32.gmra.mxu0 %v263
    %v1899 = vpop.f32.mrf.mxu0
    %v1900 = vadd.f32 %v1755, %v1899
    %v1901 = vpop.f32.mrf.mxu0
    %1902 = vmatprep.mubr.f32.mxu0 0.0
    %1903 = vmatmul.mubr.f32.gmra.mxu0 %v264
    %v1904 = vpop.f32.mrf.mxu0
    %v1905 = vadd.f32 %v1760, %v1904
    %v1906 = vpop.f32.mrf.mxu0
    %1907 = vmatprep.mubr.f32.mxu0 0.0
    %1908 = vmatmul.mubr.f32.gmra.mxu0 %v265
    %v1909 = vpop.f32.mrf.mxu0
    %v1910 = vadd.f32 %v1765, %v1909
    %v1911 = vpop.f32.mrf.mxu0
    %1912 = vmatprep.mubr.f32.mxu0 0.0
    %1913 = vmatmul.mubr.f32.gmra.mxu0 %v266
    %v1914 = vpop.f32.mrf.mxu0
    %v1915 = vadd.f32 %v1770, %v1914
    %v1916 = vpop.f32.mrf.mxu0
    %1917 = vmatprep.mubr.f32.mxu0 0.0
    %1918 = vmatmul.mubr.f32.gmra.mxu0 %v267
    %v1919 = vpop.f32.mrf.mxu0
    %v1920 = vadd.f32 %v1775, %v1919
    %v1921 = vpop.f32.mrf.mxu0
    %1922 = vmatprep.mubr.f32.mxu0 0.0
    %1923 = vmatmul.mubr.f32.gmra.mxu0 %v268
    %v1924 = vpop.f32.mrf.mxu0
    %v1925 = vadd.f32 %v1780, %v1924
    %v1926 = vpop.f32.mrf.mxu0
    %1927 = vmatprep.mubr.f32.mxu0 0.0
    %1928 = vmatmul.mubr.f32.gmra.mxu0 %v269
    %v1929 = vpop.f32.mrf.mxu0
    %v1930 = vadd.f32 %v1785, %v1929
    %v1931 = vpop.f32.mrf.mxu0
    %1932 = vmatprep.mubr.f32.mxu0 0.0
    %1933 = vmatmul.mubr.f32.gmra.mxu0 %v270
    %v1934 = vpop.f32.mrf.mxu0
    %v1935 = vadd.f32 %v1790, %v1934
    %v1936 = vpop.f32.mrf.mxu0
    %1937 = vmatprep.mubr.f32.mxu0 0.0
    %1938 = vmatmul.mubr.f32.gmra.mxu0 %v271
    %v1939 = vpop.f32.mrf.mxu0
    %v1940 = vadd.f32 %v1795, %v1939
    %v1941 = vpop.f32.mrf.mxu0
    %1942 = vmatprep.mubr.f32.mxu0 0.0
    %1943 = vmatmul.mubr.f32.gmra.mxu0 %v272
    %v1944 = vpop.f32.mrf.mxu0
    %v1945 = vadd.f32 %v1800, %v1944
    %v1946 = vpop.f32.mrf.mxu0
    %1947 = vmatprep.mubr.f32.mxu0 0.0
    %1948 = vmatmul.mubr.f32.gmra.mxu0 %v273
    %v1949 = vpop.f32.mrf.mxu0
    %v1950 = vadd.f32 %v1805, %v1949
    %v1951 = vpop.f32.mrf.mxu0
    %1952 = vmatprep.mubr.f32.mxu0 0.0
    %1953 = vmatmul.mubr.f32.gmra.mxu0 %v274
    %v1954 = vpop.f32.mrf.mxu0
    %v1955 = vadd.f32 %v1810, %v1954
    %v1956 = vpop.f32.mrf.mxu0
    %1957 = vmatprep.mubr.f32.mxu0 0.0
    %1958 = vmatmul.mubr.f32.gmra.mxu0 %v275
    %v1959 = vpop.f32.mrf.mxu0
    %v1960 = vadd.f32 %v1815, %v1959
    %v1961 = vpop.f32.mrf.mxu0
    %1962 = vmatprep.mubr.f32.mxu0 0.0
    %1963 = vmatmul.mubr.f32.gmra.mxu0 %v276
    %v1964 = vpop.f32.mrf.mxu0
    %v1965 = vadd.f32 %v1820, %v1964
    %v1966 = vpop.f32.mrf.mxu0
    %1967 = vmatprep.mubr.f32.mxu0 0.0
    %1968 = vmatmul.mubr.f32.gmra.mxu0 %v277
    %v1969 = vpop.f32.mrf.mxu0
    %v1970 = vadd.f32 %v1825, %v1969
    %v1971 = vpop.f32.mrf.mxu0
    %1972 = vmatprep.mubr.f32.mxu0 0.0
    %1973 = vmatmul.mubr.f32.gmra.mxu0 %v278
    %v1974 = vpop.f32.mrf.mxu0
    %v1975 = vadd.f32 %v1830, %v1974
    %v1976 = vpop.f32.mrf.mxu0
    %1977 = vdwg.mxu0
    %v1978 = vld [vmem:[%s19] sm:$0x1]
    %v1979 = vlaneseq
    %v1980 = vshrl.u32 %v1979, 7
    %v1981 = vsub.s32 0, %v1980
    %v1982 = vrot.slane %v1978, %v1981
    %v1983 = vadd.f32 %v1900, %v1982
    %v1984 = vadd.f32 %v1905, %v1982
    %v1985 = vadd.f32 %v1910, %v1982
    %v1986 = vadd.f32 %v1915, %v1982
    %v1987 = vadd.f32 %v1920, %v1982
    %v1988 = vadd.f32 %v1925, %v1982
    %v1989 = vadd.f32 %v1930, %v1982
    %v1990 = vadd.f32 %v1935, %v1982
    %v1991 = vadd.f32 %v1940, %v1982
    %v1992 = vadd.f32 %v1945, %v1982
    %v1993 = vadd.f32 %v1950, %v1982
    %v1994 = vadd.f32 %v1955, %v1982
    %v1995 = vadd.f32 %v1960, %v1982
    %v1996 = vadd.f32 %v1965, %v1982
    %v1997 = vadd.f32 %v1970, %v1982
    %v1998 = vadd.f32 %v1975, %v1982
    %v1999 = vmax.f32 %v1983, 0.0
    %v2000 = vmax.f32 %v1984, 0.0
    %v2001 = vmax.f32 %v1985, 0.0
    %v2002 = vmax.f32 %v1986, 0.0
    %v2003 = vmax.f32 %v1987, 0.0
    %v2004 = vmax.f32 %v1988, 0.0
    %v2005 = vmax.f32 %v1989, 0.0
    %v2006 = vmax.f32 %v1990, 0.0
    %v2007 = vmax.f32 %v1991, 0.0
    %v2008 = vmax.f32 %v1992, 0.0
    %v2009 = vmax.f32 %v1993, 0.0
    %v2010 = vmax.f32 %v1994, 0.0
    %v2011 = vmax.f32 %v1995, 0.0
    %v2012 = vmax.f32 %v1996, 0.0
    %v2013 = vmax.f32 %v1997, 0.0
    %v2014 = vmax.f32 %v1998, 0.0
    %v2015 = vld [vmem:[#allocation23] sm:$0xff]
    %v2016 = vld [vmem:[#allocation23 + $0x8] sm:$0xff]
    %v2017 = vld [vmem:[#allocation23 + $0x10] sm:$0xff]
    %v2018 = vld [vmem:[#allocation23 + $0x18] sm:$0xff]
    %v2019 = vld [vmem:[#allocation23 + $0x20] sm:$0xff]
    %v2020 = vld [vmem:[#allocation23 + $0x28] sm:$0xff]
    %v2021 = vld [vmem:[#allocation23 + $0x30] sm:$0xff]
    %v2022 = vld [vmem:[#allocation23 + $0x38] sm:$0xff]
    %v2023 = vld [vmem:[#allocation23 + $0x40] sm:$0xff]
    %v2024 = vld [vmem:[#allocation23 + $0x48] sm:$0xff]
    %v2025 = vld [vmem:[#allocation23 + $0x50] sm:$0xff]
    %v2026 = vld [vmem:[#allocation23 + $0x58] sm:$0xff]
    %v2027 = vld [vmem:[#allocation23 + $0x60] sm:$0xff]
    %v2028 = vld [vmem:[#allocation23 + $0x68] sm:$0xff]
    %v2029 = vld [vmem:[#allocation23 + $0x70] sm:$0xff]
    %v2030 = vld [vmem:[#allocation23 + $0x78] sm:$0xff]
    %v2031 = vld [vmem:[%s21] sm:$0x1]
    %v2032 = vlaneseq
    %v2033 = vshrl.u32 %v2032, 7
    %v2034 = vsub.s32 0, %v2033
    %v2035 = vrot.slane %v2031, %v2034
    %2036 = vmatprep.subr.mxu0 0.0
    %2037 = vmatpush1.msra.mxu0 %v2030
    %2038 = vmatprep.subr.mxu0 0.0
    %2039 = vmatpush1.msra.mxu0 %v2029
    %2040 = vmatprep.subr.mxu0 0.0
    %2041 = vmatpush1.msra.mxu0 %v2028
    %2042 = vmatprep.subr.mxu0 0.0
    %2043 = vmatpush1.msra.mxu0 %v2027
    %2044 = vmatprep.subr.mxu0 0.0
    %2045 = vmatpush1.msra.mxu0 %v2026
    %2046 = vmatprep.subr.mxu0 0.0
    %2047 = vmatpush1.msra.mxu0 %v2025
    %2048 = vmatprep.subr.mxu0 0.0
    %2049 = vmatpush1.msra.mxu0 %v2024
    %2050 = vmatprep.subr.mxu0 0.0
    %2051 = vmatpush1.msra.mxu0 %v2023
    %2052 = vmatprep.subr.mxu0 0.0
    %2053 = vmatpush1.msra.mxu0 %v2022
    %2054 = vmatprep.subr.mxu0 0.0
    %2055 = vmatpush1.msra.mxu0 %v2021
    %2056 = vmatprep.subr.mxu0 0.0
    %2057 = vmatpush1.msra.mxu0 %v2020
    %2058 = vmatprep.subr.mxu0 0.0
    %2059 = vmatpush1.msra.mxu0 %v2019
    %2060 = vmatprep.subr.mxu0 0.0
    %2061 = vmatpush1.msra.mxu0 %v2018
    %2062 = vmatprep.subr.mxu0 0.0
    %2063 = vmatpush1.msra.mxu0 %v2017
    %2064 = vmatprep.subr.mxu0 0.0
    %2065 = vmatpush1.msra.mxu0 %v2016
    %2066 = vmatprep.subr.mxu0 0.0
    %2067 = vmatpush1.msra.mxu0 %v2015
    %2068 = vmatprep.subr.mxu0 0.0
    %2069 = vmatpush2.msra.mxu0 0.0
    %2070 = vmatprep.subr.mxu0 0.0
    %2071 = vmatpush2.msra.mxu0 0.0
    %2072 = vmatprep.subr.mxu0 0.0
    %2073 = vmatpush2.msra.mxu0 0.0
    %2074 = vmatprep.subr.mxu0 0.0
    %2075 = vmatpush2.msra.mxu0 0.0
    %2076 = vmatprep.subr.mxu0 0.0
    %2077 = vmatpush2.msra.mxu0 0.0
    %2078 = vmatprep.subr.mxu0 0.0
    %2079 = vmatpush2.msra.mxu0 0.0
    %2080 = vmatprep.subr.mxu0 0.0
    %2081 = vmatpush2.msra.mxu0 0.0
    %2082 = vmatprep.subr.mxu0 0.0
    %2083 = vmatpush2.msra.mxu0 0.0
    %2084 = vmatprep.subr.mxu0 0.0
    %2085 = vmatpush2.msra.mxu0 0.0
    %2086 = vmatprep.subr.mxu0 0.0
    %2087 = vmatpush2.msra.mxu0 0.0
    %2088 = vmatprep.subr.mxu0 0.0
    %2089 = vmatpush2.msra.mxu0 0.0
    %2090 = vmatprep.subr.mxu0 0.0
    %2091 = vmatpush2.msra.mxu0 0.0
    %2092 = vmatprep.subr.mxu0 0.0
    %2093 = vmatpush2.msra.mxu0 0.0
    %2094 = vmatprep.subr.mxu0 0.0
    %2095 = vmatpush2.msra.mxu0 0.0
    %2096 = vmatprep.subr.mxu0 0.0
    %2097 = vmatpush2.msra.mxu0 0.0
    %2098 = vmatprep.subr.mxu0 0.0
    %2099 = vmatpush2.msra.mxu0 0.0
    %2100 = vmatprep.mubr.f32.mxu0 0.0
    %2101 = vmatmul.mubr.f32.gmra.mxu0 %v1999
    %v2102 = vpop.f32.mrf.mxu0
    %v2103 = vadd.f32 %v2035, %v2102
    %v2104 = vpop.f32.mrf.mxu0
    %2105 = vmatprep.mubr.f32.mxu0 0.0
    %2106 = vmatmul.mubr.f32.gmra.mxu0 %v2000
    %v2107 = vpop.f32.mrf.mxu0
    %v2108 = vadd.f32 %v2035, %v2107
    %v2109 = vpop.f32.mrf.mxu0
    %2110 = vmatprep.mubr.f32.mxu0 0.0
    %2111 = vmatmul.mubr.f32.gmra.mxu0 %v2001
    %v2112 = vpop.f32.mrf.mxu0
    %v2113 = vadd.f32 %v2035, %v2112
    %v2114 = vpop.f32.mrf.mxu0
    %2115 = vmatprep.mubr.f32.mxu0 0.0
    %2116 = vmatmul.mubr.f32.gmra.mxu0 %v2002
    %v2117 = vpop.f32.mrf.mxu0
    %v2118 = vadd.f32 %v2035, %v2117
    %v2119 = vpop.f32.mrf.mxu0
    %2120 = vmatprep.mubr.f32.mxu0 0.0
    %2121 = vmatmul.mubr.f32.gmra.mxu0 %v2003
    %v2122 = vpop.f32.mrf.mxu0
    %v2123 = vadd.f32 %v2035, %v2122
    %v2124 = vpop.f32.mrf.mxu0
    %2125 = vmatprep.mubr.f32.mxu0 0.0
    %2126 = vmatmul.mubr.f32.gmra.mxu0 %v2004
    %v2127 = vpop.f32.mrf.mxu0
    %v2128 = vadd.f32 %v2035, %v2127
    %v2129 = vpop.f32.mrf.mxu0
    %2130 = vmatprep.mubr.f32.mxu0 0.0
    %2131 = vmatmul.mubr.f32.gmra.mxu0 %v2005
    %v2132 = vpop.f32.mrf.mxu0
    %v2133 = vadd.f32 %v2035, %v2132
    %v2134 = vpop.f32.mrf.mxu0
    %2135 = vmatprep.mubr.f32.mxu0 0.0
    %2136 = vmatmul.mubr.f32.gmra.mxu0 %v2006
    %v2137 = vpop.f32.mrf.mxu0
    %v2138 = vadd.f32 %v2035, %v2137
    %v2139 = vpop.f32.mrf.mxu0
    %2140 = vmatprep.mubr.f32.mxu0 0.0
    %2141 = vmatmul.mubr.f32.gmra.mxu0 %v2007
    %v2142 = vpop.f32.mrf.mxu0
    %v2143 = vadd.f32 %v2035, %v2142
    %v2144 = vpop.f32.mrf.mxu0
    %2145 = vmatprep.mubr.f32.mxu0 0.0
    %2146 = vmatmul.mubr.f32.gmra.mxu0 %v2008
    %v2147 = vpop.f32.mrf.mxu0
    %v2148 = vadd.f32 %v2035, %v2147
    %v2149 = vpop.f32.mrf.mxu0
    %2150 = vmatprep.mubr.f32.mxu0 0.0
    %2151 = vmatmul.mubr.f32.gmra.mxu0 %v2009
    %v2152 = vpop.f32.mrf.mxu0
    %v2153 = vadd.f32 %v2035, %v2152
    %v2154 = vpop.f32.mrf.mxu0
    %2155 = vmatprep.mubr.f32.mxu0 0.0
    %2156 = vmatmul.mubr.f32.gmra.mxu0 %v2010
    %v2157 = vpop.f32.mrf.mxu0
    %v2158 = vadd.f32 %v2035, %v2157
    %v2159 = vpop.f32.mrf.mxu0
    %2160 = vmatprep.mubr.f32.mxu0 0.0
    %2161 = vmatmul.mubr.f32.gmra.mxu0 %v2011
    %v2162 = vpop.f32.mrf.mxu0
    %v2163 = vadd.f32 %v2035, %v2162
    %v2164 = vpop.f32.mrf.mxu0
    %2165 = vmatprep.mubr.f32.mxu0 0.0
    %2166 = vmatmul.mubr.f32.gmra.mxu0 %v2012
    %v2167 = vpop.f32.mrf.mxu0
    %v2168 = vadd.f32 %v2035, %v2167
    %v2169 = vpop.f32.mrf.mxu0
    %2170 = vmatprep.mubr.f32.mxu0 0.0
    %2171 = vmatmul.mubr.f32.gmra.mxu0 %v2013
    %v2172 = vpop.f32.mrf.mxu0
    %v2173 = vadd.f32 %v2035, %v2172
    %v2174 = vpop.f32.mrf.mxu0
    %2175 = vmatprep.mubr.f32.mxu0 0.0
    %2176 = vmatmul.mubr.f32.gmra.mxu0 %v2014
    %v2177 = vpop.f32.mrf.mxu0
    %v2178 = vadd.f32 %v2035, %v2177
    %v2179 = vpop.f32.mrf.mxu0
    %2180 = vdwg.mxu0
    %2182 = vset.pattern.permute.xlu0 0
    %2183 = vperm.xlu0 %2182, %v407
    %v2184 = vpop.permute.xlu0 %2183
    %2187 = vset.pattern.permute.xlu0 0
    %2188 = vperm.xlu0 %2187, %v408
    %v2189 = vpop.permute.xlu0 %2188
    %2192 = vset.pattern.permute.xlu0 0
    %2193 = vperm.xlu0 %2192, %v409
    %v2194 = vpop.permute.xlu0 %2193
    %2197 = vset.pattern.permute.xlu0 0
    %2198 = vperm.xlu0 %2197, %v410
    %v2199 = vpop.permute.xlu0 %2198
    %2202 = vset.pattern.permute.xlu0 0
    %2203 = vperm.xlu0 %2202, %v411
    %v2204 = vpop.permute.xlu0 %2203
    %2207 = vset.pattern.permute.xlu0 0
    %2208 = vperm.xlu0 %2207, %v412
    %v2209 = vpop.permute.xlu0 %2208
    %2212 = vset.pattern.permute.xlu0 0
    %2213 = vperm.xlu0 %2212, %v413
    %v2214 = vpop.permute.xlu0 %2213
    %2217 = vset.pattern.permute.xlu0 0
    %2218 = vperm.xlu0 %2217, %v414
    %v2219 = vpop.permute.xlu0 %2218
    %2222 = vset.pattern.permute.xlu0 0
    %2223 = vperm.xlu0 %2222, %v415
    %v2224 = vpop.permute.xlu0 %2223
    %2227 = vset.pattern.permute.xlu0 0
    %2228 = vperm.xlu0 %2227, %v416
    %v2229 = vpop.permute.xlu0 %2228
    %2232 = vset.pattern.permute.xlu0 0
    %2233 = vperm.xlu0 %2232, %v417
    %v2234 = vpop.permute.xlu0 %2233
    %2237 = vset.pattern.permute.xlu0 0
    %2238 = vperm.xlu0 %2237, %v418
    %v2239 = vpop.permute.xlu0 %2238
    %2242 = vset.pattern.permute.xlu0 0
    %2243 = vperm.xlu0 %2242, %v419
    %v2244 = vpop.permute.xlu0 %2243
    %2247 = vset.pattern.permute.xlu0 0
    %2248 = vperm.xlu0 %2247, %v420
    %v2249 = vpop.permute.xlu0 %2248
    %2252 = vset.pattern.permute.xlu0 0
    %2253 = vperm.xlu0 %2252, %v421
    %v2254 = vpop.permute.xlu0 %2253
    %2257 = vset.pattern.permute.xlu0 0
    %2258 = vperm.xlu0 %2257, %v422
    %v2259 = vpop.permute.xlu0 %2258
    %v2261 = vmul.f32 %v2103, %v2184
    %v2262 = vmul.f32 %v2108, %v2189
    %v2263 = vmul.f32 %v2113, %v2194
    %v2264 = vmul.f32 %v2118, %v2199
    %v2265 = vmul.f32 %v2123, %v2204
    %v2266 = vmul.f32 %v2128, %v2209
    %v2267 = vmul.f32 %v2133, %v2214
    %v2268 = vmul.f32 %v2138, %v2219
    %v2269 = vmul.f32 %v2143, %v2224
    %v2270 = vmul.f32 %v2148, %v2229
    %v2271 = vmul.f32 %v2153, %v2234
    %v2272 = vmul.f32 %v2158, %v2239
    %v2273 = vmul.f32 %v2163, %v2244
    %v2274 = vmul.f32 %v2168, %v2249
    %v2275 = vmul.f32 %v2173, %v2254
    %v2276 = vmul.f32 %v2178, %v2259
    %s2277 = scalar_lea.vmem [#allocation14], 128
    %v2278 = vld [vmem:[%s2277] sm:$0xff]
    %v2279 = vld [vmem:[%s2277 + $0x8] sm:$0xff]
    %v2280 = vld [vmem:[%s2277 + $0x10] sm:$0xff]
    %v2281 = vld [vmem:[%s2277 + $0x18] sm:$0xff]
    %v2282 = vld [vmem:[%s2277 + $0x20] sm:$0xff]
    %v2283 = vld [vmem:[%s2277 + $0x28] sm:$0xff]
    %v2284 = vld [vmem:[%s2277 + $0x30] sm:$0xff]
    %v2285 = vld [vmem:[%s2277 + $0x38] sm:$0xff]
    %v2286 = vld [vmem:[%s2277 + $0x40] sm:$0xff]
    %v2287 = vld [vmem:[%s2277 + $0x48] sm:$0xff]
    %v2288 = vld [vmem:[%s2277 + $0x50] sm:$0xff]
    %v2289 = vld [vmem:[%s2277 + $0x58] sm:$0xff]
    %v2290 = vld [vmem:[%s2277 + $0x60] sm:$0xff]
    %v2291 = vld [vmem:[%s2277 + $0x68] sm:$0xff]
    %v2292 = vld [vmem:[%s2277 + $0x70] sm:$0xff]
    %v2293 = vld [vmem:[%s2277 + $0x78] sm:$0xff]
    %2294 = vmatprep.subr.mxu0 0.0
    %2295 = vmatpush1.msra.mxu0 %v2293
    %2296 = vmatprep.subr.mxu0 0.0
    %2297 = vmatpush1.msra.mxu0 %v2292
    %2298 = vmatprep.subr.mxu0 0.0
    %2299 = vmatpush1.msra.mxu0 %v2291
    %2300 = vmatprep.subr.mxu0 0.0
    %2301 = vmatpush1.msra.mxu0 %v2290
    %2302 = vmatprep.subr.mxu0 0.0
    %2303 = vmatpush1.msra.mxu0 %v2289
    %2304 = vmatprep.subr.mxu0 0.0
    %2305 = vmatpush1.msra.mxu0 %v2288
    %2306 = vmatprep.subr.mxu0 0.0
    %2307 = vmatpush1.msra.mxu0 %v2287
    %2308 = vmatprep.subr.mxu0 0.0
    %2309 = vmatpush1.msra.mxu0 %v2286
    %2310 = vmatprep.subr.mxu0 0.0
    %2311 = vmatpush1.msra.mxu0 %v2285
    %2312 = vmatprep.subr.mxu0 0.0
    %2313 = vmatpush1.msra.mxu0 %v2284
    %2314 = vmatprep.subr.mxu0 0.0
    %2315 = vmatpush1.msra.mxu0 %v2283
    %2316 = vmatprep.subr.mxu0 0.0
    %2317 = vmatpush1.msra.mxu0 %v2282
    %2318 = vmatprep.subr.mxu0 0.0
    %2319 = vmatpush1.msra.mxu0 %v2281
    %2320 = vmatprep.subr.mxu0 0.0
    %2321 = vmatpush1.msra.mxu0 %v2280
    %2322 = vmatprep.subr.mxu0 0.0
    %2323 = vmatpush1.msra.mxu0 %v2279
    %2324 = vmatprep.subr.mxu0 0.0
    %2325 = vmatpush1.msra.mxu0 %v2278
    %2326 = vmatprep.subr.mxu0 0.0
    %2327 = vmatpush2.msra.mxu0 0.0
    %2328 = vmatprep.subr.mxu0 0.0
    %2329 = vmatpush2.msra.mxu0 0.0
    %2330 = vmatprep.subr.mxu0 0.0
    %2331 = vmatpush2.msra.mxu0 0.0
    %2332 = vmatprep.subr.mxu0 0.0
    %2333 = vmatpush2.msra.mxu0 0.0
    %2334 = vmatprep.subr.mxu0 0.0
    %2335 = vmatpush2.msra.mxu0 0.0
    %2336 = vmatprep.subr.mxu0 0.0
    %2337 = vmatpush2.msra.mxu0 0.0
    %2338 = vmatprep.subr.mxu0 0.0
    %2339 = vmatpush2.msra.mxu0 0.0
    %2340 = vmatprep.subr.mxu0 0.0
    %2341 = vmatpush2.msra.mxu0 0.0
    %2342 = vmatprep.subr.mxu0 0.0
    %2343 = vmatpush2.msra.mxu0 0.0
    %2344 = vmatprep.subr.mxu0 0.0
    %2345 = vmatpush2.msra.mxu0 0.0
    %2346 = vmatprep.subr.mxu0 0.0
    %2347 = vmatpush2.msra.mxu0 0.0
    %2348 = vmatprep.subr.mxu0 0.0
    %2349 = vmatpush2.msra.mxu0 0.0
    %2350 = vmatprep.subr.mxu0 0.0
    %2351 = vmatpush2.msra.mxu0 0.0
    %2352 = vmatprep.subr.mxu0 0.0
    %2353 = vmatpush2.msra.mxu0 0.0
    %2354 = vmatprep.subr.mxu0 0.0
    %2355 = vmatpush2.msra.mxu0 0.0
    %2356 = vmatprep.subr.mxu0 0.0
    %2357 = vmatpush2.msra.mxu0 0.0
    %2358 = vmatprep.mubr.f32.mxu0 0.0
    %2359 = vmatmul.mubr.f32.gmra.mxu0 %v2261
    %v2360 = vpop.f32.mrf.mxu0
    %v2361 = vadd.f32 0.0, %v2360
    %v2362 = vpop.f32.mrf.mxu0
    %2363 = vmatprep.mubr.f32.mxu0 0.0
    %2364 = vmatmul.mubr.f32.gmra.mxu0 %v2262
    %v2365 = vpop.f32.mrf.mxu0
    %v2366 = vadd.f32 0.0, %v2365
    %v2367 = vpop.f32.mrf.mxu0
    %2368 = vmatprep.mubr.f32.mxu0 0.0
    %2369 = vmatmul.mubr.f32.gmra.mxu0 %v2263
    %v2370 = vpop.f32.mrf.mxu0
    %v2371 = vadd.f32 0.0, %v2370
    %v2372 = vpop.f32.mrf.mxu0
    %2373 = vmatprep.mubr.f32.mxu0 0.0
    %2374 = vmatmul.mubr.f32.gmra.mxu0 %v2264
    %v2375 = vpop.f32.mrf.mxu0
    %v2376 = vadd.f32 0.0, %v2375
    %v2377 = vpop.f32.mrf.mxu0
    %2378 = vmatprep.mubr.f32.mxu0 0.0
    %2379 = vmatmul.mubr.f32.gmra.mxu0 %v2265
    %v2380 = vpop.f32.mrf.mxu0
    %v2381 = vadd.f32 0.0, %v2380
    %v2382 = vpop.f32.mrf.mxu0
    %2383 = vmatprep.mubr.f32.mxu0 0.0
    %2384 = vmatmul.mubr.f32.gmra.mxu0 %v2266
    %v2385 = vpop.f32.mrf.mxu0
    %v2386 = vadd.f32 0.0, %v2385
    %v2387 = vpop.f32.mrf.mxu0
    %2388 = vmatprep.mubr.f32.mxu0 0.0
    %2389 = vmatmul.mubr.f32.gmra.mxu0 %v2267
    %v2390 = vpop.f32.mrf.mxu0
    %v2391 = vadd.f32 0.0, %v2390
    %v2392 = vpop.f32.mrf.mxu0
    %2393 = vmatprep.mubr.f32.mxu0 0.0
    %2394 = vmatmul.mubr.f32.gmra.mxu0 %v2268
    %v2395 = vpop.f32.mrf.mxu0
    %v2396 = vadd.f32 0.0, %v2395
    %v2397 = vpop.f32.mrf.mxu0
    %2398 = vmatprep.mubr.f32.mxu0 0.0
    %2399 = vmatmul.mubr.f32.gmra.mxu0 %v2269
    %v2400 = vpop.f32.mrf.mxu0
    %v2401 = vadd.f32 0.0, %v2400
    %v2402 = vpop.f32.mrf.mxu0
    %2403 = vmatprep.mubr.f32.mxu0 0.0
    %2404 = vmatmul.mubr.f32.gmra.mxu0 %v2270
    %v2405 = vpop.f32.mrf.mxu0
    %v2406 = vadd.f32 0.0, %v2405
    %v2407 = vpop.f32.mrf.mxu0
    %2408 = vmatprep.mubr.f32.mxu0 0.0
    %2409 = vmatmul.mubr.f32.gmra.mxu0 %v2271
    %v2410 = vpop.f32.mrf.mxu0
    %v2411 = vadd.f32 0.0, %v2410
    %v2412 = vpop.f32.mrf.mxu0
    %2413 = vmatprep.mubr.f32.mxu0 0.0
    %2414 = vmatmul.mubr.f32.gmra.mxu0 %v2272
    %v2415 = vpop.f32.mrf.mxu0
    %v2416 = vadd.f32 0.0, %v2415
    %v2417 = vpop.f32.mrf.mxu0
    %2418 = vmatprep.mubr.f32.mxu0 0.0
    %2419 = vmatmul.mubr.f32.gmra.mxu0 %v2273
    %v2420 = vpop.f32.mrf.mxu0
    %v2421 = vadd.f32 0.0, %v2420
    %v2422 = vpop.f32.mrf.mxu0
    %2423 = vmatprep.mubr.f32.mxu0 0.0
    %2424 = vmatmul.mubr.f32.gmra.mxu0 %v2274
    %v2425 = vpop.f32.mrf.mxu0
    %v2426 = vadd.f32 0.0, %v2425
    %v2427 = vpop.f32.mrf.mxu0
    %2428 = vmatprep.mubr.f32.mxu0 0.0
    %2429 = vmatmul.mubr.f32.gmra.mxu0 %v2275
    %v2430 = vpop.f32.mrf.mxu0
    %v2431 = vadd.f32 0.0, %v2430
    %v2432 = vpop.f32.mrf.mxu0
    %2433 = vmatprep.mubr.f32.mxu0 0.0
    %2434 = vmatmul.mubr.f32.gmra.mxu0 %v2276
    %v2435 = vpop.f32.mrf.mxu0
    %v2436 = vadd.f32 0.0, %v2435
    %v2437 = vpop.f32.mrf.mxu0
    %2438 = vdwg.mxu0
    %s2439 = scalar_lea.vmem [#allocation16], 128
    %v2440 = vld [vmem:[%s2439] sm:$0xff]
    %v2441 = vld [vmem:[%s2439 + $0x8] sm:$0xff]
    %v2442 = vld [vmem:[%s2439 + $0x10] sm:$0xff]
    %v2443 = vld [vmem:[%s2439 + $0x18] sm:$0xff]
    %v2444 = vld [vmem:[%s2439 + $0x20] sm:$0xff]
    %v2445 = vld [vmem:[%s2439 + $0x28] sm:$0xff]
    %v2446 = vld [vmem:[%s2439 + $0x30] sm:$0xff]
    %v2447 = vld [vmem:[%s2439 + $0x38] sm:$0xff]
    %v2448 = vld [vmem:[%s2439 + $0x40] sm:$0xff]
    %v2449 = vld [vmem:[%s2439 + $0x48] sm:$0xff]
    %v2450 = vld [vmem:[%s2439 + $0x50] sm:$0xff]
    %v2451 = vld [vmem:[%s2439 + $0x58] sm:$0xff]
    %v2452 = vld [vmem:[%s2439 + $0x60] sm:$0xff]
    %v2453 = vld [vmem:[%s2439 + $0x68] sm:$0xff]
    %v2454 = vld [vmem:[%s2439 + $0x70] sm:$0xff]
    %v2455 = vld [vmem:[%s2439 + $0x78] sm:$0xff]
    %2456 = vmatprep.subr.mxu0 0.0
    %2457 = vmatpush1.msra.mxu0 %v2455
    %2458 = vmatprep.subr.mxu0 0.0
    %2459 = vmatpush1.msra.mxu0 %v2454
    %2460 = vmatprep.subr.mxu0 0.0
    %2461 = vmatpush1.msra.mxu0 %v2453
    %2462 = vmatprep.subr.mxu0 0.0
    %2463 = vmatpush1.msra.mxu0 %v2452
    %2464 = vmatprep.subr.mxu0 0.0
    %2465 = vmatpush1.msra.mxu0 %v2451
    %2466 = vmatprep.subr.mxu0 0.0
    %2467 = vmatpush1.msra.mxu0 %v2450
    %2468 = vmatprep.subr.mxu0 0.0
    %2469 = vmatpush1.msra.mxu0 %v2449
    %2470 = vmatprep.subr.mxu0 0.0
    %2471 = vmatpush1.msra.mxu0 %v2448
    %2472 = vmatprep.subr.mxu0 0.0
    %2473 = vmatpush1.msra.mxu0 %v2447
    %2474 = vmatprep.subr.mxu0 0.0
    %2475 = vmatpush1.msra.mxu0 %v2446
    %2476 = vmatprep.subr.mxu0 0.0
    %2477 = vmatpush1.msra.mxu0 %v2445
    %2478 = vmatprep.subr.mxu0 0.0
    %2479 = vmatpush1.msra.mxu0 %v2444
    %2480 = vmatprep.subr.mxu0 0.0
    %2481 = vmatpush1.msra.mxu0 %v2443
    %2482 = vmatprep.subr.mxu0 0.0
    %2483 = vmatpush1.msra.mxu0 %v2442
    %2484 = vmatprep.subr.mxu0 0.0
    %2485 = vmatpush1.msra.mxu0 %v2441
    %2486 = vmatprep.subr.mxu0 0.0
    %2487 = vmatpush1.msra.mxu0 %v2440
    %2488 = vmatprep.subr.mxu0 0.0
    %2489 = vmatpush2.msra.mxu0 0.0
    %2490 = vmatprep.subr.mxu0 0.0
    %2491 = vmatpush2.msra.mxu0 0.0
    %2492 = vmatprep.subr.mxu0 0.0
    %2493 = vmatpush2.msra.mxu0 0.0
    %2494 = vmatprep.subr.mxu0 0.0
    %2495 = vmatpush2.msra.mxu0 0.0
    %2496 = vmatprep.subr.mxu0 0.0
    %2497 = vmatpush2.msra.mxu0 0.0
    %2498 = vmatprep.subr.mxu0 0.0
    %2499 = vmatpush2.msra.mxu0 0.0
    %2500 = vmatprep.subr.mxu0 0.0
    %2501 = vmatpush2.msra.mxu0 0.0
    %2502 = vmatprep.subr.mxu0 0.0
    %2503 = vmatpush2.msra.mxu0 0.0
    %2504 = vmatprep.subr.mxu0 0.0
    %2505 = vmatpush2.msra.mxu0 0.0
    %2506 = vmatprep.subr.mxu0 0.0
    %2507 = vmatpush2.msra.mxu0 0.0
    %2508 = vmatprep.subr.mxu0 0.0
    %2509 = vmatpush2.msra.mxu0 0.0
    %2510 = vmatprep.subr.mxu0 0.0
    %2511 = vmatpush2.msra.mxu0 0.0
    %2512 = vmatprep.subr.mxu0 0.0
    %2513 = vmatpush2.msra.mxu0 0.0
    %2514 = vmatprep.subr.mxu0 0.0
    %2515 = vmatpush2.msra.mxu0 0.0
    %2516 = vmatprep.subr.mxu0 0.0
    %2517 = vmatpush2.msra.mxu0 0.0
    %2518 = vmatprep.subr.mxu0 0.0
    %2519 = vmatpush2.msra.mxu0 0.0
    %2520 = vmatprep.mubr.f32.mxu0 0.0
    %2521 = vmatmul.mubr.f32.gmra.mxu0 %v2261
    %v2522 = vpop.f32.mrf.mxu0
    %v2523 = vadd.f32 0.0, %v2522
    %v2524 = vpop.f32.mrf.mxu0
    %2525 = vmatprep.mubr.f32.mxu0 0.0
    %2526 = vmatmul.mubr.f32.gmra.mxu0 %v2262
    %v2527 = vpop.f32.mrf.mxu0
    %v2528 = vadd.f32 0.0, %v2527
    %v2529 = vpop.f32.mrf.mxu0
    %2530 = vmatprep.mubr.f32.mxu0 0.0
    %2531 = vmatmul.mubr.f32.gmra.mxu0 %v2263
    %v2532 = vpop.f32.mrf.mxu0
    %v2533 = vadd.f32 0.0, %v2532
    %v2534 = vpop.f32.mrf.mxu0
    %2535 = vmatprep.mubr.f32.mxu0 0.0
    %2536 = vmatmul.mubr.f32.gmra.mxu0 %v2264
    %v2537 = vpop.f32.mrf.mxu0
    %v2538 = vadd.f32 0.0, %v2537
    %v2539 = vpop.f32.mrf.mxu0
    %2540 = vmatprep.mubr.f32.mxu0 0.0
    %2541 = vmatmul.mubr.f32.gmra.mxu0 %v2265
    %v2542 = vpop.f32.mrf.mxu0
    %v2543 = vadd.f32 0.0, %v2542
    %v2544 = vpop.f32.mrf.mxu0
    %2545 = vmatprep.mubr.f32.mxu0 0.0
    %2546 = vmatmul.mubr.f32.gmra.mxu0 %v2266
    %v2547 = vpop.f32.mrf.mxu0
    %v2548 = vadd.f32 0.0, %v2547
    %v2549 = vpop.f32.mrf.mxu0
    %2550 = vmatprep.mubr.f32.mxu0 0.0
    %2551 = vmatmul.mubr.f32.gmra.mxu0 %v2267
    %v2552 = vpop.f32.mrf.mxu0
    %v2553 = vadd.f32 0.0, %v2552
    %v2554 = vpop.f32.mrf.mxu0
    %2555 = vmatprep.mubr.f32.mxu0 0.0
    %2556 = vmatmul.mubr.f32.gmra.mxu0 %v2268
    %v2557 = vpop.f32.mrf.mxu0
    %v2558 = vadd.f32 0.0, %v2557
    %v2559 = vpop.f32.mrf.mxu0
    %2560 = vmatprep.mubr.f32.mxu0 0.0
    %2561 = vmatmul.mubr.f32.gmra.mxu0 %v2269
    %v2562 = vpop.f32.mrf.mxu0
    %v2563 = vadd.f32 0.0, %v2562
    %v2564 = vpop.f32.mrf.mxu0
    %2565 = vmatprep.mubr.f32.mxu0 0.0
    %2566 = vmatmul.mubr.f32.gmra.mxu0 %v2270
    %v2567 = vpop.f32.mrf.mxu0
    %v2568 = vadd.f32 0.0, %v2567
    %v2569 = vpop.f32.mrf.mxu0
    %2570 = vmatprep.mubr.f32.mxu0 0.0
    %2571 = vmatmul.mubr.f32.gmra.mxu0 %v2271
    %v2572 = vpop.f32.mrf.mxu0
    %v2573 = vadd.f32 0.0, %v2572
    %v2574 = vpop.f32.mrf.mxu0
    %2575 = vmatprep.mubr.f32.mxu0 0.0
    %2576 = vmatmul.mubr.f32.gmra.mxu0 %v2272
    %v2577 = vpop.f32.mrf.mxu0
    %v2578 = vadd.f32 0.0, %v2577
    %v2579 = vpop.f32.mrf.mxu0
    %2580 = vmatprep.mubr.f32.mxu0 0.0
    %2581 = vmatmul.mubr.f32.gmra.mxu0 %v2273
    %v2582 = vpop.f32.mrf.mxu0
    %v2583 = vadd.f32 0.0, %v2582
    %v2584 = vpop.f32.mrf.mxu0
    %2585 = vmatprep.mubr.f32.mxu0 0.0
    %2586 = vmatmul.mubr.f32.gmra.mxu0 %v2274
    %v2587 = vpop.f32.mrf.mxu0
    %v2588 = vadd.f32 0.0, %v2587
    %v2589 = vpop.f32.mrf.mxu0
    %2590 = vmatprep.mubr.f32.mxu0 0.0
    %2591 = vmatmul.mubr.f32.gmra.mxu0 %v2275
    %v2592 = vpop.f32.mrf.mxu0
    %v2593 = vadd.f32 0.0, %v2592
    %v2594 = vpop.f32.mrf.mxu0
    %2595 = vmatprep.mubr.f32.mxu0 0.0
    %2596 = vmatmul.mubr.f32.gmra.mxu0 %v2276
    %v2597 = vpop.f32.mrf.mxu0
    %v2598 = vadd.f32 0.0, %v2597
    %v2599 = vpop.f32.mrf.mxu0
    %2600 = vdwg.mxu0
    %2601 = vmatprep.subr.mxu0 0.0
    %2602 = vmatpush1.msra.mxu0 %v2598
    %2603 = vmatprep.subr.mxu0 0.0
    %2604 = vmatpush1.msra.mxu0 %v2593
    %2605 = vmatprep.subr.mxu0 0.0
    %2606 = vmatpush1.msra.mxu0 %v2588
    %2607 = vmatprep.subr.mxu0 0.0
    %2608 = vmatpush1.msra.mxu0 %v2583
    %2609 = vmatprep.subr.mxu0 0.0
    %2610 = vmatpush1.msra.mxu0 %v2578
    %2611 = vmatprep.subr.mxu0 0.0
    %2612 = vmatpush1.msra.mxu0 %v2573
    %2613 = vmatprep.subr.mxu0 0.0
    %2614 = vmatpush1.msra.mxu0 %v2568
    %2615 = vmatprep.subr.mxu0 0.0
    %2616 = vmatpush1.msra.mxu0 %v2563
    %2617 = vmatprep.subr.mxu0 0.0
    %2618 = vmatpush1.msra.mxu0 %v2558
    %2619 = vmatprep.subr.mxu0 0.0
    %2620 = vmatpush1.msra.mxu0 %v2553
    %2621 = vmatprep.subr.mxu0 0.0
    %2622 = vmatpush1.msra.mxu0 %v2548
    %2623 = vmatprep.subr.mxu0 0.0
    %2624 = vmatpush1.msra.mxu0 %v2543
    %2625 = vmatprep.subr.mxu0 0.0
    %2626 = vmatpush1.msra.mxu0 %v2538
    %2627 = vmatprep.subr.mxu0 0.0
    %2628 = vmatpush1.msra.mxu0 %v2533
    %2629 = vmatprep.subr.mxu0 0.0
    %2630 = vmatpush1.msra.mxu0 %v2528
    %2631 = vmatprep.subr.mxu0 0.0
    %2632 = vmatpush1.msra.mxu0 %v2523
    %2633 = vmatprep.subr.mxu0 0.0
    %2634 = vmatpush2.msra.mxu0 0.0
    %2635 = vmatprep.subr.mxu0 0.0
    %2636 = vmatpush2.msra.mxu0 0.0
    %2637 = vmatprep.subr.mxu0 0.0
    %2638 = vmatpush2.msra.mxu0 0.0
    %2639 = vmatprep.subr.mxu0 0.0
    %2640 = vmatpush2.msra.mxu0 0.0
    %2641 = vmatprep.subr.mxu0 0.0
    %2642 = vmatpush2.msra.mxu0 0.0
    %2643 = vmatprep.subr.mxu0 0.0
    %2644 = vmatpush2.msra.mxu0 0.0
    %2645 = vmatprep.subr.mxu0 0.0
    %2646 = vmatpush2.msra.mxu0 0.0
    %2647 = vmatprep.subr.mxu0 0.0
    %2648 = vmatpush2.msra.mxu0 0.0
    %2649 = vmatprep.subr.mxu0 0.0
    %2650 = vmatpush2.msra.mxu0 0.0
    %2651 = vmatprep.subr.mxu0 0.0
    %2652 = vmatpush2.msra.mxu0 0.0
    %2653 = vmatprep.subr.mxu0 0.0
    %2654 = vmatpush2.msra.mxu0 0.0
    %2655 = vmatprep.subr.mxu0 0.0
    %2656 = vmatpush2.msra.mxu0 0.0
    %2657 = vmatprep.subr.mxu0 0.0
    %2658 = vmatpush2.msra.mxu0 0.0
    %2659 = vmatprep.subr.mxu0 0.0
    %2660 = vmatpush2.msra.mxu0 0.0
    %2661 = vmatprep.subr.mxu0 0.0
    %2662 = vmatpush2.msra.mxu0 0.0
    %2663 = vmatprep.subr.mxu0 0.0
    %2664 = vmatpush2.msra.mxu0 0.0
    %2665 = vmatprep.mubr.f32.mxu0 0.0
    %2666 = vmatmul.mubr.f32.gmra.mxu0 %v311
    %v2667 = vpop.f32.mrf.mxu0
    %v2668 = vadd.f32 0.0, %v2667
    %v2669 = vpop.f32.mrf.mxu0
    %2670 = vmatprep.mubr.f32.mxu0 0.0
    %2671 = vmatmul.mubr.f32.gmra.mxu0 %v312
    %v2672 = vpop.f32.mrf.mxu0
    %v2673 = vadd.f32 0.0, %v2672
    %v2674 = vpop.f32.mrf.mxu0
    %2675 = vmatprep.mubr.f32.mxu0 0.0
    %2676 = vmatmul.mubr.f32.gmra.mxu0 %v313
    %v2677 = vpop.f32.mrf.mxu0
    %v2678 = vadd.f32 0.0, %v2677
    %v2679 = vpop.f32.mrf.mxu0
    %2680 = vmatprep.mubr.f32.mxu0 0.0
    %2681 = vmatmul.mubr.f32.gmra.mxu0 %v314
    %v2682 = vpop.f32.mrf.mxu0
    %v2683 = vadd.f32 0.0, %v2682
    %v2684 = vpop.f32.mrf.mxu0
    %2685 = vmatprep.mubr.f32.mxu0 0.0
    %2686 = vmatmul.mubr.f32.gmra.mxu0 %v315
    %v2687 = vpop.f32.mrf.mxu0
    %v2688 = vadd.f32 0.0, %v2687
    %v2689 = vpop.f32.mrf.mxu0
    %2690 = vmatprep.mubr.f32.mxu0 0.0
    %2691 = vmatmul.mubr.f32.gmra.mxu0 %v316
    %v2692 = vpop.f32.mrf.mxu0
    %v2693 = vadd.f32 0.0, %v2692
    %v2694 = vpop.f32.mrf.mxu0
    %2695 = vmatprep.mubr.f32.mxu0 0.0
    %2696 = vmatmul.mubr.f32.gmra.mxu0 %v317
    %v2697 = vpop.f32.mrf.mxu0
    %v2698 = vadd.f32 0.0, %v2697
    %v2699 = vpop.f32.mrf.mxu0
    %2700 = vmatprep.mubr.f32.mxu0 0.0
    %2701 = vmatmul.mubr.f32.gmra.mxu0 %v318
    %v2702 = vpop.f32.mrf.mxu0
    %v2703 = vadd.f32 0.0, %v2702
    %v2704 = vpop.f32.mrf.mxu0
    %2705 = vmatprep.mubr.f32.mxu0 0.0
    %2706 = vmatmul.mubr.f32.gmra.mxu0 %v319
    %v2707 = vpop.f32.mrf.mxu0
    %v2708 = vadd.f32 0.0, %v2707
    %v2709 = vpop.f32.mrf.mxu0
    %2710 = vmatprep.mubr.f32.mxu0 0.0
    %2711 = vmatmul.mubr.f32.gmra.mxu0 %v320
    %v2712 = vpop.f32.mrf.mxu0
    %v2713 = vadd.f32 0.0, %v2712
    %v2714 = vpop.f32.mrf.mxu0
    %2715 = vmatprep.mubr.f32.mxu0 0.0
    %2716 = vmatmul.mubr.f32.gmra.mxu0 %v321
    %v2717 = vpop.f32.mrf.mxu0
    %v2718 = vadd.f32 0.0, %v2717
    %v2719 = vpop.f32.mrf.mxu0
    %2720 = vmatprep.mubr.f32.mxu0 0.0
    %2721 = vmatmul.mubr.f32.gmra.mxu0 %v322
    %v2722 = vpop.f32.mrf.mxu0
    %v2723 = vadd.f32 0.0, %v2722
    %v2724 = vpop.f32.mrf.mxu0
    %2725 = vmatprep.mubr.f32.mxu0 0.0
    %2726 = vmatmul.mubr.f32.gmra.mxu0 %v323
    %v2727 = vpop.f32.mrf.mxu0
    %v2728 = vadd.f32 0.0, %v2727
    %v2729 = vpop.f32.mrf.mxu0
    %2730 = vmatprep.mubr.f32.mxu0 0.0
    %2731 = vmatmul.mubr.f32.gmra.mxu0 %v324
    %v2732 = vpop.f32.mrf.mxu0
    %v2733 = vadd.f32 0.0, %v2732
    %v2734 = vpop.f32.mrf.mxu0
    %2735 = vmatprep.mubr.f32.mxu0 0.0
    %2736 = vmatmul.mubr.f32.gmra.mxu0 %v325
    %v2737 = vpop.f32.mrf.mxu0
    %v2738 = vadd.f32 0.0, %v2737
    %v2739 = vpop.f32.mrf.mxu0
    %2740 = vmatprep.mubr.f32.mxu0 0.0
    %2741 = vmatmul.mubr.f32.gmra.mxu0 %v326
    %v2742 = vpop.f32.mrf.mxu0
    %v2743 = vadd.f32 0.0, %v2742
    %v2744 = vpop.f32.mrf.mxu0
    %2745 = vdwg.mxu0
    %2746 = vmatprep.subr.mxu0 0.0
    %2747 = vmatpush1.msra.mxu0 %v2436
    %2748 = vmatprep.subr.mxu0 0.0
    %2749 = vmatpush1.msra.mxu0 %v2431
    %2750 = vmatprep.subr.mxu0 0.0
    %2751 = vmatpush1.msra.mxu0 %v2426
    %2752 = vmatprep.subr.mxu0 0.0
    %2753 = vmatpush1.msra.mxu0 %v2421
    %2754 = vmatprep.subr.mxu0 0.0
    %2755 = vmatpush1.msra.mxu0 %v2416
    %2756 = vmatprep.subr.mxu0 0.0
    %2757 = vmatpush1.msra.mxu0 %v2411
    %2758 = vmatprep.subr.mxu0 0.0
    %2759 = vmatpush1.msra.mxu0 %v2406
    %2760 = vmatprep.subr.mxu0 0.0
    %2761 = vmatpush1.msra.mxu0 %v2401
    %2762 = vmatprep.subr.mxu0 0.0
    %2763 = vmatpush1.msra.mxu0 %v2396
    %2764 = vmatprep.subr.mxu0 0.0
    %2765 = vmatpush1.msra.mxu0 %v2391
    %2766 = vmatprep.subr.mxu0 0.0
    %2767 = vmatpush1.msra.mxu0 %v2386
    %2768 = vmatprep.subr.mxu0 0.0
    %2769 = vmatpush1.msra.mxu0 %v2381
    %2770 = vmatprep.subr.mxu0 0.0
    %2771 = vmatpush1.msra.mxu0 %v2376
    %2772 = vmatprep.subr.mxu0 0.0
    %2773 = vmatpush1.msra.mxu0 %v2371
    %2774 = vmatprep.subr.mxu0 0.0
    %2775 = vmatpush1.msra.mxu0 %v2366
    %2776 = vmatprep.subr.mxu0 0.0
    %2777 = vmatpush1.msra.mxu0 %v2361
    %2778 = vmatprep.subr.mxu0 0.0
    %2779 = vmatpush2.msra.mxu0 0.0
    %2780 = vmatprep.subr.mxu0 0.0
    %2781 = vmatpush2.msra.mxu0 0.0
    %2782 = vmatprep.subr.mxu0 0.0
    %2783 = vmatpush2.msra.mxu0 0.0
    %2784 = vmatprep.subr.mxu0 0.0
    %2785 = vmatpush2.msra.mxu0 0.0
    %2786 = vmatprep.subr.mxu0 0.0
    %2787 = vmatpush2.msra.mxu0 0.0
    %2788 = vmatprep.subr.mxu0 0.0
    %2789 = vmatpush2.msra.mxu0 0.0
    %2790 = vmatprep.subr.mxu0 0.0
    %2791 = vmatpush2.msra.mxu0 0.0
    %2792 = vmatprep.subr.mxu0 0.0
    %2793 = vmatpush2.msra.mxu0 0.0
    %2794 = vmatprep.subr.mxu0 0.0
    %2795 = vmatpush2.msra.mxu0 0.0
    %2796 = vmatprep.subr.mxu0 0.0
    %2797 = vmatpush2.msra.mxu0 0.0
    %2798 = vmatprep.subr.mxu0 0.0
    %2799 = vmatpush2.msra.mxu0 0.0
    %2800 = vmatprep.subr.mxu0 0.0
    %2801 = vmatpush2.msra.mxu0 0.0
    %2802 = vmatprep.subr.mxu0 0.0
    %2803 = vmatpush2.msra.mxu0 0.0
    %2804 = vmatprep.subr.mxu0 0.0
    %2805 = vmatpush2.msra.mxu0 0.0
    %2806 = vmatprep.subr.mxu0 0.0
    %2807 = vmatpush2.msra.mxu0 0.0
    %2808 = vmatprep.subr.mxu0 0.0
    %2809 = vmatpush2.msra.mxu0 0.0
    %2810 = vmatprep.mubr.f32.mxu0 0.0
    %2811 = vmatmul.mubr.f32.gmra.mxu0 %v343
    %v2812 = vpop.f32.mrf.mxu0
    %v2813 = vadd.f32 %v2668, %v2812
    %v2814 = vpop.f32.mrf.mxu0
    %2815 = vmatprep.mubr.f32.mxu0 0.0
    %2816 = vmatmul.mubr.f32.gmra.mxu0 %v344
    %v2817 = vpop.f32.mrf.mxu0
    %v2818 = vadd.f32 %v2673, %v2817
    %v2819 = vpop.f32.mrf.mxu0
    %2820 = vmatprep.mubr.f32.mxu0 0.0
    %2821 = vmatmul.mubr.f32.gmra.mxu0 %v345
    %v2822 = vpop.f32.mrf.mxu0
    %v2823 = vadd.f32 %v2678, %v2822
    %v2824 = vpop.f32.mrf.mxu0
    %2825 = vmatprep.mubr.f32.mxu0 0.0
    %2826 = vmatmul.mubr.f32.gmra.mxu0 %v346
    %v2827 = vpop.f32.mrf.mxu0
    %v2828 = vadd.f32 %v2683, %v2827
    %v2829 = vpop.f32.mrf.mxu0
    %2830 = vmatprep.mubr.f32.mxu0 0.0
    %2831 = vmatmul.mubr.f32.gmra.mxu0 %v347
    %v2832 = vpop.f32.mrf.mxu0
    %v2833 = vadd.f32 %v2688, %v2832
    %v2834 = vpop.f32.mrf.mxu0
    %2835 = vmatprep.mubr.f32.mxu0 0.0
    %2836 = vmatmul.mubr.f32.gmra.mxu0 %v348
    %v2837 = vpop.f32.mrf.mxu0
    %v2838 = vadd.f32 %v2693, %v2837
    %v2839 = vpop.f32.mrf.mxu0
    %2840 = vmatprep.mubr.f32.mxu0 0.0
    %2841 = vmatmul.mubr.f32.gmra.mxu0 %v349
    %v2842 = vpop.f32.mrf.mxu0
    %v2843 = vadd.f32 %v2698, %v2842
    %v2844 = vpop.f32.mrf.mxu0
    %2845 = vmatprep.mubr.f32.mxu0 0.0
    %2846 = vmatmul.mubr.f32.gmra.mxu0 %v350
    %v2847 = vpop.f32.mrf.mxu0
    %v2848 = vadd.f32 %v2703, %v2847
    %v2849 = vpop.f32.mrf.mxu0
    %2850 = vmatprep.mubr.f32.mxu0 0.0
    %2851 = vmatmul.mubr.f32.gmra.mxu0 %v351
    %v2852 = vpop.f32.mrf.mxu0
    %v2853 = vadd.f32 %v2708, %v2852
    %v2854 = vpop.f32.mrf.mxu0
    %2855 = vmatprep.mubr.f32.mxu0 0.0
    %2856 = vmatmul.mubr.f32.gmra.mxu0 %v352
    %v2857 = vpop.f32.mrf.mxu0
    %v2858 = vadd.f32 %v2713, %v2857
    %v2859 = vpop.f32.mrf.mxu0
    %2860 = vmatprep.mubr.f32.mxu0 0.0
    %2861 = vmatmul.mubr.f32.gmra.mxu0 %v353
    %v2862 = vpop.f32.mrf.mxu0
    %v2863 = vadd.f32 %v2718, %v2862
    %v2864 = vpop.f32.mrf.mxu0
    %2865 = vmatprep.mubr.f32.mxu0 0.0
    %2866 = vmatmul.mubr.f32.gmra.mxu0 %v354
    %v2867 = vpop.f32.mrf.mxu0
    %v2868 = vadd.f32 %v2723, %v2867
    %v2869 = vpop.f32.mrf.mxu0
    %2870 = vmatprep.mubr.f32.mxu0 0.0
    %2871 = vmatmul.mubr.f32.gmra.mxu0 %v355
    %v2872 = vpop.f32.mrf.mxu0
    %v2873 = vadd.f32 %v2728, %v2872
    %v2874 = vpop.f32.mrf.mxu0
    %2875 = vmatprep.mubr.f32.mxu0 0.0
    %2876 = vmatmul.mubr.f32.gmra.mxu0 %v356
    %v2877 = vpop.f32.mrf.mxu0
    %v2878 = vadd.f32 %v2733, %v2877
    %v2879 = vpop.f32.mrf.mxu0
    %2880 = vmatprep.mubr.f32.mxu0 0.0
    %2881 = vmatmul.mubr.f32.gmra.mxu0 %v357
    %v2882 = vpop.f32.mrf.mxu0
    %v2883 = vadd.f32 %v2738, %v2882
    %v2884 = vpop.f32.mrf.mxu0
    %2885 = vmatprep.mubr.f32.mxu0 0.0
    %2886 = vmatmul.mubr.f32.gmra.mxu0 %v358
    %v2887 = vpop.f32.mrf.mxu0
    %v2888 = vadd.f32 %v2743, %v2887
    %v2889 = vpop.f32.mrf.mxu0
    %2890 = vdwg.mxu0
    %s2891 = scalar_lea.vmem [#allocation17], 128
    %v2892 = vld [vmem:[%s2891] sm:$0xff]
    %v2893 = vld [vmem:[%s2891 + $0x8] sm:$0xff]
    %v2894 = vld [vmem:[%s2891 + $0x10] sm:$0xff]
    %v2895 = vld [vmem:[%s2891 + $0x18] sm:$0xff]
    %v2896 = vld [vmem:[%s2891 + $0x20] sm:$0xff]
    %v2897 = vld [vmem:[%s2891 + $0x28] sm:$0xff]
    %v2898 = vld [vmem:[%s2891 + $0x30] sm:$0xff]
    %v2899 = vld [vmem:[%s2891 + $0x38] sm:$0xff]
    %v2900 = vld [vmem:[%s2891 + $0x40] sm:$0xff]
    %v2901 = vld [vmem:[%s2891 + $0x48] sm:$0xff]
    %v2902 = vld [vmem:[%s2891 + $0x50] sm:$0xff]
    %v2903 = vld [vmem:[%s2891 + $0x58] sm:$0xff]
    %v2904 = vld [vmem:[%s2891 + $0x60] sm:$0xff]
    %v2905 = vld [vmem:[%s2891 + $0x68] sm:$0xff]
    %v2906 = vld [vmem:[%s2891 + $0x70] sm:$0xff]
    %v2907 = vld [vmem:[%s2891 + $0x78] sm:$0xff]
    %2908 = vmatprep.subr.mxu0 0.0
    %2909 = vmatpush1.msra.mxu0 %v2907
    %2910 = vmatprep.subr.mxu0 0.0
    %2911 = vmatpush1.msra.mxu0 %v2906
    %2912 = vmatprep.subr.mxu0 0.0
    %2913 = vmatpush1.msra.mxu0 %v2905
    %2914 = vmatprep.subr.mxu0 0.0
    %2915 = vmatpush1.msra.mxu0 %v2904
    %2916 = vmatprep.subr.mxu0 0.0
    %2917 = vmatpush1.msra.mxu0 %v2903
    %2918 = vmatprep.subr.mxu0 0.0
    %2919 = vmatpush1.msra.mxu0 %v2902
    %2920 = vmatprep.subr.mxu0 0.0
    %2921 = vmatpush1.msra.mxu0 %v2901
    %2922 = vmatprep.subr.mxu0 0.0
    %2923 = vmatpush1.msra.mxu0 %v2900
    %2924 = vmatprep.subr.mxu0 0.0
    %2925 = vmatpush1.msra.mxu0 %v2899
    %2926 = vmatprep.subr.mxu0 0.0
    %2927 = vmatpush1.msra.mxu0 %v2898
    %2928 = vmatprep.subr.mxu0 0.0
    %2929 = vmatpush1.msra.mxu0 %v2897
    %2930 = vmatprep.subr.mxu0 0.0
    %2931 = vmatpush1.msra.mxu0 %v2896
    %2932 = vmatprep.subr.mxu0 0.0
    %2933 = vmatpush1.msra.mxu0 %v2895
    %2934 = vmatprep.subr.mxu0 0.0
    %2935 = vmatpush1.msra.mxu0 %v2894
    %2936 = vmatprep.subr.mxu0 0.0
    %2937 = vmatpush1.msra.mxu0 %v2893
    %2938 = vmatprep.subr.mxu0 0.0
    %2939 = vmatpush1.msra.mxu0 %v2892
    %2940 = vmatprep.subr.mxu0 0.0
    %2941 = vmatpush2.msra.mxu0 0.0
    %2942 = vmatprep.subr.mxu0 0.0
    %2943 = vmatpush2.msra.mxu0 0.0
    %2944 = vmatprep.subr.mxu0 0.0
    %2945 = vmatpush2.msra.mxu0 0.0
    %2946 = vmatprep.subr.mxu0 0.0
    %2947 = vmatpush2.msra.mxu0 0.0
    %2948 = vmatprep.subr.mxu0 0.0
    %2949 = vmatpush2.msra.mxu0 0.0
    %2950 = vmatprep.subr.mxu0 0.0
    %2951 = vmatpush2.msra.mxu0 0.0
    %2952 = vmatprep.subr.mxu0 0.0
    %2953 = vmatpush2.msra.mxu0 0.0
    %2954 = vmatprep.subr.mxu0 0.0
    %2955 = vmatpush2.msra.mxu0 0.0
    %2956 = vmatprep.subr.mxu0 0.0
    %2957 = vmatpush2.msra.mxu0 0.0
    %2958 = vmatprep.subr.mxu0 0.0
    %2959 = vmatpush2.msra.mxu0 0.0
    %2960 = vmatprep.subr.mxu0 0.0
    %2961 = vmatpush2.msra.mxu0 0.0
    %2962 = vmatprep.subr.mxu0 0.0
    %2963 = vmatpush2.msra.mxu0 0.0
    %2964 = vmatprep.subr.mxu0 0.0
    %2965 = vmatpush2.msra.mxu0 0.0
    %2966 = vmatprep.subr.mxu0 0.0
    %2967 = vmatpush2.msra.mxu0 0.0
    %2968 = vmatprep.subr.mxu0 0.0
    %2969 = vmatpush2.msra.mxu0 0.0
    %2970 = vmatprep.subr.mxu0 0.0
    %2971 = vmatpush2.msra.mxu0 0.0
    %2972 = vmatprep.mubr.f32.mxu0 0.0
    %2973 = vmatmul.mubr.f32.gmra.mxu0 %v1495
    %v2974 = vpop.f32.mrf.mxu0
    %v2975 = vadd.f32 0.0, %v2974
    %v2976 = vpop.f32.mrf.mxu0
    %2977 = vmatprep.mubr.f32.mxu0 0.0
    %2978 = vmatmul.mubr.f32.gmra.mxu0 %v1496
    %v2979 = vpop.f32.mrf.mxu0
    %v2980 = vadd.f32 0.0, %v2979
    %v2981 = vpop.f32.mrf.mxu0
    %2982 = vmatprep.mubr.f32.mxu0 0.0
    %2983 = vmatmul.mubr.f32.gmra.mxu0 %v1497
    %v2984 = vpop.f32.mrf.mxu0
    %v2985 = vadd.f32 0.0, %v2984
    %v2986 = vpop.f32.mrf.mxu0
    %2987 = vmatprep.mubr.f32.mxu0 0.0
    %2988 = vmatmul.mubr.f32.gmra.mxu0 %v1498
    %v2989 = vpop.f32.mrf.mxu0
    %v2990 = vadd.f32 0.0, %v2989
    %v2991 = vpop.f32.mrf.mxu0
    %2992 = vmatprep.mubr.f32.mxu0 0.0
    %2993 = vmatmul.mubr.f32.gmra.mxu0 %v1499
    %v2994 = vpop.f32.mrf.mxu0
    %v2995 = vadd.f32 0.0, %v2994
    %v2996 = vpop.f32.mrf.mxu0
    %2997 = vmatprep.mubr.f32.mxu0 0.0
    %2998 = vmatmul.mubr.f32.gmra.mxu0 %v1500
    %v2999 = vpop.f32.mrf.mxu0
    %v3000 = vadd.f32 0.0, %v2999
    %v3001 = vpop.f32.mrf.mxu0
    %3002 = vmatprep.mubr.f32.mxu0 0.0
    %3003 = vmatmul.mubr.f32.gmra.mxu0 %v1501
    %v3004 = vpop.f32.mrf.mxu0
    %v3005 = vadd.f32 0.0, %v3004
    %v3006 = vpop.f32.mrf.mxu0
    %3007 = vmatprep.mubr.f32.mxu0 0.0
    %3008 = vmatmul.mubr.f32.gmra.mxu0 %v1502
    %v3009 = vpop.f32.mrf.mxu0
    %v3010 = vadd.f32 0.0, %v3009
    %v3011 = vpop.f32.mrf.mxu0
    %3012 = vmatprep.mubr.f32.mxu0 0.0
    %3013 = vmatmul.mubr.f32.gmra.mxu0 %v1503
    %v3014 = vpop.f32.mrf.mxu0
    %v3015 = vadd.f32 0.0, %v3014
    %v3016 = vpop.f32.mrf.mxu0
    %3017 = vmatprep.mubr.f32.mxu0 0.0
    %3018 = vmatmul.mubr.f32.gmra.mxu0 %v1504
    %v3019 = vpop.f32.mrf.mxu0
    %v3020 = vadd.f32 0.0, %v3019
    %v3021 = vpop.f32.mrf.mxu0
    %3022 = vmatprep.mubr.f32.mxu0 0.0
    %3023 = vmatmul.mubr.f32.gmra.mxu0 %v1505
    %v3024 = vpop.f32.mrf.mxu0
    %v3025 = vadd.f32 0.0, %v3024
    %v3026 = vpop.f32.mrf.mxu0
    %3027 = vmatprep.mubr.f32.mxu0 0.0
    %3028 = vmatmul.mubr.f32.gmra.mxu0 %v1506
    %v3029 = vpop.f32.mrf.mxu0
    %v3030 = vadd.f32 0.0, %v3029
    %v3031 = vpop.f32.mrf.mxu0
    %3032 = vmatprep.mubr.f32.mxu0 0.0
    %3033 = vmatmul.mubr.f32.gmra.mxu0 %v1507
    %v3034 = vpop.f32.mrf.mxu0
    %v3035 = vadd.f32 0.0, %v3034
    %v3036 = vpop.f32.mrf.mxu0
    %3037 = vmatprep.mubr.f32.mxu0 0.0
    %3038 = vmatmul.mubr.f32.gmra.mxu0 %v1508
    %v3039 = vpop.f32.mrf.mxu0
    %v3040 = vadd.f32 0.0, %v3039
    %v3041 = vpop.f32.mrf.mxu0
    %3042 = vmatprep.mubr.f32.mxu0 0.0
    %3043 = vmatmul.mubr.f32.gmra.mxu0 %v1509
    %v3044 = vpop.f32.mrf.mxu0
    %v3045 = vadd.f32 0.0, %v3044
    %v3046 = vpop.f32.mrf.mxu0
    %3047 = vmatprep.mubr.f32.mxu0 0.0
    %3048 = vmatmul.mubr.f32.gmra.mxu0 %v1510
    %v3049 = vpop.f32.mrf.mxu0
    %v3050 = vadd.f32 0.0, %v3049
    %v3051 = vpop.f32.mrf.mxu0
    %3052 = vdwg.mxu0
    %v3053 = vadd.f32 %v2813, %v2975
    %v3054 = vadd.f32 %v2818, %v2980
    %v3055 = vadd.f32 %v2823, %v2985
    %v3056 = vadd.f32 %v2828, %v2990
    %v3057 = vadd.f32 %v2833, %v2995
    %v3058 = vadd.f32 %v2838, %v3000
    %v3059 = vadd.f32 %v2843, %v3005
    %v3060 = vadd.f32 %v2848, %v3010
    %v3061 = vadd.f32 %v2853, %v3015
    %v3062 = vadd.f32 %v2858, %v3020
    %v3063 = vadd.f32 %v2863, %v3025
    %v3064 = vadd.f32 %v2868, %v3030
    %v3065 = vadd.f32 %v2873, %v3035
    %v3066 = vadd.f32 %v2878, %v3040
    %v3067 = vadd.f32 %v2883, %v3045
    %v3068 = vadd.f32 %v2888, %v3050
    %v3069 = vld [vmem:[%s14 + $0x1] sm:$0x1]
    %v3070 = vlaneseq
    %v3071 = vshrl.u32 %v3070, 7
    %v3072 = vsub.s32 0, %v3071
    %v3073 = vrot.slane %v3069, %v3072
    %v3074 = vadd.f32 %v3053, %v3073
    %v3075 = vadd.f32 %v3054, %v3073
    %v3076 = vadd.f32 %v3055, %v3073
    %v3077 = vadd.f32 %v3056, %v3073
    %v3078 = vadd.f32 %v3057, %v3073
    %v3079 = vadd.f32 %v3058, %v3073
    %v3080 = vadd.f32 %v3059, %v3073
    %v3081 = vadd.f32 %v3060, %v3073
    %v3082 = vadd.f32 %v3061, %v3073
    %v3083 = vadd.f32 %v3062, %v3073
    %v3084 = vadd.f32 %v3063, %v3073
    %v3085 = vadd.f32 %v3064, %v3073
    %v3086 = vadd.f32 %v3065, %v3073
    %v3087 = vadd.f32 %v3066, %v3073
    %v3088 = vadd.f32 %v3067, %v3073
    %v3089 = vadd.f32 %v3068, %v3073
    %v3090 = vmax.f32 %v3074, 0.0
    %v3091 = vmax.f32 %v3075, 0.0
    %v3092 = vmax.f32 %v3076, 0.0
    %v3093 = vmax.f32 %v3077, 0.0
    %v3094 = vmax.f32 %v3078, 0.0
    %v3095 = vmax.f32 %v3079, 0.0
    %v3096 = vmax.f32 %v3080, 0.0
    %v3097 = vmax.f32 %v3081, 0.0
    %v3098 = vmax.f32 %v3082, 0.0
    %v3099 = vmax.f32 %v3083, 0.0
    %v3100 = vmax.f32 %v3084, 0.0
    %v3101 = vmax.f32 %v3085, 0.0
    %v3102 = vmax.f32 %v3086, 0.0
    %v3103 = vmax.f32 %v3087, 0.0
    %v3104 = vmax.f32 %v3088, 0.0
    %v3105 = vmax.f32 %v3089, 0.0
    %s3106 = scalar_lea.vmem [#allocation19], 128
    %v3107 = vld [vmem:[%s3106] sm:$0xff]
    %v3108 = vld [vmem:[%s3106 + $0x8] sm:$0xff]
    %v3109 = vld [vmem:[%s3106 + $0x10] sm:$0xff]
    %v3110 = vld [vmem:[%s3106 + $0x18] sm:$0xff]
    %v3111 = vld [vmem:[%s3106 + $0x20] sm:$0xff]
    %v3112 = vld [vmem:[%s3106 + $0x28] sm:$0xff]
    %v3113 = vld [vmem:[%s3106 + $0x30] sm:$0xff]
    %v3114 = vld [vmem:[%s3106 + $0x38] sm:$0xff]
    %v3115 = vld [vmem:[%s3106 + $0x40] sm:$0xff]
    %v3116 = vld [vmem:[%s3106 + $0x48] sm:$0xff]
    %v3117 = vld [vmem:[%s3106 + $0x50] sm:$0xff]
    %v3118 = vld [vmem:[%s3106 + $0x58] sm:$0xff]
    %v3119 = vld [vmem:[%s3106 + $0x60] sm:$0xff]
    %v3120 = vld [vmem:[%s3106 + $0x68] sm:$0xff]
    %v3121 = vld [vmem:[%s3106 + $0x70] sm:$0xff]
    %v3122 = vld [vmem:[%s3106 + $0x78] sm:$0xff]
    %v3123 = vld [vmem:[%s16 + $0x1] sm:$0x1]
    %v3124 = vlaneseq
    %v3125 = vshrl.u32 %v3124, 7
    %v3126 = vsub.s32 0, %v3125
    %v3127 = vrot.slane %v3123, %v3126
    %3128 = vmatprep.subr.mxu0 0.0
    %3129 = vmatpush1.msra.mxu0 %v3122
    %3130 = vmatprep.subr.mxu0 0.0
    %3131 = vmatpush1.msra.mxu0 %v3121
    %3132 = vmatprep.subr.mxu0 0.0
    %3133 = vmatpush1.msra.mxu0 %v3120
    %3134 = vmatprep.subr.mxu0 0.0
    %3135 = vmatpush1.msra.mxu0 %v3119
    %3136 = vmatprep.subr.mxu0 0.0
    %3137 = vmatpush1.msra.mxu0 %v3118
    %3138 = vmatprep.subr.mxu0 0.0
    %3139 = vmatpush1.msra.mxu0 %v3117
    %3140 = vmatprep.subr.mxu0 0.0
    %3141 = vmatpush1.msra.mxu0 %v3116
    %3142 = vmatprep.subr.mxu0 0.0
    %3143 = vmatpush1.msra.mxu0 %v3115
    %3144 = vmatprep.subr.mxu0 0.0
    %3145 = vmatpush1.msra.mxu0 %v3114
    %3146 = vmatprep.subr.mxu0 0.0
    %3147 = vmatpush1.msra.mxu0 %v3113
    %3148 = vmatprep.subr.mxu0 0.0
    %3149 = vmatpush1.msra.mxu0 %v3112
    %3150 = vmatprep.subr.mxu0 0.0
    %3151 = vmatpush1.msra.mxu0 %v3111
    %3152 = vmatprep.subr.mxu0 0.0
    %3153 = vmatpush1.msra.mxu0 %v3110
    %3154 = vmatprep.subr.mxu0 0.0
    %3155 = vmatpush1.msra.mxu0 %v3109
    %3156 = vmatprep.subr.mxu0 0.0
    %3157 = vmatpush1.msra.mxu0 %v3108
    %3158 = vmatprep.subr.mxu0 0.0
    %3159 = vmatpush1.msra.mxu0 %v3107
    %3160 = vmatprep.subr.mxu0 0.0
    %3161 = vmatpush2.msra.mxu0 0.0
    %3162 = vmatprep.subr.mxu0 0.0
    %3163 = vmatpush2.msra.mxu0 0.0
    %3164 = vmatprep.subr.mxu0 0.0
    %3165 = vmatpush2.msra.mxu0 0.0
    %3166 = vmatprep.subr.mxu0 0.0
    %3167 = vmatpush2.msra.mxu0 0.0
    %3168 = vmatprep.subr.mxu0 0.0
    %3169 = vmatpush2.msra.mxu0 0.0
    %3170 = vmatprep.subr.mxu0 0.0
    %3171 = vmatpush2.msra.mxu0 0.0
    %3172 = vmatprep.subr.mxu0 0.0
    %3173 = vmatpush2.msra.mxu0 0.0
    %3174 = vmatprep.subr.mxu0 0.0
    %3175 = vmatpush2.msra.mxu0 0.0
    %3176 = vmatprep.subr.mxu0 0.0
    %3177 = vmatpush2.msra.mxu0 0.0
    %3178 = vmatprep.subr.mxu0 0.0
    %3179 = vmatpush2.msra.mxu0 0.0
    %3180 = vmatprep.subr.mxu0 0.0
    %3181 = vmatpush2.msra.mxu0 0.0
    %3182 = vmatprep.subr.mxu0 0.0
    %3183 = vmatpush2.msra.mxu0 0.0
    %3184 = vmatprep.subr.mxu0 0.0
    %3185 = vmatpush2.msra.mxu0 0.0
    %3186 = vmatprep.subr.mxu0 0.0
    %3187 = vmatpush2.msra.mxu0 0.0
    %3188 = vmatprep.subr.mxu0 0.0
    %3189 = vmatpush2.msra.mxu0 0.0
    %3190 = vmatprep.subr.mxu0 0.0
    %3191 = vmatpush2.msra.mxu0 0.0
    %3192 = vmatprep.mubr.f32.mxu0 0.0
    %3193 = vmatmul.mubr.f32.gmra.mxu0 %v3090
    %v3194 = vpop.f32.mrf.mxu0
    %v3195 = vadd.f32 %v3127, %v3194
    %v3196 = vpop.f32.mrf.mxu0
    %3197 = vmatprep.mubr.f32.mxu0 0.0
    %3198 = vmatmul.mubr.f32.gmra.mxu0 %v3091
    %v3199 = vpop.f32.mrf.mxu0
    %v3200 = vadd.f32 %v3127, %v3199
    %v3201 = vpop.f32.mrf.mxu0
    %3202 = vmatprep.mubr.f32.mxu0 0.0
    %3203 = vmatmul.mubr.f32.gmra.mxu0 %v3092
    %v3204 = vpop.f32.mrf.mxu0
    %v3205 = vadd.f32 %v3127, %v3204
    %v3206 = vpop.f32.mrf.mxu0
    %3207 = vmatprep.mubr.f32.mxu0 0.0
    %3208 = vmatmul.mubr.f32.gmra.mxu0 %v3093
    %v3209 = vpop.f32.mrf.mxu0
    %v3210 = vadd.f32 %v3127, %v3209
    %v3211 = vpop.f32.mrf.mxu0
    %3212 = vmatprep.mubr.f32.mxu0 0.0
    %3213 = vmatmul.mubr.f32.gmra.mxu0 %v3094
    %v3214 = vpop.f32.mrf.mxu0
    %v3215 = vadd.f32 %v3127, %v3214
    %v3216 = vpop.f32.mrf.mxu0
    %3217 = vmatprep.mubr.f32.mxu0 0.0
    %3218 = vmatmul.mubr.f32.gmra.mxu0 %v3095
    %v3219 = vpop.f32.mrf.mxu0
    %v3220 = vadd.f32 %v3127, %v3219
    %v3221 = vpop.f32.mrf.mxu0
    %3222 = vmatprep.mubr.f32.mxu0 0.0
    %3223 = vmatmul.mubr.f32.gmra.mxu0 %v3096
    %v3224 = vpop.f32.mrf.mxu0
    %v3225 = vadd.f32 %v3127, %v3224
    %v3226 = vpop.f32.mrf.mxu0
    %3227 = vmatprep.mubr.f32.mxu0 0.0
    %3228 = vmatmul.mubr.f32.gmra.mxu0 %v3097
    %v3229 = vpop.f32.mrf.mxu0
    %v3230 = vadd.f32 %v3127, %v3229
    %v3231 = vpop.f32.mrf.mxu0
    %3232 = vmatprep.mubr.f32.mxu0 0.0
    %3233 = vmatmul.mubr.f32.gmra.mxu0 %v3098
    %v3234 = vpop.f32.mrf.mxu0
    %v3235 = vadd.f32 %v3127, %v3234
    %v3236 = vpop.f32.mrf.mxu0
    %3237 = vmatprep.mubr.f32.mxu0 0.0
    %3238 = vmatmul.mubr.f32.gmra.mxu0 %v3099
    %v3239 = vpop.f32.mrf.mxu0
    %v3240 = vadd.f32 %v3127, %v3239
    %v3241 = vpop.f32.mrf.mxu0
    %3242 = vmatprep.mubr.f32.mxu0 0.0
    %3243 = vmatmul.mubr.f32.gmra.mxu0 %v3100
    %v3244 = vpop.f32.mrf.mxu0
    %v3245 = vadd.f32 %v3127, %v3244
    %v3246 = vpop.f32.mrf.mxu0
    %3247 = vmatprep.mubr.f32.mxu0 0.0
    %3248 = vmatmul.mubr.f32.gmra.mxu0 %v3101
    %v3249 = vpop.f32.mrf.mxu0
    %v3250 = vadd.f32 %v3127, %v3249
    %v3251 = vpop.f32.mrf.mxu0
    %3252 = vmatprep.mubr.f32.mxu0 0.0
    %3253 = vmatmul.mubr.f32.gmra.mxu0 %v3102
    %v3254 = vpop.f32.mrf.mxu0
    %v3255 = vadd.f32 %v3127, %v3254
    %v3256 = vpop.f32.mrf.mxu0
    %3257 = vmatprep.mubr.f32.mxu0 0.0
    %3258 = vmatmul.mubr.f32.gmra.mxu0 %v3103
    %v3259 = vpop.f32.mrf.mxu0
    %v3260 = vadd.f32 %v3127, %v3259
    %v3261 = vpop.f32.mrf.mxu0
    %3262 = vmatprep.mubr.f32.mxu0 0.0
    %3263 = vmatmul.mubr.f32.gmra.mxu0 %v3104
    %v3264 = vpop.f32.mrf.mxu0
    %v3265 = vadd.f32 %v3127, %v3264
    %v3266 = vpop.f32.mrf.mxu0
    %3267 = vmatprep.mubr.f32.mxu0 0.0
    %3268 = vmatmul.mubr.f32.gmra.mxu0 %v3105
    %v3269 = vpop.f32.mrf.mxu0
    %v3270 = vadd.f32 %v3127, %v3269
    %v3271 = vpop.f32.mrf.mxu0
    %3272 = vdwg.mxu0
    %v3273 = vmul.f32 %v3195, %v1418
    %v3274 = vmul.f32 %v3200, %v1423
    %v3275 = vmul.f32 %v3205, %v1428
    %v3276 = vmul.f32 %v3210, %v1433
    %v3277 = vmul.f32 %v3215, %v1438
    %v3278 = vmul.f32 %v3220, %v1443
    %v3279 = vmul.f32 %v3225, %v1448
    %v3280 = vmul.f32 %v3230, %v1453
    %v3281 = vmul.f32 %v3235, %v1458
    %v3282 = vmul.f32 %v3240, %v1463
    %v3283 = vmul.f32 %v3245, %v1468
    %v3284 = vmul.f32 %v3250, %v1473
    %v3285 = vmul.f32 %v3255, %v1478
    %v3286 = vmul.f32 %v3260, %v1483
    %v3287 = vmul.f32 %v3265, %v1488
    %v3288 = vmul.f32 %v3270, %v1493
    %3289 = vmatprep.subr.mxu0 0.0
    %3290 = vmatpush1.msra.mxu0 %v3288
    %3291 = vmatprep.subr.mxu0 0.0
    %3292 = vmatpush1.msra.mxu0 %v3287
    %3293 = vmatprep.subr.mxu0 0.0
    %3294 = vmatpush1.msra.mxu0 %v3286
    %3295 = vmatprep.subr.mxu0 0.0
    %3296 = vmatpush1.msra.mxu0 %v3285
    %3297 = vmatprep.subr.mxu0 0.0
    %3298 = vmatpush1.msra.mxu0 %v3284
    %3299 = vmatprep.subr.mxu0 0.0
    %3300 = vmatpush1.msra.mxu0 %v3283
    %3301 = vmatprep.subr.mxu0 0.0
    %3302 = vmatpush1.msra.mxu0 %v3282
    %3303 = vmatprep.subr.mxu0 0.0
    %3304 = vmatpush1.msra.mxu0 %v3281
    %3305 = vmatprep.subr.mxu0 0.0
    %3306 = vmatpush1.msra.mxu0 %v3280
    %3307 = vmatprep.subr.mxu0 0.0
    %3308 = vmatpush1.msra.mxu0 %v3279
    %3309 = vmatprep.subr.mxu0 0.0
    %3310 = vmatpush1.msra.mxu0 %v3278
    %3311 = vmatprep.subr.mxu0 0.0
    %3312 = vmatpush1.msra.mxu0 %v3277
    %3313 = vmatprep.subr.mxu0 0.0
    %3314 = vmatpush1.msra.mxu0 %v3276
    %3315 = vmatprep.subr.mxu0 0.0
    %3316 = vmatpush1.msra.mxu0 %v3275
    %3317 = vmatprep.subr.mxu0 0.0
    %3318 = vmatpush1.msra.mxu0 %v3274
    %3319 = vmatprep.subr.mxu0 0.0
    %3320 = vmatpush1.msra.mxu0 %v3273
    %3321 = vmatprep.subr.mxu0 0.0
    %3322 = vmatpush2.msra.mxu0 0.0
    %3323 = vmatprep.subr.mxu0 0.0
    %3324 = vmatpush2.msra.mxu0 0.0
    %3325 = vmatprep.subr.mxu0 0.0
    %3326 = vmatpush2.msra.mxu0 0.0
    %3327 = vmatprep.subr.mxu0 0.0
    %3328 = vmatpush2.msra.mxu0 0.0
    %3329 = vmatprep.subr.mxu0 0.0
    %3330 = vmatpush2.msra.mxu0 0.0
    %3331 = vmatprep.subr.mxu0 0.0
    %3332 = vmatpush2.msra.mxu0 0.0
    %3333 = vmatprep.subr.mxu0 0.0
    %3334 = vmatpush2.msra.mxu0 0.0
    %3335 = vmatprep.subr.mxu0 0.0
    %3336 = vmatpush2.msra.mxu0 0.0
    %3337 = vmatprep.subr.mxu0 0.0
    %3338 = vmatpush2.msra.mxu0 0.0
    %3339 = vmatprep.subr.mxu0 0.0
    %3340 = vmatpush2.msra.mxu0 0.0
    %3341 = vmatprep.subr.mxu0 0.0
    %3342 = vmatpush2.msra.mxu0 0.0
    %3343 = vmatprep.subr.mxu0 0.0
    %3344 = vmatpush2.msra.mxu0 0.0
    %3345 = vmatprep.subr.mxu0 0.0
    %3346 = vmatpush2.msra.mxu0 0.0
    %3347 = vmatprep.subr.mxu0 0.0
    %3348 = vmatpush2.msra.mxu0 0.0
    %3349 = vmatprep.subr.mxu0 0.0
    %3350 = vmatpush2.msra.mxu0 0.0
    %3351 = vmatprep.subr.mxu0 0.0
    %3352 = vmatpush2.msra.mxu0 0.0
    %3353 = vmatprep.mubr.f32.mxu0 0.0
    %3354 = vmatmul.mubr.f32.gmra.mxu0 %v375
    %v3355 = vpop.f32.mrf.mxu0
    %v3356 = vadd.f32 0.0, %v3355
    %v3357 = vpop.f32.mrf.mxu0
    %3358 = vmatprep.mubr.f32.mxu0 0.0
    %3359 = vmatmul.mubr.f32.gmra.mxu0 %v376
    %v3360 = vpop.f32.mrf.mxu0
    %v3361 = vadd.f32 0.0, %v3360
    %v3362 = vpop.f32.mrf.mxu0
    %3363 = vmatprep.mubr.f32.mxu0 0.0
    %3364 = vmatmul.mubr.f32.gmra.mxu0 %v377
    %v3365 = vpop.f32.mrf.mxu0
    %v3366 = vadd.f32 0.0, %v3365
    %v3367 = vpop.f32.mrf.mxu0
    %3368 = vmatprep.mubr.f32.mxu0 0.0
    %3369 = vmatmul.mubr.f32.gmra.mxu0 %v378
    %v3370 = vpop.f32.mrf.mxu0
    %v3371 = vadd.f32 0.0, %v3370
    %v3372 = vpop.f32.mrf.mxu0
    %3373 = vmatprep.mubr.f32.mxu0 0.0
    %3374 = vmatmul.mubr.f32.gmra.mxu0 %v379
    %v3375 = vpop.f32.mrf.mxu0
    %v3376 = vadd.f32 0.0, %v3375
    %v3377 = vpop.f32.mrf.mxu0
    %3378 = vmatprep.mubr.f32.mxu0 0.0
    %3379 = vmatmul.mubr.f32.gmra.mxu0 %v380
    %v3380 = vpop.f32.mrf.mxu0
    %v3381 = vadd.f32 0.0, %v3380
    %v3382 = vpop.f32.mrf.mxu0
    %3383 = vmatprep.mubr.f32.mxu0 0.0
    %3384 = vmatmul.mubr.f32.gmra.mxu0 %v381
    %v3385 = vpop.f32.mrf.mxu0
    %v3386 = vadd.f32 0.0, %v3385
    %v3387 = vpop.f32.mrf.mxu0
    %3388 = vmatprep.mubr.f32.mxu0 0.0
    %3389 = vmatmul.mubr.f32.gmra.mxu0 %v382
    %v3390 = vpop.f32.mrf.mxu0
    %v3391 = vadd.f32 0.0, %v3390
    %v3392 = vpop.f32.mrf.mxu0
    %3393 = vmatprep.mubr.f32.mxu0 0.0
    %3394 = vmatmul.mubr.f32.gmra.mxu0 %v383
    %v3395 = vpop.f32.mrf.mxu0
    %v3396 = vadd.f32 0.0, %v3395
    %v3397 = vpop.f32.mrf.mxu0
    %3398 = vmatprep.mubr.f32.mxu0 0.0
    %3399 = vmatmul.mubr.f32.gmra.mxu0 %v384
    %v3400 = vpop.f32.mrf.mxu0
    %v3401 = vadd.f32 0.0, %v3400
    %v3402 = vpop.f32.mrf.mxu0
    %3403 = vmatprep.mubr.f32.mxu0 0.0
    %3404 = vmatmul.mubr.f32.gmra.mxu0 %v385
    %v3405 = vpop.f32.mrf.mxu0
    %v3406 = vadd.f32 0.0, %v3405
    %v3407 = vpop.f32.mrf.mxu0
    %3408 = vmatprep.mubr.f32.mxu0 0.0
    %3409 = vmatmul.mubr.f32.gmra.mxu0 %v386
    %v3410 = vpop.f32.mrf.mxu0
    %v3411 = vadd.f32 0.0, %v3410
    %v3412 = vpop.f32.mrf.mxu0
    %3413 = vmatprep.mubr.f32.mxu0 0.0
    %3414 = vmatmul.mubr.f32.gmra.mxu0 %v387
    %v3415 = vpop.f32.mrf.mxu0
    %v3416 = vadd.f32 0.0, %v3415
    %v3417 = vpop.f32.mrf.mxu0
    %3418 = vmatprep.mubr.f32.mxu0 0.0
    %3419 = vmatmul.mubr.f32.gmra.mxu0 %v388
    %v3420 = vpop.f32.mrf.mxu0
    %v3421 = vadd.f32 0.0, %v3420
    %v3422 = vpop.f32.mrf.mxu0
    %3423 = vmatprep.mubr.f32.mxu0 0.0
    %3424 = vmatmul.mubr.f32.gmra.mxu0 %v389
    %v3425 = vpop.f32.mrf.mxu0
    %v3426 = vadd.f32 0.0, %v3425
    %v3427 = vpop.f32.mrf.mxu0
    %3428 = vmatprep.mubr.f32.mxu0 0.0
    %3429 = vmatmul.mubr.f32.gmra.mxu0 %v390
    %v3430 = vpop.f32.mrf.mxu0
    %v3431 = vadd.f32 0.0, %v3430
    %v3432 = vpop.f32.mrf.mxu0
    %3433 = vdwg.mxu0
    %s3434 = scalar_lea.vmem [#allocation20], 128
    %v3435 = vld [vmem:[%s3434] sm:$0xff]
    %v3436 = vld [vmem:[%s3434 + $0x8] sm:$0xff]
    %v3437 = vld [vmem:[%s3434 + $0x10] sm:$0xff]
    %v3438 = vld [vmem:[%s3434 + $0x18] sm:$0xff]
    %v3439 = vld [vmem:[%s3434 + $0x20] sm:$0xff]
    %v3440 = vld [vmem:[%s3434 + $0x28] sm:$0xff]
    %v3441 = vld [vmem:[%s3434 + $0x30] sm:$0xff]
    %v3442 = vld [vmem:[%s3434 + $0x38] sm:$0xff]
    %v3443 = vld [vmem:[%s3434 + $0x40] sm:$0xff]
    %v3444 = vld [vmem:[%s3434 + $0x48] sm:$0xff]
    %v3445 = vld [vmem:[%s3434 + $0x50] sm:$0xff]
    %v3446 = vld [vmem:[%s3434 + $0x58] sm:$0xff]
    %v3447 = vld [vmem:[%s3434 + $0x60] sm:$0xff]
    %v3448 = vld [vmem:[%s3434 + $0x68] sm:$0xff]
    %v3449 = vld [vmem:[%s3434 + $0x70] sm:$0xff]
    %v3450 = vld [vmem:[%s3434 + $0x78] sm:$0xff]
    %s3451 = scalar_lea.vmem [#allocation22], 128
    %v3452 = vld [vmem:[%s3451] sm:$0xff]
    %v3453 = vld [vmem:[%s3451 + $0x8] sm:$0xff]
    %v3454 = vld [vmem:[%s3451 + $0x10] sm:$0xff]
    %v3455 = vld [vmem:[%s3451 + $0x18] sm:$0xff]
    %v3456 = vld [vmem:[%s3451 + $0x20] sm:$0xff]
    %v3457 = vld [vmem:[%s3451 + $0x28] sm:$0xff]
    %v3458 = vld [vmem:[%s3451 + $0x30] sm:$0xff]
    %v3459 = vld [vmem:[%s3451 + $0x38] sm:$0xff]
    %v3460 = vld [vmem:[%s3451 + $0x40] sm:$0xff]
    %v3461 = vld [vmem:[%s3451 + $0x48] sm:$0xff]
    %v3462 = vld [vmem:[%s3451 + $0x50] sm:$0xff]
    %v3463 = vld [vmem:[%s3451 + $0x58] sm:$0xff]
    %v3464 = vld [vmem:[%s3451 + $0x60] sm:$0xff]
    %v3465 = vld [vmem:[%s3451 + $0x68] sm:$0xff]
    %v3466 = vld [vmem:[%s3451 + $0x70] sm:$0xff]
    %v3467 = vld [vmem:[%s3451 + $0x78] sm:$0xff]
    %3468 = vmatprep.subr.mxu0 0.0
    %3469 = vmatpush1.msra.mxu0 %v3467
    %3470 = vmatprep.subr.mxu0 0.0
    %3471 = vmatpush1.msra.mxu0 %v3466
    %3472 = vmatprep.subr.mxu0 0.0
    %3473 = vmatpush1.msra.mxu0 %v3465
    %3474 = vmatprep.subr.mxu0 0.0
    %3475 = vmatpush1.msra.mxu0 %v3464
    %3476 = vmatprep.subr.mxu0 0.0
    %3477 = vmatpush1.msra.mxu0 %v3463
    %3478 = vmatprep.subr.mxu0 0.0
    %3479 = vmatpush1.msra.mxu0 %v3462
    %3480 = vmatprep.subr.mxu0 0.0
    %3481 = vmatpush1.msra.mxu0 %v3461
    %3482 = vmatprep.subr.mxu0 0.0
    %3483 = vmatpush1.msra.mxu0 %v3460
    %3484 = vmatprep.subr.mxu0 0.0
    %3485 = vmatpush1.msra.mxu0 %v3459
    %3486 = vmatprep.subr.mxu0 0.0
    %3487 = vmatpush1.msra.mxu0 %v3458
    %3488 = vmatprep.subr.mxu0 0.0
    %3489 = vmatpush1.msra.mxu0 %v3457
    %3490 = vmatprep.subr.mxu0 0.0
    %3491 = vmatpush1.msra.mxu0 %v3456
    %3492 = vmatprep.subr.mxu0 0.0
    %3493 = vmatpush1.msra.mxu0 %v3455
    %3494 = vmatprep.subr.mxu0 0.0
    %3495 = vmatpush1.msra.mxu0 %v3454
    %3496 = vmatprep.subr.mxu0 0.0
    %3497 = vmatpush1.msra.mxu0 %v3453
    %3498 = vmatprep.subr.mxu0 0.0
    %3499 = vmatpush1.msra.mxu0 %v3452
    %3500 = vmatprep.subr.mxu0 0.0
    %3501 = vmatpush2.msra.mxu0 0.0
    %3502 = vmatprep.subr.mxu0 0.0
    %3503 = vmatpush2.msra.mxu0 0.0
    %3504 = vmatprep.subr.mxu0 0.0
    %3505 = vmatpush2.msra.mxu0 0.0
    %3506 = vmatprep.subr.mxu0 0.0
    %3507 = vmatpush2.msra.mxu0 0.0
    %3508 = vmatprep.subr.mxu0 0.0
    %3509 = vmatpush2.msra.mxu0 0.0
    %3510 = vmatprep.subr.mxu0 0.0
    %3511 = vmatpush2.msra.mxu0 0.0
    %3512 = vmatprep.subr.mxu0 0.0
    %3513 = vmatpush2.msra.mxu0 0.0
    %3514 = vmatprep.subr.mxu0 0.0
    %3515 = vmatpush2.msra.mxu0 0.0
    %3516 = vmatprep.subr.mxu0 0.0
    %3517 = vmatpush2.msra.mxu0 0.0
    %3518 = vmatprep.subr.mxu0 0.0
    %3519 = vmatpush2.msra.mxu0 0.0
    %3520 = vmatprep.subr.mxu0 0.0
    %3521 = vmatpush2.msra.mxu0 0.0
    %3522 = vmatprep.subr.mxu0 0.0
    %3523 = vmatpush2.msra.mxu0 0.0
    %3524 = vmatprep.subr.mxu0 0.0
    %3525 = vmatpush2.msra.mxu0 0.0
    %3526 = vmatprep.subr.mxu0 0.0
    %3527 = vmatpush2.msra.mxu0 0.0
    %3528 = vmatprep.subr.mxu0 0.0
    %3529 = vmatpush2.msra.mxu0 0.0
    %3530 = vmatprep.subr.mxu0 0.0
    %3531 = vmatpush2.msra.mxu0 0.0
    %3532 = vmatprep.mubr.f32.mxu0 0.0
    %3533 = vmatmul.mubr.f32.gmra.mxu0 %v3356
    %v3534 = vpop.f32.mrf.mxu0
    %v3535 = vadd.f32 0.0, %v3534
    %v3536 = vpop.f32.mrf.mxu0
    %3537 = vmatprep.mubr.f32.mxu0 0.0
    %3538 = vmatmul.mubr.f32.gmra.mxu0 %v3361
    %v3539 = vpop.f32.mrf.mxu0
    %v3540 = vadd.f32 0.0, %v3539
    %v3541 = vpop.f32.mrf.mxu0
    %3542 = vmatprep.mubr.f32.mxu0 0.0
    %3543 = vmatmul.mubr.f32.gmra.mxu0 %v3366
    %v3544 = vpop.f32.mrf.mxu0
    %v3545 = vadd.f32 0.0, %v3544
    %v3546 = vpop.f32.mrf.mxu0
    %3547 = vmatprep.mubr.f32.mxu0 0.0
    %3548 = vmatmul.mubr.f32.gmra.mxu0 %v3371
    %v3549 = vpop.f32.mrf.mxu0
    %v3550 = vadd.f32 0.0, %v3549
    %v3551 = vpop.f32.mrf.mxu0
    %3552 = vmatprep.mubr.f32.mxu0 0.0
    %3553 = vmatmul.mubr.f32.gmra.mxu0 %v3376
    %v3554 = vpop.f32.mrf.mxu0
    %v3555 = vadd.f32 0.0, %v3554
    %v3556 = vpop.f32.mrf.mxu0
    %3557 = vmatprep.mubr.f32.mxu0 0.0
    %3558 = vmatmul.mubr.f32.gmra.mxu0 %v3381
    %v3559 = vpop.f32.mrf.mxu0
    %v3560 = vadd.f32 0.0, %v3559
    %v3561 = vpop.f32.mrf.mxu0
    %3562 = vmatprep.mubr.f32.mxu0 0.0
    %3563 = vmatmul.mubr.f32.gmra.mxu0 %v3386
    %v3564 = vpop.f32.mrf.mxu0
    %v3565 = vadd.f32 0.0, %v3564
    %v3566 = vpop.f32.mrf.mxu0
    %3567 = vmatprep.mubr.f32.mxu0 0.0
    %3568 = vmatmul.mubr.f32.gmra.mxu0 %v3391
    %v3569 = vpop.f32.mrf.mxu0
    %v3570 = vadd.f32 0.0, %v3569
    %v3571 = vpop.f32.mrf.mxu0
    %3572 = vmatprep.mubr.f32.mxu0 0.0
    %3573 = vmatmul.mubr.f32.gmra.mxu0 %v3396
    %v3574 = vpop.f32.mrf.mxu0
    %v3575 = vadd.f32 0.0, %v3574
    %v3576 = vpop.f32.mrf.mxu0
    %3577 = vmatprep.mubr.f32.mxu0 0.0
    %3578 = vmatmul.mubr.f32.gmra.mxu0 %v3401
    %v3579 = vpop.f32.mrf.mxu0
    %v3580 = vadd.f32 0.0, %v3579
    %v3581 = vpop.f32.mrf.mxu0
    %3582 = vmatprep.mubr.f32.mxu0 0.0
    %3583 = vmatmul.mubr.f32.gmra.mxu0 %v3406
    %v3584 = vpop.f32.mrf.mxu0
    %v3585 = vadd.f32 0.0, %v3584
    %v3586 = vpop.f32.mrf.mxu0
    %3587 = vmatprep.mubr.f32.mxu0 0.0
    %3588 = vmatmul.mubr.f32.gmra.mxu0 %v3411
    %v3589 = vpop.f32.mrf.mxu0
    %v3590 = vadd.f32 0.0, %v3589
    %v3591 = vpop.f32.mrf.mxu0
    %3592 = vmatprep.mubr.f32.mxu0 0.0
    %3593 = vmatmul.mubr.f32.gmra.mxu0 %v3416
    %v3594 = vpop.f32.mrf.mxu0
    %v3595 = vadd.f32 0.0, %v3594
    %v3596 = vpop.f32.mrf.mxu0
    %3597 = vmatprep.mubr.f32.mxu0 0.0
    %3598 = vmatmul.mubr.f32.gmra.mxu0 %v3421
    %v3599 = vpop.f32.mrf.mxu0
    %v3600 = vadd.f32 0.0, %v3599
    %v3601 = vpop.f32.mrf.mxu0
    %3602 = vmatprep.mubr.f32.mxu0 0.0
    %3603 = vmatmul.mubr.f32.gmra.mxu0 %v3426
    %v3604 = vpop.f32.mrf.mxu0
    %v3605 = vadd.f32 0.0, %v3604
    %v3606 = vpop.f32.mrf.mxu0
    %3607 = vmatprep.mubr.f32.mxu0 0.0
    %3608 = vmatmul.mubr.f32.gmra.mxu0 %v3431
    %v3609 = vpop.f32.mrf.mxu0
    %v3610 = vadd.f32 0.0, %v3609
    %v3611 = vpop.f32.mrf.mxu0
    %3612 = vdwg.mxu0
    %3613 = vmatprep.subr.mxu0 0.0
    %3614 = vmatpush1.msra.mxu0 %v3450
    %3615 = vmatprep.subr.mxu0 0.0
    %3616 = vmatpush1.msra.mxu0 %v3449
    %3617 = vmatprep.subr.mxu0 0.0
    %3618 = vmatpush1.msra.mxu0 %v3448
    %3619 = vmatprep.subr.mxu0 0.0
    %3620 = vmatpush1.msra.mxu0 %v3447
    %3621 = vmatprep.subr.mxu0 0.0
    %3622 = vmatpush1.msra.mxu0 %v3446
    %3623 = vmatprep.subr.mxu0 0.0
    %3624 = vmatpush1.msra.mxu0 %v3445
    %3625 = vmatprep.subr.mxu0 0.0
    %3626 = vmatpush1.msra.mxu0 %v3444
    %3627 = vmatprep.subr.mxu0 0.0
    %3628 = vmatpush1.msra.mxu0 %v3443
    %3629 = vmatprep.subr.mxu0 0.0
    %3630 = vmatpush1.msra.mxu0 %v3442
    %3631 = vmatprep.subr.mxu0 0.0
    %3632 = vmatpush1.msra.mxu0 %v3441
    %3633 = vmatprep.subr.mxu0 0.0
    %3634 = vmatpush1.msra.mxu0 %v3440
    %3635 = vmatprep.subr.mxu0 0.0
    %3636 = vmatpush1.msra.mxu0 %v3439
    %3637 = vmatprep.subr.mxu0 0.0
    %3638 = vmatpush1.msra.mxu0 %v3438
    %3639 = vmatprep.subr.mxu0 0.0
    %3640 = vmatpush1.msra.mxu0 %v3437
    %3641 = vmatprep.subr.mxu0 0.0
    %3642 = vmatpush1.msra.mxu0 %v3436
    %3643 = vmatprep.subr.mxu0 0.0
    %3644 = vmatpush1.msra.mxu0 %v3435
    %3645 = vmatprep.subr.mxu0 0.0
    %3646 = vmatpush2.msra.mxu0 0.0
    %3647 = vmatprep.subr.mxu0 0.0
    %3648 = vmatpush2.msra.mxu0 0.0
    %3649 = vmatprep.subr.mxu0 0.0
    %3650 = vmatpush2.msra.mxu0 0.0
    %3651 = vmatprep.subr.mxu0 0.0
    %3652 = vmatpush2.msra.mxu0 0.0
    %3653 = vmatprep.subr.mxu0 0.0
    %3654 = vmatpush2.msra.mxu0 0.0
    %3655 = vmatprep.subr.mxu0 0.0
    %3656 = vmatpush2.msra.mxu0 0.0
    %3657 = vmatprep.subr.mxu0 0.0
    %3658 = vmatpush2.msra.mxu0 0.0
    %3659 = vmatprep.subr.mxu0 0.0
    %3660 = vmatpush2.msra.mxu0 0.0
    %3661 = vmatprep.subr.mxu0 0.0
    %3662 = vmatpush2.msra.mxu0 0.0
    %3663 = vmatprep.subr.mxu0 0.0
    %3664 = vmatpush2.msra.mxu0 0.0
    %3665 = vmatprep.subr.mxu0 0.0
    %3666 = vmatpush2.msra.mxu0 0.0
    %3667 = vmatprep.subr.mxu0 0.0
    %3668 = vmatpush2.msra.mxu0 0.0
    %3669 = vmatprep.subr.mxu0 0.0
    %3670 = vmatpush2.msra.mxu0 0.0
    %3671 = vmatprep.subr.mxu0 0.0
    %3672 = vmatpush2.msra.mxu0 0.0
    %3673 = vmatprep.subr.mxu0 0.0
    %3674 = vmatpush2.msra.mxu0 0.0
    %3675 = vmatprep.subr.mxu0 0.0
    %3676 = vmatpush2.msra.mxu0 0.0
    %3677 = vmatprep.mubr.f32.mxu0 0.0
    %3678 = vmatmul.mubr.f32.gmra.mxu0 %v2261
    %v3679 = vpop.f32.mrf.mxu0
    %v3680 = vadd.f32 %v3535, %v3679
    %v3681 = vpop.f32.mrf.mxu0
    %3682 = vmatprep.mubr.f32.mxu0 0.0
    %3683 = vmatmul.mubr.f32.gmra.mxu0 %v2262
    %v3684 = vpop.f32.mrf.mxu0
    %v3685 = vadd.f32 %v3540, %v3684
    %v3686 = vpop.f32.mrf.mxu0
    %3687 = vmatprep.mubr.f32.mxu0 0.0
    %3688 = vmatmul.mubr.f32.gmra.mxu0 %v2263
    %v3689 = vpop.f32.mrf.mxu0
    %v3690 = vadd.f32 %v3545, %v3689
    %v3691 = vpop.f32.mrf.mxu0
    %3692 = vmatprep.mubr.f32.mxu0 0.0
    %3693 = vmatmul.mubr.f32.gmra.mxu0 %v2264
    %v3694 = vpop.f32.mrf.mxu0
    %v3695 = vadd.f32 %v3550, %v3694
    %v3696 = vpop.f32.mrf.mxu0
    %3697 = vmatprep.mubr.f32.mxu0 0.0
    %3698 = vmatmul.mubr.f32.gmra.mxu0 %v2265
    %v3699 = vpop.f32.mrf.mxu0
    %v3700 = vadd.f32 %v3555, %v3699
    %v3701 = vpop.f32.mrf.mxu0
    %3702 = vmatprep.mubr.f32.mxu0 0.0
    %3703 = vmatmul.mubr.f32.gmra.mxu0 %v2266
    %v3704 = vpop.f32.mrf.mxu0
    %v3705 = vadd.f32 %v3560, %v3704
    %v3706 = vpop.f32.mrf.mxu0
    %3707 = vmatprep.mubr.f32.mxu0 0.0
    %3708 = vmatmul.mubr.f32.gmra.mxu0 %v2267
    %v3709 = vpop.f32.mrf.mxu0
    %v3710 = vadd.f32 %v3565, %v3709
    %v3711 = vpop.f32.mrf.mxu0
    %3712 = vmatprep.mubr.f32.mxu0 0.0
    %3713 = vmatmul.mubr.f32.gmra.mxu0 %v2268
    %v3714 = vpop.f32.mrf.mxu0
    %v3715 = vadd.f32 %v3570, %v3714
    %v3716 = vpop.f32.mrf.mxu0
    %3717 = vmatprep.mubr.f32.mxu0 0.0
    %3718 = vmatmul.mubr.f32.gmra.mxu0 %v2269
    %v3719 = vpop.f32.mrf.mxu0
    %v3720 = vadd.f32 %v3575, %v3719
    %v3721 = vpop.f32.mrf.mxu0
    %3722 = vmatprep.mubr.f32.mxu0 0.0
    %3723 = vmatmul.mubr.f32.gmra.mxu0 %v2270
    %v3724 = vpop.f32.mrf.mxu0
    %v3725 = vadd.f32 %v3580, %v3724
    %v3726 = vpop.f32.mrf.mxu0
    %3727 = vmatprep.mubr.f32.mxu0 0.0
    %3728 = vmatmul.mubr.f32.gmra.mxu0 %v2271
    %v3729 = vpop.f32.mrf.mxu0
    %v3730 = vadd.f32 %v3585, %v3729
    %v3731 = vpop.f32.mrf.mxu0
    %3732 = vmatprep.mubr.f32.mxu0 0.0
    %3733 = vmatmul.mubr.f32.gmra.mxu0 %v2272
    %v3734 = vpop.f32.mrf.mxu0
    %v3735 = vadd.f32 %v3590, %v3734
    %v3736 = vpop.f32.mrf.mxu0
    %3737 = vmatprep.mubr.f32.mxu0 0.0
    %3738 = vmatmul.mubr.f32.gmra.mxu0 %v2273
    %v3739 = vpop.f32.mrf.mxu0
    %v3740 = vadd.f32 %v3595, %v3739
    %v3741 = vpop.f32.mrf.mxu0
    %3742 = vmatprep.mubr.f32.mxu0 0.0
    %3743 = vmatmul.mubr.f32.gmra.mxu0 %v2274
    %v3744 = vpop.f32.mrf.mxu0
    %v3745 = vadd.f32 %v3600, %v3744
    %v3746 = vpop.f32.mrf.mxu0
    %3747 = vmatprep.mubr.f32.mxu0 0.0
    %3748 = vmatmul.mubr.f32.gmra.mxu0 %v2275
    %v3749 = vpop.f32.mrf.mxu0
    %v3750 = vadd.f32 %v3605, %v3749
    %v3751 = vpop.f32.mrf.mxu0
    %3752 = vmatprep.mubr.f32.mxu0 0.0
    %3753 = vmatmul.mubr.f32.gmra.mxu0 %v2276
    %v3754 = vpop.f32.mrf.mxu0
    %v3755 = vadd.f32 %v3610, %v3754
    %v3756 = vpop.f32.mrf.mxu0
    %3757 = vdwg.mxu0
    %v3758 = vld [vmem:[%s19 + $0x1] sm:$0x1]
    %v3759 = vlaneseq
    %v3760 = vshrl.u32 %v3759, 7
    %v3761 = vsub.s32 0, %v3760
    %v3762 = vrot.slane %v3758, %v3761
    %v3763 = vadd.f32 %v3680, %v3762
    %v3764 = vadd.f32 %v3685, %v3762
    %v3765 = vadd.f32 %v3690, %v3762
    %v3766 = vadd.f32 %v3695, %v3762
    %v3767 = vadd.f32 %v3700, %v3762
    %v3768 = vadd.f32 %v3705, %v3762
    %v3769 = vadd.f32 %v3710, %v3762
    %v3770 = vadd.f32 %v3715, %v3762
    %v3771 = vadd.f32 %v3720, %v3762
    %v3772 = vadd.f32 %v3725, %v3762
    %v3773 = vadd.f32 %v3730, %v3762
    %v3774 = vadd.f32 %v3735, %v3762
    %v3775 = vadd.f32 %v3740, %v3762
    %v3776 = vadd.f32 %v3745, %v3762
    %v3777 = vadd.f32 %v3750, %v3762
    %v3778 = vadd.f32 %v3755, %v3762
    %v3779 = vmax.f32 %v3763, 0.0
    %v3780 = vmax.f32 %v3764, 0.0
    %v3781 = vmax.f32 %v3765, 0.0
    %v3782 = vmax.f32 %v3766, 0.0
    %v3783 = vmax.f32 %v3767, 0.0
    %v3784 = vmax.f32 %v3768, 0.0
    %v3785 = vmax.f32 %v3769, 0.0
    %v3786 = vmax.f32 %v3770, 0.0
    %v3787 = vmax.f32 %v3771, 0.0
    %v3788 = vmax.f32 %v3772, 0.0
    %v3789 = vmax.f32 %v3773, 0.0
    %v3790 = vmax.f32 %v3774, 0.0
    %v3791 = vmax.f32 %v3775, 0.0
    %v3792 = vmax.f32 %v3776, 0.0
    %v3793 = vmax.f32 %v3777, 0.0
    %v3794 = vmax.f32 %v3778, 0.0
    %s3795 = scalar_lea.vmem [#allocation23], 128
    %v3796 = vld [vmem:[%s3795] sm:$0xff]
    %v3797 = vld [vmem:[%s3795 + $0x8] sm:$0xff]
    %v3798 = vld [vmem:[%s3795 + $0x10] sm:$0xff]
    %v3799 = vld [vmem:[%s3795 + $0x18] sm:$0xff]
    %v3800 = vld [vmem:[%s3795 + $0x20] sm:$0xff]
    %v3801 = vld [vmem:[%s3795 + $0x28] sm:$0xff]
    %v3802 = vld [vmem:[%s3795 + $0x30] sm:$0xff]
    %v3803 = vld [vmem:[%s3795 + $0x38] sm:$0xff]
    %v3804 = vld [vmem:[%s3795 + $0x40] sm:$0xff]
    %v3805 = vld [vmem:[%s3795 + $0x48] sm:$0xff]
    %v3806 = vld [vmem:[%s3795 + $0x50] sm:$0xff]
    %v3807 = vld [vmem:[%s3795 + $0x58] sm:$0xff]
    %v3808 = vld [vmem:[%s3795 + $0x60] sm:$0xff]
    %v3809 = vld [vmem:[%s3795 + $0x68] sm:$0xff]
    %v3810 = vld [vmem:[%s3795 + $0x70] sm:$0xff]
    %v3811 = vld [vmem:[%s3795 + $0x78] sm:$0xff]
    %v3812 = vld [vmem:[%s21 + $0x1] sm:$0x1]
    %v3813 = vlaneseq
    %v3814 = vshrl.u32 %v3813, 7
    %v3815 = vsub.s32 0, %v3814
    %v3816 = vrot.slane %v3812, %v3815
    %3817 = vmatprep.subr.mxu0 0.0
    %3818 = vmatpush1.msra.mxu0 %v3811
    %3819 = vmatprep.subr.mxu0 0.0
    %3820 = vmatpush1.msra.mxu0 %v3810
    %3821 = vmatprep.subr.mxu0 0.0
    %3822 = vmatpush1.msra.mxu0 %v3809
    %3823 = vmatprep.subr.mxu0 0.0
    %3824 = vmatpush1.msra.mxu0 %v3808
    %3825 = vmatprep.subr.mxu0 0.0
    %3826 = vmatpush1.msra.mxu0 %v3807
    %3827 = vmatprep.subr.mxu0 0.0
    %3828 = vmatpush1.msra.mxu0 %v3806
    %3829 = vmatprep.subr.mxu0 0.0
    %3830 = vmatpush1.msra.mxu0 %v3805
    %3831 = vmatprep.subr.mxu0 0.0
    %3832 = vmatpush1.msra.mxu0 %v3804
    %3833 = vmatprep.subr.mxu0 0.0
    %3834 = vmatpush1.msra.mxu0 %v3803
    %3835 = vmatprep.subr.mxu0 0.0
    %3836 = vmatpush1.msra.mxu0 %v3802
    %3837 = vmatprep.subr.mxu0 0.0
    %3838 = vmatpush1.msra.mxu0 %v3801
    %3839 = vmatprep.subr.mxu0 0.0
    %3840 = vmatpush1.msra.mxu0 %v3800
    %3841 = vmatprep.subr.mxu0 0.0
    %3842 = vmatpush1.msra.mxu0 %v3799
    %3843 = vmatprep.subr.mxu0 0.0
    %3844 = vmatpush1.msra.mxu0 %v3798
    %3845 = vmatprep.subr.mxu0 0.0
    %3846 = vmatpush1.msra.mxu0 %v3797
    %3847 = vmatprep.subr.mxu0 0.0
    %3848 = vmatpush1.msra.mxu0 %v3796
    %3849 = vmatprep.subr.mxu0 0.0
    %3850 = vmatpush2.msra.mxu0 0.0
    %3851 = vmatprep.subr.mxu0 0.0
    %3852 = vmatpush2.msra.mxu0 0.0
    %3853 = vmatprep.subr.mxu0 0.0
    %3854 = vmatpush2.msra.mxu0 0.0
    %3855 = vmatprep.subr.mxu0 0.0
    %3856 = vmatpush2.msra.mxu0 0.0
    %3857 = vmatprep.subr.mxu0 0.0
    %3858 = vmatpush2.msra.mxu0 0.0
    %3859 = vmatprep.subr.mxu0 0.0
    %3860 = vmatpush2.msra.mxu0 0.0
    %3861 = vmatprep.subr.mxu0 0.0
    %3862 = vmatpush2.msra.mxu0 0.0
    %3863 = vmatprep.subr.mxu0 0.0
    %3864 = vmatpush2.msra.mxu0 0.0
    %3865 = vmatprep.subr.mxu0 0.0
    %3866 = vmatpush2.msra.mxu0 0.0
    %3867 = vmatprep.subr.mxu0 0.0
    %3868 = vmatpush2.msra.mxu0 0.0
    %3869 = vmatprep.subr.mxu0 0.0
    %3870 = vmatpush2.msra.mxu0 0.0
    %3871 = vmatprep.subr.mxu0 0.0
    %3872 = vmatpush2.msra.mxu0 0.0
    %3873 = vmatprep.subr.mxu0 0.0
    %3874 = vmatpush2.msra.mxu0 0.0
    %3875 = vmatprep.subr.mxu0 0.0
    %3876 = vmatpush2.msra.mxu0 0.0
    %3877 = vmatprep.subr.mxu0 0.0
    %3878 = vmatpush2.msra.mxu0 0.0
    %3879 = vmatprep.subr.mxu0 0.0
    %3880 = vmatpush2.msra.mxu0 0.0
    %3881 = vmatprep.mubr.f32.mxu0 0.0
    %3882 = vmatmul.mubr.f32.gmra.mxu0 %v3779
    %v3883 = vpop.f32.mrf.mxu0
    %v3884 = vadd.f32 %v3816, %v3883
    %v3885 = vpop.f32.mrf.mxu0
    %3886 = vmatprep.mubr.f32.mxu0 0.0
    %3887 = vmatmul.mubr.f32.gmra.mxu0 %v3780
    %v3888 = vpop.f32.mrf.mxu0
    %v3889 = vadd.f32 %v3816, %v3888
    %v3890 = vpop.f32.mrf.mxu0
    %3891 = vmatprep.mubr.f32.mxu0 0.0
    %3892 = vmatmul.mubr.f32.gmra.mxu0 %v3781
    %v3893 = vpop.f32.mrf.mxu0
    %v3894 = vadd.f32 %v3816, %v3893
    %v3895 = vpop.f32.mrf.mxu0
    %3896 = vmatprep.mubr.f32.mxu0 0.0
    %3897 = vmatmul.mubr.f32.gmra.mxu0 %v3782
    %v3898 = vpop.f32.mrf.mxu0
    %v3899 = vadd.f32 %v3816, %v3898
    %v3900 = vpop.f32.mrf.mxu0
    %3901 = vmatprep.mubr.f32.mxu0 0.0
    %3902 = vmatmul.mubr.f32.gmra.mxu0 %v3783
    %v3903 = vpop.f32.mrf.mxu0
    %v3904 = vadd.f32 %v3816, %v3903
    %v3905 = vpop.f32.mrf.mxu0
    %3906 = vmatprep.mubr.f32.mxu0 0.0
    %3907 = vmatmul.mubr.f32.gmra.mxu0 %v3784
    %v3908 = vpop.f32.mrf.mxu0
    %v3909 = vadd.f32 %v3816, %v3908
    %v3910 = vpop.f32.mrf.mxu0
    %3911 = vmatprep.mubr.f32.mxu0 0.0
    %3912 = vmatmul.mubr.f32.gmra.mxu0 %v3785
    %v3913 = vpop.f32.mrf.mxu0
    %v3914 = vadd.f32 %v3816, %v3913
    %v3915 = vpop.f32.mrf.mxu0
    %3916 = vmatprep.mubr.f32.mxu0 0.0
    %3917 = vmatmul.mubr.f32.gmra.mxu0 %v3786
    %v3918 = vpop.f32.mrf.mxu0
    %v3919 = vadd.f32 %v3816, %v3918
    %v3920 = vpop.f32.mrf.mxu0
    %3921 = vmatprep.mubr.f32.mxu0 0.0
    %3922 = vmatmul.mubr.f32.gmra.mxu0 %v3787
    %v3923 = vpop.f32.mrf.mxu0
    %v3924 = vadd.f32 %v3816, %v3923
    %v3925 = vpop.f32.mrf.mxu0
    %3926 = vmatprep.mubr.f32.mxu0 0.0
    %3927 = vmatmul.mubr.f32.gmra.mxu0 %v3788
    %v3928 = vpop.f32.mrf.mxu0
    %v3929 = vadd.f32 %v3816, %v3928
    %v3930 = vpop.f32.mrf.mxu0
    %3931 = vmatprep.mubr.f32.mxu0 0.0
    %3932 = vmatmul.mubr.f32.gmra.mxu0 %v3789
    %v3933 = vpop.f32.mrf.mxu0
    %v3934 = vadd.f32 %v3816, %v3933
    %v3935 = vpop.f32.mrf.mxu0
    %3936 = vmatprep.mubr.f32.mxu0 0.0
    %3937 = vmatmul.mubr.f32.gmra.mxu0 %v3790
    %v3938 = vpop.f32.mrf.mxu0
    %v3939 = vadd.f32 %v3816, %v3938
    %v3940 = vpop.f32.mrf.mxu0
    %3941 = vmatprep.mubr.f32.mxu0 0.0
    %3942 = vmatmul.mubr.f32.gmra.mxu0 %v3791
    %v3943 = vpop.f32.mrf.mxu0
    %v3944 = vadd.f32 %v3816, %v3943
    %v3945 = vpop.f32.mrf.mxu0
    %3946 = vmatprep.mubr.f32.mxu0 0.0
    %3947 = vmatmul.mubr.f32.gmra.mxu0 %v3792
    %v3948 = vpop.f32.mrf.mxu0
    %v3949 = vadd.f32 %v3816, %v3948
    %v3950 = vpop.f32.mrf.mxu0
    %3951 = vmatprep.mubr.f32.mxu0 0.0
    %3952 = vmatmul.mubr.f32.gmra.mxu0 %v3793
    %v3953 = vpop.f32.mrf.mxu0
    %v3954 = vadd.f32 %v3816, %v3953
    %v3955 = vpop.f32.mrf.mxu0
    %3956 = vmatprep.mubr.f32.mxu0 0.0
    %3957 = vmatmul.mubr.f32.gmra.mxu0 %v3794
    %v3958 = vpop.f32.mrf.mxu0
    %v3959 = vadd.f32 %v3816, %v3958
    %v3960 = vpop.f32.mrf.mxu0
    %3961 = vdwg.mxu0
    %v3962 = vmul.f32 %v3884, %v2184
    %v3963 = vmul.f32 %v3889, %v2189
    %v3964 = vmul.f32 %v3894, %v2194
    %v3965 = vmul.f32 %v3899, %v2199
    %v3966 = vmul.f32 %v3904, %v2204
    %v3967 = vmul.f32 %v3909, %v2209
    %v3968 = vmul.f32 %v3914, %v2214
    %v3969 = vmul.f32 %v3919, %v2219
    %v3970 = vmul.f32 %v3924, %v2224
    %v3971 = vmul.f32 %v3929, %v2229
    %v3972 = vmul.f32 %v3934, %v2234
    %v3973 = vmul.f32 %v3939, %v2239
    %v3974 = vmul.f32 %v3944, %v2244
    %v3975 = vmul.f32 %v3949, %v2249
    %v3976 = vmul.f32 %v3954, %v2254
    %v3977 = vmul.f32 %v3959, %v2259
    %s3978 = scalar_lea.vmem [#allocation14], 256
    %v3979 = vld [vmem:[%s3978] sm:$0xff]
    %v3980 = vld [vmem:[%s3978 + $0x8] sm:$0xff]
    %v3981 = vld [vmem:[%s3978 + $0x10] sm:$0xff]
    %v3982 = vld [vmem:[%s3978 + $0x18] sm:$0xff]
    %v3983 = vld [vmem:[%s3978 + $0x20] sm:$0xff]
    %v3984 = vld [vmem:[%s3978 + $0x28] sm:$0xff]
    %v3985 = vld [vmem:[%s3978 + $0x30] sm:$0xff]
    %v3986 = vld [vmem:[%s3978 + $0x38] sm:$0xff]
    %v3987 = vld [vmem:[%s3978 + $0x40] sm:$0xff]
    %v3988 = vld [vmem:[%s3978 + $0x48] sm:$0xff]
    %v3989 = vld [vmem:[%s3978 + $0x50] sm:$0xff]
    %v3990 = vld [vmem:[%s3978 + $0x58] sm:$0xff]
    %v3991 = vld [vmem:[%s3978 + $0x60] sm:$0xff]
    %v3992 = vld [vmem:[%s3978 + $0x68] sm:$0xff]
    %v3993 = vld [vmem:[%s3978 + $0x70] sm:$0xff]
    %v3994 = vld [vmem:[%s3978 + $0x78] sm:$0xff]
    %3995 = vmatprep.subr.mxu0 0.0
    %3996 = vmatpush1.msra.mxu0 %v3994
    %3997 = vmatprep.subr.mxu0 0.0
    %3998 = vmatpush1.msra.mxu0 %v3993
    %3999 = vmatprep.subr.mxu0 0.0
    %4000 = vmatpush1.msra.mxu0 %v3992
    %4001 = vmatprep.subr.mxu0 0.0
    %4002 = vmatpush1.msra.mxu0 %v3991
    %4003 = vmatprep.subr.mxu0 0.0
    %4004 = vmatpush1.msra.mxu0 %v3990
    %4005 = vmatprep.subr.mxu0 0.0
    %4006 = vmatpush1.msra.mxu0 %v3989
    %4007 = vmatprep.subr.mxu0 0.0
    %4008 = vmatpush1.msra.mxu0 %v3988
    %4009 = vmatprep.subr.mxu0 0.0
    %4010 = vmatpush1.msra.mxu0 %v3987
    %4011 = vmatprep.subr.mxu0 0.0
    %4012 = vmatpush1.msra.mxu0 %v3986
    %4013 = vmatprep.subr.mxu0 0.0
    %4014 = vmatpush1.msra.mxu0 %v3985
    %4015 = vmatprep.subr.mxu0 0.0
    %4016 = vmatpush1.msra.mxu0 %v3984
    %4017 = vmatprep.subr.mxu0 0.0
    %4018 = vmatpush1.msra.mxu0 %v3983
    %4019 = vmatprep.subr.mxu0 0.0
    %4020 = vmatpush1.msra.mxu0 %v3982
    %4021 = vmatprep.subr.mxu0 0.0
    %4022 = vmatpush1.msra.mxu0 %v3981
    %4023 = vmatprep.subr.mxu0 0.0
    %4024 = vmatpush1.msra.mxu0 %v3980
    %4025 = vmatprep.subr.mxu0 0.0
    %4026 = vmatpush1.msra.mxu0 %v3979
    %4027 = vmatprep.subr.mxu0 0.0
    %4028 = vmatpush2.msra.mxu0 0.0
    %4029 = vmatprep.subr.mxu0 0.0
    %4030 = vmatpush2.msra.mxu0 0.0
    %4031 = vmatprep.subr.mxu0 0.0
    %4032 = vmatpush2.msra.mxu0 0.0
    %4033 = vmatprep.subr.mxu0 0.0
    %4034 = vmatpush2.msra.mxu0 0.0
    %4035 = vmatprep.subr.mxu0 0.0
    %4036 = vmatpush2.msra.mxu0 0.0
    %4037 = vmatprep.subr.mxu0 0.0
    %4038 = vmatpush2.msra.mxu0 0.0
    %4039 = vmatprep.subr.mxu0 0.0
    %4040 = vmatpush2.msra.mxu0 0.0
    %4041 = vmatprep.subr.mxu0 0.0
    %4042 = vmatpush2.msra.mxu0 0.0
    %4043 = vmatprep.subr.mxu0 0.0
    %4044 = vmatpush2.msra.mxu0 0.0
    %4045 = vmatprep.subr.mxu0 0.0
    %4046 = vmatpush2.msra.mxu0 0.0
    %4047 = vmatprep.subr.mxu0 0.0
    %4048 = vmatpush2.msra.mxu0 0.0
    %4049 = vmatprep.subr.mxu0 0.0
    %4050 = vmatpush2.msra.mxu0 0.0
    %4051 = vmatprep.subr.mxu0 0.0
    %4052 = vmatpush2.msra.mxu0 0.0
    %4053 = vmatprep.subr.mxu0 0.0
    %4054 = vmatpush2.msra.mxu0 0.0
    %4055 = vmatprep.subr.mxu0 0.0
    %4056 = vmatpush2.msra.mxu0 0.0
    %4057 = vmatprep.subr.mxu0 0.0
    %4058 = vmatpush2.msra.mxu0 0.0
    %4059 = vmatprep.mubr.f32.mxu0 0.0
    %4060 = vmatmul.mubr.f32.gmra.mxu0 %v3962
    %v4061 = vpop.f32.mrf.mxu0
    %v4062 = vadd.f32 0.0, %v4061
    %v4063 = vpop.f32.mrf.mxu0
    %4064 = vmatprep.mubr.f32.mxu0 0.0
    %4065 = vmatmul.mubr.f32.gmra.mxu0 %v3963
    %v4066 = vpop.f32.mrf.mxu0
    %v4067 = vadd.f32 0.0, %v4066
    %v4068 = vpop.f32.mrf.mxu0
    %4069 = vmatprep.mubr.f32.mxu0 0.0
    %4070 = vmatmul.mubr.f32.gmra.mxu0 %v3964
    %v4071 = vpop.f32.mrf.mxu0
    %v4072 = vadd.f32 0.0, %v4071
    %v4073 = vpop.f32.mrf.mxu0
    %4074 = vmatprep.mubr.f32.mxu0 0.0
    %4075 = vmatmul.mubr.f32.gmra.mxu0 %v3965
    %v4076 = vpop.f32.mrf.mxu0
    %v4077 = vadd.f32 0.0, %v4076
    %v4078 = vpop.f32.mrf.mxu0
    %4079 = vmatprep.mubr.f32.mxu0 0.0
    %4080 = vmatmul.mubr.f32.gmra.mxu0 %v3966
    %v4081 = vpop.f32.mrf.mxu0
    %v4082 = vadd.f32 0.0, %v4081
    %v4083 = vpop.f32.mrf.mxu0
    %4084 = vmatprep.mubr.f32.mxu0 0.0
    %4085 = vmatmul.mubr.f32.gmra.mxu0 %v3967
    %v4086 = vpop.f32.mrf.mxu0
    %v4087 = vadd.f32 0.0, %v4086
    %v4088 = vpop.f32.mrf.mxu0
    %4089 = vmatprep.mubr.f32.mxu0 0.0
    %4090 = vmatmul.mubr.f32.gmra.mxu0 %v3968
    %v4091 = vpop.f32.mrf.mxu0
    %v4092 = vadd.f32 0.0, %v4091
    %v4093 = vpop.f32.mrf.mxu0
    %4094 = vmatprep.mubr.f32.mxu0 0.0
    %4095 = vmatmul.mubr.f32.gmra.mxu0 %v3969
    %v4096 = vpop.f32.mrf.mxu0
    %v4097 = vadd.f32 0.0, %v4096
    %v4098 = vpop.f32.mrf.mxu0
    %4099 = vmatprep.mubr.f32.mxu0 0.0
    %4100 = vmatmul.mubr.f32.gmra.mxu0 %v3970
    %v4101 = vpop.f32.mrf.mxu0
    %v4102 = vadd.f32 0.0, %v4101
    %v4103 = vpop.f32.mrf.mxu0
    %4104 = vmatprep.mubr.f32.mxu0 0.0
    %4105 = vmatmul.mubr.f32.gmra.mxu0 %v3971
    %v4106 = vpop.f32.mrf.mxu0
    %v4107 = vadd.f32 0.0, %v4106
    %v4108 = vpop.f32.mrf.mxu0
    %4109 = vmatprep.mubr.f32.mxu0 0.0
    %4110 = vmatmul.mubr.f32.gmra.mxu0 %v3972
    %v4111 = vpop.f32.mrf.mxu0
    %v4112 = vadd.f32 0.0, %v4111
    %v4113 = vpop.f32.mrf.mxu0
    %4114 = vmatprep.mubr.f32.mxu0 0.0
    %4115 = vmatmul.mubr.f32.gmra.mxu0 %v3973
    %v4116 = vpop.f32.mrf.mxu0
    %v4117 = vadd.f32 0.0, %v4116
    %v4118 = vpop.f32.mrf.mxu0
    %4119 = vmatprep.mubr.f32.mxu0 0.0
    %4120 = vmatmul.mubr.f32.gmra.mxu0 %v3974
    %v4121 = vpop.f32.mrf.mxu0
    %v4122 = vadd.f32 0.0, %v4121
    %v4123 = vpop.f32.mrf.mxu0
    %4124 = vmatprep.mubr.f32.mxu0 0.0
    %4125 = vmatmul.mubr.f32.gmra.mxu0 %v3975
    %v4126 = vpop.f32.mrf.mxu0
    %v4127 = vadd.f32 0.0, %v4126
    %v4128 = vpop.f32.mrf.mxu0
    %4129 = vmatprep.mubr.f32.mxu0 0.0
    %4130 = vmatmul.mubr.f32.gmra.mxu0 %v3976
    %v4131 = vpop.f32.mrf.mxu0
    %v4132 = vadd.f32 0.0, %v4131
    %v4133 = vpop.f32.mrf.mxu0
    %4134 = vmatprep.mubr.f32.mxu0 0.0
    %4135 = vmatmul.mubr.f32.gmra.mxu0 %v3977
    %v4136 = vpop.f32.mrf.mxu0
    %v4137 = vadd.f32 0.0, %v4136
    %v4138 = vpop.f32.mrf.mxu0
    %4139 = vdwg.mxu0
    %s4140 = scalar_lea.vmem [#allocation16], 256
    %v4141 = vld [vmem:[%s4140] sm:$0xff]
    %v4142 = vld [vmem:[%s4140 + $0x8] sm:$0xff]
    %v4143 = vld [vmem:[%s4140 + $0x10] sm:$0xff]
    %v4144 = vld [vmem:[%s4140 + $0x18] sm:$0xff]
    %v4145 = vld [vmem:[%s4140 + $0x20] sm:$0xff]
    %v4146 = vld [vmem:[%s4140 + $0x28] sm:$0xff]
    %v4147 = vld [vmem:[%s4140 + $0x30] sm:$0xff]
    %v4148 = vld [vmem:[%s4140 + $0x38] sm:$0xff]
    %v4149 = vld [vmem:[%s4140 + $0x40] sm:$0xff]
    %v4150 = vld [vmem:[%s4140 + $0x48] sm:$0xff]
    %v4151 = vld [vmem:[%s4140 + $0x50] sm:$0xff]
    %v4152 = vld [vmem:[%s4140 + $0x58] sm:$0xff]
    %v4153 = vld [vmem:[%s4140 + $0x60] sm:$0xff]
    %v4154 = vld [vmem:[%s4140 + $0x68] sm:$0xff]
    %v4155 = vld [vmem:[%s4140 + $0x70] sm:$0xff]
    %v4156 = vld [vmem:[%s4140 + $0x78] sm:$0xff]
    %4157 = vmatprep.subr.mxu0 0.0
    %4158 = vmatpush1.msra.mxu0 %v4156
    %4159 = vmatprep.subr.mxu0 0.0
    %4160 = vmatpush1.msra.mxu0 %v4155
    %4161 = vmatprep.subr.mxu0 0.0
    %4162 = vmatpush1.msra.mxu0 %v4154
    %4163 = vmatprep.subr.mxu0 0.0
    %4164 = vmatpush1.msra.mxu0 %v4153
    %4165 = vmatprep.subr.mxu0 0.0
    %4166 = vmatpush1.msra.mxu0 %v4152
    %4167 = vmatprep.subr.mxu0 0.0
    %4168 = vmatpush1.msra.mxu0 %v4151
    %4169 = vmatprep.subr.mxu0 0.0
    %4170 = vmatpush1.msra.mxu0 %v4150
    %4171 = vmatprep.subr.mxu0 0.0
    %4172 = vmatpush1.msra.mxu0 %v4149
    %4173 = vmatprep.subr.mxu0 0.0
    %4174 = vmatpush1.msra.mxu0 %v4148
    %4175 = vmatprep.subr.mxu0 0.0
    %4176 = vmatpush1.msra.mxu0 %v4147
    %4177 = vmatprep.subr.mxu0 0.0
    %4178 = vmatpush1.msra.mxu0 %v4146
    %4179 = vmatprep.subr.mxu0 0.0
    %4180 = vmatpush1.msra.mxu0 %v4145
    %4181 = vmatprep.subr.mxu0 0.0
    %4182 = vmatpush1.msra.mxu0 %v4144
    %4183 = vmatprep.subr.mxu0 0.0
    %4184 = vmatpush1.msra.mxu0 %v4143
    %4185 = vmatprep.subr.mxu0 0.0
    %4186 = vmatpush1.msra.mxu0 %v4142
    %4187 = vmatprep.subr.mxu0 0.0
    %4188 = vmatpush1.msra.mxu0 %v4141
    %4189 = vmatprep.subr.mxu0 0.0
    %4190 = vmatpush2.msra.mxu0 0.0
    %4191 = vmatprep.subr.mxu0 0.0
    %4192 = vmatpush2.msra.mxu0 0.0
    %4193 = vmatprep.subr.mxu0 0.0
    %4194 = vmatpush2.msra.mxu0 0.0
    %4195 = vmatprep.subr.mxu0 0.0
    %4196 = vmatpush2.msra.mxu0 0.0
    %4197 = vmatprep.subr.mxu0 0.0
    %4198 = vmatpush2.msra.mxu0 0.0
    %4199 = vmatprep.subr.mxu0 0.0
    %4200 = vmatpush2.msra.mxu0 0.0
    %4201 = vmatprep.subr.mxu0 0.0
    %4202 = vmatpush2.msra.mxu0 0.0
    %4203 = vmatprep.subr.mxu0 0.0
    %4204 = vmatpush2.msra.mxu0 0.0
    %4205 = vmatprep.subr.mxu0 0.0
    %4206 = vmatpush2.msra.mxu0 0.0
    %4207 = vmatprep.subr.mxu0 0.0
    %4208 = vmatpush2.msra.mxu0 0.0
    %4209 = vmatprep.subr.mxu0 0.0
    %4210 = vmatpush2.msra.mxu0 0.0
    %4211 = vmatprep.subr.mxu0 0.0
    %4212 = vmatpush2.msra.mxu0 0.0
    %4213 = vmatprep.subr.mxu0 0.0
    %4214 = vmatpush2.msra.mxu0 0.0
    %4215 = vmatprep.subr.mxu0 0.0
    %4216 = vmatpush2.msra.mxu0 0.0
    %4217 = vmatprep.subr.mxu0 0.0
    %4218 = vmatpush2.msra.mxu0 0.0
    %4219 = vmatprep.subr.mxu0 0.0
    %4220 = vmatpush2.msra.mxu0 0.0
    %4221 = vmatprep.mubr.f32.mxu0 0.0
    %4222 = vmatmul.mubr.f32.gmra.mxu0 %v3962
    %v4223 = vpop.f32.mrf.mxu0
    %v4224 = vadd.f32 0.0, %v4223
    %v4225 = vpop.f32.mrf.mxu0
    %4226 = vmatprep.mubr.f32.mxu0 0.0
    %4227 = vmatmul.mubr.f32.gmra.mxu0 %v3963
    %v4228 = vpop.f32.mrf.mxu0
    %v4229 = vadd.f32 0.0, %v4228
    %v4230 = vpop.f32.mrf.mxu0
    %4231 = vmatprep.mubr.f32.mxu0 0.0
    %4232 = vmatmul.mubr.f32.gmra.mxu0 %v3964
    %v4233 = vpop.f32.mrf.mxu0
    %v4234 = vadd.f32 0.0, %v4233
    %v4235 = vpop.f32.mrf.mxu0
    %4236 = vmatprep.mubr.f32.mxu0 0.0
    %4237 = vmatmul.mubr.f32.gmra.mxu0 %v3965
    %v4238 = vpop.f32.mrf.mxu0
    %v4239 = vadd.f32 0.0, %v4238
    %v4240 = vpop.f32.mrf.mxu0
    %4241 = vmatprep.mubr.f32.mxu0 0.0
    %4242 = vmatmul.mubr.f32.gmra.mxu0 %v3966
    %v4243 = vpop.f32.mrf.mxu0
    %v4244 = vadd.f32 0.0, %v4243
    %v4245 = vpop.f32.mrf.mxu0
    %4246 = vmatprep.mubr.f32.mxu0 0.0
    %4247 = vmatmul.mubr.f32.gmra.mxu0 %v3967
    %v4248 = vpop.f32.mrf.mxu0
    %v4249 = vadd.f32 0.0, %v4248
    %v4250 = vpop.f32.mrf.mxu0
    %4251 = vmatprep.mubr.f32.mxu0 0.0
    %4252 = vmatmul.mubr.f32.gmra.mxu0 %v3968
    %v4253 = vpop.f32.mrf.mxu0
    %v4254 = vadd.f32 0.0, %v4253
    %v4255 = vpop.f32.mrf.mxu0
    %4256 = vmatprep.mubr.f32.mxu0 0.0
    %4257 = vmatmul.mubr.f32.gmra.mxu0 %v3969
    %v4258 = vpop.f32.mrf.mxu0
    %v4259 = vadd.f32 0.0, %v4258
    %v4260 = vpop.f32.mrf.mxu0
    %4261 = vmatprep.mubr.f32.mxu0 0.0
    %4262 = vmatmul.mubr.f32.gmra.mxu0 %v3970
    %v4263 = vpop.f32.mrf.mxu0
    %v4264 = vadd.f32 0.0, %v4263
    %v4265 = vpop.f32.mrf.mxu0
    %4266 = vmatprep.mubr.f32.mxu0 0.0
    %4267 = vmatmul.mubr.f32.gmra.mxu0 %v3971
    %v4268 = vpop.f32.mrf.mxu0
    %v4269 = vadd.f32 0.0, %v4268
    %v4270 = vpop.f32.mrf.mxu0
    %4271 = vmatprep.mubr.f32.mxu0 0.0
    %4272 = vmatmul.mubr.f32.gmra.mxu0 %v3972
    %v4273 = vpop.f32.mrf.mxu0
    %v4274 = vadd.f32 0.0, %v4273
    %v4275 = vpop.f32.mrf.mxu0
    %4276 = vmatprep.mubr.f32.mxu0 0.0
    %4277 = vmatmul.mubr.f32.gmra.mxu0 %v3973
    %v4278 = vpop.f32.mrf.mxu0
    %v4279 = vadd.f32 0.0, %v4278
    %v4280 = vpop.f32.mrf.mxu0
    %4281 = vmatprep.mubr.f32.mxu0 0.0
    %4282 = vmatmul.mubr.f32.gmra.mxu0 %v3974
    %v4283 = vpop.f32.mrf.mxu0
    %v4284 = vadd.f32 0.0, %v4283
    %v4285 = vpop.f32.mrf.mxu0
    %4286 = vmatprep.mubr.f32.mxu0 0.0
    %4287 = vmatmul.mubr.f32.gmra.mxu0 %v3975
    %v4288 = vpop.f32.mrf.mxu0
    %v4289 = vadd.f32 0.0, %v4288
    %v4290 = vpop.f32.mrf.mxu0
    %4291 = vmatprep.mubr.f32.mxu0 0.0
    %4292 = vmatmul.mubr.f32.gmra.mxu0 %v3976
    %v4293 = vpop.f32.mrf.mxu0
    %v4294 = vadd.f32 0.0, %v4293
    %v4295 = vpop.f32.mrf.mxu0
    %4296 = vmatprep.mubr.f32.mxu0 0.0
    %4297 = vmatmul.mubr.f32.gmra.mxu0 %v3977
    %v4298 = vpop.f32.mrf.mxu0
    %v4299 = vadd.f32 0.0, %v4298
    %v4300 = vpop.f32.mrf.mxu0
    %4301 = vdwg.mxu0
    %4302 = vmatprep.subr.mxu0 0.0
    %4303 = vmatpush1.msra.mxu0 %v4299
    %4304 = vmatprep.subr.mxu0 0.0
    %4305 = vmatpush1.msra.mxu0 %v4294
    %4306 = vmatprep.subr.mxu0 0.0
    %4307 = vmatpush1.msra.mxu0 %v4289
    %4308 = vmatprep.subr.mxu0 0.0
    %4309 = vmatpush1.msra.mxu0 %v4284
    %4310 = vmatprep.subr.mxu0 0.0
    %4311 = vmatpush1.msra.mxu0 %v4279
    %4312 = vmatprep.subr.mxu0 0.0
    %4313 = vmatpush1.msra.mxu0 %v4274
    %4314 = vmatprep.subr.mxu0 0.0
    %4315 = vmatpush1.msra.mxu0 %v4269
    %4316 = vmatprep.subr.mxu0 0.0
    %4317 = vmatpush1.msra.mxu0 %v4264
    %4318 = vmatprep.subr.mxu0 0.0
    %4319 = vmatpush1.msra.mxu0 %v4259
    %4320 = vmatprep.subr.mxu0 0.0
    %4321 = vmatpush1.msra.mxu0 %v4254
    %4322 = vmatprep.subr.mxu0 0.0
    %4323 = vmatpush1.msra.mxu0 %v4249
    %4324 = vmatprep.subr.mxu0 0.0
    %4325 = vmatpush1.msra.mxu0 %v4244
    %4326 = vmatprep.subr.mxu0 0.0
    %4327 = vmatpush1.msra.mxu0 %v4239
    %4328 = vmatprep.subr.mxu0 0.0
    %4329 = vmatpush1.msra.mxu0 %v4234
    %4330 = vmatprep.subr.mxu0 0.0
    %4331 = vmatpush1.msra.mxu0 %v4229
    %4332 = vmatprep.subr.mxu0 0.0
    %4333 = vmatpush1.msra.mxu0 %v4224
    %4334 = vmatprep.subr.mxu0 0.0
    %4335 = vmatpush2.msra.mxu0 0.0
    %4336 = vmatprep.subr.mxu0 0.0
    %4337 = vmatpush2.msra.mxu0 0.0
    %4338 = vmatprep.subr.mxu0 0.0
    %4339 = vmatpush2.msra.mxu0 0.0
    %4340 = vmatprep.subr.mxu0 0.0
    %4341 = vmatpush2.msra.mxu0 0.0
    %4342 = vmatprep.subr.mxu0 0.0
    %4343 = vmatpush2.msra.mxu0 0.0
    %4344 = vmatprep.subr.mxu0 0.0
    %4345 = vmatpush2.msra.mxu0 0.0
    %4346 = vmatprep.subr.mxu0 0.0
    %4347 = vmatpush2.msra.mxu0 0.0
    %4348 = vmatprep.subr.mxu0 0.0
    %4349 = vmatpush2.msra.mxu0 0.0
    %4350 = vmatprep.subr.mxu0 0.0
    %4351 = vmatpush2.msra.mxu0 0.0
    %4352 = vmatprep.subr.mxu0 0.0
    %4353 = vmatpush2.msra.mxu0 0.0
    %4354 = vmatprep.subr.mxu0 0.0
    %4355 = vmatpush2.msra.mxu0 0.0
    %4356 = vmatprep.subr.mxu0 0.0
    %4357 = vmatpush2.msra.mxu0 0.0
    %4358 = vmatprep.subr.mxu0 0.0
    %4359 = vmatpush2.msra.mxu0 0.0
    %4360 = vmatprep.subr.mxu0 0.0
    %4361 = vmatpush2.msra.mxu0 0.0
    %4362 = vmatprep.subr.mxu0 0.0
    %4363 = vmatpush2.msra.mxu0 0.0
    %4364 = vmatprep.subr.mxu0 0.0
    %4365 = vmatpush2.msra.mxu0 0.0
    %4366 = vmatprep.mubr.f32.mxu0 0.0
    %4367 = vmatmul.mubr.f32.gmra.mxu0 %v343
    %v4368 = vpop.f32.mrf.mxu0
    %v4369 = vadd.f32 0.0, %v4368
    %v4370 = vpop.f32.mrf.mxu0
    %4371 = vmatprep.mubr.f32.mxu0 0.0
    %4372 = vmatmul.mubr.f32.gmra.mxu0 %v344
    %v4373 = vpop.f32.mrf.mxu0
    %v4374 = vadd.f32 0.0, %v4373
    %v4375 = vpop.f32.mrf.mxu0
    %4376 = vmatprep.mubr.f32.mxu0 0.0
    %4377 = vmatmul.mubr.f32.gmra.mxu0 %v345
    %v4378 = vpop.f32.mrf.mxu0
    %v4379 = vadd.f32 0.0, %v4378
    %v4380 = vpop.f32.mrf.mxu0
    %4381 = vmatprep.mubr.f32.mxu0 0.0
    %4382 = vmatmul.mubr.f32.gmra.mxu0 %v346
    %v4383 = vpop.f32.mrf.mxu0
    %v4384 = vadd.f32 0.0, %v4383
    %v4385 = vpop.f32.mrf.mxu0
    %4386 = vmatprep.mubr.f32.mxu0 0.0
    %4387 = vmatmul.mubr.f32.gmra.mxu0 %v347
    %v4388 = vpop.f32.mrf.mxu0
    %v4389 = vadd.f32 0.0, %v4388
    %v4390 = vpop.f32.mrf.mxu0
    %4391 = vmatprep.mubr.f32.mxu0 0.0
    %4392 = vmatmul.mubr.f32.gmra.mxu0 %v348
    %v4393 = vpop.f32.mrf.mxu0
    %v4394 = vadd.f32 0.0, %v4393
    %v4395 = vpop.f32.mrf.mxu0
    %4396 = vmatprep.mubr.f32.mxu0 0.0
    %4397 = vmatmul.mubr.f32.gmra.mxu0 %v349
    %v4398 = vpop.f32.mrf.mxu0
    %v4399 = vadd.f32 0.0, %v4398
    %v4400 = vpop.f32.mrf.mxu0
    %4401 = vmatprep.mubr.f32.mxu0 0.0
    %4402 = vmatmul.mubr.f32.gmra.mxu0 %v350
    %v4403 = vpop.f32.mrf.mxu0
    %v4404 = vadd.f32 0.0, %v4403
    %v4405 = vpop.f32.mrf.mxu0
    %4406 = vmatprep.mubr.f32.mxu0 0.0
    %4407 = vmatmul.mubr.f32.gmra.mxu0 %v351
    %v4408 = vpop.f32.mrf.mxu0
    %v4409 = vadd.f32 0.0, %v4408
    %v4410 = vpop.f32.mrf.mxu0
    %4411 = vmatprep.mubr.f32.mxu0 0.0
    %4412 = vmatmul.mubr.f32.gmra.mxu0 %v352
    %v4413 = vpop.f32.mrf.mxu0
    %v4414 = vadd.f32 0.0, %v4413
    %v4415 = vpop.f32.mrf.mxu0
    %4416 = vmatprep.mubr.f32.mxu0 0.0
    %4417 = vmatmul.mubr.f32.gmra.mxu0 %v353
    %v4418 = vpop.f32.mrf.mxu0
    %v4419 = vadd.f32 0.0, %v4418
    %v4420 = vpop.f32.mrf.mxu0
    %4421 = vmatprep.mubr.f32.mxu0 0.0
    %4422 = vmatmul.mubr.f32.gmra.mxu0 %v354
    %v4423 = vpop.f32.mrf.mxu0
    %v4424 = vadd.f32 0.0, %v4423
    %v4425 = vpop.f32.mrf.mxu0
    %4426 = vmatprep.mubr.f32.mxu0 0.0
    %4427 = vmatmul.mubr.f32.gmra.mxu0 %v355
    %v4428 = vpop.f32.mrf.mxu0
    %v4429 = vadd.f32 0.0, %v4428
    %v4430 = vpop.f32.mrf.mxu0
    %4431 = vmatprep.mubr.f32.mxu0 0.0
    %4432 = vmatmul.mubr.f32.gmra.mxu0 %v356
    %v4433 = vpop.f32.mrf.mxu0
    %v4434 = vadd.f32 0.0, %v4433
    %v4435 = vpop.f32.mrf.mxu0
    %4436 = vmatprep.mubr.f32.mxu0 0.0
    %4437 = vmatmul.mubr.f32.gmra.mxu0 %v357
    %v4438 = vpop.f32.mrf.mxu0
    %v4439 = vadd.f32 0.0, %v4438
    %v4440 = vpop.f32.mrf.mxu0
    %4441 = vmatprep.mubr.f32.mxu0 0.0
    %4442 = vmatmul.mubr.f32.gmra.mxu0 %v358
    %v4443 = vpop.f32.mrf.mxu0
    %v4444 = vadd.f32 0.0, %v4443
    %v4445 = vpop.f32.mrf.mxu0
    %4446 = vdwg.mxu0
    %4447 = vmatprep.subr.mxu0 0.0
    %4448 = vmatpush1.msra.mxu0 %v4137
    %4449 = vmatprep.subr.mxu0 0.0
    %4450 = vmatpush1.msra.mxu0 %v4132
    %4451 = vmatprep.subr.mxu0 0.0
    %4452 = vmatpush1.msra.mxu0 %v4127
    %4453 = vmatprep.subr.mxu0 0.0
    %4454 = vmatpush1.msra.mxu0 %v4122
    %4455 = vmatprep.subr.mxu0 0.0
    %4456 = vmatpush1.msra.mxu0 %v4117
    %4457 = vmatprep.subr.mxu0 0.0
    %4458 = vmatpush1.msra.mxu0 %v4112
    %4459 = vmatprep.subr.mxu0 0.0
    %4460 = vmatpush1.msra.mxu0 %v4107
    %4461 = vmatprep.subr.mxu0 0.0
    %4462 = vmatpush1.msra.mxu0 %v4102
    %4463 = vmatprep.subr.mxu0 0.0
    %4464 = vmatpush1.msra.mxu0 %v4097
    %4465 = vmatprep.subr.mxu0 0.0
    %4466 = vmatpush1.msra.mxu0 %v4092
    %4467 = vmatprep.subr.mxu0 0.0
    %4468 = vmatpush1.msra.mxu0 %v4087
    %4469 = vmatprep.subr.mxu0 0.0
    %4470 = vmatpush1.msra.mxu0 %v4082
    %4471 = vmatprep.subr.mxu0 0.0
    %4472 = vmatpush1.msra.mxu0 %v4077
    %4473 = vmatprep.subr.mxu0 0.0
    %4474 = vmatpush1.msra.mxu0 %v4072
    %4475 = vmatprep.subr.mxu0 0.0
    %4476 = vmatpush1.msra.mxu0 %v4067
    %4477 = vmatprep.subr.mxu0 0.0
    %4478 = vmatpush1.msra.mxu0 %v4062
    %4479 = vmatprep.subr.mxu0 0.0
    %4480 = vmatpush2.msra.mxu0 0.0
    %4481 = vmatprep.subr.mxu0 0.0
    %4482 = vmatpush2.msra.mxu0 0.0
    %4483 = vmatprep.subr.mxu0 0.0
    %4484 = vmatpush2.msra.mxu0 0.0
    %4485 = vmatprep.subr.mxu0 0.0
    %4486 = vmatpush2.msra.mxu0 0.0
    %4487 = vmatprep.subr.mxu0 0.0
    %4488 = vmatpush2.msra.mxu0 0.0
    %4489 = vmatprep.subr.mxu0 0.0
    %4490 = vmatpush2.msra.mxu0 0.0
    %4491 = vmatprep.subr.mxu0 0.0
    %4492 = vmatpush2.msra.mxu0 0.0
    %4493 = vmatprep.subr.mxu0 0.0
    %4494 = vmatpush2.msra.mxu0 0.0
    %4495 = vmatprep.subr.mxu0 0.0
    %4496 = vmatpush2.msra.mxu0 0.0
    %4497 = vmatprep.subr.mxu0 0.0
    %4498 = vmatpush2.msra.mxu0 0.0
    %4499 = vmatprep.subr.mxu0 0.0
    %4500 = vmatpush2.msra.mxu0 0.0
    %4501 = vmatprep.subr.mxu0 0.0
    %4502 = vmatpush2.msra.mxu0 0.0
    %4503 = vmatprep.subr.mxu0 0.0
    %4504 = vmatpush2.msra.mxu0 0.0
    %4505 = vmatprep.subr.mxu0 0.0
    %4506 = vmatpush2.msra.mxu0 0.0
    %4507 = vmatprep.subr.mxu0 0.0
    %4508 = vmatpush2.msra.mxu0 0.0
    %4509 = vmatprep.subr.mxu0 0.0
    %4510 = vmatpush2.msra.mxu0 0.0
    %4511 = vmatprep.mubr.f32.mxu0 0.0
    %4512 = vmatmul.mubr.f32.gmra.mxu0 %v311
    %v4513 = vpop.f32.mrf.mxu0
    %v4514 = vadd.f32 %v4369, %v4513
    %v4515 = vpop.f32.mrf.mxu0
    %4516 = vmatprep.mubr.f32.mxu0 0.0
    %4517 = vmatmul.mubr.f32.gmra.mxu0 %v312
    %v4518 = vpop.f32.mrf.mxu0
    %v4519 = vadd.f32 %v4374, %v4518
    %v4520 = vpop.f32.mrf.mxu0
    %4521 = vmatprep.mubr.f32.mxu0 0.0
    %4522 = vmatmul.mubr.f32.gmra.mxu0 %v313
    %v4523 = vpop.f32.mrf.mxu0
    %v4524 = vadd.f32 %v4379, %v4523
    %v4525 = vpop.f32.mrf.mxu0
    %4526 = vmatprep.mubr.f32.mxu0 0.0
    %4527 = vmatmul.mubr.f32.gmra.mxu0 %v314
    %v4528 = vpop.f32.mrf.mxu0
    %v4529 = vadd.f32 %v4384, %v4528
    %v4530 = vpop.f32.mrf.mxu0
    %4531 = vmatprep.mubr.f32.mxu0 0.0
    %4532 = vmatmul.mubr.f32.gmra.mxu0 %v315
    %v4533 = vpop.f32.mrf.mxu0
    %v4534 = vadd.f32 %v4389, %v4533
    %v4535 = vpop.f32.mrf.mxu0
    %4536 = vmatprep.mubr.f32.mxu0 0.0
    %4537 = vmatmul.mubr.f32.gmra.mxu0 %v316
    %v4538 = vpop.f32.mrf.mxu0
    %v4539 = vadd.f32 %v4394, %v4538
    %v4540 = vpop.f32.mrf.mxu0
    %4541 = vmatprep.mubr.f32.mxu0 0.0
    %4542 = vmatmul.mubr.f32.gmra.mxu0 %v317
    %v4543 = vpop.f32.mrf.mxu0
    %v4544 = vadd.f32 %v4399, %v4543
    %v4545 = vpop.f32.mrf.mxu0
    %4546 = vmatprep.mubr.f32.mxu0 0.0
    %4547 = vmatmul.mubr.f32.gmra.mxu0 %v318
    %v4548 = vpop.f32.mrf.mxu0
    %v4549 = vadd.f32 %v4404, %v4548
    %v4550 = vpop.f32.mrf.mxu0
    %4551 = vmatprep.mubr.f32.mxu0 0.0
    %4552 = vmatmul.mubr.f32.gmra.mxu0 %v319
    %v4553 = vpop.f32.mrf.mxu0
    %v4554 = vadd.f32 %v4409, %v4553
    %v4555 = vpop.f32.mrf.mxu0
    %4556 = vmatprep.mubr.f32.mxu0 0.0
    %4557 = vmatmul.mubr.f32.gmra.mxu0 %v320
    %v4558 = vpop.f32.mrf.mxu0
    %v4559 = vadd.f32 %v4414, %v4558
    %v4560 = vpop.f32.mrf.mxu0
    %4561 = vmatprep.mubr.f32.mxu0 0.0
    %4562 = vmatmul.mubr.f32.gmra.mxu0 %v321
    %v4563 = vpop.f32.mrf.mxu0
    %v4564 = vadd.f32 %v4419, %v4563
    %v4565 = vpop.f32.mrf.mxu0
    %4566 = vmatprep.mubr.f32.mxu0 0.0
    %4567 = vmatmul.mubr.f32.gmra.mxu0 %v322
    %v4568 = vpop.f32.mrf.mxu0
    %v4569 = vadd.f32 %v4424, %v4568
    %v4570 = vpop.f32.mrf.mxu0
    %4571 = vmatprep.mubr.f32.mxu0 0.0
    %4572 = vmatmul.mubr.f32.gmra.mxu0 %v323
    %v4573 = vpop.f32.mrf.mxu0
    %v4574 = vadd.f32 %v4429, %v4573
    %v4575 = vpop.f32.mrf.mxu0
    %4576 = vmatprep.mubr.f32.mxu0 0.0
    %4577 = vmatmul.mubr.f32.gmra.mxu0 %v324
    %v4578 = vpop.f32.mrf.mxu0
    %v4579 = vadd.f32 %v4434, %v4578
    %v4580 = vpop.f32.mrf.mxu0
    %4581 = vmatprep.mubr.f32.mxu0 0.0
    %4582 = vmatmul.mubr.f32.gmra.mxu0 %v325
    %v4583 = vpop.f32.mrf.mxu0
    %v4584 = vadd.f32 %v4439, %v4583
    %v4585 = vpop.f32.mrf.mxu0
    %4586 = vmatprep.mubr.f32.mxu0 0.0
    %4587 = vmatmul.mubr.f32.gmra.mxu0 %v326
    %v4588 = vpop.f32.mrf.mxu0
    %v4589 = vadd.f32 %v4444, %v4588
    %v4590 = vpop.f32.mrf.mxu0
    %4591 = vdwg.mxu0
    %s4592 = scalar_lea.vmem [#allocation17], 256
    %v4593 = vld [vmem:[%s4592] sm:$0xff]
    %v4594 = vld [vmem:[%s4592 + $0x8] sm:$0xff]
    %v4595 = vld [vmem:[%s4592 + $0x10] sm:$0xff]
    %v4596 = vld [vmem:[%s4592 + $0x18] sm:$0xff]
    %v4597 = vld [vmem:[%s4592 + $0x20] sm:$0xff]
    %v4598 = vld [vmem:[%s4592 + $0x28] sm:$0xff]
    %v4599 = vld [vmem:[%s4592 + $0x30] sm:$0xff]
    %v4600 = vld [vmem:[%s4592 + $0x38] sm:$0xff]
    %v4601 = vld [vmem:[%s4592 + $0x40] sm:$0xff]
    %v4602 = vld [vmem:[%s4592 + $0x48] sm:$0xff]
    %v4603 = vld [vmem:[%s4592 + $0x50] sm:$0xff]
    %v4604 = vld [vmem:[%s4592 + $0x58] sm:$0xff]
    %v4605 = vld [vmem:[%s4592 + $0x60] sm:$0xff]
    %v4606 = vld [vmem:[%s4592 + $0x68] sm:$0xff]
    %v4607 = vld [vmem:[%s4592 + $0x70] sm:$0xff]
    %v4608 = vld [vmem:[%s4592 + $0x78] sm:$0xff]
    %4609 = vmatprep.subr.mxu0 0.0
    %4610 = vmatpush1.msra.mxu0 %v4608
    %4611 = vmatprep.subr.mxu0 0.0
    %4612 = vmatpush1.msra.mxu0 %v4607
    %4613 = vmatprep.subr.mxu0 0.0
    %4614 = vmatpush1.msra.mxu0 %v4606
    %4615 = vmatprep.subr.mxu0 0.0
    %4616 = vmatpush1.msra.mxu0 %v4605
    %4617 = vmatprep.subr.mxu0 0.0
    %4618 = vmatpush1.msra.mxu0 %v4604
    %4619 = vmatprep.subr.mxu0 0.0
    %4620 = vmatpush1.msra.mxu0 %v4603
    %4621 = vmatprep.subr.mxu0 0.0
    %4622 = vmatpush1.msra.mxu0 %v4602
    %4623 = vmatprep.subr.mxu0 0.0
    %4624 = vmatpush1.msra.mxu0 %v4601
    %4625 = vmatprep.subr.mxu0 0.0
    %4626 = vmatpush1.msra.mxu0 %v4600
    %4627 = vmatprep.subr.mxu0 0.0
    %4628 = vmatpush1.msra.mxu0 %v4599
    %4629 = vmatprep.subr.mxu0 0.0
    %4630 = vmatpush1.msra.mxu0 %v4598
    %4631 = vmatprep.subr.mxu0 0.0
    %4632 = vmatpush1.msra.mxu0 %v4597
    %4633 = vmatprep.subr.mxu0 0.0
    %4634 = vmatpush1.msra.mxu0 %v4596
    %4635 = vmatprep.subr.mxu0 0.0
    %4636 = vmatpush1.msra.mxu0 %v4595
    %4637 = vmatprep.subr.mxu0 0.0
    %4638 = vmatpush1.msra.mxu0 %v4594
    %4639 = vmatprep.subr.mxu0 0.0
    %4640 = vmatpush1.msra.mxu0 %v4593
    %4641 = vmatprep.subr.mxu0 0.0
    %4642 = vmatpush2.msra.mxu0 0.0
    %4643 = vmatprep.subr.mxu0 0.0
    %4644 = vmatpush2.msra.mxu0 0.0
    %4645 = vmatprep.subr.mxu0 0.0
    %4646 = vmatpush2.msra.mxu0 0.0
    %4647 = vmatprep.subr.mxu0 0.0
    %4648 = vmatpush2.msra.mxu0 0.0
    %4649 = vmatprep.subr.mxu0 0.0
    %4650 = vmatpush2.msra.mxu0 0.0
    %4651 = vmatprep.subr.mxu0 0.0
    %4652 = vmatpush2.msra.mxu0 0.0
    %4653 = vmatprep.subr.mxu0 0.0
    %4654 = vmatpush2.msra.mxu0 0.0
    %4655 = vmatprep.subr.mxu0 0.0
    %4656 = vmatpush2.msra.mxu0 0.0
    %4657 = vmatprep.subr.mxu0 0.0
    %4658 = vmatpush2.msra.mxu0 0.0
    %4659 = vmatprep.subr.mxu0 0.0
    %4660 = vmatpush2.msra.mxu0 0.0
    %4661 = vmatprep.subr.mxu0 0.0
    %4662 = vmatpush2.msra.mxu0 0.0
    %4663 = vmatprep.subr.mxu0 0.0
    %4664 = vmatpush2.msra.mxu0 0.0
    %4665 = vmatprep.subr.mxu0 0.0
    %4666 = vmatpush2.msra.mxu0 0.0
    %4667 = vmatprep.subr.mxu0 0.0
    %4668 = vmatpush2.msra.mxu0 0.0
    %4669 = vmatprep.subr.mxu0 0.0
    %4670 = vmatpush2.msra.mxu0 0.0
    %4671 = vmatprep.subr.mxu0 0.0
    %4672 = vmatpush2.msra.mxu0 0.0
    %4673 = vmatprep.mubr.f32.mxu0 0.0
    %4674 = vmatmul.mubr.f32.gmra.mxu0 %v3273
    %v4675 = vpop.f32.mrf.mxu0
    %v4676 = vadd.f32 0.0, %v4675
    %v4677 = vpop.f32.mrf.mxu0
    %4678 = vmatprep.mubr.f32.mxu0 0.0
    %4679 = vmatmul.mubr.f32.gmra.mxu0 %v3274
    %v4680 = vpop.f32.mrf.mxu0
    %v4681 = vadd.f32 0.0, %v4680
    %v4682 = vpop.f32.mrf.mxu0
    %4683 = vmatprep.mubr.f32.mxu0 0.0
    %4684 = vmatmul.mubr.f32.gmra.mxu0 %v3275
    %v4685 = vpop.f32.mrf.mxu0
    %v4686 = vadd.f32 0.0, %v4685
    %v4687 = vpop.f32.mrf.mxu0
    %4688 = vmatprep.mubr.f32.mxu0 0.0
    %4689 = vmatmul.mubr.f32.gmra.mxu0 %v3276
    %v4690 = vpop.f32.mrf.mxu0
    %v4691 = vadd.f32 0.0, %v4690
    %v4692 = vpop.f32.mrf.mxu0
    %4693 = vmatprep.mubr.f32.mxu0 0.0
    %4694 = vmatmul.mubr.f32.gmra.mxu0 %v3277
    %v4695 = vpop.f32.mrf.mxu0
    %v4696 = vadd.f32 0.0, %v4695
    %v4697 = vpop.f32.mrf.mxu0
    %4698 = vmatprep.mubr.f32.mxu0 0.0
    %4699 = vmatmul.mubr.f32.gmra.mxu0 %v3278
    %v4700 = vpop.f32.mrf.mxu0
    %v4701 = vadd.f32 0.0, %v4700
    %v4702 = vpop.f32.mrf.mxu0
    %4703 = vmatprep.mubr.f32.mxu0 0.0
    %4704 = vmatmul.mubr.f32.gmra.mxu0 %v3279
    %v4705 = vpop.f32.mrf.mxu0
    %v4706 = vadd.f32 0.0, %v4705
    %v4707 = vpop.f32.mrf.mxu0
    %4708 = vmatprep.mubr.f32.mxu0 0.0
    %4709 = vmatmul.mubr.f32.gmra.mxu0 %v3280
    %v4710 = vpop.f32.mrf.mxu0
    %v4711 = vadd.f32 0.0, %v4710
    %v4712 = vpop.f32.mrf.mxu0
    %4713 = vmatprep.mubr.f32.mxu0 0.0
    %4714 = vmatmul.mubr.f32.gmra.mxu0 %v3281
    %v4715 = vpop.f32.mrf.mxu0
    %v4716 = vadd.f32 0.0, %v4715
    %v4717 = vpop.f32.mrf.mxu0
    %4718 = vmatprep.mubr.f32.mxu0 0.0
    %4719 = vmatmul.mubr.f32.gmra.mxu0 %v3282
    %v4720 = vpop.f32.mrf.mxu0
    %v4721 = vadd.f32 0.0, %v4720
    %v4722 = vpop.f32.mrf.mxu0
    %4723 = vmatprep.mubr.f32.mxu0 0.0
    %4724 = vmatmul.mubr.f32.gmra.mxu0 %v3283
    %v4725 = vpop.f32.mrf.mxu0
    %v4726 = vadd.f32 0.0, %v4725
    %v4727 = vpop.f32.mrf.mxu0
    %4728 = vmatprep.mubr.f32.mxu0 0.0
    %4729 = vmatmul.mubr.f32.gmra.mxu0 %v3284
    %v4730 = vpop.f32.mrf.mxu0
    %v4731 = vadd.f32 0.0, %v4730
    %v4732 = vpop.f32.mrf.mxu0
    %4733 = vmatprep.mubr.f32.mxu0 0.0
    %4734 = vmatmul.mubr.f32.gmra.mxu0 %v3285
    %v4735 = vpop.f32.mrf.mxu0
    %v4736 = vadd.f32 0.0, %v4735
    %v4737 = vpop.f32.mrf.mxu0
    %4738 = vmatprep.mubr.f32.mxu0 0.0
    %4739 = vmatmul.mubr.f32.gmra.mxu0 %v3286
    %v4740 = vpop.f32.mrf.mxu0
    %v4741 = vadd.f32 0.0, %v4740
    %v4742 = vpop.f32.mrf.mxu0
    %4743 = vmatprep.mubr.f32.mxu0 0.0
    %4744 = vmatmul.mubr.f32.gmra.mxu0 %v3287
    %v4745 = vpop.f32.mrf.mxu0
    %v4746 = vadd.f32 0.0, %v4745
    %v4747 = vpop.f32.mrf.mxu0
    %4748 = vmatprep.mubr.f32.mxu0 0.0
    %4749 = vmatmul.mubr.f32.gmra.mxu0 %v3288
    %v4750 = vpop.f32.mrf.mxu0
    %v4751 = vadd.f32 0.0, %v4750
    %v4752 = vpop.f32.mrf.mxu0
    %4753 = vdwg.mxu0
    %v4754 = vadd.f32 %v4514, %v4676
    %v4755 = vadd.f32 %v4519, %v4681
    %v4756 = vadd.f32 %v4524, %v4686
    %v4757 = vadd.f32 %v4529, %v4691
    %v4758 = vadd.f32 %v4534, %v4696
    %v4759 = vadd.f32 %v4539, %v4701
    %v4760 = vadd.f32 %v4544, %v4706
    %v4761 = vadd.f32 %v4549, %v4711
    %v4762 = vadd.f32 %v4554, %v4716
    %v4763 = vadd.f32 %v4559, %v4721
    %v4764 = vadd.f32 %v4564, %v4726
    %v4765 = vadd.f32 %v4569, %v4731
    %v4766 = vadd.f32 %v4574, %v4736
    %v4767 = vadd.f32 %v4579, %v4741
    %v4768 = vadd.f32 %v4584, %v4746
    %v4769 = vadd.f32 %v4589, %v4751
    %v4770 = vld [vmem:[%s14 + $0x2] sm:$0x1]
    %v4771 = vlaneseq
    %v4772 = vshrl.u32 %v4771, 7
    %v4773 = vsub.s32 0, %v4772
    %v4774 = vrot.slane %v4770, %v4773
    %v4775 = vadd.f32 %v4754, %v4774
    %v4776 = vadd.f32 %v4755, %v4774
    %v4777 = vadd.f32 %v4756, %v4774
    %v4778 = vadd.f32 %v4757, %v4774
    %v4779 = vadd.f32 %v4758, %v4774
    %v4780 = vadd.f32 %v4759, %v4774
    %v4781 = vadd.f32 %v4760, %v4774
    %v4782 = vadd.f32 %v4761, %v4774
    %v4783 = vadd.f32 %v4762, %v4774
    %v4784 = vadd.f32 %v4763, %v4774
    %v4785 = vadd.f32 %v4764, %v4774
    %v4786 = vadd.f32 %v4765, %v4774
    %v4787 = vadd.f32 %v4766, %v4774
    %v4788 = vadd.f32 %v4767, %v4774
    %v4789 = vadd.f32 %v4768, %v4774
    %v4790 = vadd.f32 %v4769, %v4774
    %v4791 = vld [vmem:[%s13] sm:$0xff]
    %v4792 = vld [vmem:[%s13 + $0x8] sm:$0xff]
    %v4793 = vld [vmem:[%s13 + $0x10] sm:$0xff]
    %v4794 = vld [vmem:[%s13 + $0x18] sm:$0xff]
    %v4795 = vld [vmem:[%s13 + $0x20] sm:$0xff]
    %v4796 = vld [vmem:[%s13 + $0x28] sm:$0xff]
    %v4797 = vld [vmem:[%s13 + $0x30] sm:$0xff]
    %v4798 = vld [vmem:[%s13 + $0x38] sm:$0xff]
    %v4799 = vld [vmem:[%s13 + $0x40] sm:$0xff]
    %v4800 = vld [vmem:[%s13 + $0x48] sm:$0xff]
    %v4801 = vld [vmem:[%s13 + $0x50] sm:$0xff]
    %v4802 = vld [vmem:[%s13 + $0x58] sm:$0xff]
    %v4803 = vld [vmem:[%s13 + $0x60] sm:$0xff]
    %v4804 = vld [vmem:[%s13 + $0x68] sm:$0xff]
    %v4805 = vld [vmem:[%s13 + $0x70] sm:$0xff]
    %v4806 = vld [vmem:[%s13 + $0x78] sm:$0xff]
    %4807 = vmatprep.subr.mxu0 0.0
    %4808 = vmatpush1.msra.mxu0 %v4806
    %4809 = vmatprep.subr.mxu0 0.0
    %4810 = vmatpush1.msra.mxu0 %v4805
    %4811 = vmatprep.subr.mxu0 0.0
    %4812 = vmatpush1.msra.mxu0 %v4804
    %4813 = vmatprep.subr.mxu0 0.0
    %4814 = vmatpush1.msra.mxu0 %v4803
    %4815 = vmatprep.subr.mxu0 0.0
    %4816 = vmatpush1.msra.mxu0 %v4802
    %4817 = vmatprep.subr.mxu0 0.0
    %4818 = vmatpush1.msra.mxu0 %v4801
    %4819 = vmatprep.subr.mxu0 0.0
    %4820 = vmatpush1.msra.mxu0 %v4800
    %4821 = vmatprep.subr.mxu0 0.0
    %4822 = vmatpush1.msra.mxu0 %v4799
    %4823 = vmatprep.subr.mxu0 0.0
    %4824 = vmatpush1.msra.mxu0 %v4798
    %4825 = vmatprep.subr.mxu0 0.0
    %4826 = vmatpush1.msra.mxu0 %v4797
    %4827 = vmatprep.subr.mxu0 0.0
    %4828 = vmatpush1.msra.mxu0 %v4796
    %4829 = vmatprep.subr.mxu0 0.0
    %4830 = vmatpush1.msra.mxu0 %v4795
    %4831 = vmatprep.subr.mxu0 0.0
    %4832 = vmatpush1.msra.mxu0 %v4794
    %4833 = vmatprep.subr.mxu0 0.0
    %4834 = vmatpush1.msra.mxu0 %v4793
    %4835 = vmatprep.subr.mxu0 0.0
    %4836 = vmatpush1.msra.mxu0 %v4792
    %4837 = vmatprep.subr.mxu0 0.0
    %4838 = vmatpush1.msra.mxu0 %v4791
    %4839 = vmatprep.subr.mxu0 0.0
    %4840 = vmatpush2.msra.mxu0 0.0
    %4841 = vmatprep.subr.mxu0 0.0
    %4842 = vmatpush2.msra.mxu0 0.0
    %4843 = vmatprep.subr.mxu0 0.0
    %4844 = vmatpush2.msra.mxu0 0.0
    %4845 = vmatprep.subr.mxu0 0.0
    %4846 = vmatpush2.msra.mxu0 0.0
    %4847 = vmatprep.subr.mxu0 0.0
    %4848 = vmatpush2.msra.mxu0 0.0
    %4849 = vmatprep.subr.mxu0 0.0
    %4850 = vmatpush2.msra.mxu0 0.0
    %4851 = vmatprep.subr.mxu0 0.0
    %4852 = vmatpush2.msra.mxu0 0.0
    %4853 = vmatprep.subr.mxu0 0.0
    %4854 = vmatpush2.msra.mxu0 0.0
    %4855 = vmatprep.subr.mxu0 0.0
    %4856 = vmatpush2.msra.mxu0 0.0
    %4857 = vmatprep.subr.mxu0 0.0
    %4858 = vmatpush2.msra.mxu0 0.0
    %4859 = vmatprep.subr.mxu0 0.0
    %4860 = vmatpush2.msra.mxu0 0.0
    %4861 = vmatprep.subr.mxu0 0.0
    %4862 = vmatpush2.msra.mxu0 0.0
    %4863 = vmatprep.subr.mxu0 0.0
    %4864 = vmatpush2.msra.mxu0 0.0
    %4865 = vmatprep.subr.mxu0 0.0
    %4866 = vmatpush2.msra.mxu0 0.0
    %4867 = vmatprep.subr.mxu0 0.0
    %4868 = vmatpush2.msra.mxu0 0.0
    %4869 = vmatprep.subr.mxu0 0.0
    %4870 = vmatpush2.msra.mxu0 0.0
    %4871 = vmatprep.mubr.f32.mxu0 0.0
    %4872 = vmatmul.mubr.f32.gmra.mxu0 %v279
    %v4873 = vpop.f32.mrf.mxu0
    %v4874 = vadd.f32 0.0, %v4873
    %v4875 = vpop.f32.mrf.mxu0
    %4876 = vmatprep.mubr.f32.mxu0 0.0
    %4877 = vmatmul.mubr.f32.gmra.mxu0 %v280
    %v4878 = vpop.f32.mrf.mxu0
    %v4879 = vadd.f32 0.0, %v4878
    %v4880 = vpop.f32.mrf.mxu0
    %4881 = vmatprep.mubr.f32.mxu0 0.0
    %4882 = vmatmul.mubr.f32.gmra.mxu0 %v281
    %v4883 = vpop.f32.mrf.mxu0
    %v4884 = vadd.f32 0.0, %v4883
    %v4885 = vpop.f32.mrf.mxu0
    %4886 = vmatprep.mubr.f32.mxu0 0.0
    %4887 = vmatmul.mubr.f32.gmra.mxu0 %v282
    %v4888 = vpop.f32.mrf.mxu0
    %v4889 = vadd.f32 0.0, %v4888
    %v4890 = vpop.f32.mrf.mxu0
    %4891 = vmatprep.mubr.f32.mxu0 0.0
    %4892 = vmatmul.mubr.f32.gmra.mxu0 %v283
    %v4893 = vpop.f32.mrf.mxu0
    %v4894 = vadd.f32 0.0, %v4893
    %v4895 = vpop.f32.mrf.mxu0
    %4896 = vmatprep.mubr.f32.mxu0 0.0
    %4897 = vmatmul.mubr.f32.gmra.mxu0 %v284
    %v4898 = vpop.f32.mrf.mxu0
    %v4899 = vadd.f32 0.0, %v4898
    %v4900 = vpop.f32.mrf.mxu0
    %4901 = vmatprep.mubr.f32.mxu0 0.0
    %4902 = vmatmul.mubr.f32.gmra.mxu0 %v285
    %v4903 = vpop.f32.mrf.mxu0
    %v4904 = vadd.f32 0.0, %v4903
    %v4905 = vpop.f32.mrf.mxu0
    %4906 = vmatprep.mubr.f32.mxu0 0.0
    %4907 = vmatmul.mubr.f32.gmra.mxu0 %v286
    %v4908 = vpop.f32.mrf.mxu0
    %v4909 = vadd.f32 0.0, %v4908
    %v4910 = vpop.f32.mrf.mxu0
    %4911 = vmatprep.mubr.f32.mxu0 0.0
    %4912 = vmatmul.mubr.f32.gmra.mxu0 %v287
    %v4913 = vpop.f32.mrf.mxu0
    %v4914 = vadd.f32 0.0, %v4913
    %v4915 = vpop.f32.mrf.mxu0
    %4916 = vmatprep.mubr.f32.mxu0 0.0
    %4917 = vmatmul.mubr.f32.gmra.mxu0 %v288
    %v4918 = vpop.f32.mrf.mxu0
    %v4919 = vadd.f32 0.0, %v4918
    %v4920 = vpop.f32.mrf.mxu0
    %4921 = vmatprep.mubr.f32.mxu0 0.0
    %4922 = vmatmul.mubr.f32.gmra.mxu0 %v289
    %v4923 = vpop.f32.mrf.mxu0
    %v4924 = vadd.f32 0.0, %v4923
    %v4925 = vpop.f32.mrf.mxu0
    %4926 = vmatprep.mubr.f32.mxu0 0.0
    %4927 = vmatmul.mubr.f32.gmra.mxu0 %v290
    %v4928 = vpop.f32.mrf.mxu0
    %v4929 = vadd.f32 0.0, %v4928
    %v4930 = vpop.f32.mrf.mxu0
    %4931 = vmatprep.mubr.f32.mxu0 0.0
    %4932 = vmatmul.mubr.f32.gmra.mxu0 %v291
    %v4933 = vpop.f32.mrf.mxu0
    %v4934 = vadd.f32 0.0, %v4933
    %v4935 = vpop.f32.mrf.mxu0
    %4936 = vmatprep.mubr.f32.mxu0 0.0
    %4937 = vmatmul.mubr.f32.gmra.mxu0 %v292
    %v4938 = vpop.f32.mrf.mxu0
    %v4939 = vadd.f32 0.0, %v4938
    %v4940 = vpop.f32.mrf.mxu0
    %4941 = vmatprep.mubr.f32.mxu0 0.0
    %4942 = vmatmul.mubr.f32.gmra.mxu0 %v293
    %v4943 = vpop.f32.mrf.mxu0
    %v4944 = vadd.f32 0.0, %v4943
    %v4945 = vpop.f32.mrf.mxu0
    %4946 = vmatprep.mubr.f32.mxu0 0.0
    %4947 = vmatmul.mubr.f32.gmra.mxu0 %v294
    %v4948 = vpop.f32.mrf.mxu0
    %v4949 = vadd.f32 0.0, %v4948
    %v4950 = vpop.f32.mrf.mxu0
    %4951 = vdwg.mxu0
    %v4952 = vadd.f32 %v4775, %v4874
    %v4953 = vadd.f32 %v4776, %v4879
    %v4954 = vadd.f32 %v4777, %v4884
    %v4955 = vadd.f32 %v4778, %v4889
    %v4956 = vadd.f32 %v4779, %v4894
    %v4957 = vadd.f32 %v4780, %v4899
    %v4958 = vadd.f32 %v4781, %v4904
    %v4959 = vadd.f32 %v4782, %v4909
    %v4960 = vadd.f32 %v4783, %v4914
    %v4961 = vadd.f32 %v4784, %v4919
    %v4962 = vadd.f32 %v4785, %v4924
    %v4963 = vadd.f32 %v4786, %v4929
    %v4964 = vadd.f32 %v4787, %v4934
    %v4965 = vadd.f32 %v4788, %v4939
    %v4966 = vadd.f32 %v4789, %v4944
    %v4967 = vadd.f32 %v4790, %v4949
    %v4968 = vmax.f32 %v4952, 0.0
    %v4969 = vmax.f32 %v4953, 0.0
    %v4970 = vmax.f32 %v4954, 0.0
    %v4971 = vmax.f32 %v4955, 0.0
    %v4972 = vmax.f32 %v4956, 0.0
    %v4973 = vmax.f32 %v4957, 0.0
    %v4974 = vmax.f32 %v4958, 0.0
    %v4975 = vmax.f32 %v4959, 0.0
    %v4976 = vmax.f32 %v4960, 0.0
    %v4977 = vmax.f32 %v4961, 0.0
    %v4978 = vmax.f32 %v4962, 0.0
    %v4979 = vmax.f32 %v4963, 0.0
    %v4980 = vmax.f32 %v4964, 0.0
    %v4981 = vmax.f32 %v4965, 0.0
    %v4982 = vmax.f32 %v4966, 0.0
    %v4983 = vmax.f32 %v4967, 0.0
    %s4984 = scalar_lea.vmem [#allocation19], 256
    %v4985 = vld [vmem:[%s4984] sm:$0xff]
    %v4986 = vld [vmem:[%s4984 + $0x8] sm:$0xff]
    %v4987 = vld [vmem:[%s4984 + $0x10] sm:$0xff]
    %v4988 = vld [vmem:[%s4984 + $0x18] sm:$0xff]
    %v4989 = vld [vmem:[%s4984 + $0x20] sm:$0xff]
    %v4990 = vld [vmem:[%s4984 + $0x28] sm:$0xff]
    %v4991 = vld [vmem:[%s4984 + $0x30] sm:$0xff]
    %v4992 = vld [vmem:[%s4984 + $0x38] sm:$0xff]
    %v4993 = vld [vmem:[%s4984 + $0x40] sm:$0xff]
    %v4994 = vld [vmem:[%s4984 + $0x48] sm:$0xff]
    %v4995 = vld [vmem:[%s4984 + $0x50] sm:$0xff]
    %v4996 = vld [vmem:[%s4984 + $0x58] sm:$0xff]
    %v4997 = vld [vmem:[%s4984 + $0x60] sm:$0xff]
    %v4998 = vld [vmem:[%s4984 + $0x68] sm:$0xff]
    %v4999 = vld [vmem:[%s4984 + $0x70] sm:$0xff]
    %v5000 = vld [vmem:[%s4984 + $0x78] sm:$0xff]
    %v5001 = vld [vmem:[%s16 + $0x2] sm:$0x1]
    %v5002 = vlaneseq
    %v5003 = vshrl.u32 %v5002, 7
    %v5004 = vsub.s32 0, %v5003
    %v5005 = vrot.slane %v5001, %v5004
    %5006 = vmatprep.subr.mxu0 0.0
    %5007 = vmatpush1.msra.mxu0 %v5000
    %5008 = vmatprep.subr.mxu0 0.0
    %5009 = vmatpush1.msra.mxu0 %v4999
    %5010 = vmatprep.subr.mxu0 0.0
    %5011 = vmatpush1.msra.mxu0 %v4998
    %5012 = vmatprep.subr.mxu0 0.0
    %5013 = vmatpush1.msra.mxu0 %v4997
    %5014 = vmatprep.subr.mxu0 0.0
    %5015 = vmatpush1.msra.mxu0 %v4996
    %5016 = vmatprep.subr.mxu0 0.0
    %5017 = vmatpush1.msra.mxu0 %v4995
    %5018 = vmatprep.subr.mxu0 0.0
    %5019 = vmatpush1.msra.mxu0 %v4994
    %5020 = vmatprep.subr.mxu0 0.0
    %5021 = vmatpush1.msra.mxu0 %v4993
    %5022 = vmatprep.subr.mxu0 0.0
    %5023 = vmatpush1.msra.mxu0 %v4992
    %5024 = vmatprep.subr.mxu0 0.0
    %5025 = vmatpush1.msra.mxu0 %v4991
    %5026 = vmatprep.subr.mxu0 0.0
    %5027 = vmatpush1.msra.mxu0 %v4990
    %5028 = vmatprep.subr.mxu0 0.0
    %5029 = vmatpush1.msra.mxu0 %v4989
    %5030 = vmatprep.subr.mxu0 0.0
    %5031 = vmatpush1.msra.mxu0 %v4988
    %5032 = vmatprep.subr.mxu0 0.0
    %5033 = vmatpush1.msra.mxu0 %v4987
    %5034 = vmatprep.subr.mxu0 0.0
    %5035 = vmatpush1.msra.mxu0 %v4986
    %5036 = vmatprep.subr.mxu0 0.0
    %5037 = vmatpush1.msra.mxu0 %v4985
    %5038 = vmatprep.subr.mxu0 0.0
    %5039 = vmatpush2.msra.mxu0 0.0
    %5040 = vmatprep.subr.mxu0 0.0
    %5041 = vmatpush2.msra.mxu0 0.0
    %5042 = vmatprep.subr.mxu0 0.0
    %5043 = vmatpush2.msra.mxu0 0.0
    %5044 = vmatprep.subr.mxu0 0.0
    %5045 = vmatpush2.msra.mxu0 0.0
    %5046 = vmatprep.subr.mxu0 0.0
    %5047 = vmatpush2.msra.mxu0 0.0
    %5048 = vmatprep.subr.mxu0 0.0
    %5049 = vmatpush2.msra.mxu0 0.0
    %5050 = vmatprep.subr.mxu0 0.0
    %5051 = vmatpush2.msra.mxu0 0.0
    %5052 = vmatprep.subr.mxu0 0.0
    %5053 = vmatpush2.msra.mxu0 0.0
    %5054 = vmatprep.subr.mxu0 0.0
    %5055 = vmatpush2.msra.mxu0 0.0
    %5056 = vmatprep.subr.mxu0 0.0
    %5057 = vmatpush2.msra.mxu0 0.0
    %5058 = vmatprep.subr.mxu0 0.0
    %5059 = vmatpush2.msra.mxu0 0.0
    %5060 = vmatprep.subr.mxu0 0.0
    %5061 = vmatpush2.msra.mxu0 0.0
    %5062 = vmatprep.subr.mxu0 0.0
    %5063 = vmatpush2.msra.mxu0 0.0
    %5064 = vmatprep.subr.mxu0 0.0
    %5065 = vmatpush2.msra.mxu0 0.0
    %5066 = vmatprep.subr.mxu0 0.0
    %5067 = vmatpush2.msra.mxu0 0.0
    %5068 = vmatprep.subr.mxu0 0.0
    %5069 = vmatpush2.msra.mxu0 0.0
    %5070 = vmatprep.mubr.f32.mxu0 0.0
    %5071 = vmatmul.mubr.f32.gmra.mxu0 %v4968
    %v5072 = vpop.f32.mrf.mxu0
    %v5073 = vadd.f32 %v5005, %v5072
    %v5074 = vpop.f32.mrf.mxu0
    %5075 = vmatprep.mubr.f32.mxu0 0.0
    %5076 = vmatmul.mubr.f32.gmra.mxu0 %v4969
    %v5077 = vpop.f32.mrf.mxu0
    %v5078 = vadd.f32 %v5005, %v5077
    %v5079 = vpop.f32.mrf.mxu0
    %5080 = vmatprep.mubr.f32.mxu0 0.0
    %5081 = vmatmul.mubr.f32.gmra.mxu0 %v4970
    %v5082 = vpop.f32.mrf.mxu0
    %v5083 = vadd.f32 %v5005, %v5082
    %v5084 = vpop.f32.mrf.mxu0
    %5085 = vmatprep.mubr.f32.mxu0 0.0
    %5086 = vmatmul.mubr.f32.gmra.mxu0 %v4971
    %v5087 = vpop.f32.mrf.mxu0
    %v5088 = vadd.f32 %v5005, %v5087
    %v5089 = vpop.f32.mrf.mxu0
    %5090 = vmatprep.mubr.f32.mxu0 0.0
    %5091 = vmatmul.mubr.f32.gmra.mxu0 %v4972
    %v5092 = vpop.f32.mrf.mxu0
    %v5093 = vadd.f32 %v5005, %v5092
    %v5094 = vpop.f32.mrf.mxu0
    %5095 = vmatprep.mubr.f32.mxu0 0.0
    %5096 = vmatmul.mubr.f32.gmra.mxu0 %v4973
    %v5097 = vpop.f32.mrf.mxu0
    %v5098 = vadd.f32 %v5005, %v5097
    %v5099 = vpop.f32.mrf.mxu0
    %5100 = vmatprep.mubr.f32.mxu0 0.0
    %5101 = vmatmul.mubr.f32.gmra.mxu0 %v4974
    %v5102 = vpop.f32.mrf.mxu0
    %v5103 = vadd.f32 %v5005, %v5102
    %v5104 = vpop.f32.mrf.mxu0
    %5105 = vmatprep.mubr.f32.mxu0 0.0
    %5106 = vmatmul.mubr.f32.gmra.mxu0 %v4975
    %v5107 = vpop.f32.mrf.mxu0
    %v5108 = vadd.f32 %v5005, %v5107
    %v5109 = vpop.f32.mrf.mxu0
    %5110 = vmatprep.mubr.f32.mxu0 0.0
    %5111 = vmatmul.mubr.f32.gmra.mxu0 %v4976
    %v5112 = vpop.f32.mrf.mxu0
    %v5113 = vadd.f32 %v5005, %v5112
    %v5114 = vpop.f32.mrf.mxu0
    %5115 = vmatprep.mubr.f32.mxu0 0.0
    %5116 = vmatmul.mubr.f32.gmra.mxu0 %v4977
    %v5117 = vpop.f32.mrf.mxu0
    %v5118 = vadd.f32 %v5005, %v5117
    %v5119 = vpop.f32.mrf.mxu0
    %5120 = vmatprep.mubr.f32.mxu0 0.0
    %5121 = vmatmul.mubr.f32.gmra.mxu0 %v4978
    %v5122 = vpop.f32.mrf.mxu0
    %v5123 = vadd.f32 %v5005, %v5122
    %v5124 = vpop.f32.mrf.mxu0
    %5125 = vmatprep.mubr.f32.mxu0 0.0
    %5126 = vmatmul.mubr.f32.gmra.mxu0 %v4979
    %v5127 = vpop.f32.mrf.mxu0
    %v5128 = vadd.f32 %v5005, %v5127
    %v5129 = vpop.f32.mrf.mxu0
    %5130 = vmatprep.mubr.f32.mxu0 0.0
    %5131 = vmatmul.mubr.f32.gmra.mxu0 %v4980
    %v5132 = vpop.f32.mrf.mxu0
    %v5133 = vadd.f32 %v5005, %v5132
    %v5134 = vpop.f32.mrf.mxu0
    %5135 = vmatprep.mubr.f32.mxu0 0.0
    %5136 = vmatmul.mubr.f32.gmra.mxu0 %v4981
    %v5137 = vpop.f32.mrf.mxu0
    %v5138 = vadd.f32 %v5005, %v5137
    %v5139 = vpop.f32.mrf.mxu0
    %5140 = vmatprep.mubr.f32.mxu0 0.0
    %5141 = vmatmul.mubr.f32.gmra.mxu0 %v4982
    %v5142 = vpop.f32.mrf.mxu0
    %v5143 = vadd.f32 %v5005, %v5142
    %v5144 = vpop.f32.mrf.mxu0
    %5145 = vmatprep.mubr.f32.mxu0 0.0
    %5146 = vmatmul.mubr.f32.gmra.mxu0 %v4983
    %v5147 = vpop.f32.mrf.mxu0
    %v5148 = vadd.f32 %v5005, %v5147
    %v5149 = vpop.f32.mrf.mxu0
    %5150 = vdwg.mxu0
    %v5151 = vmul.f32 %v5073, %v1418
    %v5152 = vmul.f32 %v5078, %v1423
    %v5153 = vmul.f32 %v5083, %v1428
    %v5154 = vmul.f32 %v5088, %v1433
    %v5155 = vmul.f32 %v5093, %v1438
    %v5156 = vmul.f32 %v5098, %v1443
    %v5157 = vmul.f32 %v5103, %v1448
    %v5158 = vmul.f32 %v5108, %v1453
    %v5159 = vmul.f32 %v5113, %v1458
    %v5160 = vmul.f32 %v5118, %v1463
    %v5161 = vmul.f32 %v5123, %v1468
    %v5162 = vmul.f32 %v5128, %v1473
    %v5163 = vmul.f32 %v5133, %v1478
    %v5164 = vmul.f32 %v5138, %v1483
    %v5165 = vmul.f32 %v5143, %v1488
    %v5166 = vmul.f32 %v5148, %v1493
    %5167 = vmatprep.subr.mxu0 0.0
    %5168 = vmatpush1.msra.mxu0 %v5166
    %5169 = vmatprep.subr.mxu0 0.0
    %5170 = vmatpush1.msra.mxu0 %v5165
    %5171 = vmatprep.subr.mxu0 0.0
    %5172 = vmatpush1.msra.mxu0 %v5164
    %5173 = vmatprep.subr.mxu0 0.0
    %5174 = vmatpush1.msra.mxu0 %v5163
    %5175 = vmatprep.subr.mxu0 0.0
    %5176 = vmatpush1.msra.mxu0 %v5162
    %5177 = vmatprep.subr.mxu0 0.0
    %5178 = vmatpush1.msra.mxu0 %v5161
    %5179 = vmatprep.subr.mxu0 0.0
    %5180 = vmatpush1.msra.mxu0 %v5160
    %5181 = vmatprep.subr.mxu0 0.0
    %5182 = vmatpush1.msra.mxu0 %v5159
    %5183 = vmatprep.subr.mxu0 0.0
    %5184 = vmatpush1.msra.mxu0 %v5158
    %5185 = vmatprep.subr.mxu0 0.0
    %5186 = vmatpush1.msra.mxu0 %v5157
    %5187 = vmatprep.subr.mxu0 0.0
    %5188 = vmatpush1.msra.mxu0 %v5156
    %5189 = vmatprep.subr.mxu0 0.0
    %5190 = vmatpush1.msra.mxu0 %v5155
    %5191 = vmatprep.subr.mxu0 0.0
    %5192 = vmatpush1.msra.mxu0 %v5154
    %5193 = vmatprep.subr.mxu0 0.0
    %5194 = vmatpush1.msra.mxu0 %v5153
    %5195 = vmatprep.subr.mxu0 0.0
    %5196 = vmatpush1.msra.mxu0 %v5152
    %5197 = vmatprep.subr.mxu0 0.0
    %5198 = vmatpush1.msra.mxu0 %v5151
    %5199 = vmatprep.subr.mxu0 0.0
    %5200 = vmatpush2.msra.mxu0 0.0
    %5201 = vmatprep.subr.mxu0 0.0
    %5202 = vmatpush2.msra.mxu0 0.0
    %5203 = vmatprep.subr.mxu0 0.0
    %5204 = vmatpush2.msra.mxu0 0.0
    %5205 = vmatprep.subr.mxu0 0.0
    %5206 = vmatpush2.msra.mxu0 0.0
    %5207 = vmatprep.subr.mxu0 0.0
    %5208 = vmatpush2.msra.mxu0 0.0
    %5209 = vmatprep.subr.mxu0 0.0
    %5210 = vmatpush2.msra.mxu0 0.0
    %5211 = vmatprep.subr.mxu0 0.0
    %5212 = vmatpush2.msra.mxu0 0.0
    %5213 = vmatprep.subr.mxu0 0.0
    %5214 = vmatpush2.msra.mxu0 0.0
    %5215 = vmatprep.subr.mxu0 0.0
    %5216 = vmatpush2.msra.mxu0 0.0
    %5217 = vmatprep.subr.mxu0 0.0
    %5218 = vmatpush2.msra.mxu0 0.0
    %5219 = vmatprep.subr.mxu0 0.0
    %5220 = vmatpush2.msra.mxu0 0.0
    %5221 = vmatprep.subr.mxu0 0.0
    %5222 = vmatpush2.msra.mxu0 0.0
    %5223 = vmatprep.subr.mxu0 0.0
    %5224 = vmatpush2.msra.mxu0 0.0
    %5225 = vmatprep.subr.mxu0 0.0
    %5226 = vmatpush2.msra.mxu0 0.0
    %5227 = vmatprep.subr.mxu0 0.0
    %5228 = vmatpush2.msra.mxu0 0.0
    %5229 = vmatprep.subr.mxu0 0.0
    %5230 = vmatpush2.msra.mxu0 0.0
    %5231 = vmatprep.mubr.f32.mxu0 0.0
    %5232 = vmatmul.mubr.f32.gmra.mxu0 %v359
    %v5233 = vpop.f32.mrf.mxu0
    %v5234 = vadd.f32 0.0, %v5233
    %v5235 = vpop.f32.mrf.mxu0
    %5236 = vmatprep.mubr.f32.mxu0 0.0
    %5237 = vmatmul.mubr.f32.gmra.mxu0 %v360
    %v5238 = vpop.f32.mrf.mxu0
    %v5239 = vadd.f32 0.0, %v5238
    %v5240 = vpop.f32.mrf.mxu0
    %5241 = vmatprep.mubr.f32.mxu0 0.0
    %5242 = vmatmul.mubr.f32.gmra.mxu0 %v361
    %v5243 = vpop.f32.mrf.mxu0
    %v5244 = vadd.f32 0.0, %v5243
    %v5245 = vpop.f32.mrf.mxu0
    %5246 = vmatprep.mubr.f32.mxu0 0.0
    %5247 = vmatmul.mubr.f32.gmra.mxu0 %v362
    %v5248 = vpop.f32.mrf.mxu0
    %v5249 = vadd.f32 0.0, %v5248
    %v5250 = vpop.f32.mrf.mxu0
    %5251 = vmatprep.mubr.f32.mxu0 0.0
    %5252 = vmatmul.mubr.f32.gmra.mxu0 %v363
    %v5253 = vpop.f32.mrf.mxu0
    %v5254 = vadd.f32 0.0, %v5253
    %v5255 = vpop.f32.mrf.mxu0
    %5256 = vmatprep.mubr.f32.mxu0 0.0
    %5257 = vmatmul.mubr.f32.gmra.mxu0 %v364
    %v5258 = vpop.f32.mrf.mxu0
    %v5259 = vadd.f32 0.0, %v5258
    %v5260 = vpop.f32.mrf.mxu0
    %5261 = vmatprep.mubr.f32.mxu0 0.0
    %5262 = vmatmul.mubr.f32.gmra.mxu0 %v365
    %v5263 = vpop.f32.mrf.mxu0
    %v5264 = vadd.f32 0.0, %v5263
    %v5265 = vpop.f32.mrf.mxu0
    %5266 = vmatprep.mubr.f32.mxu0 0.0
    %5267 = vmatmul.mubr.f32.gmra.mxu0 %v366
    %v5268 = vpop.f32.mrf.mxu0
    %v5269 = vadd.f32 0.0, %v5268
    %v5270 = vpop.f32.mrf.mxu0
    %5271 = vmatprep.mubr.f32.mxu0 0.0
    %5272 = vmatmul.mubr.f32.gmra.mxu0 %v367
    %v5273 = vpop.f32.mrf.mxu0
    %v5274 = vadd.f32 0.0, %v5273
    %v5275 = vpop.f32.mrf.mxu0
    %5276 = vmatprep.mubr.f32.mxu0 0.0
    %5277 = vmatmul.mubr.f32.gmra.mxu0 %v368
    %v5278 = vpop.f32.mrf.mxu0
    %v5279 = vadd.f32 0.0, %v5278
    %v5280 = vpop.f32.mrf.mxu0
    %5281 = vmatprep.mubr.f32.mxu0 0.0
    %5282 = vmatmul.mubr.f32.gmra.mxu0 %v369
    %v5283 = vpop.f32.mrf.mxu0
    %v5284 = vadd.f32 0.0, %v5283
    %v5285 = vpop.f32.mrf.mxu0
    %5286 = vmatprep.mubr.f32.mxu0 0.0
    %5287 = vmatmul.mubr.f32.gmra.mxu0 %v370
    %v5288 = vpop.f32.mrf.mxu0
    %v5289 = vadd.f32 0.0, %v5288
    %v5290 = vpop.f32.mrf.mxu0
    %5291 = vmatprep.mubr.f32.mxu0 0.0
    %5292 = vmatmul.mubr.f32.gmra.mxu0 %v371
    %v5293 = vpop.f32.mrf.mxu0
    %v5294 = vadd.f32 0.0, %v5293
    %v5295 = vpop.f32.mrf.mxu0
    %5296 = vmatprep.mubr.f32.mxu0 0.0
    %5297 = vmatmul.mubr.f32.gmra.mxu0 %v372
    %v5298 = vpop.f32.mrf.mxu0
    %v5299 = vadd.f32 0.0, %v5298
    %v5300 = vpop.f32.mrf.mxu0
    %5301 = vmatprep.mubr.f32.mxu0 0.0
    %5302 = vmatmul.mubr.f32.gmra.mxu0 %v373
    %v5303 = vpop.f32.mrf.mxu0
    %v5304 = vadd.f32 0.0, %v5303
    %v5305 = vpop.f32.mrf.mxu0
    %5306 = vmatprep.mubr.f32.mxu0 0.0
    %5307 = vmatmul.mubr.f32.gmra.mxu0 %v374
    %v5308 = vpop.f32.mrf.mxu0
    %v5309 = vadd.f32 0.0, %v5308
    %v5310 = vpop.f32.mrf.mxu0
    %5311 = vdwg.mxu0
    %s5312 = scalar_lea.vmem [#allocation20], 256
    %v5313 = vld [vmem:[%s5312] sm:$0xff]
    %v5314 = vld [vmem:[%s5312 + $0x8] sm:$0xff]
    %v5315 = vld [vmem:[%s5312 + $0x10] sm:$0xff]
    %v5316 = vld [vmem:[%s5312 + $0x18] sm:$0xff]
    %v5317 = vld [vmem:[%s5312 + $0x20] sm:$0xff]
    %v5318 = vld [vmem:[%s5312 + $0x28] sm:$0xff]
    %v5319 = vld [vmem:[%s5312 + $0x30] sm:$0xff]
    %v5320 = vld [vmem:[%s5312 + $0x38] sm:$0xff]
    %v5321 = vld [vmem:[%s5312 + $0x40] sm:$0xff]
    %v5322 = vld [vmem:[%s5312 + $0x48] sm:$0xff]
    %v5323 = vld [vmem:[%s5312 + $0x50] sm:$0xff]
    %v5324 = vld [vmem:[%s5312 + $0x58] sm:$0xff]
    %v5325 = vld [vmem:[%s5312 + $0x60] sm:$0xff]
    %v5326 = vld [vmem:[%s5312 + $0x68] sm:$0xff]
    %v5327 = vld [vmem:[%s5312 + $0x70] sm:$0xff]
    %v5328 = vld [vmem:[%s5312 + $0x78] sm:$0xff]
    %s5329 = scalar_lea.vmem [#allocation22], 256
    %v5330 = vld [vmem:[%s5329] sm:$0xff]
    %v5331 = vld [vmem:[%s5329 + $0x8] sm:$0xff]
    %v5332 = vld [vmem:[%s5329 + $0x10] sm:$0xff]
    %v5333 = vld [vmem:[%s5329 + $0x18] sm:$0xff]
    %v5334 = vld [vmem:[%s5329 + $0x20] sm:$0xff]
    %v5335 = vld [vmem:[%s5329 + $0x28] sm:$0xff]
    %v5336 = vld [vmem:[%s5329 + $0x30] sm:$0xff]
    %v5337 = vld [vmem:[%s5329 + $0x38] sm:$0xff]
    %v5338 = vld [vmem:[%s5329 + $0x40] sm:$0xff]
    %v5339 = vld [vmem:[%s5329 + $0x48] sm:$0xff]
    %v5340 = vld [vmem:[%s5329 + $0x50] sm:$0xff]
    %v5341 = vld [vmem:[%s5329 + $0x58] sm:$0xff]
    %v5342 = vld [vmem:[%s5329 + $0x60] sm:$0xff]
    %v5343 = vld [vmem:[%s5329 + $0x68] sm:$0xff]
    %v5344 = vld [vmem:[%s5329 + $0x70] sm:$0xff]
    %v5345 = vld [vmem:[%s5329 + $0x78] sm:$0xff]
    %5346 = vmatprep.subr.mxu0 0.0
    %5347 = vmatpush1.msra.mxu0 %v5345
    %5348 = vmatprep.subr.mxu0 0.0
    %5349 = vmatpush1.msra.mxu0 %v5344
    %5350 = vmatprep.subr.mxu0 0.0
    %5351 = vmatpush1.msra.mxu0 %v5343
    %5352 = vmatprep.subr.mxu0 0.0
    %5353 = vmatpush1.msra.mxu0 %v5342
    %5354 = vmatprep.subr.mxu0 0.0
    %5355 = vmatpush1.msra.mxu0 %v5341
    %5356 = vmatprep.subr.mxu0 0.0
    %5357 = vmatpush1.msra.mxu0 %v5340
    %5358 = vmatprep.subr.mxu0 0.0
    %5359 = vmatpush1.msra.mxu0 %v5339
    %5360 = vmatprep.subr.mxu0 0.0
    %5361 = vmatpush1.msra.mxu0 %v5338
    %5362 = vmatprep.subr.mxu0 0.0
    %5363 = vmatpush1.msra.mxu0 %v5337
    %5364 = vmatprep.subr.mxu0 0.0
    %5365 = vmatpush1.msra.mxu0 %v5336
    %5366 = vmatprep.subr.mxu0 0.0
    %5367 = vmatpush1.msra.mxu0 %v5335
    %5368 = vmatprep.subr.mxu0 0.0
    %5369 = vmatpush1.msra.mxu0 %v5334
    %5370 = vmatprep.subr.mxu0 0.0
    %5371 = vmatpush1.msra.mxu0 %v5333
    %5372 = vmatprep.subr.mxu0 0.0
    %5373 = vmatpush1.msra.mxu0 %v5332
    %5374 = vmatprep.subr.mxu0 0.0
    %5375 = vmatpush1.msra.mxu0 %v5331
    %5376 = vmatprep.subr.mxu0 0.0
    %5377 = vmatpush1.msra.mxu0 %v5330
    %5378 = vmatprep.subr.mxu0 0.0
    %5379 = vmatpush2.msra.mxu0 0.0
    %5380 = vmatprep.subr.mxu0 0.0
    %5381 = vmatpush2.msra.mxu0 0.0
    %5382 = vmatprep.subr.mxu0 0.0
    %5383 = vmatpush2.msra.mxu0 0.0
    %5384 = vmatprep.subr.mxu0 0.0
    %5385 = vmatpush2.msra.mxu0 0.0
    %5386 = vmatprep.subr.mxu0 0.0
    %5387 = vmatpush2.msra.mxu0 0.0
    %5388 = vmatprep.subr.mxu0 0.0
    %5389 = vmatpush2.msra.mxu0 0.0
    %5390 = vmatprep.subr.mxu0 0.0
    %5391 = vmatpush2.msra.mxu0 0.0
    %5392 = vmatprep.subr.mxu0 0.0
    %5393 = vmatpush2.msra.mxu0 0.0
    %5394 = vmatprep.subr.mxu0 0.0
    %5395 = vmatpush2.msra.mxu0 0.0
    %5396 = vmatprep.subr.mxu0 0.0
    %5397 = vmatpush2.msra.mxu0 0.0
    %5398 = vmatprep.subr.mxu0 0.0
    %5399 = vmatpush2.msra.mxu0 0.0
    %5400 = vmatprep.subr.mxu0 0.0
    %5401 = vmatpush2.msra.mxu0 0.0
    %5402 = vmatprep.subr.mxu0 0.0
    %5403 = vmatpush2.msra.mxu0 0.0
    %5404 = vmatprep.subr.mxu0 0.0
    %5405 = vmatpush2.msra.mxu0 0.0
    %5406 = vmatprep.subr.mxu0 0.0
    %5407 = vmatpush2.msra.mxu0 0.0
    %5408 = vmatprep.subr.mxu0 0.0
    %5409 = vmatpush2.msra.mxu0 0.0
    %5410 = vmatprep.mubr.f32.mxu0 0.0
    %5411 = vmatmul.mubr.f32.gmra.mxu0 %v5234
    %v5412 = vpop.f32.mrf.mxu0
    %v5413 = vadd.f32 0.0, %v5412
    %v5414 = vpop.f32.mrf.mxu0
    %5415 = vmatprep.mubr.f32.mxu0 0.0
    %5416 = vmatmul.mubr.f32.gmra.mxu0 %v5239
    %v5417 = vpop.f32.mrf.mxu0
    %v5418 = vadd.f32 0.0, %v5417
    %v5419 = vpop.f32.mrf.mxu0
    %5420 = vmatprep.mubr.f32.mxu0 0.0
    %5421 = vmatmul.mubr.f32.gmra.mxu0 %v5244
    %v5422 = vpop.f32.mrf.mxu0
    %v5423 = vadd.f32 0.0, %v5422
    %v5424 = vpop.f32.mrf.mxu0
    %5425 = vmatprep.mubr.f32.mxu0 0.0
    %5426 = vmatmul.mubr.f32.gmra.mxu0 %v5249
    %v5427 = vpop.f32.mrf.mxu0
    %v5428 = vadd.f32 0.0, %v5427
    %v5429 = vpop.f32.mrf.mxu0
    %5430 = vmatprep.mubr.f32.mxu0 0.0
    %5431 = vmatmul.mubr.f32.gmra.mxu0 %v5254
    %v5432 = vpop.f32.mrf.mxu0
    %v5433 = vadd.f32 0.0, %v5432
    %v5434 = vpop.f32.mrf.mxu0
    %5435 = vmatprep.mubr.f32.mxu0 0.0
    %5436 = vmatmul.mubr.f32.gmra.mxu0 %v5259
    %v5437 = vpop.f32.mrf.mxu0
    %v5438 = vadd.f32 0.0, %v5437
    %v5439 = vpop.f32.mrf.mxu0
    %5440 = vmatprep.mubr.f32.mxu0 0.0
    %5441 = vmatmul.mubr.f32.gmra.mxu0 %v5264
    %v5442 = vpop.f32.mrf.mxu0
    %v5443 = vadd.f32 0.0, %v5442
    %v5444 = vpop.f32.mrf.mxu0
    %5445 = vmatprep.mubr.f32.mxu0 0.0
    %5446 = vmatmul.mubr.f32.gmra.mxu0 %v5269
    %v5447 = vpop.f32.mrf.mxu0
    %v5448 = vadd.f32 0.0, %v5447
    %v5449 = vpop.f32.mrf.mxu0
    %5450 = vmatprep.mubr.f32.mxu0 0.0
    %5451 = vmatmul.mubr.f32.gmra.mxu0 %v5274
    %v5452 = vpop.f32.mrf.mxu0
    %v5453 = vadd.f32 0.0, %v5452
    %v5454 = vpop.f32.mrf.mxu0
    %5455 = vmatprep.mubr.f32.mxu0 0.0
    %5456 = vmatmul.mubr.f32.gmra.mxu0 %v5279
    %v5457 = vpop.f32.mrf.mxu0
    %v5458 = vadd.f32 0.0, %v5457
    %v5459 = vpop.f32.mrf.mxu0
    %5460 = vmatprep.mubr.f32.mxu0 0.0
    %5461 = vmatmul.mubr.f32.gmra.mxu0 %v5284
    %v5462 = vpop.f32.mrf.mxu0
    %v5463 = vadd.f32 0.0, %v5462
    %v5464 = vpop.f32.mrf.mxu0
    %5465 = vmatprep.mubr.f32.mxu0 0.0
    %5466 = vmatmul.mubr.f32.gmra.mxu0 %v5289
    %v5467 = vpop.f32.mrf.mxu0
    %v5468 = vadd.f32 0.0, %v5467
    %v5469 = vpop.f32.mrf.mxu0
    %5470 = vmatprep.mubr.f32.mxu0 0.0
    %5471 = vmatmul.mubr.f32.gmra.mxu0 %v5294
    %v5472 = vpop.f32.mrf.mxu0
    %v5473 = vadd.f32 0.0, %v5472
    %v5474 = vpop.f32.mrf.mxu0
    %5475 = vmatprep.mubr.f32.mxu0 0.0
    %5476 = vmatmul.mubr.f32.gmra.mxu0 %v5299
    %v5477 = vpop.f32.mrf.mxu0
    %v5478 = vadd.f32 0.0, %v5477
    %v5479 = vpop.f32.mrf.mxu0
    %5480 = vmatprep.mubr.f32.mxu0 0.0
    %5481 = vmatmul.mubr.f32.gmra.mxu0 %v5304
    %v5482 = vpop.f32.mrf.mxu0
    %v5483 = vadd.f32 0.0, %v5482
    %v5484 = vpop.f32.mrf.mxu0
    %5485 = vmatprep.mubr.f32.mxu0 0.0
    %5486 = vmatmul.mubr.f32.gmra.mxu0 %v5309
    %v5487 = vpop.f32.mrf.mxu0
    %v5488 = vadd.f32 0.0, %v5487
    %v5489 = vpop.f32.mrf.mxu0
    %5490 = vdwg.mxu0
    %5491 = vmatprep.subr.mxu0 0.0
    %5492 = vmatpush1.msra.mxu0 %v5328
    %5493 = vmatprep.subr.mxu0 0.0
    %5494 = vmatpush1.msra.mxu0 %v5327
    %5495 = vmatprep.subr.mxu0 0.0
    %5496 = vmatpush1.msra.mxu0 %v5326
    %5497 = vmatprep.subr.mxu0 0.0
    %5498 = vmatpush1.msra.mxu0 %v5325
    %5499 = vmatprep.subr.mxu0 0.0
    %5500 = vmatpush1.msra.mxu0 %v5324
    %5501 = vmatprep.subr.mxu0 0.0
    %5502 = vmatpush1.msra.mxu0 %v5323
    %5503 = vmatprep.subr.mxu0 0.0
    %5504 = vmatpush1.msra.mxu0 %v5322
    %5505 = vmatprep.subr.mxu0 0.0
    %5506 = vmatpush1.msra.mxu0 %v5321
    %5507 = vmatprep.subr.mxu0 0.0
    %5508 = vmatpush1.msra.mxu0 %v5320
    %5509 = vmatprep.subr.mxu0 0.0
    %5510 = vmatpush1.msra.mxu0 %v5319
    %5511 = vmatprep.subr.mxu0 0.0
    %5512 = vmatpush1.msra.mxu0 %v5318
    %5513 = vmatprep.subr.mxu0 0.0
    %5514 = vmatpush1.msra.mxu0 %v5317
    %5515 = vmatprep.subr.mxu0 0.0
    %5516 = vmatpush1.msra.mxu0 %v5316
    %5517 = vmatprep.subr.mxu0 0.0
    %5518 = vmatpush1.msra.mxu0 %v5315
    %5519 = vmatprep.subr.mxu0 0.0
    %5520 = vmatpush1.msra.mxu0 %v5314
    %5521 = vmatprep.subr.mxu0 0.0
    %5522 = vmatpush1.msra.mxu0 %v5313
    %5523 = vmatprep.subr.mxu0 0.0
    %5524 = vmatpush2.msra.mxu0 0.0
    %5525 = vmatprep.subr.mxu0 0.0
    %5526 = vmatpush2.msra.mxu0 0.0
    %5527 = vmatprep.subr.mxu0 0.0
    %5528 = vmatpush2.msra.mxu0 0.0
    %5529 = vmatprep.subr.mxu0 0.0
    %5530 = vmatpush2.msra.mxu0 0.0
    %5531 = vmatprep.subr.mxu0 0.0
    %5532 = vmatpush2.msra.mxu0 0.0
    %5533 = vmatprep.subr.mxu0 0.0
    %5534 = vmatpush2.msra.mxu0 0.0
    %5535 = vmatprep.subr.mxu0 0.0
    %5536 = vmatpush2.msra.mxu0 0.0
    %5537 = vmatprep.subr.mxu0 0.0
    %5538 = vmatpush2.msra.mxu0 0.0
    %5539 = vmatprep.subr.mxu0 0.0
    %5540 = vmatpush2.msra.mxu0 0.0
    %5541 = vmatprep.subr.mxu0 0.0
    %5542 = vmatpush2.msra.mxu0 0.0
    %5543 = vmatprep.subr.mxu0 0.0
    %5544 = vmatpush2.msra.mxu0 0.0
    %5545 = vmatprep.subr.mxu0 0.0
    %5546 = vmatpush2.msra.mxu0 0.0
    %5547 = vmatprep.subr.mxu0 0.0
    %5548 = vmatpush2.msra.mxu0 0.0
    %5549 = vmatprep.subr.mxu0 0.0
    %5550 = vmatpush2.msra.mxu0 0.0
    %5551 = vmatprep.subr.mxu0 0.0
    %5552 = vmatpush2.msra.mxu0 0.0
    %5553 = vmatprep.subr.mxu0 0.0
    %5554 = vmatpush2.msra.mxu0 0.0
    %5555 = vmatprep.mubr.f32.mxu0 0.0
    %5556 = vmatmul.mubr.f32.gmra.mxu0 %v3962
    %v5557 = vpop.f32.mrf.mxu0
    %v5558 = vadd.f32 %v5413, %v5557
    %v5559 = vpop.f32.mrf.mxu0
    %5560 = vmatprep.mubr.f32.mxu0 0.0
    %5561 = vmatmul.mubr.f32.gmra.mxu0 %v3963
    %v5562 = vpop.f32.mrf.mxu0
    %v5563 = vadd.f32 %v5418, %v5562
    %v5564 = vpop.f32.mrf.mxu0
    %5565 = vmatprep.mubr.f32.mxu0 0.0
    %5566 = vmatmul.mubr.f32.gmra.mxu0 %v3964
    %v5567 = vpop.f32.mrf.mxu0
    %v5568 = vadd.f32 %v5423, %v5567
    %v5569 = vpop.f32.mrf.mxu0
    %5570 = vmatprep.mubr.f32.mxu0 0.0
    %5571 = vmatmul.mubr.f32.gmra.mxu0 %v3965
    %v5572 = vpop.f32.mrf.mxu0
    %v5573 = vadd.f32 %v5428, %v5572
    %v5574 = vpop.f32.mrf.mxu0
    %5575 = vmatprep.mubr.f32.mxu0 0.0
    %5576 = vmatmul.mubr.f32.gmra.mxu0 %v3966
    %v5577 = vpop.f32.mrf.mxu0
    %v5578 = vadd.f32 %v5433, %v5577
    %v5579 = vpop.f32.mrf.mxu0
    %5580 = vmatprep.mubr.f32.mxu0 0.0
    %5581 = vmatmul.mubr.f32.gmra.mxu0 %v3967
    %v5582 = vpop.f32.mrf.mxu0
    %v5583 = vadd.f32 %v5438, %v5582
    %v5584 = vpop.f32.mrf.mxu0
    %5585 = vmatprep.mubr.f32.mxu0 0.0
    %5586 = vmatmul.mubr.f32.gmra.mxu0 %v3968
    %v5587 = vpop.f32.mrf.mxu0
    %v5588 = vadd.f32 %v5443, %v5587
    %v5589 = vpop.f32.mrf.mxu0
    %5590 = vmatprep.mubr.f32.mxu0 0.0
    %5591 = vmatmul.mubr.f32.gmra.mxu0 %v3969
    %v5592 = vpop.f32.mrf.mxu0
    %v5593 = vadd.f32 %v5448, %v5592
    %v5594 = vpop.f32.mrf.mxu0
    %5595 = vmatprep.mubr.f32.mxu0 0.0
    %5596 = vmatmul.mubr.f32.gmra.mxu0 %v3970
    %v5597 = vpop.f32.mrf.mxu0
    %v5598 = vadd.f32 %v5453, %v5597
    %v5599 = vpop.f32.mrf.mxu0
    %5600 = vmatprep.mubr.f32.mxu0 0.0
    %5601 = vmatmul.mubr.f32.gmra.mxu0 %v3971
    %v5602 = vpop.f32.mrf.mxu0
    %v5603 = vadd.f32 %v5458, %v5602
    %v5604 = vpop.f32.mrf.mxu0
    %5605 = vmatprep.mubr.f32.mxu0 0.0
    %5606 = vmatmul.mubr.f32.gmra.mxu0 %v3972
    %v5607 = vpop.f32.mrf.mxu0
    %v5608 = vadd.f32 %v5463, %v5607
    %v5609 = vpop.f32.mrf.mxu0
    %5610 = vmatprep.mubr.f32.mxu0 0.0
    %5611 = vmatmul.mubr.f32.gmra.mxu0 %v3973
    %v5612 = vpop.f32.mrf.mxu0
    %v5613 = vadd.f32 %v5468, %v5612
    %v5614 = vpop.f32.mrf.mxu0
    %5615 = vmatprep.mubr.f32.mxu0 0.0
    %5616 = vmatmul.mubr.f32.gmra.mxu0 %v3974
    %v5617 = vpop.f32.mrf.mxu0
    %v5618 = vadd.f32 %v5473, %v5617
    %v5619 = vpop.f32.mrf.mxu0
    %5620 = vmatprep.mubr.f32.mxu0 0.0
    %5621 = vmatmul.mubr.f32.gmra.mxu0 %v3975
    %v5622 = vpop.f32.mrf.mxu0
    %v5623 = vadd.f32 %v5478, %v5622
    %v5624 = vpop.f32.mrf.mxu0
    %5625 = vmatprep.mubr.f32.mxu0 0.0
    %5626 = vmatmul.mubr.f32.gmra.mxu0 %v3976
    %v5627 = vpop.f32.mrf.mxu0
    %v5628 = vadd.f32 %v5483, %v5627
    %v5629 = vpop.f32.mrf.mxu0
    %5630 = vmatprep.mubr.f32.mxu0 0.0
    %5631 = vmatmul.mubr.f32.gmra.mxu0 %v3977
    %v5632 = vpop.f32.mrf.mxu0
    %v5633 = vadd.f32 %v5488, %v5632
    %v5634 = vpop.f32.mrf.mxu0
    %5635 = vdwg.mxu0
    %v5636 = vld [vmem:[%s19 + $0x2] sm:$0x1]
    %v5637 = vlaneseq
    %v5638 = vshrl.u32 %v5637, 7
    %v5639 = vsub.s32 0, %v5638
    %v5640 = vrot.slane %v5636, %v5639
    %v5641 = vadd.f32 %v5558, %v5640
    %v5642 = vadd.f32 %v5563, %v5640
    %v5643 = vadd.f32 %v5568, %v5640
    %v5644 = vadd.f32 %v5573, %v5640
    %v5645 = vadd.f32 %v5578, %v5640
    %v5646 = vadd.f32 %v5583, %v5640
    %v5647 = vadd.f32 %v5588, %v5640
    %v5648 = vadd.f32 %v5593, %v5640
    %v5649 = vadd.f32 %v5598, %v5640
    %v5650 = vadd.f32 %v5603, %v5640
    %v5651 = vadd.f32 %v5608, %v5640
    %v5652 = vadd.f32 %v5613, %v5640
    %v5653 = vadd.f32 %v5618, %v5640
    %v5654 = vadd.f32 %v5623, %v5640
    %v5655 = vadd.f32 %v5628, %v5640
    %v5656 = vadd.f32 %v5633, %v5640
    %v5657 = vmax.f32 %v5641, 0.0
    %v5658 = vmax.f32 %v5642, 0.0
    %v5659 = vmax.f32 %v5643, 0.0
    %v5660 = vmax.f32 %v5644, 0.0
    %v5661 = vmax.f32 %v5645, 0.0
    %v5662 = vmax.f32 %v5646, 0.0
    %v5663 = vmax.f32 %v5647, 0.0
    %v5664 = vmax.f32 %v5648, 0.0
    %v5665 = vmax.f32 %v5649, 0.0
    %v5666 = vmax.f32 %v5650, 0.0
    %v5667 = vmax.f32 %v5651, 0.0
    %v5668 = vmax.f32 %v5652, 0.0
    %v5669 = vmax.f32 %v5653, 0.0
    %v5670 = vmax.f32 %v5654, 0.0
    %v5671 = vmax.f32 %v5655, 0.0
    %v5672 = vmax.f32 %v5656, 0.0
    %s5673 = scalar_lea.vmem [#allocation23], 256
    %v5674 = vld [vmem:[%s5673] sm:$0xff]
    %v5675 = vld [vmem:[%s5673 + $0x8] sm:$0xff]
    %v5676 = vld [vmem:[%s5673 + $0x10] sm:$0xff]
    %v5677 = vld [vmem:[%s5673 + $0x18] sm:$0xff]
    %v5678 = vld [vmem:[%s5673 + $0x20] sm:$0xff]
    %v5679 = vld [vmem:[%s5673 + $0x28] sm:$0xff]
    %v5680 = vld [vmem:[%s5673 + $0x30] sm:$0xff]
    %v5681 = vld [vmem:[%s5673 + $0x38] sm:$0xff]
    %v5682 = vld [vmem:[%s5673 + $0x40] sm:$0xff]
    %v5683 = vld [vmem:[%s5673 + $0x48] sm:$0xff]
    %v5684 = vld [vmem:[%s5673 + $0x50] sm:$0xff]
    %v5685 = vld [vmem:[%s5673 + $0x58] sm:$0xff]
    %v5686 = vld [vmem:[%s5673 + $0x60] sm:$0xff]
    %v5687 = vld [vmem:[%s5673 + $0x68] sm:$0xff]
    %v5688 = vld [vmem:[%s5673 + $0x70] sm:$0xff]
    %v5689 = vld [vmem:[%s5673 + $0x78] sm:$0xff]
    %v5690 = vld [vmem:[%s21 + $0x2] sm:$0x1]
    %v5691 = vlaneseq
    %v5692 = vshrl.u32 %v5691, 7
    %v5693 = vsub.s32 0, %v5692
    %v5694 = vrot.slane %v5690, %v5693
    %5695 = vmatprep.subr.mxu0 0.0
    %5696 = vmatpush1.msra.mxu0 %v5689
    %5697 = vmatprep.subr.mxu0 0.0
    %5698 = vmatpush1.msra.mxu0 %v5688
    %5699 = vmatprep.subr.mxu0 0.0
    %5700 = vmatpush1.msra.mxu0 %v5687
    %5701 = vmatprep.subr.mxu0 0.0
    %5702 = vmatpush1.msra.mxu0 %v5686
    %5703 = vmatprep.subr.mxu0 0.0
    %5704 = vmatpush1.msra.mxu0 %v5685
    %5705 = vmatprep.subr.mxu0 0.0
    %5706 = vmatpush1.msra.mxu0 %v5684
    %5707 = vmatprep.subr.mxu0 0.0
    %5708 = vmatpush1.msra.mxu0 %v5683
    %5709 = vmatprep.subr.mxu0 0.0
    %5710 = vmatpush1.msra.mxu0 %v5682
    %5711 = vmatprep.subr.mxu0 0.0
    %5712 = vmatpush1.msra.mxu0 %v5681
    %5713 = vmatprep.subr.mxu0 0.0
    %5714 = vmatpush1.msra.mxu0 %v5680
    %5715 = vmatprep.subr.mxu0 0.0
    %5716 = vmatpush1.msra.mxu0 %v5679
    %5717 = vmatprep.subr.mxu0 0.0
    %5718 = vmatpush1.msra.mxu0 %v5678
    %5719 = vmatprep.subr.mxu0 0.0
    %5720 = vmatpush1.msra.mxu0 %v5677
    %5721 = vmatprep.subr.mxu0 0.0
    %5722 = vmatpush1.msra.mxu0 %v5676
    %5723 = vmatprep.subr.mxu0 0.0
    %5724 = vmatpush1.msra.mxu0 %v5675
    %5725 = vmatprep.subr.mxu0 0.0
    %5726 = vmatpush1.msra.mxu0 %v5674
    %5727 = vmatprep.subr.mxu0 0.0
    %5728 = vmatpush2.msra.mxu0 0.0
    %5729 = vmatprep.subr.mxu0 0.0
    %5730 = vmatpush2.msra.mxu0 0.0
    %5731 = vmatprep.subr.mxu0 0.0
    %5732 = vmatpush2.msra.mxu0 0.0
    %5733 = vmatprep.subr.mxu0 0.0
    %5734 = vmatpush2.msra.mxu0 0.0
    %5735 = vmatprep.subr.mxu0 0.0
    %5736 = vmatpush2.msra.mxu0 0.0
    %5737 = vmatprep.subr.mxu0 0.0
    %5738 = vmatpush2.msra.mxu0 0.0
    %5739 = vmatprep.subr.mxu0 0.0
    %5740 = vmatpush2.msra.mxu0 0.0
    %5741 = vmatprep.subr.mxu0 0.0
    %5742 = vmatpush2.msra.mxu0 0.0
    %5743 = vmatprep.subr.mxu0 0.0
    %5744 = vmatpush2.msra.mxu0 0.0
    %5745 = vmatprep.subr.mxu0 0.0
    %5746 = vmatpush2.msra.mxu0 0.0
    %5747 = vmatprep.subr.mxu0 0.0
    %5748 = vmatpush2.msra.mxu0 0.0
    %5749 = vmatprep.subr.mxu0 0.0
    %5750 = vmatpush2.msra.mxu0 0.0
    %5751 = vmatprep.subr.mxu0 0.0
    %5752 = vmatpush2.msra.mxu0 0.0
    %5753 = vmatprep.subr.mxu0 0.0
    %5754 = vmatpush2.msra.mxu0 0.0
    %5755 = vmatprep.subr.mxu0 0.0
    %5756 = vmatpush2.msra.mxu0 0.0
    %5757 = vmatprep.subr.mxu0 0.0
    %5758 = vmatpush2.msra.mxu0 0.0
    %5759 = vmatprep.mubr.f32.mxu0 0.0
    %5760 = vmatmul.mubr.f32.gmra.mxu0 %v5657
    %v5761 = vpop.f32.mrf.mxu0
    %v5762 = vadd.f32 %v5694, %v5761
    %v5763 = vpop.f32.mrf.mxu0
    %5764 = vmatprep.mubr.f32.mxu0 0.0
    %5765 = vmatmul.mubr.f32.gmra.mxu0 %v5658
    %v5766 = vpop.f32.mrf.mxu0
    %v5767 = vadd.f32 %v5694, %v5766
    %v5768 = vpop.f32.mrf.mxu0
    %5769 = vmatprep.mubr.f32.mxu0 0.0
    %5770 = vmatmul.mubr.f32.gmra.mxu0 %v5659
    %v5771 = vpop.f32.mrf.mxu0
    %v5772 = vadd.f32 %v5694, %v5771
    %v5773 = vpop.f32.mrf.mxu0
    %5774 = vmatprep.mubr.f32.mxu0 0.0
    %5775 = vmatmul.mubr.f32.gmra.mxu0 %v5660
    %v5776 = vpop.f32.mrf.mxu0
    %v5777 = vadd.f32 %v5694, %v5776
    %v5778 = vpop.f32.mrf.mxu0
    %5779 = vmatprep.mubr.f32.mxu0 0.0
    %5780 = vmatmul.mubr.f32.gmra.mxu0 %v5661
    %v5781 = vpop.f32.mrf.mxu0
    %v5782 = vadd.f32 %v5694, %v5781
    %v5783 = vpop.f32.mrf.mxu0
    %5784 = vmatprep.mubr.f32.mxu0 0.0
    %5785 = vmatmul.mubr.f32.gmra.mxu0 %v5662
    %v5786 = vpop.f32.mrf.mxu0
    %v5787 = vadd.f32 %v5694, %v5786
    %v5788 = vpop.f32.mrf.mxu0
    %5789 = vmatprep.mubr.f32.mxu0 0.0
    %5790 = vmatmul.mubr.f32.gmra.mxu0 %v5663
    %v5791 = vpop.f32.mrf.mxu0
    %v5792 = vadd.f32 %v5694, %v5791
    %v5793 = vpop.f32.mrf.mxu0
    %5794 = vmatprep.mubr.f32.mxu0 0.0
    %5795 = vmatmul.mubr.f32.gmra.mxu0 %v5664
    %v5796 = vpop.f32.mrf.mxu0
    %v5797 = vadd.f32 %v5694, %v5796
    %v5798 = vpop.f32.mrf.mxu0
    %5799 = vmatprep.mubr.f32.mxu0 0.0
    %5800 = vmatmul.mubr.f32.gmra.mxu0 %v5665
    %v5801 = vpop.f32.mrf.mxu0
    %v5802 = vadd.f32 %v5694, %v5801
    %v5803 = vpop.f32.mrf.mxu0
    %5804 = vmatprep.mubr.f32.mxu0 0.0
    %5805 = vmatmul.mubr.f32.gmra.mxu0 %v5666
    %v5806 = vpop.f32.mrf.mxu0
    %v5807 = vadd.f32 %v5694, %v5806
    %v5808 = vpop.f32.mrf.mxu0
    %5809 = vmatprep.mubr.f32.mxu0 0.0
    %5810 = vmatmul.mubr.f32.gmra.mxu0 %v5667
    %v5811 = vpop.f32.mrf.mxu0
    %v5812 = vadd.f32 %v5694, %v5811
    %v5813 = vpop.f32.mrf.mxu0
    %5814 = vmatprep.mubr.f32.mxu0 0.0
    %5815 = vmatmul.mubr.f32.gmra.mxu0 %v5668
    %v5816 = vpop.f32.mrf.mxu0
    %v5817 = vadd.f32 %v5694, %v5816
    %v5818 = vpop.f32.mrf.mxu0
    %5819 = vmatprep.mubr.f32.mxu0 0.0
    %5820 = vmatmul.mubr.f32.gmra.mxu0 %v5669
    %v5821 = vpop.f32.mrf.mxu0
    %v5822 = vadd.f32 %v5694, %v5821
    %v5823 = vpop.f32.mrf.mxu0
    %5824 = vmatprep.mubr.f32.mxu0 0.0
    %5825 = vmatmul.mubr.f32.gmra.mxu0 %v5670
    %v5826 = vpop.f32.mrf.mxu0
    %v5827 = vadd.f32 %v5694, %v5826
    %v5828 = vpop.f32.mrf.mxu0
    %5829 = vmatprep.mubr.f32.mxu0 0.0
    %5830 = vmatmul.mubr.f32.gmra.mxu0 %v5671
    %v5831 = vpop.f32.mrf.mxu0
    %v5832 = vadd.f32 %v5694, %v5831
    %v5833 = vpop.f32.mrf.mxu0
    %5834 = vmatprep.mubr.f32.mxu0 0.0
    %5835 = vmatmul.mubr.f32.gmra.mxu0 %v5672
    %v5836 = vpop.f32.mrf.mxu0
    %v5837 = vadd.f32 %v5694, %v5836
    %v5838 = vpop.f32.mrf.mxu0
    %5839 = vdwg.mxu0
    %v5840 = vmul.f32 %v5762, %v2184
    %v5841 = vmul.f32 %v5767, %v2189
    %v5842 = vmul.f32 %v5772, %v2194
    %v5843 = vmul.f32 %v5777, %v2199
    %v5844 = vmul.f32 %v5782, %v2204
    %v5845 = vmul.f32 %v5787, %v2209
    %v5846 = vmul.f32 %v5792, %v2214
    %v5847 = vmul.f32 %v5797, %v2219
    %v5848 = vmul.f32 %v5802, %v2224
    %v5849 = vmul.f32 %v5807, %v2229
    %v5850 = vmul.f32 %v5812, %v2234
    %v5851 = vmul.f32 %v5817, %v2239
    %v5852 = vmul.f32 %v5822, %v2244
    %v5853 = vmul.f32 %v5827, %v2249
    %v5854 = vmul.f32 %v5832, %v2254
    %v5855 = vmul.f32 %v5837, %v2259
    %s5856 = scalar_lea.vmem [#allocation14], 384
    %v5857 = vld [vmem:[%s5856] sm:$0xff]
    %v5858 = vld [vmem:[%s5856 + $0x8] sm:$0xff]
    %v5859 = vld [vmem:[%s5856 + $0x10] sm:$0xff]
    %v5860 = vld [vmem:[%s5856 + $0x18] sm:$0xff]
    %v5861 = vld [vmem:[%s5856 + $0x20] sm:$0xff]
    %v5862 = vld [vmem:[%s5856 + $0x28] sm:$0xff]
    %v5863 = vld [vmem:[%s5856 + $0x30] sm:$0xff]
    %v5864 = vld [vmem:[%s5856 + $0x38] sm:$0xff]
    %v5865 = vld [vmem:[%s5856 + $0x40] sm:$0xff]
    %v5866 = vld [vmem:[%s5856 + $0x48] sm:$0xff]
    %v5867 = vld [vmem:[%s5856 + $0x50] sm:$0xff]
    %v5868 = vld [vmem:[%s5856 + $0x58] sm:$0xff]
    %v5869 = vld [vmem:[%s5856 + $0x60] sm:$0xff]
    %v5870 = vld [vmem:[%s5856 + $0x68] sm:$0xff]
    %v5871 = vld [vmem:[%s5856 + $0x70] sm:$0xff]
    %v5872 = vld [vmem:[%s5856 + $0x78] sm:$0xff]
    %5873 = vmatprep.subr.mxu0 0.0
    %5874 = vmatpush1.msra.mxu0 %v5872
    %5875 = vmatprep.subr.mxu0 0.0
    %5876 = vmatpush1.msra.mxu0 %v5871
    %5877 = vmatprep.subr.mxu0 0.0
    %5878 = vmatpush1.msra.mxu0 %v5870
    %5879 = vmatprep.subr.mxu0 0.0
    %5880 = vmatpush1.msra.mxu0 %v5869
    %5881 = vmatprep.subr.mxu0 0.0
    %5882 = vmatpush1.msra.mxu0 %v5868
    %5883 = vmatprep.subr.mxu0 0.0
    %5884 = vmatpush1.msra.mxu0 %v5867
    %5885 = vmatprep.subr.mxu0 0.0
    %5886 = vmatpush1.msra.mxu0 %v5866
    %5887 = vmatprep.subr.mxu0 0.0
    %5888 = vmatpush1.msra.mxu0 %v5865
    %5889 = vmatprep.subr.mxu0 0.0
    %5890 = vmatpush1.msra.mxu0 %v5864
    %5891 = vmatprep.subr.mxu0 0.0
    %5892 = vmatpush1.msra.mxu0 %v5863
    %5893 = vmatprep.subr.mxu0 0.0
    %5894 = vmatpush1.msra.mxu0 %v5862
    %5895 = vmatprep.subr.mxu0 0.0
    %5896 = vmatpush1.msra.mxu0 %v5861
    %5897 = vmatprep.subr.mxu0 0.0
    %5898 = vmatpush1.msra.mxu0 %v5860
    %5899 = vmatprep.subr.mxu0 0.0
    %5900 = vmatpush1.msra.mxu0 %v5859
    %5901 = vmatprep.subr.mxu0 0.0
    %5902 = vmatpush1.msra.mxu0 %v5858
    %5903 = vmatprep.subr.mxu0 0.0
    %5904 = vmatpush1.msra.mxu0 %v5857
    %5905 = vmatprep.subr.mxu0 0.0
    %5906 = vmatpush2.msra.mxu0 0.0
    %5907 = vmatprep.subr.mxu0 0.0
    %5908 = vmatpush2.msra.mxu0 0.0
    %5909 = vmatprep.subr.mxu0 0.0
    %5910 = vmatpush2.msra.mxu0 0.0
    %5911 = vmatprep.subr.mxu0 0.0
    %5912 = vmatpush2.msra.mxu0 0.0
    %5913 = vmatprep.subr.mxu0 0.0
    %5914 = vmatpush2.msra.mxu0 0.0
    %5915 = vmatprep.subr.mxu0 0.0
    %5916 = vmatpush2.msra.mxu0 0.0
    %5917 = vmatprep.subr.mxu0 0.0
    %5918 = vmatpush2.msra.mxu0 0.0
    %5919 = vmatprep.subr.mxu0 0.0
    %5920 = vmatpush2.msra.mxu0 0.0
    %5921 = vmatprep.subr.mxu0 0.0
    %5922 = vmatpush2.msra.mxu0 0.0
    %5923 = vmatprep.subr.mxu0 0.0
    %5924 = vmatpush2.msra.mxu0 0.0
    %5925 = vmatprep.subr.mxu0 0.0
    %5926 = vmatpush2.msra.mxu0 0.0
    %5927 = vmatprep.subr.mxu0 0.0
    %5928 = vmatpush2.msra.mxu0 0.0
    %5929 = vmatprep.subr.mxu0 0.0
    %5930 = vmatpush2.msra.mxu0 0.0
    %5931 = vmatprep.subr.mxu0 0.0
    %5932 = vmatpush2.msra.mxu0 0.0
    %5933 = vmatprep.subr.mxu0 0.0
    %5934 = vmatpush2.msra.mxu0 0.0
    %5935 = vmatprep.subr.mxu0 0.0
    %5936 = vmatpush2.msra.mxu0 0.0
    %5937 = vmatprep.mubr.f32.mxu0 0.0
    %5938 = vmatmul.mubr.f32.gmra.mxu0 %v5840
    %v5939 = vpop.f32.mrf.mxu0
    %v5940 = vadd.f32 0.0, %v5939
    %v5941 = vpop.f32.mrf.mxu0
    %5942 = vmatprep.mubr.f32.mxu0 0.0
    %5943 = vmatmul.mubr.f32.gmra.mxu0 %v5841
    %v5944 = vpop.f32.mrf.mxu0
    %v5945 = vadd.f32 0.0, %v5944
    %v5946 = vpop.f32.mrf.mxu0
    %5947 = vmatprep.mubr.f32.mxu0 0.0
    %5948 = vmatmul.mubr.f32.gmra.mxu0 %v5842
    %v5949 = vpop.f32.mrf.mxu0
    %v5950 = vadd.f32 0.0, %v5949
    %v5951 = vpop.f32.mrf.mxu0
    %5952 = vmatprep.mubr.f32.mxu0 0.0
    %5953 = vmatmul.mubr.f32.gmra.mxu0 %v5843
    %v5954 = vpop.f32.mrf.mxu0
    %v5955 = vadd.f32 0.0, %v5954
    %v5956 = vpop.f32.mrf.mxu0
    %5957 = vmatprep.mubr.f32.mxu0 0.0
    %5958 = vmatmul.mubr.f32.gmra.mxu0 %v5844
    %v5959 = vpop.f32.mrf.mxu0
    %v5960 = vadd.f32 0.0, %v5959
    %v5961 = vpop.f32.mrf.mxu0
    %5962 = vmatprep.mubr.f32.mxu0 0.0
    %5963 = vmatmul.mubr.f32.gmra.mxu0 %v5845
    %v5964 = vpop.f32.mrf.mxu0
    %v5965 = vadd.f32 0.0, %v5964
    %v5966 = vpop.f32.mrf.mxu0
    %5967 = vmatprep.mubr.f32.mxu0 0.0
    %5968 = vmatmul.mubr.f32.gmra.mxu0 %v5846
    %v5969 = vpop.f32.mrf.mxu0
    %v5970 = vadd.f32 0.0, %v5969
    %v5971 = vpop.f32.mrf.mxu0
    %5972 = vmatprep.mubr.f32.mxu0 0.0
    %5973 = vmatmul.mubr.f32.gmra.mxu0 %v5847
    %v5974 = vpop.f32.mrf.mxu0
    %v5975 = vadd.f32 0.0, %v5974
    %v5976 = vpop.f32.mrf.mxu0
    %5977 = vmatprep.mubr.f32.mxu0 0.0
    %5978 = vmatmul.mubr.f32.gmra.mxu0 %v5848
    %v5979 = vpop.f32.mrf.mxu0
    %v5980 = vadd.f32 0.0, %v5979
    %v5981 = vpop.f32.mrf.mxu0
    %5982 = vmatprep.mubr.f32.mxu0 0.0
    %5983 = vmatmul.mubr.f32.gmra.mxu0 %v5849
    %v5984 = vpop.f32.mrf.mxu0
    %v5985 = vadd.f32 0.0, %v5984
    %v5986 = vpop.f32.mrf.mxu0
    %5987 = vmatprep.mubr.f32.mxu0 0.0
    %5988 = vmatmul.mubr.f32.gmra.mxu0 %v5850
    %v5989 = vpop.f32.mrf.mxu0
    %v5990 = vadd.f32 0.0, %v5989
    %v5991 = vpop.f32.mrf.mxu0
    %5992 = vmatprep.mubr.f32.mxu0 0.0
    %5993 = vmatmul.mubr.f32.gmra.mxu0 %v5851
    %v5994 = vpop.f32.mrf.mxu0
    %v5995 = vadd.f32 0.0, %v5994
    %v5996 = vpop.f32.mrf.mxu0
    %5997 = vmatprep.mubr.f32.mxu0 0.0
    %5998 = vmatmul.mubr.f32.gmra.mxu0 %v5852
    %v5999 = vpop.f32.mrf.mxu0
    %v6000 = vadd.f32 0.0, %v5999
    %v6001 = vpop.f32.mrf.mxu0
    %6002 = vmatprep.mubr.f32.mxu0 0.0
    %6003 = vmatmul.mubr.f32.gmra.mxu0 %v5853
    %v6004 = vpop.f32.mrf.mxu0
    %v6005 = vadd.f32 0.0, %v6004
    %v6006 = vpop.f32.mrf.mxu0
    %6007 = vmatprep.mubr.f32.mxu0 0.0
    %6008 = vmatmul.mubr.f32.gmra.mxu0 %v5854
    %v6009 = vpop.f32.mrf.mxu0
    %v6010 = vadd.f32 0.0, %v6009
    %v6011 = vpop.f32.mrf.mxu0
    %6012 = vmatprep.mubr.f32.mxu0 0.0
    %6013 = vmatmul.mubr.f32.gmra.mxu0 %v5855
    %v6014 = vpop.f32.mrf.mxu0
    %v6015 = vadd.f32 0.0, %v6014
    %v6016 = vpop.f32.mrf.mxu0
    %6017 = vdwg.mxu0
    %s6018 = scalar_lea.vmem [#allocation16], 384
    %v6019 = vld [vmem:[%s6018] sm:$0xff]
    %v6020 = vld [vmem:[%s6018 + $0x8] sm:$0xff]
    %v6021 = vld [vmem:[%s6018 + $0x10] sm:$0xff]
    %v6022 = vld [vmem:[%s6018 + $0x18] sm:$0xff]
    %v6023 = vld [vmem:[%s6018 + $0x20] sm:$0xff]
    %v6024 = vld [vmem:[%s6018 + $0x28] sm:$0xff]
    %v6025 = vld [vmem:[%s6018 + $0x30] sm:$0xff]
    %v6026 = vld [vmem:[%s6018 + $0x38] sm:$0xff]
    %v6027 = vld [vmem:[%s6018 + $0x40] sm:$0xff]
    %v6028 = vld [vmem:[%s6018 + $0x48] sm:$0xff]
    %v6029 = vld [vmem:[%s6018 + $0x50] sm:$0xff]
    %v6030 = vld [vmem:[%s6018 + $0x58] sm:$0xff]
    %v6031 = vld [vmem:[%s6018 + $0x60] sm:$0xff]
    %v6032 = vld [vmem:[%s6018 + $0x68] sm:$0xff]
    %v6033 = vld [vmem:[%s6018 + $0x70] sm:$0xff]
    %v6034 = vld [vmem:[%s6018 + $0x78] sm:$0xff]
    %6035 = vmatprep.subr.mxu0 0.0
    %6036 = vmatpush1.msra.mxu0 %v6034
    %6037 = vmatprep.subr.mxu0 0.0
    %6038 = vmatpush1.msra.mxu0 %v6033
    %6039 = vmatprep.subr.mxu0 0.0
    %6040 = vmatpush1.msra.mxu0 %v6032
    %6041 = vmatprep.subr.mxu0 0.0
    %6042 = vmatpush1.msra.mxu0 %v6031
    %6043 = vmatprep.subr.mxu0 0.0
    %6044 = vmatpush1.msra.mxu0 %v6030
    %6045 = vmatprep.subr.mxu0 0.0
    %6046 = vmatpush1.msra.mxu0 %v6029
    %6047 = vmatprep.subr.mxu0 0.0
    %6048 = vmatpush1.msra.mxu0 %v6028
    %6049 = vmatprep.subr.mxu0 0.0
    %6050 = vmatpush1.msra.mxu0 %v6027
    %6051 = vmatprep.subr.mxu0 0.0
    %6052 = vmatpush1.msra.mxu0 %v6026
    %6053 = vmatprep.subr.mxu0 0.0
    %6054 = vmatpush1.msra.mxu0 %v6025
    %6055 = vmatprep.subr.mxu0 0.0
    %6056 = vmatpush1.msra.mxu0 %v6024
    %6057 = vmatprep.subr.mxu0 0.0
    %6058 = vmatpush1.msra.mxu0 %v6023
    %6059 = vmatprep.subr.mxu0 0.0
    %6060 = vmatpush1.msra.mxu0 %v6022
    %6061 = vmatprep.subr.mxu0 0.0
    %6062 = vmatpush1.msra.mxu0 %v6021
    %6063 = vmatprep.subr.mxu0 0.0
    %6064 = vmatpush1.msra.mxu0 %v6020
    %6065 = vmatprep.subr.mxu0 0.0
    %6066 = vmatpush1.msra.mxu0 %v6019
    %6067 = vmatprep.subr.mxu0 0.0
    %6068 = vmatpush2.msra.mxu0 0.0
    %6069 = vmatprep.subr.mxu0 0.0
    %6070 = vmatpush2.msra.mxu0 0.0
    %6071 = vmatprep.subr.mxu0 0.0
    %6072 = vmatpush2.msra.mxu0 0.0
    %6073 = vmatprep.subr.mxu0 0.0
    %6074 = vmatpush2.msra.mxu0 0.0
    %6075 = vmatprep.subr.mxu0 0.0
    %6076 = vmatpush2.msra.mxu0 0.0
    %6077 = vmatprep.subr.mxu0 0.0
    %6078 = vmatpush2.msra.mxu0 0.0
    %6079 = vmatprep.subr.mxu0 0.0
    %6080 = vmatpush2.msra.mxu0 0.0
    %6081 = vmatprep.subr.mxu0 0.0
    %6082 = vmatpush2.msra.mxu0 0.0
    %6083 = vmatprep.subr.mxu0 0.0
    %6084 = vmatpush2.msra.mxu0 0.0
    %6085 = vmatprep.subr.mxu0 0.0
    %6086 = vmatpush2.msra.mxu0 0.0
    %6087 = vmatprep.subr.mxu0 0.0
    %6088 = vmatpush2.msra.mxu0 0.0
    %6089 = vmatprep.subr.mxu0 0.0
    %6090 = vmatpush2.msra.mxu0 0.0
    %6091 = vmatprep.subr.mxu0 0.0
    %6092 = vmatpush2.msra.mxu0 0.0
    %6093 = vmatprep.subr.mxu0 0.0
    %6094 = vmatpush2.msra.mxu0 0.0
    %6095 = vmatprep.subr.mxu0 0.0
    %6096 = vmatpush2.msra.mxu0 0.0
    %6097 = vmatprep.subr.mxu0 0.0
    %6098 = vmatpush2.msra.mxu0 0.0
    %6099 = vmatprep.mubr.f32.mxu0 0.0
    %6100 = vmatmul.mubr.f32.gmra.mxu0 %v5840
    %v6101 = vpop.f32.mrf.mxu0
    %v6102 = vadd.f32 0.0, %v6101
    %v6103 = vpop.f32.mrf.mxu0
    %6104 = vmatprep.mubr.f32.mxu0 0.0
    %6105 = vmatmul.mubr.f32.gmra.mxu0 %v5841
    %v6106 = vpop.f32.mrf.mxu0
    %v6107 = vadd.f32 0.0, %v6106
    %v6108 = vpop.f32.mrf.mxu0
    %6109 = vmatprep.mubr.f32.mxu0 0.0
    %6110 = vmatmul.mubr.f32.gmra.mxu0 %v5842
    %v6111 = vpop.f32.mrf.mxu0
    %v6112 = vadd.f32 0.0, %v6111
    %v6113 = vpop.f32.mrf.mxu0
    %6114 = vmatprep.mubr.f32.mxu0 0.0
    %6115 = vmatmul.mubr.f32.gmra.mxu0 %v5843
    %v6116 = vpop.f32.mrf.mxu0
    %v6117 = vadd.f32 0.0, %v6116
    %v6118 = vpop.f32.mrf.mxu0
    %6119 = vmatprep.mubr.f32.mxu0 0.0
    %6120 = vmatmul.mubr.f32.gmra.mxu0 %v5844
    %v6121 = vpop.f32.mrf.mxu0
    %v6122 = vadd.f32 0.0, %v6121
    %v6123 = vpop.f32.mrf.mxu0
    %6124 = vmatprep.mubr.f32.mxu0 0.0
    %6125 = vmatmul.mubr.f32.gmra.mxu0 %v5845
    %v6126 = vpop.f32.mrf.mxu0
    %v6127 = vadd.f32 0.0, %v6126
    %v6128 = vpop.f32.mrf.mxu0
    %6129 = vmatprep.mubr.f32.mxu0 0.0
    %6130 = vmatmul.mubr.f32.gmra.mxu0 %v5846
    %v6131 = vpop.f32.mrf.mxu0
    %v6132 = vadd.f32 0.0, %v6131
    %v6133 = vpop.f32.mrf.mxu0
    %6134 = vmatprep.mubr.f32.mxu0 0.0
    %6135 = vmatmul.mubr.f32.gmra.mxu0 %v5847
    %v6136 = vpop.f32.mrf.mxu0
    %v6137 = vadd.f32 0.0, %v6136
    %v6138 = vpop.f32.mrf.mxu0
    %6139 = vmatprep.mubr.f32.mxu0 0.0
    %6140 = vmatmul.mubr.f32.gmra.mxu0 %v5848
    %v6141 = vpop.f32.mrf.mxu0
    %v6142 = vadd.f32 0.0, %v6141
    %v6143 = vpop.f32.mrf.mxu0
    %6144 = vmatprep.mubr.f32.mxu0 0.0
    %6145 = vmatmul.mubr.f32.gmra.mxu0 %v5849
    %v6146 = vpop.f32.mrf.mxu0
    %v6147 = vadd.f32 0.0, %v6146
    %v6148 = vpop.f32.mrf.mxu0
    %6149 = vmatprep.mubr.f32.mxu0 0.0
    %6150 = vmatmul.mubr.f32.gmra.mxu0 %v5850
    %v6151 = vpop.f32.mrf.mxu0
    %v6152 = vadd.f32 0.0, %v6151
    %v6153 = vpop.f32.mrf.mxu0
    %6154 = vmatprep.mubr.f32.mxu0 0.0
    %6155 = vmatmul.mubr.f32.gmra.mxu0 %v5851
    %v6156 = vpop.f32.mrf.mxu0
    %v6157 = vadd.f32 0.0, %v6156
    %v6158 = vpop.f32.mrf.mxu0
    %6159 = vmatprep.mubr.f32.mxu0 0.0
    %6160 = vmatmul.mubr.f32.gmra.mxu0 %v5852
    %v6161 = vpop.f32.mrf.mxu0
    %v6162 = vadd.f32 0.0, %v6161
    %v6163 = vpop.f32.mrf.mxu0
    %6164 = vmatprep.mubr.f32.mxu0 0.0
    %6165 = vmatmul.mubr.f32.gmra.mxu0 %v5853
    %v6166 = vpop.f32.mrf.mxu0
    %v6167 = vadd.f32 0.0, %v6166
    %v6168 = vpop.f32.mrf.mxu0
    %6169 = vmatprep.mubr.f32.mxu0 0.0
    %6170 = vmatmul.mubr.f32.gmra.mxu0 %v5854
    %v6171 = vpop.f32.mrf.mxu0
    %v6172 = vadd.f32 0.0, %v6171
    %v6173 = vpop.f32.mrf.mxu0
    %6174 = vmatprep.mubr.f32.mxu0 0.0
    %6175 = vmatmul.mubr.f32.gmra.mxu0 %v5855
    %v6176 = vpop.f32.mrf.mxu0
    %v6177 = vadd.f32 0.0, %v6176
    %v6178 = vpop.f32.mrf.mxu0
    %6179 = vdwg.mxu0
    %6180 = vmatprep.subr.mxu0 0.0
    %6181 = vmatpush1.msra.mxu0 %v6177
    %6182 = vmatprep.subr.mxu0 0.0
    %6183 = vmatpush1.msra.mxu0 %v6172
    %6184 = vmatprep.subr.mxu0 0.0
    %6185 = vmatpush1.msra.mxu0 %v6167
    %6186 = vmatprep.subr.mxu0 0.0
    %6187 = vmatpush1.msra.mxu0 %v6162
    %6188 = vmatprep.subr.mxu0 0.0
    %6189 = vmatpush1.msra.mxu0 %v6157
    %6190 = vmatprep.subr.mxu0 0.0
    %6191 = vmatpush1.msra.mxu0 %v6152
    %6192 = vmatprep.subr.mxu0 0.0
    %6193 = vmatpush1.msra.mxu0 %v6147
    %6194 = vmatprep.subr.mxu0 0.0
    %6195 = vmatpush1.msra.mxu0 %v6142
    %6196 = vmatprep.subr.mxu0 0.0
    %6197 = vmatpush1.msra.mxu0 %v6137
    %6198 = vmatprep.subr.mxu0 0.0
    %6199 = vmatpush1.msra.mxu0 %v6132
    %6200 = vmatprep.subr.mxu0 0.0
    %6201 = vmatpush1.msra.mxu0 %v6127
    %6202 = vmatprep.subr.mxu0 0.0
    %6203 = vmatpush1.msra.mxu0 %v6122
    %6204 = vmatprep.subr.mxu0 0.0
    %6205 = vmatpush1.msra.mxu0 %v6117
    %6206 = vmatprep.subr.mxu0 0.0
    %6207 = vmatpush1.msra.mxu0 %v6112
    %6208 = vmatprep.subr.mxu0 0.0
    %6209 = vmatpush1.msra.mxu0 %v6107
    %6210 = vmatprep.subr.mxu0 0.0
    %6211 = vmatpush1.msra.mxu0 %v6102
    %6212 = vmatprep.subr.mxu0 0.0
    %6213 = vmatpush2.msra.mxu0 0.0
    %6214 = vmatprep.subr.mxu0 0.0
    %6215 = vmatpush2.msra.mxu0 0.0
    %6216 = vmatprep.subr.mxu0 0.0
    %6217 = vmatpush2.msra.mxu0 0.0
    %6218 = vmatprep.subr.mxu0 0.0
    %6219 = vmatpush2.msra.mxu0 0.0
    %6220 = vmatprep.subr.mxu0 0.0
    %6221 = vmatpush2.msra.mxu0 0.0
    %6222 = vmatprep.subr.mxu0 0.0
    %6223 = vmatpush2.msra.mxu0 0.0
    %6224 = vmatprep.subr.mxu0 0.0
    %6225 = vmatpush2.msra.mxu0 0.0
    %6226 = vmatprep.subr.mxu0 0.0
    %6227 = vmatpush2.msra.mxu0 0.0
    %6228 = vmatprep.subr.mxu0 0.0
    %6229 = vmatpush2.msra.mxu0 0.0
    %6230 = vmatprep.subr.mxu0 0.0
    %6231 = vmatpush2.msra.mxu0 0.0
    %6232 = vmatprep.subr.mxu0 0.0
    %6233 = vmatpush2.msra.mxu0 0.0
    %6234 = vmatprep.subr.mxu0 0.0
    %6235 = vmatpush2.msra.mxu0 0.0
    %6236 = vmatprep.subr.mxu0 0.0
    %6237 = vmatpush2.msra.mxu0 0.0
    %6238 = vmatprep.subr.mxu0 0.0
    %6239 = vmatpush2.msra.mxu0 0.0
    %6240 = vmatprep.subr.mxu0 0.0
    %6241 = vmatpush2.msra.mxu0 0.0
    %6242 = vmatprep.subr.mxu0 0.0
    %6243 = vmatpush2.msra.mxu0 0.0
    %6244 = vmatprep.mubr.f32.mxu0 0.0
    %6245 = vmatmul.mubr.f32.gmra.mxu0 %v311
    %v6246 = vpop.f32.mrf.mxu0
    %v6247 = vadd.f32 0.0, %v6246
    %v6248 = vpop.f32.mrf.mxu0
    %6249 = vmatprep.mubr.f32.mxu0 0.0
    %6250 = vmatmul.mubr.f32.gmra.mxu0 %v312
    %v6251 = vpop.f32.mrf.mxu0
    %v6252 = vadd.f32 0.0, %v6251
    %v6253 = vpop.f32.mrf.mxu0
    %6254 = vmatprep.mubr.f32.mxu0 0.0
    %6255 = vmatmul.mubr.f32.gmra.mxu0 %v313
    %v6256 = vpop.f32.mrf.mxu0
    %v6257 = vadd.f32 0.0, %v6256
    %v6258 = vpop.f32.mrf.mxu0
    %6259 = vmatprep.mubr.f32.mxu0 0.0
    %6260 = vmatmul.mubr.f32.gmra.mxu0 %v314
    %v6261 = vpop.f32.mrf.mxu0
    %v6262 = vadd.f32 0.0, %v6261
    %v6263 = vpop.f32.mrf.mxu0
    %6264 = vmatprep.mubr.f32.mxu0 0.0
    %6265 = vmatmul.mubr.f32.gmra.mxu0 %v315
    %v6266 = vpop.f32.mrf.mxu0
    %v6267 = vadd.f32 0.0, %v6266
    %v6268 = vpop.f32.mrf.mxu0
    %6269 = vmatprep.mubr.f32.mxu0 0.0
    %6270 = vmatmul.mubr.f32.gmra.mxu0 %v316
    %v6271 = vpop.f32.mrf.mxu0
    %v6272 = vadd.f32 0.0, %v6271
    %v6273 = vpop.f32.mrf.mxu0
    %6274 = vmatprep.mubr.f32.mxu0 0.0
    %6275 = vmatmul.mubr.f32.gmra.mxu0 %v317
    %v6276 = vpop.f32.mrf.mxu0
    %v6277 = vadd.f32 0.0, %v6276
    %v6278 = vpop.f32.mrf.mxu0
    %6279 = vmatprep.mubr.f32.mxu0 0.0
    %6280 = vmatmul.mubr.f32.gmra.mxu0 %v318
    %v6281 = vpop.f32.mrf.mxu0
    %v6282 = vadd.f32 0.0, %v6281
    %v6283 = vpop.f32.mrf.mxu0
    %6284 = vmatprep.mubr.f32.mxu0 0.0
    %6285 = vmatmul.mubr.f32.gmra.mxu0 %v319
    %v6286 = vpop.f32.mrf.mxu0
    %v6287 = vadd.f32 0.0, %v6286
    %v6288 = vpop.f32.mrf.mxu0
    %6289 = vmatprep.mubr.f32.mxu0 0.0
    %6290 = vmatmul.mubr.f32.gmra.mxu0 %v320
    %v6291 = vpop.f32.mrf.mxu0
    %v6292 = vadd.f32 0.0, %v6291
    %v6293 = vpop.f32.mrf.mxu0
    %6294 = vmatprep.mubr.f32.mxu0 0.0
    %6295 = vmatmul.mubr.f32.gmra.mxu0 %v321
    %v6296 = vpop.f32.mrf.mxu0
    %v6297 = vadd.f32 0.0, %v6296
    %v6298 = vpop.f32.mrf.mxu0
    %6299 = vmatprep.mubr.f32.mxu0 0.0
    %6300 = vmatmul.mubr.f32.gmra.mxu0 %v322
    %v6301 = vpop.f32.mrf.mxu0
    %v6302 = vadd.f32 0.0, %v6301
    %v6303 = vpop.f32.mrf.mxu0
    %6304 = vmatprep.mubr.f32.mxu0 0.0
    %6305 = vmatmul.mubr.f32.gmra.mxu0 %v323
    %v6306 = vpop.f32.mrf.mxu0
    %v6307 = vadd.f32 0.0, %v6306
    %v6308 = vpop.f32.mrf.mxu0
    %6309 = vmatprep.mubr.f32.mxu0 0.0
    %6310 = vmatmul.mubr.f32.gmra.mxu0 %v324
    %v6311 = vpop.f32.mrf.mxu0
    %v6312 = vadd.f32 0.0, %v6311
    %v6313 = vpop.f32.mrf.mxu0
    %6314 = vmatprep.mubr.f32.mxu0 0.0
    %6315 = vmatmul.mubr.f32.gmra.mxu0 %v325
    %v6316 = vpop.f32.mrf.mxu0
    %v6317 = vadd.f32 0.0, %v6316
    %v6318 = vpop.f32.mrf.mxu0
    %6319 = vmatprep.mubr.f32.mxu0 0.0
    %6320 = vmatmul.mubr.f32.gmra.mxu0 %v326
    %v6321 = vpop.f32.mrf.mxu0
    %v6322 = vadd.f32 0.0, %v6321
    %v6323 = vpop.f32.mrf.mxu0
    %6324 = vdwg.mxu0
    %6325 = vmatprep.subr.mxu0 0.0
    %6326 = vmatpush1.msra.mxu0 %v6015
    %6327 = vmatprep.subr.mxu0 0.0
    %6328 = vmatpush1.msra.mxu0 %v6010
    %6329 = vmatprep.subr.mxu0 0.0
    %6330 = vmatpush1.msra.mxu0 %v6005
    %6331 = vmatprep.subr.mxu0 0.0
    %6332 = vmatpush1.msra.mxu0 %v6000
    %6333 = vmatprep.subr.mxu0 0.0
    %6334 = vmatpush1.msra.mxu0 %v5995
    %6335 = vmatprep.subr.mxu0 0.0
    %6336 = vmatpush1.msra.mxu0 %v5990
    %6337 = vmatprep.subr.mxu0 0.0
    %6338 = vmatpush1.msra.mxu0 %v5985
    %6339 = vmatprep.subr.mxu0 0.0
    %6340 = vmatpush1.msra.mxu0 %v5980
    %6341 = vmatprep.subr.mxu0 0.0
    %6342 = vmatpush1.msra.mxu0 %v5975
    %6343 = vmatprep.subr.mxu0 0.0
    %6344 = vmatpush1.msra.mxu0 %v5970
    %6345 = vmatprep.subr.mxu0 0.0
    %6346 = vmatpush1.msra.mxu0 %v5965
    %6347 = vmatprep.subr.mxu0 0.0
    %6348 = vmatpush1.msra.mxu0 %v5960
    %6349 = vmatprep.subr.mxu0 0.0
    %6350 = vmatpush1.msra.mxu0 %v5955
    %6351 = vmatprep.subr.mxu0 0.0
    %6352 = vmatpush1.msra.mxu0 %v5950
    %6353 = vmatprep.subr.mxu0 0.0
    %6354 = vmatpush1.msra.mxu0 %v5945
    %6355 = vmatprep.subr.mxu0 0.0
    %6356 = vmatpush1.msra.mxu0 %v5940
    %6357 = vmatprep.subr.mxu0 0.0
    %6358 = vmatpush2.msra.mxu0 0.0
    %6359 = vmatprep.subr.mxu0 0.0
    %6360 = vmatpush2.msra.mxu0 0.0
    %6361 = vmatprep.subr.mxu0 0.0
    %6362 = vmatpush2.msra.mxu0 0.0
    %6363 = vmatprep.subr.mxu0 0.0
    %6364 = vmatpush2.msra.mxu0 0.0
    %6365 = vmatprep.subr.mxu0 0.0
    %6366 = vmatpush2.msra.mxu0 0.0
    %6367 = vmatprep.subr.mxu0 0.0
    %6368 = vmatpush2.msra.mxu0 0.0
    %6369 = vmatprep.subr.mxu0 0.0
    %6370 = vmatpush2.msra.mxu0 0.0
    %6371 = vmatprep.subr.mxu0 0.0
    %6372 = vmatpush2.msra.mxu0 0.0
    %6373 = vmatprep.subr.mxu0 0.0
    %6374 = vmatpush2.msra.mxu0 0.0
    %6375 = vmatprep.subr.mxu0 0.0
    %6376 = vmatpush2.msra.mxu0 0.0
    %6377 = vmatprep.subr.mxu0 0.0
    %6378 = vmatpush2.msra.mxu0 0.0
    %6379 = vmatprep.subr.mxu0 0.0
    %6380 = vmatpush2.msra.mxu0 0.0
    %6381 = vmatprep.subr.mxu0 0.0
    %6382 = vmatpush2.msra.mxu0 0.0
    %6383 = vmatprep.subr.mxu0 0.0
    %6384 = vmatpush2.msra.mxu0 0.0
    %6385 = vmatprep.subr.mxu0 0.0
    %6386 = vmatpush2.msra.mxu0 0.0
    %6387 = vmatprep.subr.mxu0 0.0
    %6388 = vmatpush2.msra.mxu0 0.0
    %6389 = vmatprep.mubr.f32.mxu0 0.0
    %6390 = vmatmul.mubr.f32.gmra.mxu0 %v343
    %v6391 = vpop.f32.mrf.mxu0
    %v6392 = vadd.f32 %v6247, %v6391
    %v6393 = vpop.f32.mrf.mxu0
    %6394 = vmatprep.mubr.f32.mxu0 0.0
    %6395 = vmatmul.mubr.f32.gmra.mxu0 %v344
    %v6396 = vpop.f32.mrf.mxu0
    %v6397 = vadd.f32 %v6252, %v6396
    %v6398 = vpop.f32.mrf.mxu0
    %6399 = vmatprep.mubr.f32.mxu0 0.0
    %6400 = vmatmul.mubr.f32.gmra.mxu0 %v345
    %v6401 = vpop.f32.mrf.mxu0
    %v6402 = vadd.f32 %v6257, %v6401
    %v6403 = vpop.f32.mrf.mxu0
    %6404 = vmatprep.mubr.f32.mxu0 0.0
    %6405 = vmatmul.mubr.f32.gmra.mxu0 %v346
    %v6406 = vpop.f32.mrf.mxu0
    %v6407 = vadd.f32 %v6262, %v6406
    %v6408 = vpop.f32.mrf.mxu0
    %6409 = vmatprep.mubr.f32.mxu0 0.0
    %6410 = vmatmul.mubr.f32.gmra.mxu0 %v347
    %v6411 = vpop.f32.mrf.mxu0
    %v6412 = vadd.f32 %v6267, %v6411
    %v6413 = vpop.f32.mrf.mxu0
    %6414 = vmatprep.mubr.f32.mxu0 0.0
    %6415 = vmatmul.mubr.f32.gmra.mxu0 %v348
    %v6416 = vpop.f32.mrf.mxu0
    %v6417 = vadd.f32 %v6272, %v6416
    %v6418 = vpop.f32.mrf.mxu0
    %6419 = vmatprep.mubr.f32.mxu0 0.0
    %6420 = vmatmul.mubr.f32.gmra.mxu0 %v349
    %v6421 = vpop.f32.mrf.mxu0
    %v6422 = vadd.f32 %v6277, %v6421
    %v6423 = vpop.f32.mrf.mxu0
    %6424 = vmatprep.mubr.f32.mxu0 0.0
    %6425 = vmatmul.mubr.f32.gmra.mxu0 %v350
    %v6426 = vpop.f32.mrf.mxu0
    %v6427 = vadd.f32 %v6282, %v6426
    %v6428 = vpop.f32.mrf.mxu0
    %6429 = vmatprep.mubr.f32.mxu0 0.0
    %6430 = vmatmul.mubr.f32.gmra.mxu0 %v351
    %v6431 = vpop.f32.mrf.mxu0
    %v6432 = vadd.f32 %v6287, %v6431
    %v6433 = vpop.f32.mrf.mxu0
    %6434 = vmatprep.mubr.f32.mxu0 0.0
    %6435 = vmatmul.mubr.f32.gmra.mxu0 %v352
    %v6436 = vpop.f32.mrf.mxu0
    %v6437 = vadd.f32 %v6292, %v6436
    %v6438 = vpop.f32.mrf.mxu0
    %6439 = vmatprep.mubr.f32.mxu0 0.0
    %6440 = vmatmul.mubr.f32.gmra.mxu0 %v353
    %v6441 = vpop.f32.mrf.mxu0
    %v6442 = vadd.f32 %v6297, %v6441
    %v6443 = vpop.f32.mrf.mxu0
    %6444 = vmatprep.mubr.f32.mxu0 0.0
    %6445 = vmatmul.mubr.f32.gmra.mxu0 %v354
    %v6446 = vpop.f32.mrf.mxu0
    %v6447 = vadd.f32 %v6302, %v6446
    %v6448 = vpop.f32.mrf.mxu0
    %6449 = vmatprep.mubr.f32.mxu0 0.0
    %6450 = vmatmul.mubr.f32.gmra.mxu0 %v355
    %v6451 = vpop.f32.mrf.mxu0
    %v6452 = vadd.f32 %v6307, %v6451
    %v6453 = vpop.f32.mrf.mxu0
    %6454 = vmatprep.mubr.f32.mxu0 0.0
    %6455 = vmatmul.mubr.f32.gmra.mxu0 %v356
    %v6456 = vpop.f32.mrf.mxu0
    %v6457 = vadd.f32 %v6312, %v6456
    %v6458 = vpop.f32.mrf.mxu0
    %6459 = vmatprep.mubr.f32.mxu0 0.0
    %6460 = vmatmul.mubr.f32.gmra.mxu0 %v357
    %v6461 = vpop.f32.mrf.mxu0
    %v6462 = vadd.f32 %v6317, %v6461
    %v6463 = vpop.f32.mrf.mxu0
    %6464 = vmatprep.mubr.f32.mxu0 0.0
    %6465 = vmatmul.mubr.f32.gmra.mxu0 %v358
    %v6466 = vpop.f32.mrf.mxu0
    %v6467 = vadd.f32 %v6322, %v6466
    %v6468 = vpop.f32.mrf.mxu0
    %6469 = vdwg.mxu0
    %s6470 = scalar_lea.vmem [#allocation17], 384
    %v6471 = vld [vmem:[%s6470] sm:$0xff]
    %v6472 = vld [vmem:[%s6470 + $0x8] sm:$0xff]
    %v6473 = vld [vmem:[%s6470 + $0x10] sm:$0xff]
    %v6474 = vld [vmem:[%s6470 + $0x18] sm:$0xff]
    %v6475 = vld [vmem:[%s6470 + $0x20] sm:$0xff]
    %v6476 = vld [vmem:[%s6470 + $0x28] sm:$0xff]
    %v6477 = vld [vmem:[%s6470 + $0x30] sm:$0xff]
    %v6478 = vld [vmem:[%s6470 + $0x38] sm:$0xff]
    %v6479 = vld [vmem:[%s6470 + $0x40] sm:$0xff]
    %v6480 = vld [vmem:[%s6470 + $0x48] sm:$0xff]
    %v6481 = vld [vmem:[%s6470 + $0x50] sm:$0xff]
    %v6482 = vld [vmem:[%s6470 + $0x58] sm:$0xff]
    %v6483 = vld [vmem:[%s6470 + $0x60] sm:$0xff]
    %v6484 = vld [vmem:[%s6470 + $0x68] sm:$0xff]
    %v6485 = vld [vmem:[%s6470 + $0x70] sm:$0xff]
    %v6486 = vld [vmem:[%s6470 + $0x78] sm:$0xff]
    %6487 = vmatprep.subr.mxu0 0.0
    %6488 = vmatpush1.msra.mxu0 %v6486
    %6489 = vmatprep.subr.mxu0 0.0
    %6490 = vmatpush1.msra.mxu0 %v6485
    %6491 = vmatprep.subr.mxu0 0.0
    %6492 = vmatpush1.msra.mxu0 %v6484
    %6493 = vmatprep.subr.mxu0 0.0
    %6494 = vmatpush1.msra.mxu0 %v6483
    %6495 = vmatprep.subr.mxu0 0.0
    %6496 = vmatpush1.msra.mxu0 %v6482
    %6497 = vmatprep.subr.mxu0 0.0
    %6498 = vmatpush1.msra.mxu0 %v6481
    %6499 = vmatprep.subr.mxu0 0.0
    %6500 = vmatpush1.msra.mxu0 %v6480
    %6501 = vmatprep.subr.mxu0 0.0
    %6502 = vmatpush1.msra.mxu0 %v6479
    %6503 = vmatprep.subr.mxu0 0.0
    %6504 = vmatpush1.msra.mxu0 %v6478
    %6505 = vmatprep.subr.mxu0 0.0
    %6506 = vmatpush1.msra.mxu0 %v6477
    %6507 = vmatprep.subr.mxu0 0.0
    %6508 = vmatpush1.msra.mxu0 %v6476
    %6509 = vmatprep.subr.mxu0 0.0
    %6510 = vmatpush1.msra.mxu0 %v6475
    %6511 = vmatprep.subr.mxu0 0.0
    %6512 = vmatpush1.msra.mxu0 %v6474
    %6513 = vmatprep.subr.mxu0 0.0
    %6514 = vmatpush1.msra.mxu0 %v6473
    %6515 = vmatprep.subr.mxu0 0.0
    %6516 = vmatpush1.msra.mxu0 %v6472
    %6517 = vmatprep.subr.mxu0 0.0
    %6518 = vmatpush1.msra.mxu0 %v6471
    %6519 = vmatprep.subr.mxu0 0.0
    %6520 = vmatpush2.msra.mxu0 0.0
    %6521 = vmatprep.subr.mxu0 0.0
    %6522 = vmatpush2.msra.mxu0 0.0
    %6523 = vmatprep.subr.mxu0 0.0
    %6524 = vmatpush2.msra.mxu0 0.0
    %6525 = vmatprep.subr.mxu0 0.0
    %6526 = vmatpush2.msra.mxu0 0.0
    %6527 = vmatprep.subr.mxu0 0.0
    %6528 = vmatpush2.msra.mxu0 0.0
    %6529 = vmatprep.subr.mxu0 0.0
    %6530 = vmatpush2.msra.mxu0 0.0
    %6531 = vmatprep.subr.mxu0 0.0
    %6532 = vmatpush2.msra.mxu0 0.0
    %6533 = vmatprep.subr.mxu0 0.0
    %6534 = vmatpush2.msra.mxu0 0.0
    %6535 = vmatprep.subr.mxu0 0.0
    %6536 = vmatpush2.msra.mxu0 0.0
    %6537 = vmatprep.subr.mxu0 0.0
    %6538 = vmatpush2.msra.mxu0 0.0
    %6539 = vmatprep.subr.mxu0 0.0
    %6540 = vmatpush2.msra.mxu0 0.0
    %6541 = vmatprep.subr.mxu0 0.0
    %6542 = vmatpush2.msra.mxu0 0.0
    %6543 = vmatprep.subr.mxu0 0.0
    %6544 = vmatpush2.msra.mxu0 0.0
    %6545 = vmatprep.subr.mxu0 0.0
    %6546 = vmatpush2.msra.mxu0 0.0
    %6547 = vmatprep.subr.mxu0 0.0
    %6548 = vmatpush2.msra.mxu0 0.0
    %6549 = vmatprep.subr.mxu0 0.0
    %6550 = vmatpush2.msra.mxu0 0.0
    %6551 = vmatprep.mubr.f32.mxu0 0.0
    %6552 = vmatmul.mubr.f32.gmra.mxu0 %v5151
    %v6553 = vpop.f32.mrf.mxu0
    %v6554 = vadd.f32 0.0, %v6553
    %v6555 = vpop.f32.mrf.mxu0
    %6556 = vmatprep.mubr.f32.mxu0 0.0
    %6557 = vmatmul.mubr.f32.gmra.mxu0 %v5152
    %v6558 = vpop.f32.mrf.mxu0
    %v6559 = vadd.f32 0.0, %v6558
    %v6560 = vpop.f32.mrf.mxu0
    %6561 = vmatprep.mubr.f32.mxu0 0.0
    %6562 = vmatmul.mubr.f32.gmra.mxu0 %v5153
    %v6563 = vpop.f32.mrf.mxu0
    %v6564 = vadd.f32 0.0, %v6563
    %v6565 = vpop.f32.mrf.mxu0
    %6566 = vmatprep.mubr.f32.mxu0 0.0
    %6567 = vmatmul.mubr.f32.gmra.mxu0 %v5154
    %v6568 = vpop.f32.mrf.mxu0
    %v6569 = vadd.f32 0.0, %v6568
    %v6570 = vpop.f32.mrf.mxu0
    %6571 = vmatprep.mubr.f32.mxu0 0.0
    %6572 = vmatmul.mubr.f32.gmra.mxu0 %v5155
    %v6573 = vpop.f32.mrf.mxu0
    %v6574 = vadd.f32 0.0, %v6573
    %v6575 = vpop.f32.mrf.mxu0
    %6576 = vmatprep.mubr.f32.mxu0 0.0
    %6577 = vmatmul.mubr.f32.gmra.mxu0 %v5156
    %v6578 = vpop.f32.mrf.mxu0
    %v6579 = vadd.f32 0.0, %v6578
    %v6580 = vpop.f32.mrf.mxu0
    %6581 = vmatprep.mubr.f32.mxu0 0.0
    %6582 = vmatmul.mubr.f32.gmra.mxu0 %v5157
    %v6583 = vpop.f32.mrf.mxu0
    %v6584 = vadd.f32 0.0, %v6583
    %v6585 = vpop.f32.mrf.mxu0
    %6586 = vmatprep.mubr.f32.mxu0 0.0
    %6587 = vmatmul.mubr.f32.gmra.mxu0 %v5158
    %v6588 = vpop.f32.mrf.mxu0
    %v6589 = vadd.f32 0.0, %v6588
    %v6590 = vpop.f32.mrf.mxu0
    %6591 = vmatprep.mubr.f32.mxu0 0.0
    %6592 = vmatmul.mubr.f32.gmra.mxu0 %v5159
    %v6593 = vpop.f32.mrf.mxu0
    %v6594 = vadd.f32 0.0, %v6593
    %v6595 = vpop.f32.mrf.mxu0
    %6596 = vmatprep.mubr.f32.mxu0 0.0
    %6597 = vmatmul.mubr.f32.gmra.mxu0 %v5160
    %v6598 = vpop.f32.mrf.mxu0
    %v6599 = vadd.f32 0.0, %v6598
    %v6600 = vpop.f32.mrf.mxu0
    %6601 = vmatprep.mubr.f32.mxu0 0.0
    %6602 = vmatmul.mubr.f32.gmra.mxu0 %v5161
    %v6603 = vpop.f32.mrf.mxu0
    %v6604 = vadd.f32 0.0, %v6603
    %v6605 = vpop.f32.mrf.mxu0
    %6606 = vmatprep.mubr.f32.mxu0 0.0
    %6607 = vmatmul.mubr.f32.gmra.mxu0 %v5162
    %v6608 = vpop.f32.mrf.mxu0
    %v6609 = vadd.f32 0.0, %v6608
    %v6610 = vpop.f32.mrf.mxu0
    %6611 = vmatprep.mubr.f32.mxu0 0.0
    %6612 = vmatmul.mubr.f32.gmra.mxu0 %v5163
    %v6613 = vpop.f32.mrf.mxu0
    %v6614 = vadd.f32 0.0, %v6613
    %v6615 = vpop.f32.mrf.mxu0
    %6616 = vmatprep.mubr.f32.mxu0 0.0
    %6617 = vmatmul.mubr.f32.gmra.mxu0 %v5164
    %v6618 = vpop.f32.mrf.mxu0
    %v6619 = vadd.f32 0.0, %v6618
    %v6620 = vpop.f32.mrf.mxu0
    %6621 = vmatprep.mubr.f32.mxu0 0.0
    %6622 = vmatmul.mubr.f32.gmra.mxu0 %v5165
    %v6623 = vpop.f32.mrf.mxu0
    %v6624 = vadd.f32 0.0, %v6623
    %v6625 = vpop.f32.mrf.mxu0
    %6626 = vmatprep.mubr.f32.mxu0 0.0
    %6627 = vmatmul.mubr.f32.gmra.mxu0 %v5166
    %v6628 = vpop.f32.mrf.mxu0
    %v6629 = vadd.f32 0.0, %v6628
    %v6630 = vpop.f32.mrf.mxu0
    %6631 = vdwg.mxu0
    %v6632 = vadd.f32 %v6392, %v6554
    %v6633 = vadd.f32 %v6397, %v6559
    %v6634 = vadd.f32 %v6402, %v6564
    %v6635 = vadd.f32 %v6407, %v6569
    %v6636 = vadd.f32 %v6412, %v6574
    %v6637 = vadd.f32 %v6417, %v6579
    %v6638 = vadd.f32 %v6422, %v6584
    %v6639 = vadd.f32 %v6427, %v6589
    %v6640 = vadd.f32 %v6432, %v6594
    %v6641 = vadd.f32 %v6437, %v6599
    %v6642 = vadd.f32 %v6442, %v6604
    %v6643 = vadd.f32 %v6447, %v6609
    %v6644 = vadd.f32 %v6452, %v6614
    %v6645 = vadd.f32 %v6457, %v6619
    %v6646 = vadd.f32 %v6462, %v6624
    %v6647 = vadd.f32 %v6467, %v6629
    %v6648 = vld [vmem:[%s14 + $0x3] sm:$0x1]
    %v6649 = vlaneseq
    %v6650 = vshrl.u32 %v6649, 7
    %v6651 = vsub.s32 0, %v6650
    %v6652 = vrot.slane %v6648, %v6651
    %v6653 = vadd.f32 %v6632, %v6652
    %v6654 = vadd.f32 %v6633, %v6652
    %v6655 = vadd.f32 %v6634, %v6652
    %v6656 = vadd.f32 %v6635, %v6652
    %v6657 = vadd.f32 %v6636, %v6652
    %v6658 = vadd.f32 %v6637, %v6652
    %v6659 = vadd.f32 %v6638, %v6652
    %v6660 = vadd.f32 %v6639, %v6652
    %v6661 = vadd.f32 %v6640, %v6652
    %v6662 = vadd.f32 %v6641, %v6652
    %v6663 = vadd.f32 %v6642, %v6652
    %v6664 = vadd.f32 %v6643, %v6652
    %v6665 = vadd.f32 %v6644, %v6652
    %v6666 = vadd.f32 %v6645, %v6652
    %v6667 = vadd.f32 %v6646, %v6652
    %v6668 = vadd.f32 %v6647, %v6652
    %v6669 = vmax.f32 %v6653, 0.0
    %v6670 = vmax.f32 %v6654, 0.0
    %v6671 = vmax.f32 %v6655, 0.0
    %v6672 = vmax.f32 %v6656, 0.0
    %v6673 = vmax.f32 %v6657, 0.0
    %v6674 = vmax.f32 %v6658, 0.0
    %v6675 = vmax.f32 %v6659, 0.0
    %v6676 = vmax.f32 %v6660, 0.0
    %v6677 = vmax.f32 %v6661, 0.0
    %v6678 = vmax.f32 %v6662, 0.0
    %v6679 = vmax.f32 %v6663, 0.0
    %v6680 = vmax.f32 %v6664, 0.0
    %v6681 = vmax.f32 %v6665, 0.0
    %v6682 = vmax.f32 %v6666, 0.0
    %v6683 = vmax.f32 %v6667, 0.0
    %v6684 = vmax.f32 %v6668, 0.0
    %s6685 = scalar_lea.vmem [#allocation19], 384
    %v6686 = vld [vmem:[%s6685] sm:$0xff]
    %v6687 = vld [vmem:[%s6685 + $0x8] sm:$0xff]
    %v6688 = vld [vmem:[%s6685 + $0x10] sm:$0xff]
    %v6689 = vld [vmem:[%s6685 + $0x18] sm:$0xff]
    %v6690 = vld [vmem:[%s6685 + $0x20] sm:$0xff]
    %v6691 = vld [vmem:[%s6685 + $0x28] sm:$0xff]
    %v6692 = vld [vmem:[%s6685 + $0x30] sm:$0xff]
    %v6693 = vld [vmem:[%s6685 + $0x38] sm:$0xff]
    %v6694 = vld [vmem:[%s6685 + $0x40] sm:$0xff]
    %v6695 = vld [vmem:[%s6685 + $0x48] sm:$0xff]
    %v6696 = vld [vmem:[%s6685 + $0x50] sm:$0xff]
    %v6697 = vld [vmem:[%s6685 + $0x58] sm:$0xff]
    %v6698 = vld [vmem:[%s6685 + $0x60] sm:$0xff]
    %v6699 = vld [vmem:[%s6685 + $0x68] sm:$0xff]
    %v6700 = vld [vmem:[%s6685 + $0x70] sm:$0xff]
    %v6701 = vld [vmem:[%s6685 + $0x78] sm:$0xff]
    %v6702 = vld [vmem:[%s16 + $0x3] sm:$0x1]
    %v6703 = vlaneseq
    %v6704 = vshrl.u32 %v6703, 7
    %v6705 = vsub.s32 0, %v6704
    %v6706 = vrot.slane %v6702, %v6705
    %6707 = vmatprep.subr.mxu0 0.0
    %6708 = vmatpush1.msra.mxu0 %v6701
    %6709 = vmatprep.subr.mxu0 0.0
    %6710 = vmatpush1.msra.mxu0 %v6700
    %6711 = vmatprep.subr.mxu0 0.0
    %6712 = vmatpush1.msra.mxu0 %v6699
    %6713 = vmatprep.subr.mxu0 0.0
    %6714 = vmatpush1.msra.mxu0 %v6698
    %6715 = vmatprep.subr.mxu0 0.0
    %6716 = vmatpush1.msra.mxu0 %v6697
    %6717 = vmatprep.subr.mxu0 0.0
    %6718 = vmatpush1.msra.mxu0 %v6696
    %6719 = vmatprep.subr.mxu0 0.0
    %6720 = vmatpush1.msra.mxu0 %v6695
    %6721 = vmatprep.subr.mxu0 0.0
    %6722 = vmatpush1.msra.mxu0 %v6694
    %6723 = vmatprep.subr.mxu0 0.0
    %6724 = vmatpush1.msra.mxu0 %v6693
    %6725 = vmatprep.subr.mxu0 0.0
    %6726 = vmatpush1.msra.mxu0 %v6692
    %6727 = vmatprep.subr.mxu0 0.0
    %6728 = vmatpush1.msra.mxu0 %v6691
    %6729 = vmatprep.subr.mxu0 0.0
    %6730 = vmatpush1.msra.mxu0 %v6690
    %6731 = vmatprep.subr.mxu0 0.0
    %6732 = vmatpush1.msra.mxu0 %v6689
    %6733 = vmatprep.subr.mxu0 0.0
    %6734 = vmatpush1.msra.mxu0 %v6688
    %6735 = vmatprep.subr.mxu0 0.0
    %6736 = vmatpush1.msra.mxu0 %v6687
    %6737 = vmatprep.subr.mxu0 0.0
    %6738 = vmatpush1.msra.mxu0 %v6686
    %6739 = vmatprep.subr.mxu0 0.0
    %6740 = vmatpush2.msra.mxu0 0.0
    %6741 = vmatprep.subr.mxu0 0.0
    %6742 = vmatpush2.msra.mxu0 0.0
    %6743 = vmatprep.subr.mxu0 0.0
    %6744 = vmatpush2.msra.mxu0 0.0
    %6745 = vmatprep.subr.mxu0 0.0
    %6746 = vmatpush2.msra.mxu0 0.0
    %6747 = vmatprep.subr.mxu0 0.0
    %6748 = vmatpush2.msra.mxu0 0.0
    %6749 = vmatprep.subr.mxu0 0.0
    %6750 = vmatpush2.msra.mxu0 0.0
    %6751 = vmatprep.subr.mxu0 0.0
    %6752 = vmatpush2.msra.mxu0 0.0
    %6753 = vmatprep.subr.mxu0 0.0
    %6754 = vmatpush2.msra.mxu0 0.0
    %6755 = vmatprep.subr.mxu0 0.0
    %6756 = vmatpush2.msra.mxu0 0.0
    %6757 = vmatprep.subr.mxu0 0.0
    %6758 = vmatpush2.msra.mxu0 0.0
    %6759 = vmatprep.subr.mxu0 0.0
    %6760 = vmatpush2.msra.mxu0 0.0
    %6761 = vmatprep.subr.mxu0 0.0
    %6762 = vmatpush2.msra.mxu0 0.0
    %6763 = vmatprep.subr.mxu0 0.0
    %6764 = vmatpush2.msra.mxu0 0.0
    %6765 = vmatprep.subr.mxu0 0.0
    %6766 = vmatpush2.msra.mxu0 0.0
    %6767 = vmatprep.subr.mxu0 0.0
    %6768 = vmatpush2.msra.mxu0 0.0
    %6769 = vmatprep.subr.mxu0 0.0
    %6770 = vmatpush2.msra.mxu0 0.0
    %6771 = vmatprep.mubr.f32.mxu0 0.0
    %6772 = vmatmul.mubr.f32.gmra.mxu0 %v6669
    %v6773 = vpop.f32.mrf.mxu0
    %v6774 = vadd.f32 %v6706, %v6773
    %v6775 = vpop.f32.mrf.mxu0
    %6776 = vmatprep.mubr.f32.mxu0 0.0
    %6777 = vmatmul.mubr.f32.gmra.mxu0 %v6670
    %v6778 = vpop.f32.mrf.mxu0
    %v6779 = vadd.f32 %v6706, %v6778
    %v6780 = vpop.f32.mrf.mxu0
    %6781 = vmatprep.mubr.f32.mxu0 0.0
    %6782 = vmatmul.mubr.f32.gmra.mxu0 %v6671
    %v6783 = vpop.f32.mrf.mxu0
    %v6784 = vadd.f32 %v6706, %v6783
    %v6785 = vpop.f32.mrf.mxu0
    %6786 = vmatprep.mubr.f32.mxu0 0.0
    %6787 = vmatmul.mubr.f32.gmra.mxu0 %v6672
    %v6788 = vpop.f32.mrf.mxu0
    %v6789 = vadd.f32 %v6706, %v6788
    %v6790 = vpop.f32.mrf.mxu0
    %6791 = vmatprep.mubr.f32.mxu0 0.0
    %6792 = vmatmul.mubr.f32.gmra.mxu0 %v6673
    %v6793 = vpop.f32.mrf.mxu0
    %v6794 = vadd.f32 %v6706, %v6793
    %v6795 = vpop.f32.mrf.mxu0
    %6796 = vmatprep.mubr.f32.mxu0 0.0
    %6797 = vmatmul.mubr.f32.gmra.mxu0 %v6674
    %v6798 = vpop.f32.mrf.mxu0
    %v6799 = vadd.f32 %v6706, %v6798
    %v6800 = vpop.f32.mrf.mxu0
    %6801 = vmatprep.mubr.f32.mxu0 0.0
    %6802 = vmatmul.mubr.f32.gmra.mxu0 %v6675
    %v6803 = vpop.f32.mrf.mxu0
    %v6804 = vadd.f32 %v6706, %v6803
    %v6805 = vpop.f32.mrf.mxu0
    %6806 = vmatprep.mubr.f32.mxu0 0.0
    %6807 = vmatmul.mubr.f32.gmra.mxu0 %v6676
    %v6808 = vpop.f32.mrf.mxu0
    %v6809 = vadd.f32 %v6706, %v6808
    %v6810 = vpop.f32.mrf.mxu0
    %6811 = vmatprep.mubr.f32.mxu0 0.0
    %6812 = vmatmul.mubr.f32.gmra.mxu0 %v6677
    %v6813 = vpop.f32.mrf.mxu0
    %v6814 = vadd.f32 %v6706, %v6813
    %v6815 = vpop.f32.mrf.mxu0
    %6816 = vmatprep.mubr.f32.mxu0 0.0
    %6817 = vmatmul.mubr.f32.gmra.mxu0 %v6678
    %v6818 = vpop.f32.mrf.mxu0
    %v6819 = vadd.f32 %v6706, %v6818
    %v6820 = vpop.f32.mrf.mxu0
    %6821 = vmatprep.mubr.f32.mxu0 0.0
    %6822 = vmatmul.mubr.f32.gmra.mxu0 %v6679
    %v6823 = vpop.f32.mrf.mxu0
    %v6824 = vadd.f32 %v6706, %v6823
    %v6825 = vpop.f32.mrf.mxu0
    %6826 = vmatprep.mubr.f32.mxu0 0.0
    %6827 = vmatmul.mubr.f32.gmra.mxu0 %v6680
    %v6828 = vpop.f32.mrf.mxu0
    %v6829 = vadd.f32 %v6706, %v6828
    %v6830 = vpop.f32.mrf.mxu0
    %6831 = vmatprep.mubr.f32.mxu0 0.0
    %6832 = vmatmul.mubr.f32.gmra.mxu0 %v6681
    %v6833 = vpop.f32.mrf.mxu0
    %v6834 = vadd.f32 %v6706, %v6833
    %v6835 = vpop.f32.mrf.mxu0
    %6836 = vmatprep.mubr.f32.mxu0 0.0
    %6837 = vmatmul.mubr.f32.gmra.mxu0 %v6682
    %v6838 = vpop.f32.mrf.mxu0
    %v6839 = vadd.f32 %v6706, %v6838
    %v6840 = vpop.f32.mrf.mxu0
    %6841 = vmatprep.mubr.f32.mxu0 0.0
    %6842 = vmatmul.mubr.f32.gmra.mxu0 %v6683
    %v6843 = vpop.f32.mrf.mxu0
    %v6844 = vadd.f32 %v6706, %v6843
    %v6845 = vpop.f32.mrf.mxu0
    %6846 = vmatprep.mubr.f32.mxu0 0.0
    %6847 = vmatmul.mubr.f32.gmra.mxu0 %v6684
    %v6848 = vpop.f32.mrf.mxu0
    %v6849 = vadd.f32 %v6706, %v6848
    %v6850 = vpop.f32.mrf.mxu0
    %6851 = vdwg.mxu0
    %v6852 = vmul.f32 %v6774, %v1418
    %v6853 = vmul.f32 %v6779, %v1423
    %v6854 = vmul.f32 %v6784, %v1428
    %v6855 = vmul.f32 %v6789, %v1433
    %v6856 = vmul.f32 %v6794, %v1438
    %v6857 = vmul.f32 %v6799, %v1443
    %v6858 = vmul.f32 %v6804, %v1448
    %v6859 = vmul.f32 %v6809, %v1453
    %v6860 = vmul.f32 %v6814, %v1458
    %v6861 = vmul.f32 %v6819, %v1463
    %v6862 = vmul.f32 %v6824, %v1468
    %v6863 = vmul.f32 %v6829, %v1473
    %v6864 = vmul.f32 %v6834, %v1478
    %v6865 = vmul.f32 %v6839, %v1483
    %v6866 = vmul.f32 %v6844, %v1488
    %v6867 = vmul.f32 %v6849, %v1493
    %6868 = vmatprep.subr.mxu0 0.0
    %6869 = vmatpush1.msra.mxu0 %v6867
    %6870 = vmatprep.subr.mxu0 0.0
    %6871 = vmatpush1.msra.mxu0 %v6866
    %6872 = vmatprep.subr.mxu0 0.0
    %6873 = vmatpush1.msra.mxu0 %v6865
    %6874 = vmatprep.subr.mxu0 0.0
    %6875 = vmatpush1.msra.mxu0 %v6864
    %6876 = vmatprep.subr.mxu0 0.0
    %6877 = vmatpush1.msra.mxu0 %v6863
    %6878 = vmatprep.subr.mxu0 0.0
    %6879 = vmatpush1.msra.mxu0 %v6862
    %6880 = vmatprep.subr.mxu0 0.0
    %6881 = vmatpush1.msra.mxu0 %v6861
    %6882 = vmatprep.subr.mxu0 0.0
    %6883 = vmatpush1.msra.mxu0 %v6860
    %6884 = vmatprep.subr.mxu0 0.0
    %6885 = vmatpush1.msra.mxu0 %v6859
    %6886 = vmatprep.subr.mxu0 0.0
    %6887 = vmatpush1.msra.mxu0 %v6858
    %6888 = vmatprep.subr.mxu0 0.0
    %6889 = vmatpush1.msra.mxu0 %v6857
    %6890 = vmatprep.subr.mxu0 0.0
    %6891 = vmatpush1.msra.mxu0 %v6856
    %6892 = vmatprep.subr.mxu0 0.0
    %6893 = vmatpush1.msra.mxu0 %v6855
    %6894 = vmatprep.subr.mxu0 0.0
    %6895 = vmatpush1.msra.mxu0 %v6854
    %6896 = vmatprep.subr.mxu0 0.0
    %6897 = vmatpush1.msra.mxu0 %v6853
    %6898 = vmatprep.subr.mxu0 0.0
    %6899 = vmatpush1.msra.mxu0 %v6852
    %6900 = vmatprep.subr.mxu0 0.0
    %6901 = vmatpush2.msra.mxu0 0.0
    %6902 = vmatprep.subr.mxu0 0.0
    %6903 = vmatpush2.msra.mxu0 0.0
    %6904 = vmatprep.subr.mxu0 0.0
    %6905 = vmatpush2.msra.mxu0 0.0
    %6906 = vmatprep.subr.mxu0 0.0
    %6907 = vmatpush2.msra.mxu0 0.0
    %6908 = vmatprep.subr.mxu0 0.0
    %6909 = vmatpush2.msra.mxu0 0.0
    %6910 = vmatprep.subr.mxu0 0.0
    %6911 = vmatpush2.msra.mxu0 0.0
    %6912 = vmatprep.subr.mxu0 0.0
    %6913 = vmatpush2.msra.mxu0 0.0
    %6914 = vmatprep.subr.mxu0 0.0
    %6915 = vmatpush2.msra.mxu0 0.0
    %6916 = vmatprep.subr.mxu0 0.0
    %6917 = vmatpush2.msra.mxu0 0.0
    %6918 = vmatprep.subr.mxu0 0.0
    %6919 = vmatpush2.msra.mxu0 0.0
    %6920 = vmatprep.subr.mxu0 0.0
    %6921 = vmatpush2.msra.mxu0 0.0
    %6922 = vmatprep.subr.mxu0 0.0
    %6923 = vmatpush2.msra.mxu0 0.0
    %6924 = vmatprep.subr.mxu0 0.0
    %6925 = vmatpush2.msra.mxu0 0.0
    %6926 = vmatprep.subr.mxu0 0.0
    %6927 = vmatpush2.msra.mxu0 0.0
    %6928 = vmatprep.subr.mxu0 0.0
    %6929 = vmatpush2.msra.mxu0 0.0
    %6930 = vmatprep.subr.mxu0 0.0
    %6931 = vmatpush2.msra.mxu0 0.0
    %6932 = vmatprep.mubr.f32.mxu0 0.0
    %6933 = vmatmul.mubr.f32.gmra.mxu0 %v375
    %v6934 = vpop.f32.mrf.mxu0
    %v6935 = vadd.f32 0.0, %v6934
    %v6936 = vpop.f32.mrf.mxu0
    %6937 = vmatprep.mubr.f32.mxu0 0.0
    %6938 = vmatmul.mubr.f32.gmra.mxu0 %v376
    %v6939 = vpop.f32.mrf.mxu0
    %v6940 = vadd.f32 0.0, %v6939
    %v6941 = vpop.f32.mrf.mxu0
    %6942 = vmatprep.mubr.f32.mxu0 0.0
    %6943 = vmatmul.mubr.f32.gmra.mxu0 %v377
    %v6944 = vpop.f32.mrf.mxu0
    %v6945 = vadd.f32 0.0, %v6944
    %v6946 = vpop.f32.mrf.mxu0
    %6947 = vmatprep.mubr.f32.mxu0 0.0
    %6948 = vmatmul.mubr.f32.gmra.mxu0 %v378
    %v6949 = vpop.f32.mrf.mxu0
    %v6950 = vadd.f32 0.0, %v6949
    %v6951 = vpop.f32.mrf.mxu0
    %6952 = vmatprep.mubr.f32.mxu0 0.0
    %6953 = vmatmul.mubr.f32.gmra.mxu0 %v379
    %v6954 = vpop.f32.mrf.mxu0
    %v6955 = vadd.f32 0.0, %v6954
    %v6956 = vpop.f32.mrf.mxu0
    %6957 = vmatprep.mubr.f32.mxu0 0.0
    %6958 = vmatmul.mubr.f32.gmra.mxu0 %v380
    %v6959 = vpop.f32.mrf.mxu0
    %v6960 = vadd.f32 0.0, %v6959
    %v6961 = vpop.f32.mrf.mxu0
    %6962 = vmatprep.mubr.f32.mxu0 0.0
    %6963 = vmatmul.mubr.f32.gmra.mxu0 %v381
    %v6964 = vpop.f32.mrf.mxu0
    %v6965 = vadd.f32 0.0, %v6964
    %v6966 = vpop.f32.mrf.mxu0
    %6967 = vmatprep.mubr.f32.mxu0 0.0
    %6968 = vmatmul.mubr.f32.gmra.mxu0 %v382
    %v6969 = vpop.f32.mrf.mxu0
    %v6970 = vadd.f32 0.0, %v6969
    %v6971 = vpop.f32.mrf.mxu0
    %6972 = vmatprep.mubr.f32.mxu0 0.0
    %6973 = vmatmul.mubr.f32.gmra.mxu0 %v383
    %v6974 = vpop.f32.mrf.mxu0
    %v6975 = vadd.f32 0.0, %v6974
    %v6976 = vpop.f32.mrf.mxu0
    %6977 = vmatprep.mubr.f32.mxu0 0.0
    %6978 = vmatmul.mubr.f32.gmra.mxu0 %v384
    %v6979 = vpop.f32.mrf.mxu0
    %v6980 = vadd.f32 0.0, %v6979
    %v6981 = vpop.f32.mrf.mxu0
    %6982 = vmatprep.mubr.f32.mxu0 0.0
    %6983 = vmatmul.mubr.f32.gmra.mxu0 %v385
    %v6984 = vpop.f32.mrf.mxu0
    %v6985 = vadd.f32 0.0, %v6984
    %v6986 = vpop.f32.mrf.mxu0
    %6987 = vmatprep.mubr.f32.mxu0 0.0
    %6988 = vmatmul.mubr.f32.gmra.mxu0 %v386
    %v6989 = vpop.f32.mrf.mxu0
    %v6990 = vadd.f32 0.0, %v6989
    %v6991 = vpop.f32.mrf.mxu0
    %6992 = vmatprep.mubr.f32.mxu0 0.0
    %6993 = vmatmul.mubr.f32.gmra.mxu0 %v387
    %v6994 = vpop.f32.mrf.mxu0
    %v6995 = vadd.f32 0.0, %v6994
    %v6996 = vpop.f32.mrf.mxu0
    %6997 = vmatprep.mubr.f32.mxu0 0.0
    %6998 = vmatmul.mubr.f32.gmra.mxu0 %v388
    %v6999 = vpop.f32.mrf.mxu0
    %v7000 = vadd.f32 0.0, %v6999
    %v7001 = vpop.f32.mrf.mxu0
    %7002 = vmatprep.mubr.f32.mxu0 0.0
    %7003 = vmatmul.mubr.f32.gmra.mxu0 %v389
    %v7004 = vpop.f32.mrf.mxu0
    %v7005 = vadd.f32 0.0, %v7004
    %v7006 = vpop.f32.mrf.mxu0
    %7007 = vmatprep.mubr.f32.mxu0 0.0
    %7008 = vmatmul.mubr.f32.gmra.mxu0 %v390
    %v7009 = vpop.f32.mrf.mxu0
    %v7010 = vadd.f32 0.0, %v7009
    %v7011 = vpop.f32.mrf.mxu0
    %7012 = vdwg.mxu0
    %s7013 = scalar_lea.vmem [#allocation20], 384
    %v7014 = vld [vmem:[%s7013] sm:$0xff]
    %v7015 = vld [vmem:[%s7013 + $0x8] sm:$0xff]
    %v7016 = vld [vmem:[%s7013 + $0x10] sm:$0xff]
    %v7017 = vld [vmem:[%s7013 + $0x18] sm:$0xff]
    %v7018 = vld [vmem:[%s7013 + $0x20] sm:$0xff]
    %v7019 = vld [vmem:[%s7013 + $0x28] sm:$0xff]
    %v7020 = vld [vmem:[%s7013 + $0x30] sm:$0xff]
    %v7021 = vld [vmem:[%s7013 + $0x38] sm:$0xff]
    %v7022 = vld [vmem:[%s7013 + $0x40] sm:$0xff]
    %v7023 = vld [vmem:[%s7013 + $0x48] sm:$0xff]
    %v7024 = vld [vmem:[%s7013 + $0x50] sm:$0xff]
    %v7025 = vld [vmem:[%s7013 + $0x58] sm:$0xff]
    %v7026 = vld [vmem:[%s7013 + $0x60] sm:$0xff]
    %v7027 = vld [vmem:[%s7013 + $0x68] sm:$0xff]
    %v7028 = vld [vmem:[%s7013 + $0x70] sm:$0xff]
    %v7029 = vld [vmem:[%s7013 + $0x78] sm:$0xff]
    %s7030 = scalar_lea.vmem [#allocation22], 384
    %v7031 = vld [vmem:[%s7030] sm:$0xff]
    %v7032 = vld [vmem:[%s7030 + $0x8] sm:$0xff]
    %v7033 = vld [vmem:[%s7030 + $0x10] sm:$0xff]
    %v7034 = vld [vmem:[%s7030 + $0x18] sm:$0xff]
    %v7035 = vld [vmem:[%s7030 + $0x20] sm:$0xff]
    %v7036 = vld [vmem:[%s7030 + $0x28] sm:$0xff]
    %v7037 = vld [vmem:[%s7030 + $0x30] sm:$0xff]
    %v7038 = vld [vmem:[%s7030 + $0x38] sm:$0xff]
    %v7039 = vld [vmem:[%s7030 + $0x40] sm:$0xff]
    %v7040 = vld [vmem:[%s7030 + $0x48] sm:$0xff]
    %v7041 = vld [vmem:[%s7030 + $0x50] sm:$0xff]
    %v7042 = vld [vmem:[%s7030 + $0x58] sm:$0xff]
    %v7043 = vld [vmem:[%s7030 + $0x60] sm:$0xff]
    %v7044 = vld [vmem:[%s7030 + $0x68] sm:$0xff]
    %v7045 = vld [vmem:[%s7030 + $0x70] sm:$0xff]
    %v7046 = vld [vmem:[%s7030 + $0x78] sm:$0xff]
    %7047 = vmatprep.subr.mxu0 0.0
    %7048 = vmatpush1.msra.mxu0 %v7046
    %7049 = vmatprep.subr.mxu0 0.0
    %7050 = vmatpush1.msra.mxu0 %v7045
    %7051 = vmatprep.subr.mxu0 0.0
    %7052 = vmatpush1.msra.mxu0 %v7044
    %7053 = vmatprep.subr.mxu0 0.0
    %7054 = vmatpush1.msra.mxu0 %v7043
    %7055 = vmatprep.subr.mxu0 0.0
    %7056 = vmatpush1.msra.mxu0 %v7042
    %7057 = vmatprep.subr.mxu0 0.0
    %7058 = vmatpush1.msra.mxu0 %v7041
    %7059 = vmatprep.subr.mxu0 0.0
    %7060 = vmatpush1.msra.mxu0 %v7040
    %7061 = vmatprep.subr.mxu0 0.0
    %7062 = vmatpush1.msra.mxu0 %v7039
    %7063 = vmatprep.subr.mxu0 0.0
    %7064 = vmatpush1.msra.mxu0 %v7038
    %7065 = vmatprep.subr.mxu0 0.0
    %7066 = vmatpush1.msra.mxu0 %v7037
    %7067 = vmatprep.subr.mxu0 0.0
    %7068 = vmatpush1.msra.mxu0 %v7036
    %7069 = vmatprep.subr.mxu0 0.0
    %7070 = vmatpush1.msra.mxu0 %v7035
    %7071 = vmatprep.subr.mxu0 0.0
    %7072 = vmatpush1.msra.mxu0 %v7034
    %7073 = vmatprep.subr.mxu0 0.0
    %7074 = vmatpush1.msra.mxu0 %v7033
    %7075 = vmatprep.subr.mxu0 0.0
    %7076 = vmatpush1.msra.mxu0 %v7032
    %7077 = vmatprep.subr.mxu0 0.0
    %7078 = vmatpush1.msra.mxu0 %v7031
    %7079 = vmatprep.subr.mxu0 0.0
    %7080 = vmatpush2.msra.mxu0 0.0
    %7081 = vmatprep.subr.mxu0 0.0
    %7082 = vmatpush2.msra.mxu0 0.0
    %7083 = vmatprep.subr.mxu0 0.0
    %7084 = vmatpush2.msra.mxu0 0.0
    %7085 = vmatprep.subr.mxu0 0.0
    %7086 = vmatpush2.msra.mxu0 0.0
    %7087 = vmatprep.subr.mxu0 0.0
    %7088 = vmatpush2.msra.mxu0 0.0
    %7089 = vmatprep.subr.mxu0 0.0
    %7090 = vmatpush2.msra.mxu0 0.0
    %7091 = vmatprep.subr.mxu0 0.0
    %7092 = vmatpush2.msra.mxu0 0.0
    %7093 = vmatprep.subr.mxu0 0.0
    %7094 = vmatpush2.msra.mxu0 0.0
    %7095 = vmatprep.subr.mxu0 0.0
    %7096 = vmatpush2.msra.mxu0 0.0
    %7097 = vmatprep.subr.mxu0 0.0
    %7098 = vmatpush2.msra.mxu0 0.0
    %7099 = vmatprep.subr.mxu0 0.0
    %7100 = vmatpush2.msra.mxu0 0.0
    %7101 = vmatprep.subr.mxu0 0.0
    %7102 = vmatpush2.msra.mxu0 0.0
    %7103 = vmatprep.subr.mxu0 0.0
    %7104 = vmatpush2.msra.mxu0 0.0
    %7105 = vmatprep.subr.mxu0 0.0
    %7106 = vmatpush2.msra.mxu0 0.0
    %7107 = vmatprep.subr.mxu0 0.0
    %7108 = vmatpush2.msra.mxu0 0.0
    %7109 = vmatprep.subr.mxu0 0.0
    %7110 = vmatpush2.msra.mxu0 0.0
    %7111 = vmatprep.mubr.f32.mxu0 0.0
    %7112 = vmatmul.mubr.f32.gmra.mxu0 %v6935
    %v7113 = vpop.f32.mrf.mxu0
    %v7114 = vadd.f32 0.0, %v7113
    %v7115 = vpop.f32.mrf.mxu0
    %7116 = vmatprep.mubr.f32.mxu0 0.0
    %7117 = vmatmul.mubr.f32.gmra.mxu0 %v6940
    %v7118 = vpop.f32.mrf.mxu0
    %v7119 = vadd.f32 0.0, %v7118
    %v7120 = vpop.f32.mrf.mxu0
    %7121 = vmatprep.mubr.f32.mxu0 0.0
    %7122 = vmatmul.mubr.f32.gmra.mxu0 %v6945
    %v7123 = vpop.f32.mrf.mxu0
    %v7124 = vadd.f32 0.0, %v7123
    %v7125 = vpop.f32.mrf.mxu0
    %7126 = vmatprep.mubr.f32.mxu0 0.0
    %7127 = vmatmul.mubr.f32.gmra.mxu0 %v6950
    %v7128 = vpop.f32.mrf.mxu0
    %v7129 = vadd.f32 0.0, %v7128
    %v7130 = vpop.f32.mrf.mxu0
    %7131 = vmatprep.mubr.f32.mxu0 0.0
    %7132 = vmatmul.mubr.f32.gmra.mxu0 %v6955
    %v7133 = vpop.f32.mrf.mxu0
    %v7134 = vadd.f32 0.0, %v7133
    %v7135 = vpop.f32.mrf.mxu0
    %7136 = vmatprep.mubr.f32.mxu0 0.0
    %7137 = vmatmul.mubr.f32.gmra.mxu0 %v6960
    %v7138 = vpop.f32.mrf.mxu0
    %v7139 = vadd.f32 0.0, %v7138
    %v7140 = vpop.f32.mrf.mxu0
    %7141 = vmatprep.mubr.f32.mxu0 0.0
    %7142 = vmatmul.mubr.f32.gmra.mxu0 %v6965
    %v7143 = vpop.f32.mrf.mxu0
    %v7144 = vadd.f32 0.0, %v7143
    %v7145 = vpop.f32.mrf.mxu0
    %7146 = vmatprep.mubr.f32.mxu0 0.0
    %7147 = vmatmul.mubr.f32.gmra.mxu0 %v6970
    %v7148 = vpop.f32.mrf.mxu0
    %v7149 = vadd.f32 0.0, %v7148
    %v7150 = vpop.f32.mrf.mxu0
    %7151 = vmatprep.mubr.f32.mxu0 0.0
    %7152 = vmatmul.mubr.f32.gmra.mxu0 %v6975
    %v7153 = vpop.f32.mrf.mxu0
    %v7154 = vadd.f32 0.0, %v7153
    %v7155 = vpop.f32.mrf.mxu0
    %7156 = vmatprep.mubr.f32.mxu0 0.0
    %7157 = vmatmul.mubr.f32.gmra.mxu0 %v6980
    %v7158 = vpop.f32.mrf.mxu0
    %v7159 = vadd.f32 0.0, %v7158
    %v7160 = vpop.f32.mrf.mxu0
    %7161 = vmatprep.mubr.f32.mxu0 0.0
    %7162 = vmatmul.mubr.f32.gmra.mxu0 %v6985
    %v7163 = vpop.f32.mrf.mxu0
    %v7164 = vadd.f32 0.0, %v7163
    %v7165 = vpop.f32.mrf.mxu0
    %7166 = vmatprep.mubr.f32.mxu0 0.0
    %7167 = vmatmul.mubr.f32.gmra.mxu0 %v6990
    %v7168 = vpop.f32.mrf.mxu0
    %v7169 = vadd.f32 0.0, %v7168
    %v7170 = vpop.f32.mrf.mxu0
    %7171 = vmatprep.mubr.f32.mxu0 0.0
    %7172 = vmatmul.mubr.f32.gmra.mxu0 %v6995
    %v7173 = vpop.f32.mrf.mxu0
    %v7174 = vadd.f32 0.0, %v7173
    %v7175 = vpop.f32.mrf.mxu0
    %7176 = vmatprep.mubr.f32.mxu0 0.0
    %7177 = vmatmul.mubr.f32.gmra.mxu0 %v7000
    %v7178 = vpop.f32.mrf.mxu0
    %v7179 = vadd.f32 0.0, %v7178
    %v7180 = vpop.f32.mrf.mxu0
    %7181 = vmatprep.mubr.f32.mxu0 0.0
    %7182 = vmatmul.mubr.f32.gmra.mxu0 %v7005
    %v7183 = vpop.f32.mrf.mxu0
    %v7184 = vadd.f32 0.0, %v7183
    %v7185 = vpop.f32.mrf.mxu0
    %7186 = vmatprep.mubr.f32.mxu0 0.0
    %7187 = vmatmul.mubr.f32.gmra.mxu0 %v7010
    %v7188 = vpop.f32.mrf.mxu0
    %v7189 = vadd.f32 0.0, %v7188
    %v7190 = vpop.f32.mrf.mxu0
    %7191 = vdwg.mxu0
    %7192 = vmatprep.subr.mxu0 0.0
    %7193 = vmatpush1.msra.mxu0 %v7029
    %7194 = vmatprep.subr.mxu0 0.0
    %7195 = vmatpush1.msra.mxu0 %v7028
    %7196 = vmatprep.subr.mxu0 0.0
    %7197 = vmatpush1.msra.mxu0 %v7027
    %7198 = vmatprep.subr.mxu0 0.0
    %7199 = vmatpush1.msra.mxu0 %v7026
    %7200 = vmatprep.subr.mxu0 0.0
    %7201 = vmatpush1.msra.mxu0 %v7025
    %7202 = vmatprep.subr.mxu0 0.0
    %7203 = vmatpush1.msra.mxu0 %v7024
    %7204 = vmatprep.subr.mxu0 0.0
    %7205 = vmatpush1.msra.mxu0 %v7023
    %7206 = vmatprep.subr.mxu0 0.0
    %7207 = vmatpush1.msra.mxu0 %v7022
    %7208 = vmatprep.subr.mxu0 0.0
    %7209 = vmatpush1.msra.mxu0 %v7021
    %7210 = vmatprep.subr.mxu0 0.0
    %7211 = vmatpush1.msra.mxu0 %v7020
    %7212 = vmatprep.subr.mxu0 0.0
    %7213 = vmatpush1.msra.mxu0 %v7019
    %7214 = vmatprep.subr.mxu0 0.0
    %7215 = vmatpush1.msra.mxu0 %v7018
    %7216 = vmatprep.subr.mxu0 0.0
    %7217 = vmatpush1.msra.mxu0 %v7017
    %7218 = vmatprep.subr.mxu0 0.0
    %7219 = vmatpush1.msra.mxu0 %v7016
    %7220 = vmatprep.subr.mxu0 0.0
    %7221 = vmatpush1.msra.mxu0 %v7015
    %7222 = vmatprep.subr.mxu0 0.0
    %7223 = vmatpush1.msra.mxu0 %v7014
    %7224 = vmatprep.subr.mxu0 0.0
    %7225 = vmatpush2.msra.mxu0 0.0
    %7226 = vmatprep.subr.mxu0 0.0
    %7227 = vmatpush2.msra.mxu0 0.0
    %7228 = vmatprep.subr.mxu0 0.0
    %7229 = vmatpush2.msra.mxu0 0.0
    %7230 = vmatprep.subr.mxu0 0.0
    %7231 = vmatpush2.msra.mxu0 0.0
    %7232 = vmatprep.subr.mxu0 0.0
    %7233 = vmatpush2.msra.mxu0 0.0
    %7234 = vmatprep.subr.mxu0 0.0
    %7235 = vmatpush2.msra.mxu0 0.0
    %7236 = vmatprep.subr.mxu0 0.0
    %7237 = vmatpush2.msra.mxu0 0.0
    %7238 = vmatprep.subr.mxu0 0.0
    %7239 = vmatpush2.msra.mxu0 0.0
    %7240 = vmatprep.subr.mxu0 0.0
    %7241 = vmatpush2.msra.mxu0 0.0
    %7242 = vmatprep.subr.mxu0 0.0
    %7243 = vmatpush2.msra.mxu0 0.0
    %7244 = vmatprep.subr.mxu0 0.0
    %7245 = vmatpush2.msra.mxu0 0.0
    %7246 = vmatprep.subr.mxu0 0.0
    %7247 = vmatpush2.msra.mxu0 0.0
    %7248 = vmatprep.subr.mxu0 0.0
    %7249 = vmatpush2.msra.mxu0 0.0
    %7250 = vmatprep.subr.mxu0 0.0
    %7251 = vmatpush2.msra.mxu0 0.0
    %7252 = vmatprep.subr.mxu0 0.0
    %7253 = vmatpush2.msra.mxu0 0.0
    %7254 = vmatprep.subr.mxu0 0.0
    %7255 = vmatpush2.msra.mxu0 0.0
    %7256 = vmatprep.mubr.f32.mxu0 0.0
    %7257 = vmatmul.mubr.f32.gmra.mxu0 %v5840
    %v7258 = vpop.f32.mrf.mxu0
    %v7259 = vadd.f32 %v7114, %v7258
    %v7260 = vpop.f32.mrf.mxu0
    %7261 = vmatprep.mubr.f32.mxu0 0.0
    %7262 = vmatmul.mubr.f32.gmra.mxu0 %v5841
    %v7263 = vpop.f32.mrf.mxu0
    %v7264 = vadd.f32 %v7119, %v7263
    %v7265 = vpop.f32.mrf.mxu0
    %7266 = vmatprep.mubr.f32.mxu0 0.0
    %7267 = vmatmul.mubr.f32.gmra.mxu0 %v5842
    %v7268 = vpop.f32.mrf.mxu0
    %v7269 = vadd.f32 %v7124, %v7268
    %v7270 = vpop.f32.mrf.mxu0
    %7271 = vmatprep.mubr.f32.mxu0 0.0
    %7272 = vmatmul.mubr.f32.gmra.mxu0 %v5843
    %v7273 = vpop.f32.mrf.mxu0
    %v7274 = vadd.f32 %v7129, %v7273
    %v7275 = vpop.f32.mrf.mxu0
    %7276 = vmatprep.mubr.f32.mxu0 0.0
    %7277 = vmatmul.mubr.f32.gmra.mxu0 %v5844
    %v7278 = vpop.f32.mrf.mxu0
    %v7279 = vadd.f32 %v7134, %v7278
    %v7280 = vpop.f32.mrf.mxu0
    %7281 = vmatprep.mubr.f32.mxu0 0.0
    %7282 = vmatmul.mubr.f32.gmra.mxu0 %v5845
    %v7283 = vpop.f32.mrf.mxu0
    %v7284 = vadd.f32 %v7139, %v7283
    %v7285 = vpop.f32.mrf.mxu0
    %7286 = vmatprep.mubr.f32.mxu0 0.0
    %7287 = vmatmul.mubr.f32.gmra.mxu0 %v5846
    %v7288 = vpop.f32.mrf.mxu0
    %v7289 = vadd.f32 %v7144, %v7288
    %v7290 = vpop.f32.mrf.mxu0
    %7291 = vmatprep.mubr.f32.mxu0 0.0
    %7292 = vmatmul.mubr.f32.gmra.mxu0 %v5847
    %v7293 = vpop.f32.mrf.mxu0
    %v7294 = vadd.f32 %v7149, %v7293
    %v7295 = vpop.f32.mrf.mxu0
    %7296 = vmatprep.mubr.f32.mxu0 0.0
    %7297 = vmatmul.mubr.f32.gmra.mxu0 %v5848
    %v7298 = vpop.f32.mrf.mxu0
    %v7299 = vadd.f32 %v7154, %v7298
    %v7300 = vpop.f32.mrf.mxu0
    %7301 = vmatprep.mubr.f32.mxu0 0.0
    %7302 = vmatmul.mubr.f32.gmra.mxu0 %v5849
    %v7303 = vpop.f32.mrf.mxu0
    %v7304 = vadd.f32 %v7159, %v7303
    %v7305 = vpop.f32.mrf.mxu0
    %7306 = vmatprep.mubr.f32.mxu0 0.0
    %7307 = vmatmul.mubr.f32.gmra.mxu0 %v5850
    %v7308 = vpop.f32.mrf.mxu0
    %v7309 = vadd.f32 %v7164, %v7308
    %v7310 = vpop.f32.mrf.mxu0
    %7311 = vmatprep.mubr.f32.mxu0 0.0
    %7312 = vmatmul.mubr.f32.gmra.mxu0 %v5851
    %v7313 = vpop.f32.mrf.mxu0
    %v7314 = vadd.f32 %v7169, %v7313
    %v7315 = vpop.f32.mrf.mxu0
    %7316 = vmatprep.mubr.f32.mxu0 0.0
    %7317 = vmatmul.mubr.f32.gmra.mxu0 %v5852
    %v7318 = vpop.f32.mrf.mxu0
    %v7319 = vadd.f32 %v7174, %v7318
    %v7320 = vpop.f32.mrf.mxu0
    %7321 = vmatprep.mubr.f32.mxu0 0.0
    %7322 = vmatmul.mubr.f32.gmra.mxu0 %v5853
    %v7323 = vpop.f32.mrf.mxu0
    %v7324 = vadd.f32 %v7179, %v7323
    %v7325 = vpop.f32.mrf.mxu0
    %7326 = vmatprep.mubr.f32.mxu0 0.0
    %7327 = vmatmul.mubr.f32.gmra.mxu0 %v5854
    %v7328 = vpop.f32.mrf.mxu0
    %v7329 = vadd.f32 %v7184, %v7328
    %v7330 = vpop.f32.mrf.mxu0
    %7331 = vmatprep.mubr.f32.mxu0 0.0
    %7332 = vmatmul.mubr.f32.gmra.mxu0 %v5855
    %v7333 = vpop.f32.mrf.mxu0
    %v7334 = vadd.f32 %v7189, %v7333
    %v7335 = vpop.f32.mrf.mxu0
    %7336 = vdwg.mxu0
    %v7337 = vld [vmem:[%s19 + $0x3] sm:$0x1]
    %v7338 = vlaneseq
    %v7339 = vshrl.u32 %v7338, 7
    %v7340 = vsub.s32 0, %v7339
    %v7341 = vrot.slane %v7337, %v7340
    %v7342 = vadd.f32 %v7259, %v7341
    %v7343 = vadd.f32 %v7264, %v7341
    %v7344 = vadd.f32 %v7269, %v7341
    %v7345 = vadd.f32 %v7274, %v7341
    %v7346 = vadd.f32 %v7279, %v7341
    %v7347 = vadd.f32 %v7284, %v7341
    %v7348 = vadd.f32 %v7289, %v7341
    %v7349 = vadd.f32 %v7294, %v7341
    %v7350 = vadd.f32 %v7299, %v7341
    %v7351 = vadd.f32 %v7304, %v7341
    %v7352 = vadd.f32 %v7309, %v7341
    %v7353 = vadd.f32 %v7314, %v7341
    %v7354 = vadd.f32 %v7319, %v7341
    %v7355 = vadd.f32 %v7324, %v7341
    %v7356 = vadd.f32 %v7329, %v7341
    %v7357 = vadd.f32 %v7334, %v7341
    %v7358 = vmax.f32 %v7342, 0.0
    %v7359 = vmax.f32 %v7343, 0.0
    %v7360 = vmax.f32 %v7344, 0.0
    %v7361 = vmax.f32 %v7345, 0.0
    %v7362 = vmax.f32 %v7346, 0.0
    %v7363 = vmax.f32 %v7347, 0.0
    %v7364 = vmax.f32 %v7348, 0.0
    %v7365 = vmax.f32 %v7349, 0.0
    %v7366 = vmax.f32 %v7350, 0.0
    %v7367 = vmax.f32 %v7351, 0.0
    %v7368 = vmax.f32 %v7352, 0.0
    %v7369 = vmax.f32 %v7353, 0.0
    %v7370 = vmax.f32 %v7354, 0.0
    %v7371 = vmax.f32 %v7355, 0.0
    %v7372 = vmax.f32 %v7356, 0.0
    %v7373 = vmax.f32 %v7357, 0.0
    %s7374 = scalar_lea.vmem [#allocation23], 384
    %v7375 = vld [vmem:[%s7374] sm:$0xff]
    %v7376 = vld [vmem:[%s7374 + $0x8] sm:$0xff]
    %v7377 = vld [vmem:[%s7374 + $0x10] sm:$0xff]
    %v7378 = vld [vmem:[%s7374 + $0x18] sm:$0xff]
    %v7379 = vld [vmem:[%s7374 + $0x20] sm:$0xff]
    %v7380 = vld [vmem:[%s7374 + $0x28] sm:$0xff]
    %v7381 = vld [vmem:[%s7374 + $0x30] sm:$0xff]
    %v7382 = vld [vmem:[%s7374 + $0x38] sm:$0xff]
    %v7383 = vld [vmem:[%s7374 + $0x40] sm:$0xff]
    %v7384 = vld [vmem:[%s7374 + $0x48] sm:$0xff]
    %v7385 = vld [vmem:[%s7374 + $0x50] sm:$0xff]
    %v7386 = vld [vmem:[%s7374 + $0x58] sm:$0xff]
    %v7387 = vld [vmem:[%s7374 + $0x60] sm:$0xff]
    %v7388 = vld [vmem:[%s7374 + $0x68] sm:$0xff]
    %v7389 = vld [vmem:[%s7374 + $0x70] sm:$0xff]
    %v7390 = vld [vmem:[%s7374 + $0x78] sm:$0xff]
    %v7391 = vld [vmem:[%s21 + $0x3] sm:$0x1]
    %v7392 = vlaneseq
    %v7393 = vshrl.u32 %v7392, 7
    %v7394 = vsub.s32 0, %v7393
    %v7395 = vrot.slane %v7391, %v7394
    %7396 = vmatprep.subr.mxu0 0.0
    %7397 = vmatpush1.msra.mxu0 %v7390
    %7398 = vmatprep.subr.mxu0 0.0
    %7399 = vmatpush1.msra.mxu0 %v7389
    %7400 = vmatprep.subr.mxu0 0.0
    %7401 = vmatpush1.msra.mxu0 %v7388
    %7402 = vmatprep.subr.mxu0 0.0
    %7403 = vmatpush1.msra.mxu0 %v7387
    %7404 = vmatprep.subr.mxu0 0.0
    %7405 = vmatpush1.msra.mxu0 %v7386
    %7406 = vmatprep.subr.mxu0 0.0
    %7407 = vmatpush1.msra.mxu0 %v7385
    %7408 = vmatprep.subr.mxu0 0.0
    %7409 = vmatpush1.msra.mxu0 %v7384
    %7410 = vmatprep.subr.mxu0 0.0
    %7411 = vmatpush1.msra.mxu0 %v7383
    %7412 = vmatprep.subr.mxu0 0.0
    %7413 = vmatpush1.msra.mxu0 %v7382
    %7414 = vmatprep.subr.mxu0 0.0
    %7415 = vmatpush1.msra.mxu0 %v7381
    %7416 = vmatprep.subr.mxu0 0.0
    %7417 = vmatpush1.msra.mxu0 %v7380
    %7418 = vmatprep.subr.mxu0 0.0
    %7419 = vmatpush1.msra.mxu0 %v7379
    %7420 = vmatprep.subr.mxu0 0.0
    %7421 = vmatpush1.msra.mxu0 %v7378
    %7422 = vmatprep.subr.mxu0 0.0
    %7423 = vmatpush1.msra.mxu0 %v7377
    %7424 = vmatprep.subr.mxu0 0.0
    %7425 = vmatpush1.msra.mxu0 %v7376
    %7426 = vmatprep.subr.mxu0 0.0
    %7427 = vmatpush1.msra.mxu0 %v7375
    %7428 = vmatprep.subr.mxu0 0.0
    %7429 = vmatpush2.msra.mxu0 0.0
    %7430 = vmatprep.subr.mxu0 0.0
    %7431 = vmatpush2.msra.mxu0 0.0
    %7432 = vmatprep.subr.mxu0 0.0
    %7433 = vmatpush2.msra.mxu0 0.0
    %7434 = vmatprep.subr.mxu0 0.0
    %7435 = vmatpush2.msra.mxu0 0.0
    %7436 = vmatprep.subr.mxu0 0.0
    %7437 = vmatpush2.msra.mxu0 0.0
    %7438 = vmatprep.subr.mxu0 0.0
    %7439 = vmatpush2.msra.mxu0 0.0
    %7440 = vmatprep.subr.mxu0 0.0
    %7441 = vmatpush2.msra.mxu0 0.0
    %7442 = vmatprep.subr.mxu0 0.0
    %7443 = vmatpush2.msra.mxu0 0.0
    %7444 = vmatprep.subr.mxu0 0.0
    %7445 = vmatpush2.msra.mxu0 0.0
    %7446 = vmatprep.subr.mxu0 0.0
    %7447 = vmatpush2.msra.mxu0 0.0
    %7448 = vmatprep.subr.mxu0 0.0
    %7449 = vmatpush2.msra.mxu0 0.0
    %7450 = vmatprep.subr.mxu0 0.0
    %7451 = vmatpush2.msra.mxu0 0.0
    %7452 = vmatprep.subr.mxu0 0.0
    %7453 = vmatpush2.msra.mxu0 0.0
    %7454 = vmatprep.subr.mxu0 0.0
    %7455 = vmatpush2.msra.mxu0 0.0
    %7456 = vmatprep.subr.mxu0 0.0
    %7457 = vmatpush2.msra.mxu0 0.0
    %7458 = vmatprep.subr.mxu0 0.0
    %7459 = vmatpush2.msra.mxu0 0.0
    %7460 = vmatprep.mubr.f32.mxu0 0.0
    %7461 = vmatmul.mubr.f32.gmra.mxu0 %v7358
    %v7462 = vpop.f32.mrf.mxu0
    %v7463 = vadd.f32 %v7395, %v7462
    %v7464 = vpop.f32.mrf.mxu0
    %7465 = vmatprep.mubr.f32.mxu0 0.0
    %7466 = vmatmul.mubr.f32.gmra.mxu0 %v7359
    %v7467 = vpop.f32.mrf.mxu0
    %v7468 = vadd.f32 %v7395, %v7467
    %v7469 = vpop.f32.mrf.mxu0
    %7470 = vmatprep.mubr.f32.mxu0 0.0
    %7471 = vmatmul.mubr.f32.gmra.mxu0 %v7360
    %v7472 = vpop.f32.mrf.mxu0
    %v7473 = vadd.f32 %v7395, %v7472
    %v7474 = vpop.f32.mrf.mxu0
    %7475 = vmatprep.mubr.f32.mxu0 0.0
    %7476 = vmatmul.mubr.f32.gmra.mxu0 %v7361
    %v7477 = vpop.f32.mrf.mxu0
    %v7478 = vadd.f32 %v7395, %v7477
    %v7479 = vpop.f32.mrf.mxu0
    %7480 = vmatprep.mubr.f32.mxu0 0.0
    %7481 = vmatmul.mubr.f32.gmra.mxu0 %v7362
    %v7482 = vpop.f32.mrf.mxu0
    %v7483 = vadd.f32 %v7395, %v7482
    %v7484 = vpop.f32.mrf.mxu0
    %7485 = vmatprep.mubr.f32.mxu0 0.0
    %7486 = vmatmul.mubr.f32.gmra.mxu0 %v7363
    %v7487 = vpop.f32.mrf.mxu0
    %v7488 = vadd.f32 %v7395, %v7487
    %v7489 = vpop.f32.mrf.mxu0
    %7490 = vmatprep.mubr.f32.mxu0 0.0
    %7491 = vmatmul.mubr.f32.gmra.mxu0 %v7364
    %v7492 = vpop.f32.mrf.mxu0
    %v7493 = vadd.f32 %v7395, %v7492
    %v7494 = vpop.f32.mrf.mxu0
    %7495 = vmatprep.mubr.f32.mxu0 0.0
    %7496 = vmatmul.mubr.f32.gmra.mxu0 %v7365
    %v7497 = vpop.f32.mrf.mxu0
    %v7498 = vadd.f32 %v7395, %v7497
    %v7499 = vpop.f32.mrf.mxu0
    %7500 = vmatprep.mubr.f32.mxu0 0.0
    %7501 = vmatmul.mubr.f32.gmra.mxu0 %v7366
    %v7502 = vpop.f32.mrf.mxu0
    %v7503 = vadd.f32 %v7395, %v7502
    %v7504 = vpop.f32.mrf.mxu0
    %7505 = vmatprep.mubr.f32.mxu0 0.0
    %7506 = vmatmul.mubr.f32.gmra.mxu0 %v7367
    %v7507 = vpop.f32.mrf.mxu0
    %v7508 = vadd.f32 %v7395, %v7507
    %v7509 = vpop.f32.mrf.mxu0
    %7510 = vmatprep.mubr.f32.mxu0 0.0
    %7511 = vmatmul.mubr.f32.gmra.mxu0 %v7368
    %v7512 = vpop.f32.mrf.mxu0
    %v7513 = vadd.f32 %v7395, %v7512
    %v7514 = vpop.f32.mrf.mxu0
    %7515 = vmatprep.mubr.f32.mxu0 0.0
    %7516 = vmatmul.mubr.f32.gmra.mxu0 %v7369
    %v7517 = vpop.f32.mrf.mxu0
    %v7518 = vadd.f32 %v7395, %v7517
    %v7519 = vpop.f32.mrf.mxu0
    %7520 = vmatprep.mubr.f32.mxu0 0.0
    %7521 = vmatmul.mubr.f32.gmra.mxu0 %v7370
    %v7522 = vpop.f32.mrf.mxu0
    %v7523 = vadd.f32 %v7395, %v7522
    %v7524 = vpop.f32.mrf.mxu0
    %7525 = vmatprep.mubr.f32.mxu0 0.0
    %7526 = vmatmul.mubr.f32.gmra.mxu0 %v7371
    %v7527 = vpop.f32.mrf.mxu0
    %v7528 = vadd.f32 %v7395, %v7527
    %v7529 = vpop.f32.mrf.mxu0
    %7530 = vmatprep.mubr.f32.mxu0 0.0
    %7531 = vmatmul.mubr.f32.gmra.mxu0 %v7372
    %v7532 = vpop.f32.mrf.mxu0
    %v7533 = vadd.f32 %v7395, %v7532
    %v7534 = vpop.f32.mrf.mxu0
    %7535 = vmatprep.mubr.f32.mxu0 0.0
    %7536 = vmatmul.mubr.f32.gmra.mxu0 %v7373
    %v7537 = vpop.f32.mrf.mxu0
    %v7538 = vadd.f32 %v7395, %v7537
    %v7539 = vpop.f32.mrf.mxu0
    %7540 = vdwg.mxu0
    %v7541 = vmul.f32 %v7463, %v2184
    %v7542 = vmul.f32 %v7468, %v2189
    %v7543 = vmul.f32 %v7473, %v2194
    %v7544 = vmul.f32 %v7478, %v2199
    %v7545 = vmul.f32 %v7483, %v2204
    %v7546 = vmul.f32 %v7488, %v2209
    %v7547 = vmul.f32 %v7493, %v2214
    %v7548 = vmul.f32 %v7498, %v2219
    %v7549 = vmul.f32 %v7503, %v2224
    %v7550 = vmul.f32 %v7508, %v2229
    %v7551 = vmul.f32 %v7513, %v2234
    %v7552 = vmul.f32 %v7518, %v2239
    %v7553 = vmul.f32 %v7523, %v2244
    %v7554 = vmul.f32 %v7528, %v2249
    %v7555 = vmul.f32 %v7533, %v2254
    %v7556 = vmul.f32 %v7538, %v2259
    %s7557 = scalar_lea.vmem [#allocation14], 512
    %v7558 = vld [vmem:[%s7557] sm:$0xff]
    %v7559 = vld [vmem:[%s7557 + $0x8] sm:$0xff]
    %v7560 = vld [vmem:[%s7557 + $0x10] sm:$0xff]
    %v7561 = vld [vmem:[%s7557 + $0x18] sm:$0xff]
    %v7562 = vld [vmem:[%s7557 + $0x20] sm:$0xff]
    %v7563 = vld [vmem:[%s7557 + $0x28] sm:$0xff]
    %v7564 = vld [vmem:[%s7557 + $0x30] sm:$0xff]
    %v7565 = vld [vmem:[%s7557 + $0x38] sm:$0xff]
    %v7566 = vld [vmem:[%s7557 + $0x40] sm:$0xff]
    %v7567 = vld [vmem:[%s7557 + $0x48] sm:$0xff]
    %v7568 = vld [vmem:[%s7557 + $0x50] sm:$0xff]
    %v7569 = vld [vmem:[%s7557 + $0x58] sm:$0xff]
    %v7570 = vld [vmem:[%s7557 + $0x60] sm:$0xff]
    %v7571 = vld [vmem:[%s7557 + $0x68] sm:$0xff]
    %v7572 = vld [vmem:[%s7557 + $0x70] sm:$0xff]
    %v7573 = vld [vmem:[%s7557 + $0x78] sm:$0xff]
    %7574 = vmatprep.subr.mxu0 0.0
    %7575 = vmatpush1.msra.mxu0 %v7573
    %7576 = vmatprep.subr.mxu0 0.0
    %7577 = vmatpush1.msra.mxu0 %v7572
    %7578 = vmatprep.subr.mxu0 0.0
    %7579 = vmatpush1.msra.mxu0 %v7571
    %7580 = vmatprep.subr.mxu0 0.0
    %7581 = vmatpush1.msra.mxu0 %v7570
    %7582 = vmatprep.subr.mxu0 0.0
    %7583 = vmatpush1.msra.mxu0 %v7569
    %7584 = vmatprep.subr.mxu0 0.0
    %7585 = vmatpush1.msra.mxu0 %v7568
    %7586 = vmatprep.subr.mxu0 0.0
    %7587 = vmatpush1.msra.mxu0 %v7567
    %7588 = vmatprep.subr.mxu0 0.0
    %7589 = vmatpush1.msra.mxu0 %v7566
    %7590 = vmatprep.subr.mxu0 0.0
    %7591 = vmatpush1.msra.mxu0 %v7565
    %7592 = vmatprep.subr.mxu0 0.0
    %7593 = vmatpush1.msra.mxu0 %v7564
    %7594 = vmatprep.subr.mxu0 0.0
    %7595 = vmatpush1.msra.mxu0 %v7563
    %7596 = vmatprep.subr.mxu0 0.0
    %7597 = vmatpush1.msra.mxu0 %v7562
    %7598 = vmatprep.subr.mxu0 0.0
    %7599 = vmatpush1.msra.mxu0 %v7561
    %7600 = vmatprep.subr.mxu0 0.0
    %7601 = vmatpush1.msra.mxu0 %v7560
    %7602 = vmatprep.subr.mxu0 0.0
    %7603 = vmatpush1.msra.mxu0 %v7559
    %7604 = vmatprep.subr.mxu0 0.0
    %7605 = vmatpush1.msra.mxu0 %v7558
    %7606 = vmatprep.subr.mxu0 0.0
    %7607 = vmatpush2.msra.mxu0 0.0
    %7608 = vmatprep.subr.mxu0 0.0
    %7609 = vmatpush2.msra.mxu0 0.0
    %7610 = vmatprep.subr.mxu0 0.0
    %7611 = vmatpush2.msra.mxu0 0.0
    %7612 = vmatprep.subr.mxu0 0.0
    %7613 = vmatpush2.msra.mxu0 0.0
    %7614 = vmatprep.subr.mxu0 0.0
    %7615 = vmatpush2.msra.mxu0 0.0
    %7616 = vmatprep.subr.mxu0 0.0
    %7617 = vmatpush2.msra.mxu0 0.0
    %7618 = vmatprep.subr.mxu0 0.0
    %7619 = vmatpush2.msra.mxu0 0.0
    %7620 = vmatprep.subr.mxu0 0.0
    %7621 = vmatpush2.msra.mxu0 0.0
    %7622 = vmatprep.subr.mxu0 0.0
    %7623 = vmatpush2.msra.mxu0 0.0
    %7624 = vmatprep.subr.mxu0 0.0
    %7625 = vmatpush2.msra.mxu0 0.0
    %7626 = vmatprep.subr.mxu0 0.0
    %7627 = vmatpush2.msra.mxu0 0.0
    %7628 = vmatprep.subr.mxu0 0.0
    %7629 = vmatpush2.msra.mxu0 0.0
    %7630 = vmatprep.subr.mxu0 0.0
    %7631 = vmatpush2.msra.mxu0 0.0
    %7632 = vmatprep.subr.mxu0 0.0
    %7633 = vmatpush2.msra.mxu0 0.0
    %7634 = vmatprep.subr.mxu0 0.0
    %7635 = vmatpush2.msra.mxu0 0.0
    %7636 = vmatprep.subr.mxu0 0.0
    %7637 = vmatpush2.msra.mxu0 0.0
    %7638 = vmatprep.mubr.f32.mxu0 0.0
    %7639 = vmatmul.mubr.f32.gmra.mxu0 %v7541
    %v7640 = vpop.f32.mrf.mxu0
    %v7641 = vadd.f32 0.0, %v7640
    %v7642 = vpop.f32.mrf.mxu0
    %7643 = vmatprep.mubr.f32.mxu0 0.0
    %7644 = vmatmul.mubr.f32.gmra.mxu0 %v7542
    %v7645 = vpop.f32.mrf.mxu0
    %v7646 = vadd.f32 0.0, %v7645
    %v7647 = vpop.f32.mrf.mxu0
    %7648 = vmatprep.mubr.f32.mxu0 0.0
    %7649 = vmatmul.mubr.f32.gmra.mxu0 %v7543
    %v7650 = vpop.f32.mrf.mxu0
    %v7651 = vadd.f32 0.0, %v7650
    %v7652 = vpop.f32.mrf.mxu0
    %7653 = vmatprep.mubr.f32.mxu0 0.0
    %7654 = vmatmul.mubr.f32.gmra.mxu0 %v7544
    %v7655 = vpop.f32.mrf.mxu0
    %v7656 = vadd.f32 0.0, %v7655
    %v7657 = vpop.f32.mrf.mxu0
    %7658 = vmatprep.mubr.f32.mxu0 0.0
    %7659 = vmatmul.mubr.f32.gmra.mxu0 %v7545
    %v7660 = vpop.f32.mrf.mxu0
    %v7661 = vadd.f32 0.0, %v7660
    %v7662 = vpop.f32.mrf.mxu0
    %7663 = vmatprep.mubr.f32.mxu0 0.0
    %7664 = vmatmul.mubr.f32.gmra.mxu0 %v7546
    %v7665 = vpop.f32.mrf.mxu0
    %v7666 = vadd.f32 0.0, %v7665
    %v7667 = vpop.f32.mrf.mxu0
    %7668 = vmatprep.mubr.f32.mxu0 0.0
    %7669 = vmatmul.mubr.f32.gmra.mxu0 %v7547
    %v7670 = vpop.f32.mrf.mxu0
    %v7671 = vadd.f32 0.0, %v7670
    %v7672 = vpop.f32.mrf.mxu0
    %7673 = vmatprep.mubr.f32.mxu0 0.0
    %7674 = vmatmul.mubr.f32.gmra.mxu0 %v7548
    %v7675 = vpop.f32.mrf.mxu0
    %v7676 = vadd.f32 0.0, %v7675
    %v7677 = vpop.f32.mrf.mxu0
    %7678 = vmatprep.mubr.f32.mxu0 0.0
    %7679 = vmatmul.mubr.f32.gmra.mxu0 %v7549
    %v7680 = vpop.f32.mrf.mxu0
    %v7681 = vadd.f32 0.0, %v7680
    %v7682 = vpop.f32.mrf.mxu0
    %7683 = vmatprep.mubr.f32.mxu0 0.0
    %7684 = vmatmul.mubr.f32.gmra.mxu0 %v7550
    %v7685 = vpop.f32.mrf.mxu0
    %v7686 = vadd.f32 0.0, %v7685
    %v7687 = vpop.f32.mrf.mxu0
    %7688 = vmatprep.mubr.f32.mxu0 0.0
    %7689 = vmatmul.mubr.f32.gmra.mxu0 %v7551
    %v7690 = vpop.f32.mrf.mxu0
    %v7691 = vadd.f32 0.0, %v7690
    %v7692 = vpop.f32.mrf.mxu0
    %7693 = vmatprep.mubr.f32.mxu0 0.0
    %7694 = vmatmul.mubr.f32.gmra.mxu0 %v7552
    %v7695 = vpop.f32.mrf.mxu0
    %v7696 = vadd.f32 0.0, %v7695
    %v7697 = vpop.f32.mrf.mxu0
    %7698 = vmatprep.mubr.f32.mxu0 0.0
    %7699 = vmatmul.mubr.f32.gmra.mxu0 %v7553
    %v7700 = vpop.f32.mrf.mxu0
    %v7701 = vadd.f32 0.0, %v7700
    %v7702 = vpop.f32.mrf.mxu0
    %7703 = vmatprep.mubr.f32.mxu0 0.0
    %7704 = vmatmul.mubr.f32.gmra.mxu0 %v7554
    %v7705 = vpop.f32.mrf.mxu0
    %v7706 = vadd.f32 0.0, %v7705
    %v7707 = vpop.f32.mrf.mxu0
    %7708 = vmatprep.mubr.f32.mxu0 0.0
    %7709 = vmatmul.mubr.f32.gmra.mxu0 %v7555
    %v7710 = vpop.f32.mrf.mxu0
    %v7711 = vadd.f32 0.0, %v7710
    %v7712 = vpop.f32.mrf.mxu0
    %7713 = vmatprep.mubr.f32.mxu0 0.0
    %7714 = vmatmul.mubr.f32.gmra.mxu0 %v7556
    %v7715 = vpop.f32.mrf.mxu0
    %v7716 = vadd.f32 0.0, %v7715
    %v7717 = vpop.f32.mrf.mxu0
    %7718 = vdwg.mxu0
    %s7719 = scalar_lea.vmem [#allocation16], 512
    %v7720 = vld [vmem:[%s7719] sm:$0xff]
    %v7721 = vld [vmem:[%s7719 + $0x8] sm:$0xff]
    %v7722 = vld [vmem:[%s7719 + $0x10] sm:$0xff]
    %v7723 = vld [vmem:[%s7719 + $0x18] sm:$0xff]
    %v7724 = vld [vmem:[%s7719 + $0x20] sm:$0xff]
    %v7725 = vld [vmem:[%s7719 + $0x28] sm:$0xff]
    %v7726 = vld [vmem:[%s7719 + $0x30] sm:$0xff]
    %v7727 = vld [vmem:[%s7719 + $0x38] sm:$0xff]
    %v7728 = vld [vmem:[%s7719 + $0x40] sm:$0xff]
    %v7729 = vld [vmem:[%s7719 + $0x48] sm:$0xff]
    %v7730 = vld [vmem:[%s7719 + $0x50] sm:$0xff]
    %v7731 = vld [vmem:[%s7719 + $0x58] sm:$0xff]
    %v7732 = vld [vmem:[%s7719 + $0x60] sm:$0xff]
    %v7733 = vld [vmem:[%s7719 + $0x68] sm:$0xff]
    %v7734 = vld [vmem:[%s7719 + $0x70] sm:$0xff]
    %v7735 = vld [vmem:[%s7719 + $0x78] sm:$0xff]
    %7736 = vmatprep.subr.mxu0 0.0
    %7737 = vmatpush1.msra.mxu0 %v7735
    %7738 = vmatprep.subr.mxu0 0.0
    %7739 = vmatpush1.msra.mxu0 %v7734
    %7740 = vmatprep.subr.mxu0 0.0
    %7741 = vmatpush1.msra.mxu0 %v7733
    %7742 = vmatprep.subr.mxu0 0.0
    %7743 = vmatpush1.msra.mxu0 %v7732
    %7744 = vmatprep.subr.mxu0 0.0
    %7745 = vmatpush1.msra.mxu0 %v7731
    %7746 = vmatprep.subr.mxu0 0.0
    %7747 = vmatpush1.msra.mxu0 %v7730
    %7748 = vmatprep.subr.mxu0 0.0
    %7749 = vmatpush1.msra.mxu0 %v7729
    %7750 = vmatprep.subr.mxu0 0.0
    %7751 = vmatpush1.msra.mxu0 %v7728
    %7752 = vmatprep.subr.mxu0 0.0
    %7753 = vmatpush1.msra.mxu0 %v7727
    %7754 = vmatprep.subr.mxu0 0.0
    %7755 = vmatpush1.msra.mxu0 %v7726
    %7756 = vmatprep.subr.mxu0 0.0
    %7757 = vmatpush1.msra.mxu0 %v7725
    %7758 = vmatprep.subr.mxu0 0.0
    %7759 = vmatpush1.msra.mxu0 %v7724
    %7760 = vmatprep.subr.mxu0 0.0
    %7761 = vmatpush1.msra.mxu0 %v7723
    %7762 = vmatprep.subr.mxu0 0.0
    %7763 = vmatpush1.msra.mxu0 %v7722
    %7764 = vmatprep.subr.mxu0 0.0
    %7765 = vmatpush1.msra.mxu0 %v7721
    %7766 = vmatprep.subr.mxu0 0.0
    %7767 = vmatpush1.msra.mxu0 %v7720
    %7768 = vmatprep.subr.mxu0 0.0
    %7769 = vmatpush2.msra.mxu0 0.0
    %7770 = vmatprep.subr.mxu0 0.0
    %7771 = vmatpush2.msra.mxu0 0.0
    %7772 = vmatprep.subr.mxu0 0.0
    %7773 = vmatpush2.msra.mxu0 0.0
    %7774 = vmatprep.subr.mxu0 0.0
    %7775 = vmatpush2.msra.mxu0 0.0
    %7776 = vmatprep.subr.mxu0 0.0
    %7777 = vmatpush2.msra.mxu0 0.0
    %7778 = vmatprep.subr.mxu0 0.0
    %7779 = vmatpush2.msra.mxu0 0.0
    %7780 = vmatprep.subr.mxu0 0.0
    %7781 = vmatpush2.msra.mxu0 0.0
    %7782 = vmatprep.subr.mxu0 0.0
    %7783 = vmatpush2.msra.mxu0 0.0
    %7784 = vmatprep.subr.mxu0 0.0
    %7785 = vmatpush2.msra.mxu0 0.0
    %7786 = vmatprep.subr.mxu0 0.0
    %7787 = vmatpush2.msra.mxu0 0.0
    %7788 = vmatprep.subr.mxu0 0.0
    %7789 = vmatpush2.msra.mxu0 0.0
    %7790 = vmatprep.subr.mxu0 0.0
    %7791 = vmatpush2.msra.mxu0 0.0
    %7792 = vmatprep.subr.mxu0 0.0
    %7793 = vmatpush2.msra.mxu0 0.0
    %7794 = vmatprep.subr.mxu0 0.0
    %7795 = vmatpush2.msra.mxu0 0.0
    %7796 = vmatprep.subr.mxu0 0.0
    %7797 = vmatpush2.msra.mxu0 0.0
    %7798 = vmatprep.subr.mxu0 0.0
    %7799 = vmatpush2.msra.mxu0 0.0
    %7800 = vmatprep.mubr.f32.mxu0 0.0
    %7801 = vmatmul.mubr.f32.gmra.mxu0 %v7541
    %v7802 = vpop.f32.mrf.mxu0
    %v7803 = vadd.f32 0.0, %v7802
    %v7804 = vpop.f32.mrf.mxu0
    %7805 = vmatprep.mubr.f32.mxu0 0.0
    %7806 = vmatmul.mubr.f32.gmra.mxu0 %v7542
    %v7807 = vpop.f32.mrf.mxu0
    %v7808 = vadd.f32 0.0, %v7807
    %v7809 = vpop.f32.mrf.mxu0
    %7810 = vmatprep.mubr.f32.mxu0 0.0
    %7811 = vmatmul.mubr.f32.gmra.mxu0 %v7543
    %v7812 = vpop.f32.mrf.mxu0
    %v7813 = vadd.f32 0.0, %v7812
    %v7814 = vpop.f32.mrf.mxu0
    %7815 = vmatprep.mubr.f32.mxu0 0.0
    %7816 = vmatmul.mubr.f32.gmra.mxu0 %v7544
    %v7817 = vpop.f32.mrf.mxu0
    %v7818 = vadd.f32 0.0, %v7817
    %v7819 = vpop.f32.mrf.mxu0
    %7820 = vmatprep.mubr.f32.mxu0 0.0
    %7821 = vmatmul.mubr.f32.gmra.mxu0 %v7545
    %v7822 = vpop.f32.mrf.mxu0
    %v7823 = vadd.f32 0.0, %v7822
    %v7824 = vpop.f32.mrf.mxu0
    %7825 = vmatprep.mubr.f32.mxu0 0.0
    %7826 = vmatmul.mubr.f32.gmra.mxu0 %v7546
    %v7827 = vpop.f32.mrf.mxu0
    %v7828 = vadd.f32 0.0, %v7827
    %v7829 = vpop.f32.mrf.mxu0
    %7830 = vmatprep.mubr.f32.mxu0 0.0
    %7831 = vmatmul.mubr.f32.gmra.mxu0 %v7547
    %v7832 = vpop.f32.mrf.mxu0
    %v7833 = vadd.f32 0.0, %v7832
    %v7834 = vpop.f32.mrf.mxu0
    %7835 = vmatprep.mubr.f32.mxu0 0.0
    %7836 = vmatmul.mubr.f32.gmra.mxu0 %v7548
    %v7837 = vpop.f32.mrf.mxu0
    %v7838 = vadd.f32 0.0, %v7837
    %v7839 = vpop.f32.mrf.mxu0
    %7840 = vmatprep.mubr.f32.mxu0 0.0
    %7841 = vmatmul.mubr.f32.gmra.mxu0 %v7549
    %v7842 = vpop.f32.mrf.mxu0
    %v7843 = vadd.f32 0.0, %v7842
    %v7844 = vpop.f32.mrf.mxu0
    %7845 = vmatprep.mubr.f32.mxu0 0.0
    %7846 = vmatmul.mubr.f32.gmra.mxu0 %v7550
    %v7847 = vpop.f32.mrf.mxu0
    %v7848 = vadd.f32 0.0, %v7847
    %v7849 = vpop.f32.mrf.mxu0
    %7850 = vmatprep.mubr.f32.mxu0 0.0
    %7851 = vmatmul.mubr.f32.gmra.mxu0 %v7551
    %v7852 = vpop.f32.mrf.mxu0
    %v7853 = vadd.f32 0.0, %v7852
    %v7854 = vpop.f32.mrf.mxu0
    %7855 = vmatprep.mubr.f32.mxu0 0.0
    %7856 = vmatmul.mubr.f32.gmra.mxu0 %v7552
    %v7857 = vpop.f32.mrf.mxu0
    %v7858 = vadd.f32 0.0, %v7857
    %v7859 = vpop.f32.mrf.mxu0
    %7860 = vmatprep.mubr.f32.mxu0 0.0
    %7861 = vmatmul.mubr.f32.gmra.mxu0 %v7553
    %v7862 = vpop.f32.mrf.mxu0
    %v7863 = vadd.f32 0.0, %v7862
    %v7864 = vpop.f32.mrf.mxu0
    %7865 = vmatprep.mubr.f32.mxu0 0.0
    %7866 = vmatmul.mubr.f32.gmra.mxu0 %v7554
    %v7867 = vpop.f32.mrf.mxu0
    %v7868 = vadd.f32 0.0, %v7867
    %v7869 = vpop.f32.mrf.mxu0
    %7870 = vmatprep.mubr.f32.mxu0 0.0
    %7871 = vmatmul.mubr.f32.gmra.mxu0 %v7555
    %v7872 = vpop.f32.mrf.mxu0
    %v7873 = vadd.f32 0.0, %v7872
    %v7874 = vpop.f32.mrf.mxu0
    %7875 = vmatprep.mubr.f32.mxu0 0.0
    %7876 = vmatmul.mubr.f32.gmra.mxu0 %v7556
    %v7877 = vpop.f32.mrf.mxu0
    %v7878 = vadd.f32 0.0, %v7877
    %v7879 = vpop.f32.mrf.mxu0
    %7880 = vdwg.mxu0
    %7881 = vmatprep.subr.mxu0 0.0
    %7882 = vmatpush1.msra.mxu0 %v7878
    %7883 = vmatprep.subr.mxu0 0.0
    %7884 = vmatpush1.msra.mxu0 %v7873
    %7885 = vmatprep.subr.mxu0 0.0
    %7886 = vmatpush1.msra.mxu0 %v7868
    %7887 = vmatprep.subr.mxu0 0.0
    %7888 = vmatpush1.msra.mxu0 %v7863
    %7889 = vmatprep.subr.mxu0 0.0
    %7890 = vmatpush1.msra.mxu0 %v7858
    %7891 = vmatprep.subr.mxu0 0.0
    %7892 = vmatpush1.msra.mxu0 %v7853
    %7893 = vmatprep.subr.mxu0 0.0
    %7894 = vmatpush1.msra.mxu0 %v7848
    %7895 = vmatprep.subr.mxu0 0.0
    %7896 = vmatpush1.msra.mxu0 %v7843
    %7897 = vmatprep.subr.mxu0 0.0
    %7898 = vmatpush1.msra.mxu0 %v7838
    %7899 = vmatprep.subr.mxu0 0.0
    %7900 = vmatpush1.msra.mxu0 %v7833
    %7901 = vmatprep.subr.mxu0 0.0
    %7902 = vmatpush1.msra.mxu0 %v7828
    %7903 = vmatprep.subr.mxu0 0.0
    %7904 = vmatpush1.msra.mxu0 %v7823
    %7905 = vmatprep.subr.mxu0 0.0
    %7906 = vmatpush1.msra.mxu0 %v7818
    %7907 = vmatprep.subr.mxu0 0.0
    %7908 = vmatpush1.msra.mxu0 %v7813
    %7909 = vmatprep.subr.mxu0 0.0
    %7910 = vmatpush1.msra.mxu0 %v7808
    %7911 = vmatprep.subr.mxu0 0.0
    %7912 = vmatpush1.msra.mxu0 %v7803
    %7913 = vmatprep.subr.mxu0 0.0
    %7914 = vmatpush2.msra.mxu0 0.0
    %7915 = vmatprep.subr.mxu0 0.0
    %7916 = vmatpush2.msra.mxu0 0.0
    %7917 = vmatprep.subr.mxu0 0.0
    %7918 = vmatpush2.msra.mxu0 0.0
    %7919 = vmatprep.subr.mxu0 0.0
    %7920 = vmatpush2.msra.mxu0 0.0
    %7921 = vmatprep.subr.mxu0 0.0
    %7922 = vmatpush2.msra.mxu0 0.0
    %7923 = vmatprep.subr.mxu0 0.0
    %7924 = vmatpush2.msra.mxu0 0.0
    %7925 = vmatprep.subr.mxu0 0.0
    %7926 = vmatpush2.msra.mxu0 0.0
    %7927 = vmatprep.subr.mxu0 0.0
    %7928 = vmatpush2.msra.mxu0 0.0
    %7929 = vmatprep.subr.mxu0 0.0
    %7930 = vmatpush2.msra.mxu0 0.0
    %7931 = vmatprep.subr.mxu0 0.0
    %7932 = vmatpush2.msra.mxu0 0.0
    %7933 = vmatprep.subr.mxu0 0.0
    %7934 = vmatpush2.msra.mxu0 0.0
    %7935 = vmatprep.subr.mxu0 0.0
    %7936 = vmatpush2.msra.mxu0 0.0
    %7937 = vmatprep.subr.mxu0 0.0
    %7938 = vmatpush2.msra.mxu0 0.0
    %7939 = vmatprep.subr.mxu0 0.0
    %7940 = vmatpush2.msra.mxu0 0.0
    %7941 = vmatprep.subr.mxu0 0.0
    %7942 = vmatpush2.msra.mxu0 0.0
    %7943 = vmatprep.subr.mxu0 0.0
    %7944 = vmatpush2.msra.mxu0 0.0
    %7945 = vmatprep.mubr.f32.mxu0 0.0
    %7946 = vmatmul.mubr.f32.gmra.mxu0 %v343
    %v7947 = vpop.f32.mrf.mxu0
    %v7948 = vadd.f32 0.0, %v7947
    %v7949 = vpop.f32.mrf.mxu0
    %7950 = vmatprep.mubr.f32.mxu0 0.0
    %7951 = vmatmul.mubr.f32.gmra.mxu0 %v344
    %v7952 = vpop.f32.mrf.mxu0
    %v7953 = vadd.f32 0.0, %v7952
    %v7954 = vpop.f32.mrf.mxu0
    %7955 = vmatprep.mubr.f32.mxu0 0.0
    %7956 = vmatmul.mubr.f32.gmra.mxu0 %v345
    %v7957 = vpop.f32.mrf.mxu0
    %v7958 = vadd.f32 0.0, %v7957
    %v7959 = vpop.f32.mrf.mxu0
    %7960 = vmatprep.mubr.f32.mxu0 0.0
    %7961 = vmatmul.mubr.f32.gmra.mxu0 %v346
    %v7962 = vpop.f32.mrf.mxu0
    %v7963 = vadd.f32 0.0, %v7962
    %v7964 = vpop.f32.mrf.mxu0
    %7965 = vmatprep.mubr.f32.mxu0 0.0
    %7966 = vmatmul.mubr.f32.gmra.mxu0 %v347
    %v7967 = vpop.f32.mrf.mxu0
    %v7968 = vadd.f32 0.0, %v7967
    %v7969 = vpop.f32.mrf.mxu0
    %7970 = vmatprep.mubr.f32.mxu0 0.0
    %7971 = vmatmul.mubr.f32.gmra.mxu0 %v348
    %v7972 = vpop.f32.mrf.mxu0
    %v7973 = vadd.f32 0.0, %v7972
    %v7974 = vpop.f32.mrf.mxu0
    %7975 = vmatprep.mubr.f32.mxu0 0.0
    %7976 = vmatmul.mubr.f32.gmra.mxu0 %v349
    %v7977 = vpop.f32.mrf.mxu0
    %v7978 = vadd.f32 0.0, %v7977
    %v7979 = vpop.f32.mrf.mxu0
    %7980 = vmatprep.mubr.f32.mxu0 0.0
    %7981 = vmatmul.mubr.f32.gmra.mxu0 %v350
    %v7982 = vpop.f32.mrf.mxu0
    %v7983 = vadd.f32 0.0, %v7982
    %v7984 = vpop.f32.mrf.mxu0
    %7985 = vmatprep.mubr.f32.mxu0 0.0
    %7986 = vmatmul.mubr.f32.gmra.mxu0 %v351
    %v7987 = vpop.f32.mrf.mxu0
    %v7988 = vadd.f32 0.0, %v7987
    %v7989 = vpop.f32.mrf.mxu0
    %7990 = vmatprep.mubr.f32.mxu0 0.0
    %7991 = vmatmul.mubr.f32.gmra.mxu0 %v352
    %v7992 = vpop.f32.mrf.mxu0
    %v7993 = vadd.f32 0.0, %v7992
    %v7994 = vpop.f32.mrf.mxu0
    %7995 = vmatprep.mubr.f32.mxu0 0.0
    %7996 = vmatmul.mubr.f32.gmra.mxu0 %v353
    %v7997 = vpop.f32.mrf.mxu0
    %v7998 = vadd.f32 0.0, %v7997
    %v7999 = vpop.f32.mrf.mxu0
    %8000 = vmatprep.mubr.f32.mxu0 0.0
    %8001 = vmatmul.mubr.f32.gmra.mxu0 %v354
    %v8002 = vpop.f32.mrf.mxu0
    %v8003 = vadd.f32 0.0, %v8002
    %v8004 = vpop.f32.mrf.mxu0
    %8005 = vmatprep.mubr.f32.mxu0 0.0
    %8006 = vmatmul.mubr.f32.gmra.mxu0 %v355
    %v8007 = vpop.f32.mrf.mxu0
    %v8008 = vadd.f32 0.0, %v8007
    %v8009 = vpop.f32.mrf.mxu0
    %8010 = vmatprep.mubr.f32.mxu0 0.0
    %8011 = vmatmul.mubr.f32.gmra.mxu0 %v356
    %v8012 = vpop.f32.mrf.mxu0
    %v8013 = vadd.f32 0.0, %v8012
    %v8014 = vpop.f32.mrf.mxu0
    %8015 = vmatprep.mubr.f32.mxu0 0.0
    %8016 = vmatmul.mubr.f32.gmra.mxu0 %v357
    %v8017 = vpop.f32.mrf.mxu0
    %v8018 = vadd.f32 0.0, %v8017
    %v8019 = vpop.f32.mrf.mxu0
    %8020 = vmatprep.mubr.f32.mxu0 0.0
    %8021 = vmatmul.mubr.f32.gmra.mxu0 %v358
    %v8022 = vpop.f32.mrf.mxu0
    %v8023 = vadd.f32 0.0, %v8022
    %v8024 = vpop.f32.mrf.mxu0
    %8025 = vdwg.mxu0
    %8026 = vmatprep.subr.mxu0 0.0
    %8027 = vmatpush1.msra.mxu0 %v7716
    %8028 = vmatprep.subr.mxu0 0.0
    %8029 = vmatpush1.msra.mxu0 %v7711
    %8030 = vmatprep.subr.mxu0 0.0
    %8031 = vmatpush1.msra.mxu0 %v7706
    %8032 = vmatprep.subr.mxu0 0.0
    %8033 = vmatpush1.msra.mxu0 %v7701
    %8034 = vmatprep.subr.mxu0 0.0
    %8035 = vmatpush1.msra.mxu0 %v7696
    %8036 = vmatprep.subr.mxu0 0.0
    %8037 = vmatpush1.msra.mxu0 %v7691
    %8038 = vmatprep.subr.mxu0 0.0
    %8039 = vmatpush1.msra.mxu0 %v7686
    %8040 = vmatprep.subr.mxu0 0.0
    %8041 = vmatpush1.msra.mxu0 %v7681
    %8042 = vmatprep.subr.mxu0 0.0
    %8043 = vmatpush1.msra.mxu0 %v7676
    %8044 = vmatprep.subr.mxu0 0.0
    %8045 = vmatpush1.msra.mxu0 %v7671
    %8046 = vmatprep.subr.mxu0 0.0
    %8047 = vmatpush1.msra.mxu0 %v7666
    %8048 = vmatprep.subr.mxu0 0.0
    %8049 = vmatpush1.msra.mxu0 %v7661
    %8050 = vmatprep.subr.mxu0 0.0
    %8051 = vmatpush1.msra.mxu0 %v7656
    %8052 = vmatprep.subr.mxu0 0.0
    %8053 = vmatpush1.msra.mxu0 %v7651
    %8054 = vmatprep.subr.mxu0 0.0
    %8055 = vmatpush1.msra.mxu0 %v7646
    %8056 = vmatprep.subr.mxu0 0.0
    %8057 = vmatpush1.msra.mxu0 %v7641
    %8058 = vmatprep.subr.mxu0 0.0
    %8059 = vmatpush2.msra.mxu0 0.0
    %8060 = vmatprep.subr.mxu0 0.0
    %8061 = vmatpush2.msra.mxu0 0.0
    %8062 = vmatprep.subr.mxu0 0.0
    %8063 = vmatpush2.msra.mxu0 0.0
    %8064 = vmatprep.subr.mxu0 0.0
    %8065 = vmatpush2.msra.mxu0 0.0
    %8066 = vmatprep.subr.mxu0 0.0
    %8067 = vmatpush2.msra.mxu0 0.0
    %8068 = vmatprep.subr.mxu0 0.0
    %8069 = vmatpush2.msra.mxu0 0.0
    %8070 = vmatprep.subr.mxu0 0.0
    %8071 = vmatpush2.msra.mxu0 0.0
    %8072 = vmatprep.subr.mxu0 0.0
    %8073 = vmatpush2.msra.mxu0 0.0
    %8074 = vmatprep.subr.mxu0 0.0
    %8075 = vmatpush2.msra.mxu0 0.0
    %8076 = vmatprep.subr.mxu0 0.0
    %8077 = vmatpush2.msra.mxu0 0.0
    %8078 = vmatprep.subr.mxu0 0.0
    %8079 = vmatpush2.msra.mxu0 0.0
    %8080 = vmatprep.subr.mxu0 0.0
    %8081 = vmatpush2.msra.mxu0 0.0
    %8082 = vmatprep.subr.mxu0 0.0
    %8083 = vmatpush2.msra.mxu0 0.0
    %8084 = vmatprep.subr.mxu0 0.0
    %8085 = vmatpush2.msra.mxu0 0.0
    %8086 = vmatprep.subr.mxu0 0.0
    %8087 = vmatpush2.msra.mxu0 0.0
    %8088 = vmatprep.subr.mxu0 0.0
    %8089 = vmatpush2.msra.mxu0 0.0
    %8090 = vmatprep.mubr.f32.mxu0 0.0
    %8091 = vmatmul.mubr.f32.gmra.mxu0 %v311
    %v8092 = vpop.f32.mrf.mxu0
    %v8093 = vadd.f32 %v7948, %v8092
    %v8094 = vpop.f32.mrf.mxu0
    %8095 = vmatprep.mubr.f32.mxu0 0.0
    %8096 = vmatmul.mubr.f32.gmra.mxu0 %v312
    %v8097 = vpop.f32.mrf.mxu0
    %v8098 = vadd.f32 %v7953, %v8097
    %v8099 = vpop.f32.mrf.mxu0
    %8100 = vmatprep.mubr.f32.mxu0 0.0
    %8101 = vmatmul.mubr.f32.gmra.mxu0 %v313
    %v8102 = vpop.f32.mrf.mxu0
    %v8103 = vadd.f32 %v7958, %v8102
    %v8104 = vpop.f32.mrf.mxu0
    %8105 = vmatprep.mubr.f32.mxu0 0.0
    %8106 = vmatmul.mubr.f32.gmra.mxu0 %v314
    %v8107 = vpop.f32.mrf.mxu0
    %v8108 = vadd.f32 %v7963, %v8107
    %v8109 = vpop.f32.mrf.mxu0
    %8110 = vmatprep.mubr.f32.mxu0 0.0
    %8111 = vmatmul.mubr.f32.gmra.mxu0 %v315
    %v8112 = vpop.f32.mrf.mxu0
    %v8113 = vadd.f32 %v7968, %v8112
    %v8114 = vpop.f32.mrf.mxu0
    %8115 = vmatprep.mubr.f32.mxu0 0.0
    %8116 = vmatmul.mubr.f32.gmra.mxu0 %v316
    %v8117 = vpop.f32.mrf.mxu0
    %v8118 = vadd.f32 %v7973, %v8117
    %v8119 = vpop.f32.mrf.mxu0
    %8120 = vmatprep.mubr.f32.mxu0 0.0
    %8121 = vmatmul.mubr.f32.gmra.mxu0 %v317
    %v8122 = vpop.f32.mrf.mxu0
    %v8123 = vadd.f32 %v7978, %v8122
    %v8124 = vpop.f32.mrf.mxu0
    %8125 = vmatprep.mubr.f32.mxu0 0.0
    %8126 = vmatmul.mubr.f32.gmra.mxu0 %v318
    %v8127 = vpop.f32.mrf.mxu0
    %v8128 = vadd.f32 %v7983, %v8127
    %v8129 = vpop.f32.mrf.mxu0
    %8130 = vmatprep.mubr.f32.mxu0 0.0
    %8131 = vmatmul.mubr.f32.gmra.mxu0 %v319
    %v8132 = vpop.f32.mrf.mxu0
    %v8133 = vadd.f32 %v7988, %v8132
    %v8134 = vpop.f32.mrf.mxu0
    %8135 = vmatprep.mubr.f32.mxu0 0.0
    %8136 = vmatmul.mubr.f32.gmra.mxu0 %v320
    %v8137 = vpop.f32.mrf.mxu0
    %v8138 = vadd.f32 %v7993, %v8137
    %v8139 = vpop.f32.mrf.mxu0
    %8140 = vmatprep.mubr.f32.mxu0 0.0
    %8141 = vmatmul.mubr.f32.gmra.mxu0 %v321
    %v8142 = vpop.f32.mrf.mxu0
    %v8143 = vadd.f32 %v7998, %v8142
    %v8144 = vpop.f32.mrf.mxu0
    %8145 = vmatprep.mubr.f32.mxu0 0.0
    %8146 = vmatmul.mubr.f32.gmra.mxu0 %v322
    %v8147 = vpop.f32.mrf.mxu0
    %v8148 = vadd.f32 %v8003, %v8147
    %v8149 = vpop.f32.mrf.mxu0
    %8150 = vmatprep.mubr.f32.mxu0 0.0
    %8151 = vmatmul.mubr.f32.gmra.mxu0 %v323
    %v8152 = vpop.f32.mrf.mxu0
    %v8153 = vadd.f32 %v8008, %v8152
    %v8154 = vpop.f32.mrf.mxu0
    %8155 = vmatprep.mubr.f32.mxu0 0.0
    %8156 = vmatmul.mubr.f32.gmra.mxu0 %v324
    %v8157 = vpop.f32.mrf.mxu0
    %v8158 = vadd.f32 %v8013, %v8157
    %v8159 = vpop.f32.mrf.mxu0
    %8160 = vmatprep.mubr.f32.mxu0 0.0
    %8161 = vmatmul.mubr.f32.gmra.mxu0 %v325
    %v8162 = vpop.f32.mrf.mxu0
    %v8163 = vadd.f32 %v8018, %v8162
    %v8164 = vpop.f32.mrf.mxu0
    %8165 = vmatprep.mubr.f32.mxu0 0.0
    %8166 = vmatmul.mubr.f32.gmra.mxu0 %v326
    %v8167 = vpop.f32.mrf.mxu0
    %v8168 = vadd.f32 %v8023, %v8167
    %v8169 = vpop.f32.mrf.mxu0
    %8170 = vdwg.mxu0
    %s8171 = scalar_lea.vmem [#allocation17], 512
    %v8172 = vld [vmem:[%s8171] sm:$0xff]
    %v8173 = vld [vmem:[%s8171 + $0x8] sm:$0xff]
    %v8174 = vld [vmem:[%s8171 + $0x10] sm:$0xff]
    %v8175 = vld [vmem:[%s8171 + $0x18] sm:$0xff]
    %v8176 = vld [vmem:[%s8171 + $0x20] sm:$0xff]
    %v8177 = vld [vmem:[%s8171 + $0x28] sm:$0xff]
    %v8178 = vld [vmem:[%s8171 + $0x30] sm:$0xff]
    %v8179 = vld [vmem:[%s8171 + $0x38] sm:$0xff]
    %v8180 = vld [vmem:[%s8171 + $0x40] sm:$0xff]
    %v8181 = vld [vmem:[%s8171 + $0x48] sm:$0xff]
    %v8182 = vld [vmem:[%s8171 + $0x50] sm:$0xff]
    %v8183 = vld [vmem:[%s8171 + $0x58] sm:$0xff]
    %v8184 = vld [vmem:[%s8171 + $0x60] sm:$0xff]
    %v8185 = vld [vmem:[%s8171 + $0x68] sm:$0xff]
    %v8186 = vld [vmem:[%s8171 + $0x70] sm:$0xff]
    %v8187 = vld [vmem:[%s8171 + $0x78] sm:$0xff]
    %8188 = vmatprep.subr.mxu0 0.0
    %8189 = vmatpush1.msra.mxu0 %v8187
    %8190 = vmatprep.subr.mxu0 0.0
    %8191 = vmatpush1.msra.mxu0 %v8186
    %8192 = vmatprep.subr.mxu0 0.0
    %8193 = vmatpush1.msra.mxu0 %v8185
    %8194 = vmatprep.subr.mxu0 0.0
    %8195 = vmatpush1.msra.mxu0 %v8184
    %8196 = vmatprep.subr.mxu0 0.0
    %8197 = vmatpush1.msra.mxu0 %v8183
    %8198 = vmatprep.subr.mxu0 0.0
    %8199 = vmatpush1.msra.mxu0 %v8182
    %8200 = vmatprep.subr.mxu0 0.0
    %8201 = vmatpush1.msra.mxu0 %v8181
    %8202 = vmatprep.subr.mxu0 0.0
    %8203 = vmatpush1.msra.mxu0 %v8180
    %8204 = vmatprep.subr.mxu0 0.0
    %8205 = vmatpush1.msra.mxu0 %v8179
    %8206 = vmatprep.subr.mxu0 0.0
    %8207 = vmatpush1.msra.mxu0 %v8178
    %8208 = vmatprep.subr.mxu0 0.0
    %8209 = vmatpush1.msra.mxu0 %v8177
    %8210 = vmatprep.subr.mxu0 0.0
    %8211 = vmatpush1.msra.mxu0 %v8176
    %8212 = vmatprep.subr.mxu0 0.0
    %8213 = vmatpush1.msra.mxu0 %v8175
    %8214 = vmatprep.subr.mxu0 0.0
    %8215 = vmatpush1.msra.mxu0 %v8174
    %8216 = vmatprep.subr.mxu0 0.0
    %8217 = vmatpush1.msra.mxu0 %v8173
    %8218 = vmatprep.subr.mxu0 0.0
    %8219 = vmatpush1.msra.mxu0 %v8172
    %8220 = vmatprep.subr.mxu0 0.0
    %8221 = vmatpush2.msra.mxu0 0.0
    %8222 = vmatprep.subr.mxu0 0.0
    %8223 = vmatpush2.msra.mxu0 0.0
    %8224 = vmatprep.subr.mxu0 0.0
    %8225 = vmatpush2.msra.mxu0 0.0
    %8226 = vmatprep.subr.mxu0 0.0
    %8227 = vmatpush2.msra.mxu0 0.0
    %8228 = vmatprep.subr.mxu0 0.0
    %8229 = vmatpush2.msra.mxu0 0.0
    %8230 = vmatprep.subr.mxu0 0.0
    %8231 = vmatpush2.msra.mxu0 0.0
    %8232 = vmatprep.subr.mxu0 0.0
    %8233 = vmatpush2.msra.mxu0 0.0
    %8234 = vmatprep.subr.mxu0 0.0
    %8235 = vmatpush2.msra.mxu0 0.0
    %8236 = vmatprep.subr.mxu0 0.0
    %8237 = vmatpush2.msra.mxu0 0.0
    %8238 = vmatprep.subr.mxu0 0.0
    %8239 = vmatpush2.msra.mxu0 0.0
    %8240 = vmatprep.subr.mxu0 0.0
    %8241 = vmatpush2.msra.mxu0 0.0
    %8242 = vmatprep.subr.mxu0 0.0
    %8243 = vmatpush2.msra.mxu0 0.0
    %8244 = vmatprep.subr.mxu0 0.0
    %8245 = vmatpush2.msra.mxu0 0.0
    %8246 = vmatprep.subr.mxu0 0.0
    %8247 = vmatpush2.msra.mxu0 0.0
    %8248 = vmatprep.subr.mxu0 0.0
    %8249 = vmatpush2.msra.mxu0 0.0
    %8250 = vmatprep.subr.mxu0 0.0
    %8251 = vmatpush2.msra.mxu0 0.0
    %8252 = vmatprep.mubr.f32.mxu0 0.0
    %8253 = vmatmul.mubr.f32.gmra.mxu0 %v6852
    %v8254 = vpop.f32.mrf.mxu0
    %v8255 = vadd.f32 0.0, %v8254
    %v8256 = vpop.f32.mrf.mxu0
    %8257 = vmatprep.mubr.f32.mxu0 0.0
    %8258 = vmatmul.mubr.f32.gmra.mxu0 %v6853
    %v8259 = vpop.f32.mrf.mxu0
    %v8260 = vadd.f32 0.0, %v8259
    %v8261 = vpop.f32.mrf.mxu0
    %8262 = vmatprep.mubr.f32.mxu0 0.0
    %8263 = vmatmul.mubr.f32.gmra.mxu0 %v6854
    %v8264 = vpop.f32.mrf.mxu0
    %v8265 = vadd.f32 0.0, %v8264
    %v8266 = vpop.f32.mrf.mxu0
    %8267 = vmatprep.mubr.f32.mxu0 0.0
    %8268 = vmatmul.mubr.f32.gmra.mxu0 %v6855
    %v8269 = vpop.f32.mrf.mxu0
    %v8270 = vadd.f32 0.0, %v8269
    %v8271 = vpop.f32.mrf.mxu0
    %8272 = vmatprep.mubr.f32.mxu0 0.0
    %8273 = vmatmul.mubr.f32.gmra.mxu0 %v6856
    %v8274 = vpop.f32.mrf.mxu0
    %v8275 = vadd.f32 0.0, %v8274
    %v8276 = vpop.f32.mrf.mxu0
    %8277 = vmatprep.mubr.f32.mxu0 0.0
    %8278 = vmatmul.mubr.f32.gmra.mxu0 %v6857
    %v8279 = vpop.f32.mrf.mxu0
    %v8280 = vadd.f32 0.0, %v8279
    %v8281 = vpop.f32.mrf.mxu0
    %8282 = vmatprep.mubr.f32.mxu0 0.0
    %8283 = vmatmul.mubr.f32.gmra.mxu0 %v6858
    %v8284 = vpop.f32.mrf.mxu0
    %v8285 = vadd.f32 0.0, %v8284
    %v8286 = vpop.f32.mrf.mxu0
    %8287 = vmatprep.mubr.f32.mxu0 0.0
    %8288 = vmatmul.mubr.f32.gmra.mxu0 %v6859
    %v8289 = vpop.f32.mrf.mxu0
    %v8290 = vadd.f32 0.0, %v8289
    %v8291 = vpop.f32.mrf.mxu0
    %8292 = vmatprep.mubr.f32.mxu0 0.0
    %8293 = vmatmul.mubr.f32.gmra.mxu0 %v6860
    %v8294 = vpop.f32.mrf.mxu0
    %v8295 = vadd.f32 0.0, %v8294
    %v8296 = vpop.f32.mrf.mxu0
    %8297 = vmatprep.mubr.f32.mxu0 0.0
    %8298 = vmatmul.mubr.f32.gmra.mxu0 %v6861
    %v8299 = vpop.f32.mrf.mxu0
    %v8300 = vadd.f32 0.0, %v8299
    %v8301 = vpop.f32.mrf.mxu0
    %8302 = vmatprep.mubr.f32.mxu0 0.0
    %8303 = vmatmul.mubr.f32.gmra.mxu0 %v6862
    %v8304 = vpop.f32.mrf.mxu0
    %v8305 = vadd.f32 0.0, %v8304
    %v8306 = vpop.f32.mrf.mxu0
    %8307 = vmatprep.mubr.f32.mxu0 0.0
    %8308 = vmatmul.mubr.f32.gmra.mxu0 %v6863
    %v8309 = vpop.f32.mrf.mxu0
    %v8310 = vadd.f32 0.0, %v8309
    %v8311 = vpop.f32.mrf.mxu0
    %8312 = vmatprep.mubr.f32.mxu0 0.0
    %8313 = vmatmul.mubr.f32.gmra.mxu0 %v6864
    %v8314 = vpop.f32.mrf.mxu0
    %v8315 = vadd.f32 0.0, %v8314
    %v8316 = vpop.f32.mrf.mxu0
    %8317 = vmatprep.mubr.f32.mxu0 0.0
    %8318 = vmatmul.mubr.f32.gmra.mxu0 %v6865
    %v8319 = vpop.f32.mrf.mxu0
    %v8320 = vadd.f32 0.0, %v8319
    %v8321 = vpop.f32.mrf.mxu0
    %8322 = vmatprep.mubr.f32.mxu0 0.0
    %8323 = vmatmul.mubr.f32.gmra.mxu0 %v6866
    %v8324 = vpop.f32.mrf.mxu0
    %v8325 = vadd.f32 0.0, %v8324
    %v8326 = vpop.f32.mrf.mxu0
    %8327 = vmatprep.mubr.f32.mxu0 0.0
    %8328 = vmatmul.mubr.f32.gmra.mxu0 %v6867
    %v8329 = vpop.f32.mrf.mxu0
    %v8330 = vadd.f32 0.0, %v8329
    %v8331 = vpop.f32.mrf.mxu0
    %8332 = vdwg.mxu0
    %v8333 = vadd.f32 %v8093, %v8255
    %v8334 = vadd.f32 %v8098, %v8260
    %v8335 = vadd.f32 %v8103, %v8265
    %v8336 = vadd.f32 %v8108, %v8270
    %v8337 = vadd.f32 %v8113, %v8275
    %v8338 = vadd.f32 %v8118, %v8280
    %v8339 = vadd.f32 %v8123, %v8285
    %v8340 = vadd.f32 %v8128, %v8290
    %v8341 = vadd.f32 %v8133, %v8295
    %v8342 = vadd.f32 %v8138, %v8300
    %v8343 = vadd.f32 %v8143, %v8305
    %v8344 = vadd.f32 %v8148, %v8310
    %v8345 = vadd.f32 %v8153, %v8315
    %v8346 = vadd.f32 %v8158, %v8320
    %v8347 = vadd.f32 %v8163, %v8325
    %v8348 = vadd.f32 %v8168, %v8330
    %v8349 = vld [vmem:[%s14 + $0x4] sm:$0x1]
    %v8350 = vlaneseq
    %v8351 = vshrl.u32 %v8350, 7
    %v8352 = vsub.s32 0, %v8351
    %v8353 = vrot.slane %v8349, %v8352
    %v8354 = vadd.f32 %v8333, %v8353
    %v8355 = vadd.f32 %v8334, %v8353
    %v8356 = vadd.f32 %v8335, %v8353
    %v8357 = vadd.f32 %v8336, %v8353
    %v8358 = vadd.f32 %v8337, %v8353
    %v8359 = vadd.f32 %v8338, %v8353
    %v8360 = vadd.f32 %v8339, %v8353
    %v8361 = vadd.f32 %v8340, %v8353
    %v8362 = vadd.f32 %v8341, %v8353
    %v8363 = vadd.f32 %v8342, %v8353
    %v8364 = vadd.f32 %v8343, %v8353
    %v8365 = vadd.f32 %v8344, %v8353
    %v8366 = vadd.f32 %v8345, %v8353
    %v8367 = vadd.f32 %v8346, %v8353
    %v8368 = vadd.f32 %v8347, %v8353
    %v8369 = vadd.f32 %v8348, %v8353
    %s8370 = scalar_lea.vmem %s13, 128
    %v8371 = vld [vmem:[%s8370] sm:$0xff]
    %v8372 = vld [vmem:[%s8370 + $0x8] sm:$0xff]
    %v8373 = vld [vmem:[%s8370 + $0x10] sm:$0xff]
    %v8374 = vld [vmem:[%s8370 + $0x18] sm:$0xff]
    %v8375 = vld [vmem:[%s8370 + $0x20] sm:$0xff]
    %v8376 = vld [vmem:[%s8370 + $0x28] sm:$0xff]
    %v8377 = vld [vmem:[%s8370 + $0x30] sm:$0xff]
    %v8378 = vld [vmem:[%s8370 + $0x38] sm:$0xff]
    %v8379 = vld [vmem:[%s8370 + $0x40] sm:$0xff]
    %v8380 = vld [vmem:[%s8370 + $0x48] sm:$0xff]
    %v8381 = vld [vmem:[%s8370 + $0x50] sm:$0xff]
    %v8382 = vld [vmem:[%s8370 + $0x58] sm:$0xff]
    %v8383 = vld [vmem:[%s8370 + $0x60] sm:$0xff]
    %v8384 = vld [vmem:[%s8370 + $0x68] sm:$0xff]
    %v8385 = vld [vmem:[%s8370 + $0x70] sm:$0xff]
    %v8386 = vld [vmem:[%s8370 + $0x78] sm:$0xff]
    %8387 = vmatprep.subr.mxu0 0.0
    %8388 = vmatpush1.msra.mxu0 %v8386
    %8389 = vmatprep.subr.mxu0 0.0
    %8390 = vmatpush1.msra.mxu0 %v8385
    %8391 = vmatprep.subr.mxu0 0.0
    %8392 = vmatpush1.msra.mxu0 %v8384
    %8393 = vmatprep.subr.mxu0 0.0
    %8394 = vmatpush1.msra.mxu0 %v8383
    %8395 = vmatprep.subr.mxu0 0.0
    %8396 = vmatpush1.msra.mxu0 %v8382
    %8397 = vmatprep.subr.mxu0 0.0
    %8398 = vmatpush1.msra.mxu0 %v8381
    %8399 = vmatprep.subr.mxu0 0.0
    %8400 = vmatpush1.msra.mxu0 %v8380
    %8401 = vmatprep.subr.mxu0 0.0
    %8402 = vmatpush1.msra.mxu0 %v8379
    %8403 = vmatprep.subr.mxu0 0.0
    %8404 = vmatpush1.msra.mxu0 %v8378
    %8405 = vmatprep.subr.mxu0 0.0
    %8406 = vmatpush1.msra.mxu0 %v8377
    %8407 = vmatprep.subr.mxu0 0.0
    %8408 = vmatpush1.msra.mxu0 %v8376
    %8409 = vmatprep.subr.mxu0 0.0
    %8410 = vmatpush1.msra.mxu0 %v8375
    %8411 = vmatprep.subr.mxu0 0.0
    %8412 = vmatpush1.msra.mxu0 %v8374
    %8413 = vmatprep.subr.mxu0 0.0
    %8414 = vmatpush1.msra.mxu0 %v8373
    %8415 = vmatprep.subr.mxu0 0.0
    %8416 = vmatpush1.msra.mxu0 %v8372
    %8417 = vmatprep.subr.mxu0 0.0
    %8418 = vmatpush1.msra.mxu0 %v8371
    %8419 = vmatprep.subr.mxu0 0.0
    %8420 = vmatpush2.msra.mxu0 0.0
    %8421 = vmatprep.subr.mxu0 0.0
    %8422 = vmatpush2.msra.mxu0 0.0
    %8423 = vmatprep.subr.mxu0 0.0
    %8424 = vmatpush2.msra.mxu0 0.0
    %8425 = vmatprep.subr.mxu0 0.0
    %8426 = vmatpush2.msra.mxu0 0.0
    %8427 = vmatprep.subr.mxu0 0.0
    %8428 = vmatpush2.msra.mxu0 0.0
    %8429 = vmatprep.subr.mxu0 0.0
    %8430 = vmatpush2.msra.mxu0 0.0
    %8431 = vmatprep.subr.mxu0 0.0
    %8432 = vmatpush2.msra.mxu0 0.0
    %8433 = vmatprep.subr.mxu0 0.0
    %8434 = vmatpush2.msra.mxu0 0.0
    %8435 = vmatprep.subr.mxu0 0.0
    %8436 = vmatpush2.msra.mxu0 0.0
    %8437 = vmatprep.subr.mxu0 0.0
    %8438 = vmatpush2.msra.mxu0 0.0
    %8439 = vmatprep.subr.mxu0 0.0
    %8440 = vmatpush2.msra.mxu0 0.0
    %8441 = vmatprep.subr.mxu0 0.0
    %8442 = vmatpush2.msra.mxu0 0.0
    %8443 = vmatprep.subr.mxu0 0.0
    %8444 = vmatpush2.msra.mxu0 0.0
    %8445 = vmatprep.subr.mxu0 0.0
    %8446 = vmatpush2.msra.mxu0 0.0
    %8447 = vmatprep.subr.mxu0 0.0
    %8448 = vmatpush2.msra.mxu0 0.0
    %8449 = vmatprep.subr.mxu0 0.0
    %8450 = vmatpush2.msra.mxu0 0.0
    %8451 = vmatprep.mubr.f32.mxu0 0.0
    %8452 = vmatmul.mubr.f32.gmra.mxu0 %v279
    %v8453 = vpop.f32.mrf.mxu0
    %v8454 = vadd.f32 0.0, %v8453
    %v8455 = vpop.f32.mrf.mxu0
    %8456 = vmatprep.mubr.f32.mxu0 0.0
    %8457 = vmatmul.mubr.f32.gmra.mxu0 %v280
    %v8458 = vpop.f32.mrf.mxu0
    %v8459 = vadd.f32 0.0, %v8458
    %v8460 = vpop.f32.mrf.mxu0
    %8461 = vmatprep.mubr.f32.mxu0 0.0
    %8462 = vmatmul.mubr.f32.gmra.mxu0 %v281
    %v8463 = vpop.f32.mrf.mxu0
    %v8464 = vadd.f32 0.0, %v8463
    %v8465 = vpop.f32.mrf.mxu0
    %8466 = vmatprep.mubr.f32.mxu0 0.0
    %8467 = vmatmul.mubr.f32.gmra.mxu0 %v282
    %v8468 = vpop.f32.mrf.mxu0
    %v8469 = vadd.f32 0.0, %v8468
    %v8470 = vpop.f32.mrf.mxu0
    %8471 = vmatprep.mubr.f32.mxu0 0.0
    %8472 = vmatmul.mubr.f32.gmra.mxu0 %v283
    %v8473 = vpop.f32.mrf.mxu0
    %v8474 = vadd.f32 0.0, %v8473
    %v8475 = vpop.f32.mrf.mxu0
    %8476 = vmatprep.mubr.f32.mxu0 0.0
    %8477 = vmatmul.mubr.f32.gmra.mxu0 %v284
    %v8478 = vpop.f32.mrf.mxu0
    %v8479 = vadd.f32 0.0, %v8478
    %v8480 = vpop.f32.mrf.mxu0
    %8481 = vmatprep.mubr.f32.mxu0 0.0
    %8482 = vmatmul.mubr.f32.gmra.mxu0 %v285
    %v8483 = vpop.f32.mrf.mxu0
    %v8484 = vadd.f32 0.0, %v8483
    %v8485 = vpop.f32.mrf.mxu0
    %8486 = vmatprep.mubr.f32.mxu0 0.0
    %8487 = vmatmul.mubr.f32.gmra.mxu0 %v286
    %v8488 = vpop.f32.mrf.mxu0
    %v8489 = vadd.f32 0.0, %v8488
    %v8490 = vpop.f32.mrf.mxu0
    %8491 = vmatprep.mubr.f32.mxu0 0.0
    %8492 = vmatmul.mubr.f32.gmra.mxu0 %v287
    %v8493 = vpop.f32.mrf.mxu0
    %v8494 = vadd.f32 0.0, %v8493
    %v8495 = vpop.f32.mrf.mxu0
    %8496 = vmatprep.mubr.f32.mxu0 0.0
    %8497 = vmatmul.mubr.f32.gmra.mxu0 %v288
    %v8498 = vpop.f32.mrf.mxu0
    %v8499 = vadd.f32 0.0, %v8498
    %v8500 = vpop.f32.mrf.mxu0
    %8501 = vmatprep.mubr.f32.mxu0 0.0
    %8502 = vmatmul.mubr.f32.gmra.mxu0 %v289
    %v8503 = vpop.f32.mrf.mxu0
    %v8504 = vadd.f32 0.0, %v8503
    %v8505 = vpop.f32.mrf.mxu0
    %8506 = vmatprep.mubr.f32.mxu0 0.0
    %8507 = vmatmul.mubr.f32.gmra.mxu0 %v290
    %v8508 = vpop.f32.mrf.mxu0
    %v8509 = vadd.f32 0.0, %v8508
    %v8510 = vpop.f32.mrf.mxu0
    %8511 = vmatprep.mubr.f32.mxu0 0.0
    %8512 = vmatmul.mubr.f32.gmra.mxu0 %v291
    %v8513 = vpop.f32.mrf.mxu0
    %v8514 = vadd.f32 0.0, %v8513
    %v8515 = vpop.f32.mrf.mxu0
    %8516 = vmatprep.mubr.f32.mxu0 0.0
    %8517 = vmatmul.mubr.f32.gmra.mxu0 %v292
    %v8518 = vpop.f32.mrf.mxu0
    %v8519 = vadd.f32 0.0, %v8518
    %v8520 = vpop.f32.mrf.mxu0
    %8521 = vmatprep.mubr.f32.mxu0 0.0
    %8522 = vmatmul.mubr.f32.gmra.mxu0 %v293
    %v8523 = vpop.f32.mrf.mxu0
    %v8524 = vadd.f32 0.0, %v8523
    %v8525 = vpop.f32.mrf.mxu0
    %8526 = vmatprep.mubr.f32.mxu0 0.0
    %8527 = vmatmul.mubr.f32.gmra.mxu0 %v294
    %v8528 = vpop.f32.mrf.mxu0
    %v8529 = vadd.f32 0.0, %v8528
    %v8530 = vpop.f32.mrf.mxu0
    %8531 = vdwg.mxu0
    %v8532 = vadd.f32 %v8354, %v8454
    %v8533 = vadd.f32 %v8355, %v8459
    %v8534 = vadd.f32 %v8356, %v8464
    %v8535 = vadd.f32 %v8357, %v8469
    %v8536 = vadd.f32 %v8358, %v8474
    %v8537 = vadd.f32 %v8359, %v8479
    %v8538 = vadd.f32 %v8360, %v8484
    %v8539 = vadd.f32 %v8361, %v8489
    %v8540 = vadd.f32 %v8362, %v8494
    %v8541 = vadd.f32 %v8363, %v8499
    %v8542 = vadd.f32 %v8364, %v8504
    %v8543 = vadd.f32 %v8365, %v8509
    %v8544 = vadd.f32 %v8366, %v8514
    %v8545 = vadd.f32 %v8367, %v8519
    %v8546 = vadd.f32 %v8368, %v8524
    %v8547 = vadd.f32 %v8369, %v8529
    %v8548 = vmax.f32 %v8532, 0.0
    %v8549 = vmax.f32 %v8533, 0.0
    %v8550 = vmax.f32 %v8534, 0.0
    %v8551 = vmax.f32 %v8535, 0.0
    %v8552 = vmax.f32 %v8536, 0.0
    %v8553 = vmax.f32 %v8537, 0.0
    %v8554 = vmax.f32 %v8538, 0.0
    %v8555 = vmax.f32 %v8539, 0.0
    %v8556 = vmax.f32 %v8540, 0.0
    %v8557 = vmax.f32 %v8541, 0.0
    %v8558 = vmax.f32 %v8542, 0.0
    %v8559 = vmax.f32 %v8543, 0.0
    %v8560 = vmax.f32 %v8544, 0.0
    %v8561 = vmax.f32 %v8545, 0.0
    %v8562 = vmax.f32 %v8546, 0.0
    %v8563 = vmax.f32 %v8547, 0.0
    %s8564 = scalar_lea.vmem [#allocation19], 512
    %v8565 = vld [vmem:[%s8564] sm:$0xff]
    %v8566 = vld [vmem:[%s8564 + $0x8] sm:$0xff]
    %v8567 = vld [vmem:[%s8564 + $0x10] sm:$0xff]
    %v8568 = vld [vmem:[%s8564 + $0x18] sm:$0xff]
    %v8569 = vld [vmem:[%s8564 + $0x20] sm:$0xff]
    %v8570 = vld [vmem:[%s8564 + $0x28] sm:$0xff]
    %v8571 = vld [vmem:[%s8564 + $0x30] sm:$0xff]
    %v8572 = vld [vmem:[%s8564 + $0x38] sm:$0xff]
    %v8573 = vld [vmem:[%s8564 + $0x40] sm:$0xff]
    %v8574 = vld [vmem:[%s8564 + $0x48] sm:$0xff]
    %v8575 = vld [vmem:[%s8564 + $0x50] sm:$0xff]
    %v8576 = vld [vmem:[%s8564 + $0x58] sm:$0xff]
    %v8577 = vld [vmem:[%s8564 + $0x60] sm:$0xff]
    %v8578 = vld [vmem:[%s8564 + $0x68] sm:$0xff]
    %v8579 = vld [vmem:[%s8564 + $0x70] sm:$0xff]
    %v8580 = vld [vmem:[%s8564 + $0x78] sm:$0xff]
    %v8581 = vld [vmem:[%s16 + $0x4] sm:$0x1]
    %v8582 = vlaneseq
    %v8583 = vshrl.u32 %v8582, 7
    %v8584 = vsub.s32 0, %v8583
    %v8585 = vrot.slane %v8581, %v8584
    %8586 = vmatprep.subr.mxu0 0.0
    %8587 = vmatpush1.msra.mxu0 %v8580
    %8588 = vmatprep.subr.mxu0 0.0
    %8589 = vmatpush1.msra.mxu0 %v8579
    %8590 = vmatprep.subr.mxu0 0.0
    %8591 = vmatpush1.msra.mxu0 %v8578
    %8592 = vmatprep.subr.mxu0 0.0
    %8593 = vmatpush1.msra.mxu0 %v8577
    %8594 = vmatprep.subr.mxu0 0.0
    %8595 = vmatpush1.msra.mxu0 %v8576
    %8596 = vmatprep.subr.mxu0 0.0
    %8597 = vmatpush1.msra.mxu0 %v8575
    %8598 = vmatprep.subr.mxu0 0.0
    %8599 = vmatpush1.msra.mxu0 %v8574
    %8600 = vmatprep.subr.mxu0 0.0
    %8601 = vmatpush1.msra.mxu0 %v8573
    %8602 = vmatprep.subr.mxu0 0.0
    %8603 = vmatpush1.msra.mxu0 %v8572
    %8604 = vmatprep.subr.mxu0 0.0
    %8605 = vmatpush1.msra.mxu0 %v8571
    %8606 = vmatprep.subr.mxu0 0.0
    %8607 = vmatpush1.msra.mxu0 %v8570
    %8608 = vmatprep.subr.mxu0 0.0
    %8609 = vmatpush1.msra.mxu0 %v8569
    %8610 = vmatprep.subr.mxu0 0.0
    %8611 = vmatpush1.msra.mxu0 %v8568
    %8612 = vmatprep.subr.mxu0 0.0
    %8613 = vmatpush1.msra.mxu0 %v8567
    %8614 = vmatprep.subr.mxu0 0.0
    %8615 = vmatpush1.msra.mxu0 %v8566
    %8616 = vmatprep.subr.mxu0 0.0
    %8617 = vmatpush1.msra.mxu0 %v8565
    %8618 = vmatprep.subr.mxu0 0.0
    %8619 = vmatpush2.msra.mxu0 0.0
    %8620 = vmatprep.subr.mxu0 0.0
    %8621 = vmatpush2.msra.mxu0 0.0
    %8622 = vmatprep.subr.mxu0 0.0
    %8623 = vmatpush2.msra.mxu0 0.0
    %8624 = vmatprep.subr.mxu0 0.0
    %8625 = vmatpush2.msra.mxu0 0.0
    %8626 = vmatprep.subr.mxu0 0.0
    %8627 = vmatpush2.msra.mxu0 0.0
    %8628 = vmatprep.subr.mxu0 0.0
    %8629 = vmatpush2.msra.mxu0 0.0
    %8630 = vmatprep.subr.mxu0 0.0
    %8631 = vmatpush2.msra.mxu0 0.0
    %8632 = vmatprep.subr.mxu0 0.0
    %8633 = vmatpush2.msra.mxu0 0.0
    %8634 = vmatprep.subr.mxu0 0.0
    %8635 = vmatpush2.msra.mxu0 0.0
    %8636 = vmatprep.subr.mxu0 0.0
    %8637 = vmatpush2.msra.mxu0 0.0
    %8638 = vmatprep.subr.mxu0 0.0
    %8639 = vmatpush2.msra.mxu0 0.0
    %8640 = vmatprep.subr.mxu0 0.0
    %8641 = vmatpush2.msra.mxu0 0.0
    %8642 = vmatprep.subr.mxu0 0.0
    %8643 = vmatpush2.msra.mxu0 0.0
    %8644 = vmatprep.subr.mxu0 0.0
    %8645 = vmatpush2.msra.mxu0 0.0
    %8646 = vmatprep.subr.mxu0 0.0
    %8647 = vmatpush2.msra.mxu0 0.0
    %8648 = vmatprep.subr.mxu0 0.0
    %8649 = vmatpush2.msra.mxu0 0.0
    %8650 = vmatprep.mubr.f32.mxu0 0.0
    %8651 = vmatmul.mubr.f32.gmra.mxu0 %v8548
    %v8652 = vpop.f32.mrf.mxu0
    %v8653 = vadd.f32 %v8585, %v8652
    %v8654 = vpop.f32.mrf.mxu0
    %8655 = vmatprep.mubr.f32.mxu0 0.0
    %8656 = vmatmul.mubr.f32.gmra.mxu0 %v8549
    %v8657 = vpop.f32.mrf.mxu0
    %v8658 = vadd.f32 %v8585, %v8657
    %v8659 = vpop.f32.mrf.mxu0
    %8660 = vmatprep.mubr.f32.mxu0 0.0
    %8661 = vmatmul.mubr.f32.gmra.mxu0 %v8550
    %v8662 = vpop.f32.mrf.mxu0
    %v8663 = vadd.f32 %v8585, %v8662
    %v8664 = vpop.f32.mrf.mxu0
    %8665 = vmatprep.mubr.f32.mxu0 0.0
    %8666 = vmatmul.mubr.f32.gmra.mxu0 %v8551
    %v8667 = vpop.f32.mrf.mxu0
    %v8668 = vadd.f32 %v8585, %v8667
    %v8669 = vpop.f32.mrf.mxu0
    %8670 = vmatprep.mubr.f32.mxu0 0.0
    %8671 = vmatmul.mubr.f32.gmra.mxu0 %v8552
    %v8672 = vpop.f32.mrf.mxu0
    %v8673 = vadd.f32 %v8585, %v8672
    %v8674 = vpop.f32.mrf.mxu0
    %8675 = vmatprep.mubr.f32.mxu0 0.0
    %8676 = vmatmul.mubr.f32.gmra.mxu0 %v8553
    %v8677 = vpop.f32.mrf.mxu0
    %v8678 = vadd.f32 %v8585, %v8677
    %v8679 = vpop.f32.mrf.mxu0
    %8680 = vmatprep.mubr.f32.mxu0 0.0
    %8681 = vmatmul.mubr.f32.gmra.mxu0 %v8554
    %v8682 = vpop.f32.mrf.mxu0
    %v8683 = vadd.f32 %v8585, %v8682
    %v8684 = vpop.f32.mrf.mxu0
    %8685 = vmatprep.mubr.f32.mxu0 0.0
    %8686 = vmatmul.mubr.f32.gmra.mxu0 %v8555
    %v8687 = vpop.f32.mrf.mxu0
    %v8688 = vadd.f32 %v8585, %v8687
    %v8689 = vpop.f32.mrf.mxu0
    %8690 = vmatprep.mubr.f32.mxu0 0.0
    %8691 = vmatmul.mubr.f32.gmra.mxu0 %v8556
    %v8692 = vpop.f32.mrf.mxu0
    %v8693 = vadd.f32 %v8585, %v8692
    %v8694 = vpop.f32.mrf.mxu0
    %8695 = vmatprep.mubr.f32.mxu0 0.0
    %8696 = vmatmul.mubr.f32.gmra.mxu0 %v8557
    %v8697 = vpop.f32.mrf.mxu0
    %v8698 = vadd.f32 %v8585, %v8697
    %v8699 = vpop.f32.mrf.mxu0
    %8700 = vmatprep.mubr.f32.mxu0 0.0
    %8701 = vmatmul.mubr.f32.gmra.mxu0 %v8558
    %v8702 = vpop.f32.mrf.mxu0
    %v8703 = vadd.f32 %v8585, %v8702
    %v8704 = vpop.f32.mrf.mxu0
    %8705 = vmatprep.mubr.f32.mxu0 0.0
    %8706 = vmatmul.mubr.f32.gmra.mxu0 %v8559
    %v8707 = vpop.f32.mrf.mxu0
    %v8708 = vadd.f32 %v8585, %v8707
    %v8709 = vpop.f32.mrf.mxu0
    %8710 = vmatprep.mubr.f32.mxu0 0.0
    %8711 = vmatmul.mubr.f32.gmra.mxu0 %v8560
    %v8712 = vpop.f32.mrf.mxu0
    %v8713 = vadd.f32 %v8585, %v8712
    %v8714 = vpop.f32.mrf.mxu0
    %8715 = vmatprep.mubr.f32.mxu0 0.0
    %8716 = vmatmul.mubr.f32.gmra.mxu0 %v8561
    %v8717 = vpop.f32.mrf.mxu0
    %v8718 = vadd.f32 %v8585, %v8717
    %v8719 = vpop.f32.mrf.mxu0
    %8720 = vmatprep.mubr.f32.mxu0 0.0
    %8721 = vmatmul.mubr.f32.gmra.mxu0 %v8562
    %v8722 = vpop.f32.mrf.mxu0
    %v8723 = vadd.f32 %v8585, %v8722
    %v8724 = vpop.f32.mrf.mxu0
    %8725 = vmatprep.mubr.f32.mxu0 0.0
    %8726 = vmatmul.mubr.f32.gmra.mxu0 %v8563
    %v8727 = vpop.f32.mrf.mxu0
    %v8728 = vadd.f32 %v8585, %v8727
    %v8729 = vpop.f32.mrf.mxu0
    %8730 = vdwg.mxu0
    %v8731 = vmul.f32 %v8653, %v1418
    %v8732 = vmul.f32 %v8658, %v1423
    %v8733 = vmul.f32 %v8663, %v1428
    %v8734 = vmul.f32 %v8668, %v1433
    %v8735 = vmul.f32 %v8673, %v1438
    %v8736 = vmul.f32 %v8678, %v1443
    %v8737 = vmul.f32 %v8683, %v1448
    %v8738 = vmul.f32 %v8688, %v1453
    %v8739 = vmul.f32 %v8693, %v1458
    %v8740 = vmul.f32 %v8698, %v1463
    %v8741 = vmul.f32 %v8703, %v1468
    %v8742 = vmul.f32 %v8708, %v1473
    %v8743 = vmul.f32 %v8713, %v1478
    %v8744 = vmul.f32 %v8718, %v1483
    %v8745 = vmul.f32 %v8723, %v1488
    %v8746 = vmul.f32 %v8728, %v1493
    %8747 = vmatprep.subr.mxu0 0.0
    %8748 = vmatpush1.msra.mxu0 %v8746
    %8749 = vmatprep.subr.mxu0 0.0
    %8750 = vmatpush1.msra.mxu0 %v8745
    %8751 = vmatprep.subr.mxu0 0.0
    %8752 = vmatpush1.msra.mxu0 %v8744
    %8753 = vmatprep.subr.mxu0 0.0
    %8754 = vmatpush1.msra.mxu0 %v8743
    %8755 = vmatprep.subr.mxu0 0.0
    %8756 = vmatpush1.msra.mxu0 %v8742
    %8757 = vmatprep.subr.mxu0 0.0
    %8758 = vmatpush1.msra.mxu0 %v8741
    %8759 = vmatprep.subr.mxu0 0.0
    %8760 = vmatpush1.msra.mxu0 %v8740
    %8761 = vmatprep.subr.mxu0 0.0
    %8762 = vmatpush1.msra.mxu0 %v8739
    %8763 = vmatprep.subr.mxu0 0.0
    %8764 = vmatpush1.msra.mxu0 %v8738
    %8765 = vmatprep.subr.mxu0 0.0
    %8766 = vmatpush1.msra.mxu0 %v8737
    %8767 = vmatprep.subr.mxu0 0.0
    %8768 = vmatpush1.msra.mxu0 %v8736
    %8769 = vmatprep.subr.mxu0 0.0
    %8770 = vmatpush1.msra.mxu0 %v8735
    %8771 = vmatprep.subr.mxu0 0.0
    %8772 = vmatpush1.msra.mxu0 %v8734
    %8773 = vmatprep.subr.mxu0 0.0
    %8774 = vmatpush1.msra.mxu0 %v8733
    %8775 = vmatprep.subr.mxu0 0.0
    %8776 = vmatpush1.msra.mxu0 %v8732
    %8777 = vmatprep.subr.mxu0 0.0
    %8778 = vmatpush1.msra.mxu0 %v8731
    %8779 = vmatprep.subr.mxu0 0.0
    %8780 = vmatpush2.msra.mxu0 0.0
    %8781 = vmatprep.subr.mxu0 0.0
    %8782 = vmatpush2.msra.mxu0 0.0
    %8783 = vmatprep.subr.mxu0 0.0
    %8784 = vmatpush2.msra.mxu0 0.0
    %8785 = vmatprep.subr.mxu0 0.0
    %8786 = vmatpush2.msra.mxu0 0.0
    %8787 = vmatprep.subr.mxu0 0.0
    %8788 = vmatpush2.msra.mxu0 0.0
    %8789 = vmatprep.subr.mxu0 0.0
    %8790 = vmatpush2.msra.mxu0 0.0
    %8791 = vmatprep.subr.mxu0 0.0
    %8792 = vmatpush2.msra.mxu0 0.0
    %8793 = vmatprep.subr.mxu0 0.0
    %8794 = vmatpush2.msra.mxu0 0.0
    %8795 = vmatprep.subr.mxu0 0.0
    %8796 = vmatpush2.msra.mxu0 0.0
    %8797 = vmatprep.subr.mxu0 0.0
    %8798 = vmatpush2.msra.mxu0 0.0
    %8799 = vmatprep.subr.mxu0 0.0
    %8800 = vmatpush2.msra.mxu0 0.0
    %8801 = vmatprep.subr.mxu0 0.0
    %8802 = vmatpush2.msra.mxu0 0.0
    %8803 = vmatprep.subr.mxu0 0.0
    %8804 = vmatpush2.msra.mxu0 0.0
    %8805 = vmatprep.subr.mxu0 0.0
    %8806 = vmatpush2.msra.mxu0 0.0
    %8807 = vmatprep.subr.mxu0 0.0
    %8808 = vmatpush2.msra.mxu0 0.0
    %8809 = vmatprep.subr.mxu0 0.0
    %8810 = vmatpush2.msra.mxu0 0.0
    %8811 = vmatprep.mubr.f32.mxu0 0.0
    %8812 = vmatmul.mubr.f32.gmra.mxu0 %v359
    %v8813 = vpop.f32.mrf.mxu0
    %v8814 = vadd.f32 0.0, %v8813
    %v8815 = vpop.f32.mrf.mxu0
    %8816 = vmatprep.mubr.f32.mxu0 0.0
    %8817 = vmatmul.mubr.f32.gmra.mxu0 %v360
    %v8818 = vpop.f32.mrf.mxu0
    %v8819 = vadd.f32 0.0, %v8818
    %v8820 = vpop.f32.mrf.mxu0
    %8821 = vmatprep.mubr.f32.mxu0 0.0
    %8822 = vmatmul.mubr.f32.gmra.mxu0 %v361
    %v8823 = vpop.f32.mrf.mxu0
    %v8824 = vadd.f32 0.0, %v8823
    %v8825 = vpop.f32.mrf.mxu0
    %8826 = vmatprep.mubr.f32.mxu0 0.0
    %8827 = vmatmul.mubr.f32.gmra.mxu0 %v362
    %v8828 = vpop.f32.mrf.mxu0
    %v8829 = vadd.f32 0.0, %v8828
    %v8830 = vpop.f32.mrf.mxu0
    %8831 = vmatprep.mubr.f32.mxu0 0.0
    %8832 = vmatmul.mubr.f32.gmra.mxu0 %v363
    %v8833 = vpop.f32.mrf.mxu0
    %v8834 = vadd.f32 0.0, %v8833
    %v8835 = vpop.f32.mrf.mxu0
    %8836 = vmatprep.mubr.f32.mxu0 0.0
    %8837 = vmatmul.mubr.f32.gmra.mxu0 %v364
    %v8838 = vpop.f32.mrf.mxu0
    %v8839 = vadd.f32 0.0, %v8838
    %v8840 = vpop.f32.mrf.mxu0
    %8841 = vmatprep.mubr.f32.mxu0 0.0
    %8842 = vmatmul.mubr.f32.gmra.mxu0 %v365
    %v8843 = vpop.f32.mrf.mxu0
    %v8844 = vadd.f32 0.0, %v8843
    %v8845 = vpop.f32.mrf.mxu0
    %8846 = vmatprep.mubr.f32.mxu0 0.0
    %8847 = vmatmul.mubr.f32.gmra.mxu0 %v366
    %v8848 = vpop.f32.mrf.mxu0
    %v8849 = vadd.f32 0.0, %v8848
    %v8850 = vpop.f32.mrf.mxu0
    %8851 = vmatprep.mubr.f32.mxu0 0.0
    %8852 = vmatmul.mubr.f32.gmra.mxu0 %v367
    %v8853 = vpop.f32.mrf.mxu0
    %v8854 = vadd.f32 0.0, %v8853
    %v8855 = vpop.f32.mrf.mxu0
    %8856 = vmatprep.mubr.f32.mxu0 0.0
    %8857 = vmatmul.mubr.f32.gmra.mxu0 %v368
    %v8858 = vpop.f32.mrf.mxu0
    %v8859 = vadd.f32 0.0, %v8858
    %v8860 = vpop.f32.mrf.mxu0
    %8861 = vmatprep.mubr.f32.mxu0 0.0
    %8862 = vmatmul.mubr.f32.gmra.mxu0 %v369
    %v8863 = vpop.f32.mrf.mxu0
    %v8864 = vadd.f32 0.0, %v8863
    %v8865 = vpop.f32.mrf.mxu0
    %8866 = vmatprep.mubr.f32.mxu0 0.0
    %8867 = vmatmul.mubr.f32.gmra.mxu0 %v370
    %v8868 = vpop.f32.mrf.mxu0
    %v8869 = vadd.f32 0.0, %v8868
    %v8870 = vpop.f32.mrf.mxu0
    %8871 = vmatprep.mubr.f32.mxu0 0.0
    %8872 = vmatmul.mubr.f32.gmra.mxu0 %v371
    %v8873 = vpop.f32.mrf.mxu0
    %v8874 = vadd.f32 0.0, %v8873
    %v8875 = vpop.f32.mrf.mxu0
    %8876 = vmatprep.mubr.f32.mxu0 0.0
    %8877 = vmatmul.mubr.f32.gmra.mxu0 %v372
    %v8878 = vpop.f32.mrf.mxu0
    %v8879 = vadd.f32 0.0, %v8878
    %v8880 = vpop.f32.mrf.mxu0
    %8881 = vmatprep.mubr.f32.mxu0 0.0
    %8882 = vmatmul.mubr.f32.gmra.mxu0 %v373
    %v8883 = vpop.f32.mrf.mxu0
    %v8884 = vadd.f32 0.0, %v8883
    %v8885 = vpop.f32.mrf.mxu0
    %8886 = vmatprep.mubr.f32.mxu0 0.0
    %8887 = vmatmul.mubr.f32.gmra.mxu0 %v374
    %v8888 = vpop.f32.mrf.mxu0
    %v8889 = vadd.f32 0.0, %v8888
    %v8890 = vpop.f32.mrf.mxu0
    %8891 = vdwg.mxu0
    %s8892 = scalar_lea.vmem [#allocation20], 512
    %v8893 = vld [vmem:[%s8892] sm:$0xff]
    %v8894 = vld [vmem:[%s8892 + $0x8] sm:$0xff]
    %v8895 = vld [vmem:[%s8892 + $0x10] sm:$0xff]
    %v8896 = vld [vmem:[%s8892 + $0x18] sm:$0xff]
    %v8897 = vld [vmem:[%s8892 + $0x20] sm:$0xff]
    %v8898 = vld [vmem:[%s8892 + $0x28] sm:$0xff]
    %v8899 = vld [vmem:[%s8892 + $0x30] sm:$0xff]
    %v8900 = vld [vmem:[%s8892 + $0x38] sm:$0xff]
    %v8901 = vld [vmem:[%s8892 + $0x40] sm:$0xff]
    %v8902 = vld [vmem:[%s8892 + $0x48] sm:$0xff]
    %v8903 = vld [vmem:[%s8892 + $0x50] sm:$0xff]
    %v8904 = vld [vmem:[%s8892 + $0x58] sm:$0xff]
    %v8905 = vld [vmem:[%s8892 + $0x60] sm:$0xff]
    %v8906 = vld [vmem:[%s8892 + $0x68] sm:$0xff]
    %v8907 = vld [vmem:[%s8892 + $0x70] sm:$0xff]
    %v8908 = vld [vmem:[%s8892 + $0x78] sm:$0xff]
    %s8909 = scalar_lea.vmem [#allocation22], 512
    %v8910 = vld [vmem:[%s8909] sm:$0xff]
    %v8911 = vld [vmem:[%s8909 + $0x8] sm:$0xff]
    %v8912 = vld [vmem:[%s8909 + $0x10] sm:$0xff]
    %v8913 = vld [vmem:[%s8909 + $0x18] sm:$0xff]
    %v8914 = vld [vmem:[%s8909 + $0x20] sm:$0xff]
    %v8915 = vld [vmem:[%s8909 + $0x28] sm:$0xff]
    %v8916 = vld [vmem:[%s8909 + $0x30] sm:$0xff]
    %v8917 = vld [vmem:[%s8909 + $0x38] sm:$0xff]
    %v8918 = vld [vmem:[%s8909 + $0x40] sm:$0xff]
    %v8919 = vld [vmem:[%s8909 + $0x48] sm:$0xff]
    %v8920 = vld [vmem:[%s8909 + $0x50] sm:$0xff]
    %v8921 = vld [vmem:[%s8909 + $0x58] sm:$0xff]
    %v8922 = vld [vmem:[%s8909 + $0x60] sm:$0xff]
    %v8923 = vld [vmem:[%s8909 + $0x68] sm:$0xff]
    %v8924 = vld [vmem:[%s8909 + $0x70] sm:$0xff]
    %v8925 = vld [vmem:[%s8909 + $0x78] sm:$0xff]
    %8926 = vmatprep.subr.mxu0 0.0
    %8927 = vmatpush1.msra.mxu0 %v8925
    %8928 = vmatprep.subr.mxu0 0.0
    %8929 = vmatpush1.msra.mxu0 %v8924
    %8930 = vmatprep.subr.mxu0 0.0
    %8931 = vmatpush1.msra.mxu0 %v8923
    %8932 = vmatprep.subr.mxu0 0.0
    %8933 = vmatpush1.msra.mxu0 %v8922
    %8934 = vmatprep.subr.mxu0 0.0
    %8935 = vmatpush1.msra.mxu0 %v8921
    %8936 = vmatprep.subr.mxu0 0.0
    %8937 = vmatpush1.msra.mxu0 %v8920
    %8938 = vmatprep.subr.mxu0 0.0
    %8939 = vmatpush1.msra.mxu0 %v8919
    %8940 = vmatprep.subr.mxu0 0.0
    %8941 = vmatpush1.msra.mxu0 %v8918
    %8942 = vmatprep.subr.mxu0 0.0
    %8943 = vmatpush1.msra.mxu0 %v8917
    %8944 = vmatprep.subr.mxu0 0.0
    %8945 = vmatpush1.msra.mxu0 %v8916
    %8946 = vmatprep.subr.mxu0 0.0
    %8947 = vmatpush1.msra.mxu0 %v8915
    %8948 = vmatprep.subr.mxu0 0.0
    %8949 = vmatpush1.msra.mxu0 %v8914
    %8950 = vmatprep.subr.mxu0 0.0
    %8951 = vmatpush1.msra.mxu0 %v8913
    %8952 = vmatprep.subr.mxu0 0.0
    %8953 = vmatpush1.msra.mxu0 %v8912
    %8954 = vmatprep.subr.mxu0 0.0
    %8955 = vmatpush1.msra.mxu0 %v8911
    %8956 = vmatprep.subr.mxu0 0.0
    %8957 = vmatpush1.msra.mxu0 %v8910
    %8958 = vmatprep.subr.mxu0 0.0
    %8959 = vmatpush2.msra.mxu0 0.0
    %8960 = vmatprep.subr.mxu0 0.0
    %8961 = vmatpush2.msra.mxu0 0.0
    %8962 = vmatprep.subr.mxu0 0.0
    %8963 = vmatpush2.msra.mxu0 0.0
    %8964 = vmatprep.subr.mxu0 0.0
    %8965 = vmatpush2.msra.mxu0 0.0
    %8966 = vmatprep.subr.mxu0 0.0
    %8967 = vmatpush2.msra.mxu0 0.0
    %8968 = vmatprep.subr.mxu0 0.0
    %8969 = vmatpush2.msra.mxu0 0.0
    %8970 = vmatprep.subr.mxu0 0.0
    %8971 = vmatpush2.msra.mxu0 0.0
    %8972 = vmatprep.subr.mxu0 0.0
    %8973 = vmatpush2.msra.mxu0 0.0
    %8974 = vmatprep.subr.mxu0 0.0
    %8975 = vmatpush2.msra.mxu0 0.0
    %8976 = vmatprep.subr.mxu0 0.0
    %8977 = vmatpush2.msra.mxu0 0.0
    %8978 = vmatprep.subr.mxu0 0.0
    %8979 = vmatpush2.msra.mxu0 0.0
    %8980 = vmatprep.subr.mxu0 0.0
    %8981 = vmatpush2.msra.mxu0 0.0
    %8982 = vmatprep.subr.mxu0 0.0
    %8983 = vmatpush2.msra.mxu0 0.0
    %8984 = vmatprep.subr.mxu0 0.0
    %8985 = vmatpush2.msra.mxu0 0.0
    %8986 = vmatprep.subr.mxu0 0.0
    %8987 = vmatpush2.msra.mxu0 0.0
    %8988 = vmatprep.subr.mxu0 0.0
    %8989 = vmatpush2.msra.mxu0 0.0
    %8990 = vmatprep.mubr.f32.mxu0 0.0
    %8991 = vmatmul.mubr.f32.gmra.mxu0 %v8814
    %v8992 = vpop.f32.mrf.mxu0
    %v8993 = vadd.f32 0.0, %v8992
    %v8994 = vpop.f32.mrf.mxu0
    %8995 = vmatprep.mubr.f32.mxu0 0.0
    %8996 = vmatmul.mubr.f32.gmra.mxu0 %v8819
    %v8997 = vpop.f32.mrf.mxu0
    %v8998 = vadd.f32 0.0, %v8997
    %v8999 = vpop.f32.mrf.mxu0
    %9000 = vmatprep.mubr.f32.mxu0 0.0
    %9001 = vmatmul.mubr.f32.gmra.mxu0 %v8824
    %v9002 = vpop.f32.mrf.mxu0
    %v9003 = vadd.f32 0.0, %v9002
    %v9004 = vpop.f32.mrf.mxu0
    %9005 = vmatprep.mubr.f32.mxu0 0.0
    %9006 = vmatmul.mubr.f32.gmra.mxu0 %v8829
    %v9007 = vpop.f32.mrf.mxu0
    %v9008 = vadd.f32 0.0, %v9007
    %v9009 = vpop.f32.mrf.mxu0
    %9010 = vmatprep.mubr.f32.mxu0 0.0
    %9011 = vmatmul.mubr.f32.gmra.mxu0 %v8834
    %v9012 = vpop.f32.mrf.mxu0
    %v9013 = vadd.f32 0.0, %v9012
    %v9014 = vpop.f32.mrf.mxu0
    %9015 = vmatprep.mubr.f32.mxu0 0.0
    %9016 = vmatmul.mubr.f32.gmra.mxu0 %v8839
    %v9017 = vpop.f32.mrf.mxu0
    %v9018 = vadd.f32 0.0, %v9017
    %v9019 = vpop.f32.mrf.mxu0
    %9020 = vmatprep.mubr.f32.mxu0 0.0
    %9021 = vmatmul.mubr.f32.gmra.mxu0 %v8844
    %v9022 = vpop.f32.mrf.mxu0
    %v9023 = vadd.f32 0.0, %v9022
    %v9024 = vpop.f32.mrf.mxu0
    %9025 = vmatprep.mubr.f32.mxu0 0.0
    %9026 = vmatmul.mubr.f32.gmra.mxu0 %v8849
    %v9027 = vpop.f32.mrf.mxu0
    %v9028 = vadd.f32 0.0, %v9027
    %v9029 = vpop.f32.mrf.mxu0
    %9030 = vmatprep.mubr.f32.mxu0 0.0
    %9031 = vmatmul.mubr.f32.gmra.mxu0 %v8854
    %v9032 = vpop.f32.mrf.mxu0
    %v9033 = vadd.f32 0.0, %v9032
    %v9034 = vpop.f32.mrf.mxu0
    %9035 = vmatprep.mubr.f32.mxu0 0.0
    %9036 = vmatmul.mubr.f32.gmra.mxu0 %v8859
    %v9037 = vpop.f32.mrf.mxu0
    %v9038 = vadd.f32 0.0, %v9037
    %v9039 = vpop.f32.mrf.mxu0
    %9040 = vmatprep.mubr.f32.mxu0 0.0
    %9041 = vmatmul.mubr.f32.gmra.mxu0 %v8864
    %v9042 = vpop.f32.mrf.mxu0
    %v9043 = vadd.f32 0.0, %v9042
    %v9044 = vpop.f32.mrf.mxu0
    %9045 = vmatprep.mubr.f32.mxu0 0.0
    %9046 = vmatmul.mubr.f32.gmra.mxu0 %v8869
    %v9047 = vpop.f32.mrf.mxu0
    %v9048 = vadd.f32 0.0, %v9047
    %v9049 = vpop.f32.mrf.mxu0
    %9050 = vmatprep.mubr.f32.mxu0 0.0
    %9051 = vmatmul.mubr.f32.gmra.mxu0 %v8874
    %v9052 = vpop.f32.mrf.mxu0
    %v9053 = vadd.f32 0.0, %v9052
    %v9054 = vpop.f32.mrf.mxu0
    %9055 = vmatprep.mubr.f32.mxu0 0.0
    %9056 = vmatmul.mubr.f32.gmra.mxu0 %v8879
    %v9057 = vpop.f32.mrf.mxu0
    %v9058 = vadd.f32 0.0, %v9057
    %v9059 = vpop.f32.mrf.mxu0
    %9060 = vmatprep.mubr.f32.mxu0 0.0
    %9061 = vmatmul.mubr.f32.gmra.mxu0 %v8884
    %v9062 = vpop.f32.mrf.mxu0
    %v9063 = vadd.f32 0.0, %v9062
    %v9064 = vpop.f32.mrf.mxu0
    %9065 = vmatprep.mubr.f32.mxu0 0.0
    %9066 = vmatmul.mubr.f32.gmra.mxu0 %v8889
    %v9067 = vpop.f32.mrf.mxu0
    %v9068 = vadd.f32 0.0, %v9067
    %v9069 = vpop.f32.mrf.mxu0
    %9070 = vdwg.mxu0
    %9071 = vmatprep.subr.mxu0 0.0
    %9072 = vmatpush1.msra.mxu0 %v8908
    %9073 = vmatprep.subr.mxu0 0.0
    %9074 = vmatpush1.msra.mxu0 %v8907
    %9075 = vmatprep.subr.mxu0 0.0
    %9076 = vmatpush1.msra.mxu0 %v8906
    %9077 = vmatprep.subr.mxu0 0.0
    %9078 = vmatpush1.msra.mxu0 %v8905
    %9079 = vmatprep.subr.mxu0 0.0
    %9080 = vmatpush1.msra.mxu0 %v8904
    %9081 = vmatprep.subr.mxu0 0.0
    %9082 = vmatpush1.msra.mxu0 %v8903
    %9083 = vmatprep.subr.mxu0 0.0
    %9084 = vmatpush1.msra.mxu0 %v8902
    %9085 = vmatprep.subr.mxu0 0.0
    %9086 = vmatpush1.msra.mxu0 %v8901
    %9087 = vmatprep.subr.mxu0 0.0
    %9088 = vmatpush1.msra.mxu0 %v8900
    %9089 = vmatprep.subr.mxu0 0.0
    %9090 = vmatpush1.msra.mxu0 %v8899
    %9091 = vmatprep.subr.mxu0 0.0
    %9092 = vmatpush1.msra.mxu0 %v8898
    %9093 = vmatprep.subr.mxu0 0.0
    %9094 = vmatpush1.msra.mxu0 %v8897
    %9095 = vmatprep.subr.mxu0 0.0
    %9096 = vmatpush1.msra.mxu0 %v8896
    %9097 = vmatprep.subr.mxu0 0.0
    %9098 = vmatpush1.msra.mxu0 %v8895
    %9099 = vmatprep.subr.mxu0 0.0
    %9100 = vmatpush1.msra.mxu0 %v8894
    %9101 = vmatprep.subr.mxu0 0.0
    %9102 = vmatpush1.msra.mxu0 %v8893
    %9103 = vmatprep.subr.mxu0 0.0
    %9104 = vmatpush2.msra.mxu0 0.0
    %9105 = vmatprep.subr.mxu0 0.0
    %9106 = vmatpush2.msra.mxu0 0.0
    %9107 = vmatprep.subr.mxu0 0.0
    %9108 = vmatpush2.msra.mxu0 0.0
    %9109 = vmatprep.subr.mxu0 0.0
    %9110 = vmatpush2.msra.mxu0 0.0
    %9111 = vmatprep.subr.mxu0 0.0
    %9112 = vmatpush2.msra.mxu0 0.0
    %9113 = vmatprep.subr.mxu0 0.0
    %9114 = vmatpush2.msra.mxu0 0.0
    %9115 = vmatprep.subr.mxu0 0.0
    %9116 = vmatpush2.msra.mxu0 0.0
    %9117 = vmatprep.subr.mxu0 0.0
    %9118 = vmatpush2.msra.mxu0 0.0
    %9119 = vmatprep.subr.mxu0 0.0
    %9120 = vmatpush2.msra.mxu0 0.0
    %9121 = vmatprep.subr.mxu0 0.0
    %9122 = vmatpush2.msra.mxu0 0.0
    %9123 = vmatprep.subr.mxu0 0.0
    %9124 = vmatpush2.msra.mxu0 0.0
    %9125 = vmatprep.subr.mxu0 0.0
    %9126 = vmatpush2.msra.mxu0 0.0
    %9127 = vmatprep.subr.mxu0 0.0
    %9128 = vmatpush2.msra.mxu0 0.0
    %9129 = vmatprep.subr.mxu0 0.0
    %9130 = vmatpush2.msra.mxu0 0.0
    %9131 = vmatprep.subr.mxu0 0.0
    %9132 = vmatpush2.msra.mxu0 0.0
    %9133 = vmatprep.subr.mxu0 0.0
    %9134 = vmatpush2.msra.mxu0 0.0
    %9135 = vmatprep.mubr.f32.mxu0 0.0
    %9136 = vmatmul.mubr.f32.gmra.mxu0 %v7541
    %v9137 = vpop.f32.mrf.mxu0
    %v9138 = vadd.f32 %v8993, %v9137
    %v9139 = vpop.f32.mrf.mxu0
    %9140 = vmatprep.mubr.f32.mxu0 0.0
    %9141 = vmatmul.mubr.f32.gmra.mxu0 %v7542
    %v9142 = vpop.f32.mrf.mxu0
    %v9143 = vadd.f32 %v8998, %v9142
    %v9144 = vpop.f32.mrf.mxu0
    %9145 = vmatprep.mubr.f32.mxu0 0.0
    %9146 = vmatmul.mubr.f32.gmra.mxu0 %v7543
    %v9147 = vpop.f32.mrf.mxu0
    %v9148 = vadd.f32 %v9003, %v9147
    %v9149 = vpop.f32.mrf.mxu0
    %9150 = vmatprep.mubr.f32.mxu0 0.0
    %9151 = vmatmul.mubr.f32.gmra.mxu0 %v7544
    %v9152 = vpop.f32.mrf.mxu0
    %v9153 = vadd.f32 %v9008, %v9152
    %v9154 = vpop.f32.mrf.mxu0
    %9155 = vmatprep.mubr.f32.mxu0 0.0
    %9156 = vmatmul.mubr.f32.gmra.mxu0 %v7545
    %v9157 = vpop.f32.mrf.mxu0
    %v9158 = vadd.f32 %v9013, %v9157
    %v9159 = vpop.f32.mrf.mxu0
    %9160 = vmatprep.mubr.f32.mxu0 0.0
    %9161 = vmatmul.mubr.f32.gmra.mxu0 %v7546
    %v9162 = vpop.f32.mrf.mxu0
    %v9163 = vadd.f32 %v9018, %v9162
    %v9164 = vpop.f32.mrf.mxu0
    %9165 = vmatprep.mubr.f32.mxu0 0.0
    %9166 = vmatmul.mubr.f32.gmra.mxu0 %v7547
    %v9167 = vpop.f32.mrf.mxu0
    %v9168 = vadd.f32 %v9023, %v9167
    %v9169 = vpop.f32.mrf.mxu0
    %9170 = vmatprep.mubr.f32.mxu0 0.0
    %9171 = vmatmul.mubr.f32.gmra.mxu0 %v7548
    %v9172 = vpop.f32.mrf.mxu0
    %v9173 = vadd.f32 %v9028, %v9172
    %v9174 = vpop.f32.mrf.mxu0
    %9175 = vmatprep.mubr.f32.mxu0 0.0
    %9176 = vmatmul.mubr.f32.gmra.mxu0 %v7549
    %v9177 = vpop.f32.mrf.mxu0
    %v9178 = vadd.f32 %v9033, %v9177
    %v9179 = vpop.f32.mrf.mxu0
    %9180 = vmatprep.mubr.f32.mxu0 0.0
    %9181 = vmatmul.mubr.f32.gmra.mxu0 %v7550
    %v9182 = vpop.f32.mrf.mxu0
    %v9183 = vadd.f32 %v9038, %v9182
    %v9184 = vpop.f32.mrf.mxu0
    %9185 = vmatprep.mubr.f32.mxu0 0.0
    %9186 = vmatmul.mubr.f32.gmra.mxu0 %v7551
    %v9187 = vpop.f32.mrf.mxu0
    %v9188 = vadd.f32 %v9043, %v9187
    %v9189 = vpop.f32.mrf.mxu0
    %9190 = vmatprep.mubr.f32.mxu0 0.0
    %9191 = vmatmul.mubr.f32.gmra.mxu0 %v7552
    %v9192 = vpop.f32.mrf.mxu0
    %v9193 = vadd.f32 %v9048, %v9192
    %v9194 = vpop.f32.mrf.mxu0
    %9195 = vmatprep.mubr.f32.mxu0 0.0
    %9196 = vmatmul.mubr.f32.gmra.mxu0 %v7553
    %v9197 = vpop.f32.mrf.mxu0
    %v9198 = vadd.f32 %v9053, %v9197
    %v9199 = vpop.f32.mrf.mxu0
    %9200 = vmatprep.mubr.f32.mxu0 0.0
    %9201 = vmatmul.mubr.f32.gmra.mxu0 %v7554
    %v9202 = vpop.f32.mrf.mxu0
    %v9203 = vadd.f32 %v9058, %v9202
    %v9204 = vpop.f32.mrf.mxu0
    %9205 = vmatprep.mubr.f32.mxu0 0.0
    %9206 = vmatmul.mubr.f32.gmra.mxu0 %v7555
    %v9207 = vpop.f32.mrf.mxu0
    %v9208 = vadd.f32 %v9063, %v9207
    %v9209 = vpop.f32.mrf.mxu0
    %9210 = vmatprep.mubr.f32.mxu0 0.0
    %9211 = vmatmul.mubr.f32.gmra.mxu0 %v7556
    %v9212 = vpop.f32.mrf.mxu0
    %v9213 = vadd.f32 %v9068, %v9212
    %v9214 = vpop.f32.mrf.mxu0
    %9215 = vdwg.mxu0
    %v9216 = vld [vmem:[%s19 + $0x4] sm:$0x1]
    %v9217 = vlaneseq
    %v9218 = vshrl.u32 %v9217, 7
    %v9219 = vsub.s32 0, %v9218
    %v9220 = vrot.slane %v9216, %v9219
    %v9221 = vadd.f32 %v9138, %v9220
    %v9222 = vadd.f32 %v9143, %v9220
    %v9223 = vadd.f32 %v9148, %v9220
    %v9224 = vadd.f32 %v9153, %v9220
    %v9225 = vadd.f32 %v9158, %v9220
    %v9226 = vadd.f32 %v9163, %v9220
    %v9227 = vadd.f32 %v9168, %v9220
    %v9228 = vadd.f32 %v9173, %v9220
    %v9229 = vadd.f32 %v9178, %v9220
    %v9230 = vadd.f32 %v9183, %v9220
    %v9231 = vadd.f32 %v9188, %v9220
    %v9232 = vadd.f32 %v9193, %v9220
    %v9233 = vadd.f32 %v9198, %v9220
    %v9234 = vadd.f32 %v9203, %v9220
    %v9235 = vadd.f32 %v9208, %v9220
    %v9236 = vadd.f32 %v9213, %v9220
    %v9237 = vmax.f32 %v9221, 0.0
    %v9238 = vmax.f32 %v9222, 0.0
    %v9239 = vmax.f32 %v9223, 0.0
    %v9240 = vmax.f32 %v9224, 0.0
    %v9241 = vmax.f32 %v9225, 0.0
    %v9242 = vmax.f32 %v9226, 0.0
    %v9243 = vmax.f32 %v9227, 0.0
    %v9244 = vmax.f32 %v9228, 0.0
    %v9245 = vmax.f32 %v9229, 0.0
    %v9246 = vmax.f32 %v9230, 0.0
    %v9247 = vmax.f32 %v9231, 0.0
    %v9248 = vmax.f32 %v9232, 0.0
    %v9249 = vmax.f32 %v9233, 0.0
    %v9250 = vmax.f32 %v9234, 0.0
    %v9251 = vmax.f32 %v9235, 0.0
    %v9252 = vmax.f32 %v9236, 0.0
    %s9253 = scalar_lea.vmem [#allocation23], 512
    %v9254 = vld [vmem:[%s9253] sm:$0xff]
    %v9255 = vld [vmem:[%s9253 + $0x8] sm:$0xff]
    %v9256 = vld [vmem:[%s9253 + $0x10] sm:$0xff]
    %v9257 = vld [vmem:[%s9253 + $0x18] sm:$0xff]
    %v9258 = vld [vmem:[%s9253 + $0x20] sm:$0xff]
    %v9259 = vld [vmem:[%s9253 + $0x28] sm:$0xff]
    %v9260 = vld [vmem:[%s9253 + $0x30] sm:$0xff]
    %v9261 = vld [vmem:[%s9253 + $0x38] sm:$0xff]
    %v9262 = vld [vmem:[%s9253 + $0x40] sm:$0xff]
    %v9263 = vld [vmem:[%s9253 + $0x48] sm:$0xff]
    %v9264 = vld [vmem:[%s9253 + $0x50] sm:$0xff]
    %v9265 = vld [vmem:[%s9253 + $0x58] sm:$0xff]
    %v9266 = vld [vmem:[%s9253 + $0x60] sm:$0xff]
    %v9267 = vld [vmem:[%s9253 + $0x68] sm:$0xff]
    %v9268 = vld [vmem:[%s9253 + $0x70] sm:$0xff]
    %v9269 = vld [vmem:[%s9253 + $0x78] sm:$0xff]
    %v9270 = vld [vmem:[%s21 + $0x4] sm:$0x1]
    %v9271 = vlaneseq
    %v9272 = vshrl.u32 %v9271, 7
    %v9273 = vsub.s32 0, %v9272
    %v9274 = vrot.slane %v9270, %v9273
    %9275 = vmatprep.subr.mxu0 0.0
    %9276 = vmatpush1.msra.mxu0 %v9269
    %9277 = vmatprep.subr.mxu0 0.0
    %9278 = vmatpush1.msra.mxu0 %v9268
    %9279 = vmatprep.subr.mxu0 0.0
    %9280 = vmatpush1.msra.mxu0 %v9267
    %9281 = vmatprep.subr.mxu0 0.0
    %9282 = vmatpush1.msra.mxu0 %v9266
    %9283 = vmatprep.subr.mxu0 0.0
    %9284 = vmatpush1.msra.mxu0 %v9265
    %9285 = vmatprep.subr.mxu0 0.0
    %9286 = vmatpush1.msra.mxu0 %v9264
    %9287 = vmatprep.subr.mxu0 0.0
    %9288 = vmatpush1.msra.mxu0 %v9263
    %9289 = vmatprep.subr.mxu0 0.0
    %9290 = vmatpush1.msra.mxu0 %v9262
    %9291 = vmatprep.subr.mxu0 0.0
    %9292 = vmatpush1.msra.mxu0 %v9261
    %9293 = vmatprep.subr.mxu0 0.0
    %9294 = vmatpush1.msra.mxu0 %v9260
    %9295 = vmatprep.subr.mxu0 0.0
    %9296 = vmatpush1.msra.mxu0 %v9259
    %9297 = vmatprep.subr.mxu0 0.0
    %9298 = vmatpush1.msra.mxu0 %v9258
    %9299 = vmatprep.subr.mxu0 0.0
    %9300 = vmatpush1.msra.mxu0 %v9257
    %9301 = vmatprep.subr.mxu0 0.0
    %9302 = vmatpush1.msra.mxu0 %v9256
    %9303 = vmatprep.subr.mxu0 0.0
    %9304 = vmatpush1.msra.mxu0 %v9255
    %9305 = vmatprep.subr.mxu0 0.0
    %9306 = vmatpush1.msra.mxu0 %v9254
    %9307 = vmatprep.subr.mxu0 0.0
    %9308 = vmatpush2.msra.mxu0 0.0
    %9309 = vmatprep.subr.mxu0 0.0
    %9310 = vmatpush2.msra.mxu0 0.0
    %9311 = vmatprep.subr.mxu0 0.0
    %9312 = vmatpush2.msra.mxu0 0.0
    %9313 = vmatprep.subr.mxu0 0.0
    %9314 = vmatpush2.msra.mxu0 0.0
    %9315 = vmatprep.subr.mxu0 0.0
    %9316 = vmatpush2.msra.mxu0 0.0
    %9317 = vmatprep.subr.mxu0 0.0
    %9318 = vmatpush2.msra.mxu0 0.0
    %9319 = vmatprep.subr.mxu0 0.0
    %9320 = vmatpush2.msra.mxu0 0.0
    %9321 = vmatprep.subr.mxu0 0.0
    %9322 = vmatpush2.msra.mxu0 0.0
    %9323 = vmatprep.subr.mxu0 0.0
    %9324 = vmatpush2.msra.mxu0 0.0
    %9325 = vmatprep.subr.mxu0 0.0
    %9326 = vmatpush2.msra.mxu0 0.0
    %9327 = vmatprep.subr.mxu0 0.0
    %9328 = vmatpush2.msra.mxu0 0.0
    %9329 = vmatprep.subr.mxu0 0.0
    %9330 = vmatpush2.msra.mxu0 0.0
    %9331 = vmatprep.subr.mxu0 0.0
    %9332 = vmatpush2.msra.mxu0 0.0
    %9333 = vmatprep.subr.mxu0 0.0
    %9334 = vmatpush2.msra.mxu0 0.0
    %9335 = vmatprep.subr.mxu0 0.0
    %9336 = vmatpush2.msra.mxu0 0.0
    %9337 = vmatprep.subr.mxu0 0.0
    %9338 = vmatpush2.msra.mxu0 0.0
    %9339 = vmatprep.mubr.f32.mxu0 0.0
    %9340 = vmatmul.mubr.f32.gmra.mxu0 %v9237
    %v9341 = vpop.f32.mrf.mxu0
    %v9342 = vadd.f32 %v9274, %v9341
    %v9343 = vpop.f32.mrf.mxu0
    %9344 = vmatprep.mubr.f32.mxu0 0.0
    %9345 = vmatmul.mubr.f32.gmra.mxu0 %v9238
    %v9346 = vpop.f32.mrf.mxu0
    %v9347 = vadd.f32 %v9274, %v9346
    %v9348 = vpop.f32.mrf.mxu0
    %9349 = vmatprep.mubr.f32.mxu0 0.0
    %9350 = vmatmul.mubr.f32.gmra.mxu0 %v9239
    %v9351 = vpop.f32.mrf.mxu0
    %v9352 = vadd.f32 %v9274, %v9351
    %v9353 = vpop.f32.mrf.mxu0
    %9354 = vmatprep.mubr.f32.mxu0 0.0
    %9355 = vmatmul.mubr.f32.gmra.mxu0 %v9240
    %v9356 = vpop.f32.mrf.mxu0
    %v9357 = vadd.f32 %v9274, %v9356
    %v9358 = vpop.f32.mrf.mxu0
    %9359 = vmatprep.mubr.f32.mxu0 0.0
    %9360 = vmatmul.mubr.f32.gmra.mxu0 %v9241
    %v9361 = vpop.f32.mrf.mxu0
    %v9362 = vadd.f32 %v9274, %v9361
    %v9363 = vpop.f32.mrf.mxu0
    %9364 = vmatprep.mubr.f32.mxu0 0.0
    %9365 = vmatmul.mubr.f32.gmra.mxu0 %v9242
    %v9366 = vpop.f32.mrf.mxu0
    %v9367 = vadd.f32 %v9274, %v9366
    %v9368 = vpop.f32.mrf.mxu0
    %9369 = vmatprep.mubr.f32.mxu0 0.0
    %9370 = vmatmul.mubr.f32.gmra.mxu0 %v9243
    %v9371 = vpop.f32.mrf.mxu0
    %v9372 = vadd.f32 %v9274, %v9371
    %v9373 = vpop.f32.mrf.mxu0
    %9374 = vmatprep.mubr.f32.mxu0 0.0
    %9375 = vmatmul.mubr.f32.gmra.mxu0 %v9244
    %v9376 = vpop.f32.mrf.mxu0
    %v9377 = vadd.f32 %v9274, %v9376
    %v9378 = vpop.f32.mrf.mxu0
    %9379 = vmatprep.mubr.f32.mxu0 0.0
    %9380 = vmatmul.mubr.f32.gmra.mxu0 %v9245
    %v9381 = vpop.f32.mrf.mxu0
    %v9382 = vadd.f32 %v9274, %v9381
    %v9383 = vpop.f32.mrf.mxu0
    %9384 = vmatprep.mubr.f32.mxu0 0.0
    %9385 = vmatmul.mubr.f32.gmra.mxu0 %v9246
    %v9386 = vpop.f32.mrf.mxu0
    %v9387 = vadd.f32 %v9274, %v9386
    %v9388 = vpop.f32.mrf.mxu0
    %9389 = vmatprep.mubr.f32.mxu0 0.0
    %9390 = vmatmul.mubr.f32.gmra.mxu0 %v9247
    %v9391 = vpop.f32.mrf.mxu0
    %v9392 = vadd.f32 %v9274, %v9391
    %v9393 = vpop.f32.mrf.mxu0
    %9394 = vmatprep.mubr.f32.mxu0 0.0
    %9395 = vmatmul.mubr.f32.gmra.mxu0 %v9248
    %v9396 = vpop.f32.mrf.mxu0
    %v9397 = vadd.f32 %v9274, %v9396
    %v9398 = vpop.f32.mrf.mxu0
    %9399 = vmatprep.mubr.f32.mxu0 0.0
    %9400 = vmatmul.mubr.f32.gmra.mxu0 %v9249
    %v9401 = vpop.f32.mrf.mxu0
    %v9402 = vadd.f32 %v9274, %v9401
    %v9403 = vpop.f32.mrf.mxu0
    %9404 = vmatprep.mubr.f32.mxu0 0.0
    %9405 = vmatmul.mubr.f32.gmra.mxu0 %v9250
    %v9406 = vpop.f32.mrf.mxu0
    %v9407 = vadd.f32 %v9274, %v9406
    %v9408 = vpop.f32.mrf.mxu0
    %9409 = vmatprep.mubr.f32.mxu0 0.0
    %9410 = vmatmul.mubr.f32.gmra.mxu0 %v9251
    %v9411 = vpop.f32.mrf.mxu0
    %v9412 = vadd.f32 %v9274, %v9411
    %v9413 = vpop.f32.mrf.mxu0
    %9414 = vmatprep.mubr.f32.mxu0 0.0
    %9415 = vmatmul.mubr.f32.gmra.mxu0 %v9252
    %v9416 = vpop.f32.mrf.mxu0
    %v9417 = vadd.f32 %v9274, %v9416
    %v9418 = vpop.f32.mrf.mxu0
    %9419 = vdwg.mxu0
    %v9420 = vmul.f32 %v9342, %v2184
    %v9421 = vmul.f32 %v9347, %v2189
    %v9422 = vmul.f32 %v9352, %v2194
    %v9423 = vmul.f32 %v9357, %v2199
    %v9424 = vmul.f32 %v9362, %v2204
    %v9425 = vmul.f32 %v9367, %v2209
    %v9426 = vmul.f32 %v9372, %v2214
    %v9427 = vmul.f32 %v9377, %v2219
    %v9428 = vmul.f32 %v9382, %v2224
    %v9429 = vmul.f32 %v9387, %v2229
    %v9430 = vmul.f32 %v9392, %v2234
    %v9431 = vmul.f32 %v9397, %v2239
    %v9432 = vmul.f32 %v9402, %v2244
    %v9433 = vmul.f32 %v9407, %v2249
    %v9434 = vmul.f32 %v9412, %v2254
    %v9435 = vmul.f32 %v9417, %v2259
    %s9436 = scalar_lea.vmem [#allocation14], 640
    %v9437 = vld [vmem:[%s9436] sm:$0xff]
    %v9438 = vld [vmem:[%s9436 + $0x8] sm:$0xff]
    %v9439 = vld [vmem:[%s9436 + $0x10] sm:$0xff]
    %v9440 = vld [vmem:[%s9436 + $0x18] sm:$0xff]
    %v9441 = vld [vmem:[%s9436 + $0x20] sm:$0xff]
    %v9442 = vld [vmem:[%s9436 + $0x28] sm:$0xff]
    %v9443 = vld [vmem:[%s9436 + $0x30] sm:$0xff]
    %v9444 = vld [vmem:[%s9436 + $0x38] sm:$0xff]
    %v9445 = vld [vmem:[%s9436 + $0x40] sm:$0xff]
    %v9446 = vld [vmem:[%s9436 + $0x48] sm:$0xff]
    %v9447 = vld [vmem:[%s9436 + $0x50] sm:$0xff]
    %v9448 = vld [vmem:[%s9436 + $0x58] sm:$0xff]
    %v9449 = vld [vmem:[%s9436 + $0x60] sm:$0xff]
    %v9450 = vld [vmem:[%s9436 + $0x68] sm:$0xff]
    %v9451 = vld [vmem:[%s9436 + $0x70] sm:$0xff]
    %v9452 = vld [vmem:[%s9436 + $0x78] sm:$0xff]
    %9453 = vmatprep.subr.mxu0 0.0
    %9454 = vmatpush1.msra.mxu0 %v9452
    %9455 = vmatprep.subr.mxu0 0.0
    %9456 = vmatpush1.msra.mxu0 %v9451
    %9457 = vmatprep.subr.mxu0 0.0
    %9458 = vmatpush1.msra.mxu0 %v9450
    %9459 = vmatprep.subr.mxu0 0.0
    %9460 = vmatpush1.msra.mxu0 %v9449
    %9461 = vmatprep.subr.mxu0 0.0
    %9462 = vmatpush1.msra.mxu0 %v9448
    %9463 = vmatprep.subr.mxu0 0.0
    %9464 = vmatpush1.msra.mxu0 %v9447
    %9465 = vmatprep.subr.mxu0 0.0
    %9466 = vmatpush1.msra.mxu0 %v9446
    %9467 = vmatprep.subr.mxu0 0.0
    %9468 = vmatpush1.msra.mxu0 %v9445
    %9469 = vmatprep.subr.mxu0 0.0
    %9470 = vmatpush1.msra.mxu0 %v9444
    %9471 = vmatprep.subr.mxu0 0.0
    %9472 = vmatpush1.msra.mxu0 %v9443
    %9473 = vmatprep.subr.mxu0 0.0
    %9474 = vmatpush1.msra.mxu0 %v9442
    %9475 = vmatprep.subr.mxu0 0.0
    %9476 = vmatpush1.msra.mxu0 %v9441
    %9477 = vmatprep.subr.mxu0 0.0
    %9478 = vmatpush1.msra.mxu0 %v9440
    %9479 = vmatprep.subr.mxu0 0.0
    %9480 = vmatpush1.msra.mxu0 %v9439
    %9481 = vmatprep.subr.mxu0 0.0
    %9482 = vmatpush1.msra.mxu0 %v9438
    %9483 = vmatprep.subr.mxu0 0.0
    %9484 = vmatpush1.msra.mxu0 %v9437
    %9485 = vmatprep.subr.mxu0 0.0
    %9486 = vmatpush2.msra.mxu0 0.0
    %9487 = vmatprep.subr.mxu0 0.0
    %9488 = vmatpush2.msra.mxu0 0.0
    %9489 = vmatprep.subr.mxu0 0.0
    %9490 = vmatpush2.msra.mxu0 0.0
    %9491 = vmatprep.subr.mxu0 0.0
    %9492 = vmatpush2.msra.mxu0 0.0
    %9493 = vmatprep.subr.mxu0 0.0
    %9494 = vmatpush2.msra.mxu0 0.0
    %9495 = vmatprep.subr.mxu0 0.0
    %9496 = vmatpush2.msra.mxu0 0.0
    %9497 = vmatprep.subr.mxu0 0.0
    %9498 = vmatpush2.msra.mxu0 0.0
    %9499 = vmatprep.subr.mxu0 0.0
    %9500 = vmatpush2.msra.mxu0 0.0
    %9501 = vmatprep.subr.mxu0 0.0
    %9502 = vmatpush2.msra.mxu0 0.0
    %9503 = vmatprep.subr.mxu0 0.0
    %9504 = vmatpush2.msra.mxu0 0.0
    %9505 = vmatprep.subr.mxu0 0.0
    %9506 = vmatpush2.msra.mxu0 0.0
    %9507 = vmatprep.subr.mxu0 0.0
    %9508 = vmatpush2.msra.mxu0 0.0
    %9509 = vmatprep.subr.mxu0 0.0
    %9510 = vmatpush2.msra.mxu0 0.0
    %9511 = vmatprep.subr.mxu0 0.0
    %9512 = vmatpush2.msra.mxu0 0.0
    %9513 = vmatprep.subr.mxu0 0.0
    %9514 = vmatpush2.msra.mxu0 0.0
    %9515 = vmatprep.subr.mxu0 0.0
    %9516 = vmatpush2.msra.mxu0 0.0
    %9517 = vmatprep.mubr.f32.mxu0 0.0
    %9518 = vmatmul.mubr.f32.gmra.mxu0 %v9420
    %v9519 = vpop.f32.mrf.mxu0
    %v9520 = vadd.f32 0.0, %v9519
    %v9521 = vpop.f32.mrf.mxu0
    %9522 = vmatprep.mubr.f32.mxu0 0.0
    %9523 = vmatmul.mubr.f32.gmra.mxu0 %v9421
    %v9524 = vpop.f32.mrf.mxu0
    %v9525 = vadd.f32 0.0, %v9524
    %v9526 = vpop.f32.mrf.mxu0
    %9527 = vmatprep.mubr.f32.mxu0 0.0
    %9528 = vmatmul.mubr.f32.gmra.mxu0 %v9422
    %v9529 = vpop.f32.mrf.mxu0
    %v9530 = vadd.f32 0.0, %v9529
    %v9531 = vpop.f32.mrf.mxu0
    %9532 = vmatprep.mubr.f32.mxu0 0.0
    %9533 = vmatmul.mubr.f32.gmra.mxu0 %v9423
    %v9534 = vpop.f32.mrf.mxu0
    %v9535 = vadd.f32 0.0, %v9534
    %v9536 = vpop.f32.mrf.mxu0
    %9537 = vmatprep.mubr.f32.mxu0 0.0
    %9538 = vmatmul.mubr.f32.gmra.mxu0 %v9424
    %v9539 = vpop.f32.mrf.mxu0
    %v9540 = vadd.f32 0.0, %v9539
    %v9541 = vpop.f32.mrf.mxu0
    %9542 = vmatprep.mubr.f32.mxu0 0.0
    %9543 = vmatmul.mubr.f32.gmra.mxu0 %v9425
    %v9544 = vpop.f32.mrf.mxu0
    %v9545 = vadd.f32 0.0, %v9544
    %v9546 = vpop.f32.mrf.mxu0
    %9547 = vmatprep.mubr.f32.mxu0 0.0
    %9548 = vmatmul.mubr.f32.gmra.mxu0 %v9426
    %v9549 = vpop.f32.mrf.mxu0
    %v9550 = vadd.f32 0.0, %v9549
    %v9551 = vpop.f32.mrf.mxu0
    %9552 = vmatprep.mubr.f32.mxu0 0.0
    %9553 = vmatmul.mubr.f32.gmra.mxu0 %v9427
    %v9554 = vpop.f32.mrf.mxu0
    %v9555 = vadd.f32 0.0, %v9554
    %v9556 = vpop.f32.mrf.mxu0
    %9557 = vmatprep.mubr.f32.mxu0 0.0
    %9558 = vmatmul.mubr.f32.gmra.mxu0 %v9428
    %v9559 = vpop.f32.mrf.mxu0
    %v9560 = vadd.f32 0.0, %v9559
    %v9561 = vpop.f32.mrf.mxu0
    %9562 = vmatprep.mubr.f32.mxu0 0.0
    %9563 = vmatmul.mubr.f32.gmra.mxu0 %v9429
    %v9564 = vpop.f32.mrf.mxu0
    %v9565 = vadd.f32 0.0, %v9564
    %v9566 = vpop.f32.mrf.mxu0
    %9567 = vmatprep.mubr.f32.mxu0 0.0
    %9568 = vmatmul.mubr.f32.gmra.mxu0 %v9430
    %v9569 = vpop.f32.mrf.mxu0
    %v9570 = vadd.f32 0.0, %v9569
    %v9571 = vpop.f32.mrf.mxu0
    %9572 = vmatprep.mubr.f32.mxu0 0.0
    %9573 = vmatmul.mubr.f32.gmra.mxu0 %v9431
    %v9574 = vpop.f32.mrf.mxu0
    %v9575 = vadd.f32 0.0, %v9574
    %v9576 = vpop.f32.mrf.mxu0
    %9577 = vmatprep.mubr.f32.mxu0 0.0
    %9578 = vmatmul.mubr.f32.gmra.mxu0 %v9432
    %v9579 = vpop.f32.mrf.mxu0
    %v9580 = vadd.f32 0.0, %v9579
    %v9581 = vpop.f32.mrf.mxu0
    %9582 = vmatprep.mubr.f32.mxu0 0.0
    %9583 = vmatmul.mubr.f32.gmra.mxu0 %v9433
    %v9584 = vpop.f32.mrf.mxu0
    %v9585 = vadd.f32 0.0, %v9584
    %v9586 = vpop.f32.mrf.mxu0
    %9587 = vmatprep.mubr.f32.mxu0 0.0
    %9588 = vmatmul.mubr.f32.gmra.mxu0 %v9434
    %v9589 = vpop.f32.mrf.mxu0
    %v9590 = vadd.f32 0.0, %v9589
    %v9591 = vpop.f32.mrf.mxu0
    %9592 = vmatprep.mubr.f32.mxu0 0.0
    %9593 = vmatmul.mubr.f32.gmra.mxu0 %v9435
    %v9594 = vpop.f32.mrf.mxu0
    %v9595 = vadd.f32 0.0, %v9594
    %v9596 = vpop.f32.mrf.mxu0
    %9597 = vdwg.mxu0
    %s9598 = scalar_lea.vmem [#allocation16], 640
    %v9599 = vld [vmem:[%s9598] sm:$0xff]
    %v9600 = vld [vmem:[%s9598 + $0x8] sm:$0xff]
    %v9601 = vld [vmem:[%s9598 + $0x10] sm:$0xff]
    %v9602 = vld [vmem:[%s9598 + $0x18] sm:$0xff]
    %v9603 = vld [vmem:[%s9598 + $0x20] sm:$0xff]
    %v9604 = vld [vmem:[%s9598 + $0x28] sm:$0xff]
    %v9605 = vld [vmem:[%s9598 + $0x30] sm:$0xff]
    %v9606 = vld [vmem:[%s9598 + $0x38] sm:$0xff]
    %v9607 = vld [vmem:[%s9598 + $0x40] sm:$0xff]
    %v9608 = vld [vmem:[%s9598 + $0x48] sm:$0xff]
    %v9609 = vld [vmem:[%s9598 + $0x50] sm:$0xff]
    %v9610 = vld [vmem:[%s9598 + $0x58] sm:$0xff]
    %v9611 = vld [vmem:[%s9598 + $0x60] sm:$0xff]
    %v9612 = vld [vmem:[%s9598 + $0x68] sm:$0xff]
    %v9613 = vld [vmem:[%s9598 + $0x70] sm:$0xff]
    %v9614 = vld [vmem:[%s9598 + $0x78] sm:$0xff]
    %9615 = vmatprep.subr.mxu0 0.0
    %9616 = vmatpush1.msra.mxu0 %v9614
    %9617 = vmatprep.subr.mxu0 0.0
    %9618 = vmatpush1.msra.mxu0 %v9613
    %9619 = vmatprep.subr.mxu0 0.0
    %9620 = vmatpush1.msra.mxu0 %v9612
    %9621 = vmatprep.subr.mxu0 0.0
    %9622 = vmatpush1.msra.mxu0 %v9611
    %9623 = vmatprep.subr.mxu0 0.0
    %9624 = vmatpush1.msra.mxu0 %v9610
    %9625 = vmatprep.subr.mxu0 0.0
    %9626 = vmatpush1.msra.mxu0 %v9609
    %9627 = vmatprep.subr.mxu0 0.0
    %9628 = vmatpush1.msra.mxu0 %v9608
    %9629 = vmatprep.subr.mxu0 0.0
    %9630 = vmatpush1.msra.mxu0 %v9607
    %9631 = vmatprep.subr.mxu0 0.0
    %9632 = vmatpush1.msra.mxu0 %v9606
    %9633 = vmatprep.subr.mxu0 0.0
    %9634 = vmatpush1.msra.mxu0 %v9605
    %9635 = vmatprep.subr.mxu0 0.0
    %9636 = vmatpush1.msra.mxu0 %v9604
    %9637 = vmatprep.subr.mxu0 0.0
    %9638 = vmatpush1.msra.mxu0 %v9603
    %9639 = vmatprep.subr.mxu0 0.0
    %9640 = vmatpush1.msra.mxu0 %v9602
    %9641 = vmatprep.subr.mxu0 0.0
    %9642 = vmatpush1.msra.mxu0 %v9601
    %9643 = vmatprep.subr.mxu0 0.0
    %9644 = vmatpush1.msra.mxu0 %v9600
    %9645 = vmatprep.subr.mxu0 0.0
    %9646 = vmatpush1.msra.mxu0 %v9599
    %9647 = vmatprep.subr.mxu0 0.0
    %9648 = vmatpush2.msra.mxu0 0.0
    %9649 = vmatprep.subr.mxu0 0.0
    %9650 = vmatpush2.msra.mxu0 0.0
    %9651 = vmatprep.subr.mxu0 0.0
    %9652 = vmatpush2.msra.mxu0 0.0
    %9653 = vmatprep.subr.mxu0 0.0
    %9654 = vmatpush2.msra.mxu0 0.0
    %9655 = vmatprep.subr.mxu0 0.0
    %9656 = vmatpush2.msra.mxu0 0.0
    %9657 = vmatprep.subr.mxu0 0.0
    %9658 = vmatpush2.msra.mxu0 0.0
    %9659 = vmatprep.subr.mxu0 0.0
    %9660 = vmatpush2.msra.mxu0 0.0
    %9661 = vmatprep.subr.mxu0 0.0
    %9662 = vmatpush2.msra.mxu0 0.0
    %9663 = vmatprep.subr.mxu0 0.0
    %9664 = vmatpush2.msra.mxu0 0.0
    %9665 = vmatprep.subr.mxu0 0.0
    %9666 = vmatpush2.msra.mxu0 0.0
    %9667 = vmatprep.subr.mxu0 0.0
    %9668 = vmatpush2.msra.mxu0 0.0
    %9669 = vmatprep.subr.mxu0 0.0
    %9670 = vmatpush2.msra.mxu0 0.0
    %9671 = vmatprep.subr.mxu0 0.0
    %9672 = vmatpush2.msra.mxu0 0.0
    %9673 = vmatprep.subr.mxu0 0.0
    %9674 = vmatpush2.msra.mxu0 0.0
    %9675 = vmatprep.subr.mxu0 0.0
    %9676 = vmatpush2.msra.mxu0 0.0
    %9677 = vmatprep.subr.mxu0 0.0
    %9678 = vmatpush2.msra.mxu0 0.0
    %9679 = vmatprep.mubr.f32.mxu0 0.0
    %9680 = vmatmul.mubr.f32.gmra.mxu0 %v9420
    %v9681 = vpop.f32.mrf.mxu0
    %v9682 = vadd.f32 0.0, %v9681
    %v9683 = vpop.f32.mrf.mxu0
    %9684 = vmatprep.mubr.f32.mxu0 0.0
    %9685 = vmatmul.mubr.f32.gmra.mxu0 %v9421
    %v9686 = vpop.f32.mrf.mxu0
    %v9687 = vadd.f32 0.0, %v9686
    %v9688 = vpop.f32.mrf.mxu0
    %9689 = vmatprep.mubr.f32.mxu0 0.0
    %9690 = vmatmul.mubr.f32.gmra.mxu0 %v9422
    %v9691 = vpop.f32.mrf.mxu0
    %v9692 = vadd.f32 0.0, %v9691
    %v9693 = vpop.f32.mrf.mxu0
    %9694 = vmatprep.mubr.f32.mxu0 0.0
    %9695 = vmatmul.mubr.f32.gmra.mxu0 %v9423
    %v9696 = vpop.f32.mrf.mxu0
    %v9697 = vadd.f32 0.0, %v9696
    %v9698 = vpop.f32.mrf.mxu0
    %9699 = vmatprep.mubr.f32.mxu0 0.0
    %9700 = vmatmul.mubr.f32.gmra.mxu0 %v9424
    %v9701 = vpop.f32.mrf.mxu0
    %v9702 = vadd.f32 0.0, %v9701
    %v9703 = vpop.f32.mrf.mxu0
    %9704 = vmatprep.mubr.f32.mxu0 0.0
    %9705 = vmatmul.mubr.f32.gmra.mxu0 %v9425
    %v9706 = vpop.f32.mrf.mxu0
    %v9707 = vadd.f32 0.0, %v9706
    %v9708 = vpop.f32.mrf.mxu0
    %9709 = vmatprep.mubr.f32.mxu0 0.0
    %9710 = vmatmul.mubr.f32.gmra.mxu0 %v9426
    %v9711 = vpop.f32.mrf.mxu0
    %v9712 = vadd.f32 0.0, %v9711
    %v9713 = vpop.f32.mrf.mxu0
    %9714 = vmatprep.mubr.f32.mxu0 0.0
    %9715 = vmatmul.mubr.f32.gmra.mxu0 %v9427
    %v9716 = vpop.f32.mrf.mxu0
    %v9717 = vadd.f32 0.0, %v9716
    %v9718 = vpop.f32.mrf.mxu0
    %9719 = vmatprep.mubr.f32.mxu0 0.0
    %9720 = vmatmul.mubr.f32.gmra.mxu0 %v9428
    %v9721 = vpop.f32.mrf.mxu0
    %v9722 = vadd.f32 0.0, %v9721
    %v9723 = vpop.f32.mrf.mxu0
    %9724 = vmatprep.mubr.f32.mxu0 0.0
    %9725 = vmatmul.mubr.f32.gmra.mxu0 %v9429
    %v9726 = vpop.f32.mrf.mxu0
    %v9727 = vadd.f32 0.0, %v9726
    %v9728 = vpop.f32.mrf.mxu0
    %9729 = vmatprep.mubr.f32.mxu0 0.0
    %9730 = vmatmul.mubr.f32.gmra.mxu0 %v9430
    %v9731 = vpop.f32.mrf.mxu0
    %v9732 = vadd.f32 0.0, %v9731
    %v9733 = vpop.f32.mrf.mxu0
    %9734 = vmatprep.mubr.f32.mxu0 0.0
    %9735 = vmatmul.mubr.f32.gmra.mxu0 %v9431
    %v9736 = vpop.f32.mrf.mxu0
    %v9737 = vadd.f32 0.0, %v9736
    %v9738 = vpop.f32.mrf.mxu0
    %9739 = vmatprep.mubr.f32.mxu0 0.0
    %9740 = vmatmul.mubr.f32.gmra.mxu0 %v9432
    %v9741 = vpop.f32.mrf.mxu0
    %v9742 = vadd.f32 0.0, %v9741
    %v9743 = vpop.f32.mrf.mxu0
    %9744 = vmatprep.mubr.f32.mxu0 0.0
    %9745 = vmatmul.mubr.f32.gmra.mxu0 %v9433
    %v9746 = vpop.f32.mrf.mxu0
    %v9747 = vadd.f32 0.0, %v9746
    %v9748 = vpop.f32.mrf.mxu0
    %9749 = vmatprep.mubr.f32.mxu0 0.0
    %9750 = vmatmul.mubr.f32.gmra.mxu0 %v9434
    %v9751 = vpop.f32.mrf.mxu0
    %v9752 = vadd.f32 0.0, %v9751
    %v9753 = vpop.f32.mrf.mxu0
    %9754 = vmatprep.mubr.f32.mxu0 0.0
    %9755 = vmatmul.mubr.f32.gmra.mxu0 %v9435
    %v9756 = vpop.f32.mrf.mxu0
    %v9757 = vadd.f32 0.0, %v9756
    %v9758 = vpop.f32.mrf.mxu0
    %9759 = vdwg.mxu0
    %9760 = vmatprep.subr.mxu0 0.0
    %9761 = vmatpush1.msra.mxu0 %v9757
    %9762 = vmatprep.subr.mxu0 0.0
    %9763 = vmatpush1.msra.mxu0 %v9752
    %9764 = vmatprep.subr.mxu0 0.0
    %9765 = vmatpush1.msra.mxu0 %v9747
    %9766 = vmatprep.subr.mxu0 0.0
    %9767 = vmatpush1.msra.mxu0 %v9742
    %9768 = vmatprep.subr.mxu0 0.0
    %9769 = vmatpush1.msra.mxu0 %v9737
    %9770 = vmatprep.subr.mxu0 0.0
    %9771 = vmatpush1.msra.mxu0 %v9732
    %9772 = vmatprep.subr.mxu0 0.0
    %9773 = vmatpush1.msra.mxu0 %v9727
    %9774 = vmatprep.subr.mxu0 0.0
    %9775 = vmatpush1.msra.mxu0 %v9722
    %9776 = vmatprep.subr.mxu0 0.0
    %9777 = vmatpush1.msra.mxu0 %v9717
    %9778 = vmatprep.subr.mxu0 0.0
    %9779 = vmatpush1.msra.mxu0 %v9712
    %9780 = vmatprep.subr.mxu0 0.0
    %9781 = vmatpush1.msra.mxu0 %v9707
    %9782 = vmatprep.subr.mxu0 0.0
    %9783 = vmatpush1.msra.mxu0 %v9702
    %9784 = vmatprep.subr.mxu0 0.0
    %9785 = vmatpush1.msra.mxu0 %v9697
    %9786 = vmatprep.subr.mxu0 0.0
    %9787 = vmatpush1.msra.mxu0 %v9692
    %9788 = vmatprep.subr.mxu0 0.0
    %9789 = vmatpush1.msra.mxu0 %v9687
    %9790 = vmatprep.subr.mxu0 0.0
    %9791 = vmatpush1.msra.mxu0 %v9682
    %9792 = vmatprep.subr.mxu0 0.0
    %9793 = vmatpush2.msra.mxu0 0.0
    %9794 = vmatprep.subr.mxu0 0.0
    %9795 = vmatpush2.msra.mxu0 0.0
    %9796 = vmatprep.subr.mxu0 0.0
    %9797 = vmatpush2.msra.mxu0 0.0
    %9798 = vmatprep.subr.mxu0 0.0
    %9799 = vmatpush2.msra.mxu0 0.0
    %9800 = vmatprep.subr.mxu0 0.0
    %9801 = vmatpush2.msra.mxu0 0.0
    %9802 = vmatprep.subr.mxu0 0.0
    %9803 = vmatpush2.msra.mxu0 0.0
    %9804 = vmatprep.subr.mxu0 0.0
    %9805 = vmatpush2.msra.mxu0 0.0
    %9806 = vmatprep.subr.mxu0 0.0
    %9807 = vmatpush2.msra.mxu0 0.0
    %9808 = vmatprep.subr.mxu0 0.0
    %9809 = vmatpush2.msra.mxu0 0.0
    %9810 = vmatprep.subr.mxu0 0.0
    %9811 = vmatpush2.msra.mxu0 0.0
    %9812 = vmatprep.subr.mxu0 0.0
    %9813 = vmatpush2.msra.mxu0 0.0
    %9814 = vmatprep.subr.mxu0 0.0
    %9815 = vmatpush2.msra.mxu0 0.0
    %9816 = vmatprep.subr.mxu0 0.0
    %9817 = vmatpush2.msra.mxu0 0.0
    %9818 = vmatprep.subr.mxu0 0.0
    %9819 = vmatpush2.msra.mxu0 0.0
    %9820 = vmatprep.subr.mxu0 0.0
    %9821 = vmatpush2.msra.mxu0 0.0
    %9822 = vmatprep.subr.mxu0 0.0
    %9823 = vmatpush2.msra.mxu0 0.0
    %9824 = vmatprep.mubr.f32.mxu0 0.0
    %9825 = vmatmul.mubr.f32.gmra.mxu0 %v311
    %v9826 = vpop.f32.mrf.mxu0
    %v9827 = vadd.f32 0.0, %v9826
    %v9828 = vpop.f32.mrf.mxu0
    %9829 = vmatprep.mubr.f32.mxu0 0.0
    %9830 = vmatmul.mubr.f32.gmra.mxu0 %v312
    %v9831 = vpop.f32.mrf.mxu0
    %v9832 = vadd.f32 0.0, %v9831
    %v9833 = vpop.f32.mrf.mxu0
    %9834 = vmatprep.mubr.f32.mxu0 0.0
    %9835 = vmatmul.mubr.f32.gmra.mxu0 %v313
    %v9836 = vpop.f32.mrf.mxu0
    %v9837 = vadd.f32 0.0, %v9836
    %v9838 = vpop.f32.mrf.mxu0
    %9839 = vmatprep.mubr.f32.mxu0 0.0
    %9840 = vmatmul.mubr.f32.gmra.mxu0 %v314
    %v9841 = vpop.f32.mrf.mxu0
    %v9842 = vadd.f32 0.0, %v9841
    %v9843 = vpop.f32.mrf.mxu0
    %9844 = vmatprep.mubr.f32.mxu0 0.0
    %9845 = vmatmul.mubr.f32.gmra.mxu0 %v315
    %v9846 = vpop.f32.mrf.mxu0
    %v9847 = vadd.f32 0.0, %v9846
    %v9848 = vpop.f32.mrf.mxu0
    %9849 = vmatprep.mubr.f32.mxu0 0.0
    %9850 = vmatmul.mubr.f32.gmra.mxu0 %v316
    %v9851 = vpop.f32.mrf.mxu0
    %v9852 = vadd.f32 0.0, %v9851
    %v9853 = vpop.f32.mrf.mxu0
    %9854 = vmatprep.mubr.f32.mxu0 0.0
    %9855 = vmatmul.mubr.f32.gmra.mxu0 %v317
    %v9856 = vpop.f32.mrf.mxu0
    %v9857 = vadd.f32 0.0, %v9856
    %v9858 = vpop.f32.mrf.mxu0
    %9859 = vmatprep.mubr.f32.mxu0 0.0
    %9860 = vmatmul.mubr.f32.gmra.mxu0 %v318
    %v9861 = vpop.f32.mrf.mxu0
    %v9862 = vadd.f32 0.0, %v9861
    %v9863 = vpop.f32.mrf.mxu0
    %9864 = vmatprep.mubr.f32.mxu0 0.0
    %9865 = vmatmul.mubr.f32.gmra.mxu0 %v319
    %v9866 = vpop.f32.mrf.mxu0
    %v9867 = vadd.f32 0.0, %v9866
    %v9868 = vpop.f32.mrf.mxu0
    %9869 = vmatprep.mubr.f32.mxu0 0.0
    %9870 = vmatmul.mubr.f32.gmra.mxu0 %v320
    %v9871 = vpop.f32.mrf.mxu0
    %v9872 = vadd.f32 0.0, %v9871
    %v9873 = vpop.f32.mrf.mxu0
    %9874 = vmatprep.mubr.f32.mxu0 0.0
    %9875 = vmatmul.mubr.f32.gmra.mxu0 %v321
    %v9876 = vpop.f32.mrf.mxu0
    %v9877 = vadd.f32 0.0, %v9876
    %v9878 = vpop.f32.mrf.mxu0
    %9879 = vmatprep.mubr.f32.mxu0 0.0
    %9880 = vmatmul.mubr.f32.gmra.mxu0 %v322
    %v9881 = vpop.f32.mrf.mxu0
    %v9882 = vadd.f32 0.0, %v9881
    %v9883 = vpop.f32.mrf.mxu0
    %9884 = vmatprep.mubr.f32.mxu0 0.0
    %9885 = vmatmul.mubr.f32.gmra.mxu0 %v323
    %v9886 = vpop.f32.mrf.mxu0
    %v9887 = vadd.f32 0.0, %v9886
    %v9888 = vpop.f32.mrf.mxu0
    %9889 = vmatprep.mubr.f32.mxu0 0.0
    %9890 = vmatmul.mubr.f32.gmra.mxu0 %v324
    %v9891 = vpop.f32.mrf.mxu0
    %v9892 = vadd.f32 0.0, %v9891
    %v9893 = vpop.f32.mrf.mxu0
    %9894 = vmatprep.mubr.f32.mxu0 0.0
    %9895 = vmatmul.mubr.f32.gmra.mxu0 %v325
    %v9896 = vpop.f32.mrf.mxu0
    %v9897 = vadd.f32 0.0, %v9896
    %v9898 = vpop.f32.mrf.mxu0
    %9899 = vmatprep.mubr.f32.mxu0 0.0
    %9900 = vmatmul.mubr.f32.gmra.mxu0 %v326
    %v9901 = vpop.f32.mrf.mxu0
    %v9902 = vadd.f32 0.0, %v9901
    %v9903 = vpop.f32.mrf.mxu0
    %9904 = vdwg.mxu0
    %9905 = vmatprep.subr.mxu0 0.0
    %9906 = vmatpush1.msra.mxu0 %v9595
    %9907 = vmatprep.subr.mxu0 0.0
    %9908 = vmatpush1.msra.mxu0 %v9590
    %9909 = vmatprep.subr.mxu0 0.0
    %9910 = vmatpush1.msra.mxu0 %v9585
    %9911 = vmatprep.subr.mxu0 0.0
    %9912 = vmatpush1.msra.mxu0 %v9580
    %9913 = vmatprep.subr.mxu0 0.0
    %9914 = vmatpush1.msra.mxu0 %v9575
    %9915 = vmatprep.subr.mxu0 0.0
    %9916 = vmatpush1.msra.mxu0 %v9570
    %9917 = vmatprep.subr.mxu0 0.0
    %9918 = vmatpush1.msra.mxu0 %v9565
    %9919 = vmatprep.subr.mxu0 0.0
    %9920 = vmatpush1.msra.mxu0 %v9560
    %9921 = vmatprep.subr.mxu0 0.0
    %9922 = vmatpush1.msra.mxu0 %v9555
    %9923 = vmatprep.subr.mxu0 0.0
    %9924 = vmatpush1.msra.mxu0 %v9550
    %9925 = vmatprep.subr.mxu0 0.0
    %9926 = vmatpush1.msra.mxu0 %v9545
    %9927 = vmatprep.subr.mxu0 0.0
    %9928 = vmatpush1.msra.mxu0 %v9540
    %9929 = vmatprep.subr.mxu0 0.0
    %9930 = vmatpush1.msra.mxu0 %v9535
    %9931 = vmatprep.subr.mxu0 0.0
    %9932 = vmatpush1.msra.mxu0 %v9530
    %9933 = vmatprep.subr.mxu0 0.0
    %9934 = vmatpush1.msra.mxu0 %v9525
    %9935 = vmatprep.subr.mxu0 0.0
    %9936 = vmatpush1.msra.mxu0 %v9520
    %9937 = vmatprep.subr.mxu0 0.0
    %9938 = vmatpush2.msra.mxu0 0.0
    %9939 = vmatprep.subr.mxu0 0.0
    %9940 = vmatpush2.msra.mxu0 0.0
    %9941 = vmatprep.subr.mxu0 0.0
    %9942 = vmatpush2.msra.mxu0 0.0
    %9943 = vmatprep.subr.mxu0 0.0
    %9944 = vmatpush2.msra.mxu0 0.0
    %9945 = vmatprep.subr.mxu0 0.0
    %9946 = vmatpush2.msra.mxu0 0.0
    %9947 = vmatprep.subr.mxu0 0.0
    %9948 = vmatpush2.msra.mxu0 0.0
    %9949 = vmatprep.subr.mxu0 0.0
    %9950 = vmatpush2.msra.mxu0 0.0
    %9951 = vmatprep.subr.mxu0 0.0
    %9952 = vmatpush2.msra.mxu0 0.0
    %9953 = vmatprep.subr.mxu0 0.0
    %9954 = vmatpush2.msra.mxu0 0.0
    %9955 = vmatprep.subr.mxu0 0.0
    %9956 = vmatpush2.msra.mxu0 0.0
    %9957 = vmatprep.subr.mxu0 0.0
    %9958 = vmatpush2.msra.mxu0 0.0
    %9959 = vmatprep.subr.mxu0 0.0
    %9960 = vmatpush2.msra.mxu0 0.0
    %9961 = vmatprep.subr.mxu0 0.0
    %9962 = vmatpush2.msra.mxu0 0.0
    %9963 = vmatprep.subr.mxu0 0.0
    %9964 = vmatpush2.msra.mxu0 0.0
    %9965 = vmatprep.subr.mxu0 0.0
    %9966 = vmatpush2.msra.mxu0 0.0
    %9967 = vmatprep.subr.mxu0 0.0
    %9968 = vmatpush2.msra.mxu0 0.0
    %9969 = vmatprep.mubr.f32.mxu0 0.0
    %9970 = vmatmul.mubr.f32.gmra.mxu0 %v343
    %v9971 = vpop.f32.mrf.mxu0
    %v9972 = vadd.f32 %v9827, %v9971
    %v9973 = vpop.f32.mrf.mxu0
    %9974 = vmatprep.mubr.f32.mxu0 0.0
    %9975 = vmatmul.mubr.f32.gmra.mxu0 %v344
    %v9976 = vpop.f32.mrf.mxu0
    %v9977 = vadd.f32 %v9832, %v9976
    %v9978 = vpop.f32.mrf.mxu0
    %9979 = vmatprep.mubr.f32.mxu0 0.0
    %9980 = vmatmul.mubr.f32.gmra.mxu0 %v345
    %v9981 = vpop.f32.mrf.mxu0
    %v9982 = vadd.f32 %v9837, %v9981
    %v9983 = vpop.f32.mrf.mxu0
    %9984 = vmatprep.mubr.f32.mxu0 0.0
    %9985 = vmatmul.mubr.f32.gmra.mxu0 %v346
    %v9986 = vpop.f32.mrf.mxu0
    %v9987 = vadd.f32 %v9842, %v9986
    %v9988 = vpop.f32.mrf.mxu0
    %9989 = vmatprep.mubr.f32.mxu0 0.0
    %9990 = vmatmul.mubr.f32.gmra.mxu0 %v347
    %v9991 = vpop.f32.mrf.mxu0
    %v9992 = vadd.f32 %v9847, %v9991
    %v9993 = vpop.f32.mrf.mxu0
    %9994 = vmatprep.mubr.f32.mxu0 0.0
    %9995 = vmatmul.mubr.f32.gmra.mxu0 %v348
    %v9996 = vpop.f32.mrf.mxu0
    %v9997 = vadd.f32 %v9852, %v9996
    %v9998 = vpop.f32.mrf.mxu0
    %9999 = vmatprep.mubr.f32.mxu0 0.0
    %10000 = vmatmul.mubr.f32.gmra.mxu0 %v349
    %v10001 = vpop.f32.mrf.mxu0
    %v10002 = vadd.f32 %v9857, %v10001
    %v10003 = vpop.f32.mrf.mxu0
    %10004 = vmatprep.mubr.f32.mxu0 0.0
    %10005 = vmatmul.mubr.f32.gmra.mxu0 %v350
    %v10006 = vpop.f32.mrf.mxu0
    %v10007 = vadd.f32 %v9862, %v10006
    %v10008 = vpop.f32.mrf.mxu0
    %10009 = vmatprep.mubr.f32.mxu0 0.0
    %10010 = vmatmul.mubr.f32.gmra.mxu0 %v351
    %v10011 = vpop.f32.mrf.mxu0
    %v10012 = vadd.f32 %v9867, %v10011
    %v10013 = vpop.f32.mrf.mxu0
    %10014 = vmatprep.mubr.f32.mxu0 0.0
    %10015 = vmatmul.mubr.f32.gmra.mxu0 %v352
    %v10016 = vpop.f32.mrf.mxu0
    %v10017 = vadd.f32 %v9872, %v10016
    %v10018 = vpop.f32.mrf.mxu0
    %10019 = vmatprep.mubr.f32.mxu0 0.0
    %10020 = vmatmul.mubr.f32.gmra.mxu0 %v353
    %v10021 = vpop.f32.mrf.mxu0
    %v10022 = vadd.f32 %v9877, %v10021
    %v10023 = vpop.f32.mrf.mxu0
    %10024 = vmatprep.mubr.f32.mxu0 0.0
    %10025 = vmatmul.mubr.f32.gmra.mxu0 %v354
    %v10026 = vpop.f32.mrf.mxu0
    %v10027 = vadd.f32 %v9882, %v10026
    %v10028 = vpop.f32.mrf.mxu0
    %10029 = vmatprep.mubr.f32.mxu0 0.0
    %10030 = vmatmul.mubr.f32.gmra.mxu0 %v355
    %v10031 = vpop.f32.mrf.mxu0
    %v10032 = vadd.f32 %v9887, %v10031
    %v10033 = vpop.f32.mrf.mxu0
    %10034 = vmatprep.mubr.f32.mxu0 0.0
    %10035 = vmatmul.mubr.f32.gmra.mxu0 %v356
    %v10036 = vpop.f32.mrf.mxu0
    %v10037 = vadd.f32 %v9892, %v10036
    %v10038 = vpop.f32.mrf.mxu0
    %10039 = vmatprep.mubr.f32.mxu0 0.0
    %10040 = vmatmul.mubr.f32.gmra.mxu0 %v357
    %v10041 = vpop.f32.mrf.mxu0
    %v10042 = vadd.f32 %v9897, %v10041
    %v10043 = vpop.f32.mrf.mxu0
    %10044 = vmatprep.mubr.f32.mxu0 0.0
    %10045 = vmatmul.mubr.f32.gmra.mxu0 %v358
    %v10046 = vpop.f32.mrf.mxu0
    %v10047 = vadd.f32 %v9902, %v10046
    %v10048 = vpop.f32.mrf.mxu0
    %10049 = vdwg.mxu0
    %s10050 = scalar_lea.vmem [#allocation17], 640
    %v10051 = vld [vmem:[%s10050] sm:$0xff]
    %v10052 = vld [vmem:[%s10050 + $0x8] sm:$0xff]
    %v10053 = vld [vmem:[%s10050 + $0x10] sm:$0xff]
    %v10054 = vld [vmem:[%s10050 + $0x18] sm:$0xff]
    %v10055 = vld [vmem:[%s10050 + $0x20] sm:$0xff]
    %v10056 = vld [vmem:[%s10050 + $0x28] sm:$0xff]
    %v10057 = vld [vmem:[%s10050 + $0x30] sm:$0xff]
    %v10058 = vld [vmem:[%s10050 + $0x38] sm:$0xff]
    %v10059 = vld [vmem:[%s10050 + $0x40] sm:$0xff]
    %v10060 = vld [vmem:[%s10050 + $0x48] sm:$0xff]
    %v10061 = vld [vmem:[%s10050 + $0x50] sm:$0xff]
    %v10062 = vld [vmem:[%s10050 + $0x58] sm:$0xff]
    %v10063 = vld [vmem:[%s10050 + $0x60] sm:$0xff]
    %v10064 = vld [vmem:[%s10050 + $0x68] sm:$0xff]
    %v10065 = vld [vmem:[%s10050 + $0x70] sm:$0xff]
    %v10066 = vld [vmem:[%s10050 + $0x78] sm:$0xff]
    %10067 = vmatprep.subr.mxu0 0.0
    %10068 = vmatpush1.msra.mxu0 %v10066
    %10069 = vmatprep.subr.mxu0 0.0
    %10070 = vmatpush1.msra.mxu0 %v10065
    %10071 = vmatprep.subr.mxu0 0.0
    %10072 = vmatpush1.msra.mxu0 %v10064
    %10073 = vmatprep.subr.mxu0 0.0
    %10074 = vmatpush1.msra.mxu0 %v10063
    %10075 = vmatprep.subr.mxu0 0.0
    %10076 = vmatpush1.msra.mxu0 %v10062
    %10077 = vmatprep.subr.mxu0 0.0
    %10078 = vmatpush1.msra.mxu0 %v10061
    %10079 = vmatprep.subr.mxu0 0.0
    %10080 = vmatpush1.msra.mxu0 %v10060
    %10081 = vmatprep.subr.mxu0 0.0
    %10082 = vmatpush1.msra.mxu0 %v10059
    %10083 = vmatprep.subr.mxu0 0.0
    %10084 = vmatpush1.msra.mxu0 %v10058
    %10085 = vmatprep.subr.mxu0 0.0
    %10086 = vmatpush1.msra.mxu0 %v10057
    %10087 = vmatprep.subr.mxu0 0.0
    %10088 = vmatpush1.msra.mxu0 %v10056
    %10089 = vmatprep.subr.mxu0 0.0
    %10090 = vmatpush1.msra.mxu0 %v10055
    %10091 = vmatprep.subr.mxu0 0.0
    %10092 = vmatpush1.msra.mxu0 %v10054
    %10093 = vmatprep.subr.mxu0 0.0
    %10094 = vmatpush1.msra.mxu0 %v10053
    %10095 = vmatprep.subr.mxu0 0.0
    %10096 = vmatpush1.msra.mxu0 %v10052
    %10097 = vmatprep.subr.mxu0 0.0
    %10098 = vmatpush1.msra.mxu0 %v10051
    %10099 = vmatprep.subr.mxu0 0.0
    %10100 = vmatpush2.msra.mxu0 0.0
    %10101 = vmatprep.subr.mxu0 0.0
    %10102 = vmatpush2.msra.mxu0 0.0
    %10103 = vmatprep.subr.mxu0 0.0
    %10104 = vmatpush2.msra.mxu0 0.0
    %10105 = vmatprep.subr.mxu0 0.0
    %10106 = vmatpush2.msra.mxu0 0.0
    %10107 = vmatprep.subr.mxu0 0.0
    %10108 = vmatpush2.msra.mxu0 0.0
    %10109 = vmatprep.subr.mxu0 0.0
    %10110 = vmatpush2.msra.mxu0 0.0
    %10111 = vmatprep.subr.mxu0 0.0
    %10112 = vmatpush2.msra.mxu0 0.0
    %10113 = vmatprep.subr.mxu0 0.0
    %10114 = vmatpush2.msra.mxu0 0.0
    %10115 = vmatprep.subr.mxu0 0.0
    %10116 = vmatpush2.msra.mxu0 0.0
    %10117 = vmatprep.subr.mxu0 0.0
    %10118 = vmatpush2.msra.mxu0 0.0
    %10119 = vmatprep.subr.mxu0 0.0
    %10120 = vmatpush2.msra.mxu0 0.0
    %10121 = vmatprep.subr.mxu0 0.0
    %10122 = vmatpush2.msra.mxu0 0.0
    %10123 = vmatprep.subr.mxu0 0.0
    %10124 = vmatpush2.msra.mxu0 0.0
    %10125 = vmatprep.subr.mxu0 0.0
    %10126 = vmatpush2.msra.mxu0 0.0
    %10127 = vmatprep.subr.mxu0 0.0
    %10128 = vmatpush2.msra.mxu0 0.0
    %10129 = vmatprep.subr.mxu0 0.0
    %10130 = vmatpush2.msra.mxu0 0.0
    %10131 = vmatprep.mubr.f32.mxu0 0.0
    %10132 = vmatmul.mubr.f32.gmra.mxu0 %v8731
    %v10133 = vpop.f32.mrf.mxu0
    %v10134 = vadd.f32 0.0, %v10133
    %v10135 = vpop.f32.mrf.mxu0
    %10136 = vmatprep.mubr.f32.mxu0 0.0
    %10137 = vmatmul.mubr.f32.gmra.mxu0 %v8732
    %v10138 = vpop.f32.mrf.mxu0
    %v10139 = vadd.f32 0.0, %v10138
    %v10140 = vpop.f32.mrf.mxu0
    %10141 = vmatprep.mubr.f32.mxu0 0.0
    %10142 = vmatmul.mubr.f32.gmra.mxu0 %v8733
    %v10143 = vpop.f32.mrf.mxu0
    %v10144 = vadd.f32 0.0, %v10143
    %v10145 = vpop.f32.mrf.mxu0
    %10146 = vmatprep.mubr.f32.mxu0 0.0
    %10147 = vmatmul.mubr.f32.gmra.mxu0 %v8734
    %v10148 = vpop.f32.mrf.mxu0
    %v10149 = vadd.f32 0.0, %v10148
    %v10150 = vpop.f32.mrf.mxu0
    %10151 = vmatprep.mubr.f32.mxu0 0.0
    %10152 = vmatmul.mubr.f32.gmra.mxu0 %v8735
    %v10153 = vpop.f32.mrf.mxu0
    %v10154 = vadd.f32 0.0, %v10153
    %v10155 = vpop.f32.mrf.mxu0
    %10156 = vmatprep.mubr.f32.mxu0 0.0
    %10157 = vmatmul.mubr.f32.gmra.mxu0 %v8736
    %v10158 = vpop.f32.mrf.mxu0
    %v10159 = vadd.f32 0.0, %v10158
    %v10160 = vpop.f32.mrf.mxu0
    %10161 = vmatprep.mubr.f32.mxu0 0.0
    %10162 = vmatmul.mubr.f32.gmra.mxu0 %v8737
    %v10163 = vpop.f32.mrf.mxu0
    %v10164 = vadd.f32 0.0, %v10163
    %v10165 = vpop.f32.mrf.mxu0
    %10166 = vmatprep.mubr.f32.mxu0 0.0
    %10167 = vmatmul.mubr.f32.gmra.mxu0 %v8738
    %v10168 = vpop.f32.mrf.mxu0
    %v10169 = vadd.f32 0.0, %v10168
    %v10170 = vpop.f32.mrf.mxu0
    %10171 = vmatprep.mubr.f32.mxu0 0.0
    %10172 = vmatmul.mubr.f32.gmra.mxu0 %v8739
    %v10173 = vpop.f32.mrf.mxu0
    %v10174 = vadd.f32 0.0, %v10173
    %v10175 = vpop.f32.mrf.mxu0
    %10176 = vmatprep.mubr.f32.mxu0 0.0
    %10177 = vmatmul.mubr.f32.gmra.mxu0 %v8740
    %v10178 = vpop.f32.mrf.mxu0
    %v10179 = vadd.f32 0.0, %v10178
    %v10180 = vpop.f32.mrf.mxu0
    %10181 = vmatprep.mubr.f32.mxu0 0.0
    %10182 = vmatmul.mubr.f32.gmra.mxu0 %v8741
    %v10183 = vpop.f32.mrf.mxu0
    %v10184 = vadd.f32 0.0, %v10183
    %v10185 = vpop.f32.mrf.mxu0
    %10186 = vmatprep.mubr.f32.mxu0 0.0
    %10187 = vmatmul.mubr.f32.gmra.mxu0 %v8742
    %v10188 = vpop.f32.mrf.mxu0
    %v10189 = vadd.f32 0.0, %v10188
    %v10190 = vpop.f32.mrf.mxu0
    %10191 = vmatprep.mubr.f32.mxu0 0.0
    %10192 = vmatmul.mubr.f32.gmra.mxu0 %v8743
    %v10193 = vpop.f32.mrf.mxu0
    %v10194 = vadd.f32 0.0, %v10193
    %v10195 = vpop.f32.mrf.mxu0
    %10196 = vmatprep.mubr.f32.mxu0 0.0
    %10197 = vmatmul.mubr.f32.gmra.mxu0 %v8744
    %v10198 = vpop.f32.mrf.mxu0
    %v10199 = vadd.f32 0.0, %v10198
    %v10200 = vpop.f32.mrf.mxu0
    %10201 = vmatprep.mubr.f32.mxu0 0.0
    %10202 = vmatmul.mubr.f32.gmra.mxu0 %v8745
    %v10203 = vpop.f32.mrf.mxu0
    %v10204 = vadd.f32 0.0, %v10203
    %v10205 = vpop.f32.mrf.mxu0
    %10206 = vmatprep.mubr.f32.mxu0 0.0
    %10207 = vmatmul.mubr.f32.gmra.mxu0 %v8746
    %v10208 = vpop.f32.mrf.mxu0
    %v10209 = vadd.f32 0.0, %v10208
    %v10210 = vpop.f32.mrf.mxu0
    %10211 = vdwg.mxu0
    %v10212 = vadd.f32 %v9972, %v10134
    %v10213 = vadd.f32 %v9977, %v10139
    %v10214 = vadd.f32 %v9982, %v10144
    %v10215 = vadd.f32 %v9987, %v10149
    %v10216 = vadd.f32 %v9992, %v10154
    %v10217 = vadd.f32 %v9997, %v10159
    %v10218 = vadd.f32 %v10002, %v10164
    %v10219 = vadd.f32 %v10007, %v10169
    %v10220 = vadd.f32 %v10012, %v10174
    %v10221 = vadd.f32 %v10017, %v10179
    %v10222 = vadd.f32 %v10022, %v10184
    %v10223 = vadd.f32 %v10027, %v10189
    %v10224 = vadd.f32 %v10032, %v10194
    %v10225 = vadd.f32 %v10037, %v10199
    %v10226 = vadd.f32 %v10042, %v10204
    %v10227 = vadd.f32 %v10047, %v10209
    %v10228 = vld [vmem:[%s14 + $0x5] sm:$0x1]
    %v10229 = vlaneseq
    %v10230 = vshrl.u32 %v10229, 7
    %v10231 = vsub.s32 0, %v10230
    %v10232 = vrot.slane %v10228, %v10231
    %v10233 = vadd.f32 %v10212, %v10232
    %v10234 = vadd.f32 %v10213, %v10232
    %v10235 = vadd.f32 %v10214, %v10232
    %v10236 = vadd.f32 %v10215, %v10232
    %v10237 = vadd.f32 %v10216, %v10232
    %v10238 = vadd.f32 %v10217, %v10232
    %v10239 = vadd.f32 %v10218, %v10232
    %v10240 = vadd.f32 %v10219, %v10232
    %v10241 = vadd.f32 %v10220, %v10232
    %v10242 = vadd.f32 %v10221, %v10232
    %v10243 = vadd.f32 %v10222, %v10232
    %v10244 = vadd.f32 %v10223, %v10232
    %v10245 = vadd.f32 %v10224, %v10232
    %v10246 = vadd.f32 %v10225, %v10232
    %v10247 = vadd.f32 %v10226, %v10232
    %v10248 = vadd.f32 %v10227, %v10232
    %v10249 = vmax.f32 %v10233, 0.0
    %v10250 = vmax.f32 %v10234, 0.0
    %v10251 = vmax.f32 %v10235, 0.0
    %v10252 = vmax.f32 %v10236, 0.0
    %v10253 = vmax.f32 %v10237, 0.0
    %v10254 = vmax.f32 %v10238, 0.0
    %v10255 = vmax.f32 %v10239, 0.0
    %v10256 = vmax.f32 %v10240, 0.0
    %v10257 = vmax.f32 %v10241, 0.0
    %v10258 = vmax.f32 %v10242, 0.0
    %v10259 = vmax.f32 %v10243, 0.0
    %v10260 = vmax.f32 %v10244, 0.0
    %v10261 = vmax.f32 %v10245, 0.0
    %v10262 = vmax.f32 %v10246, 0.0
    %v10263 = vmax.f32 %v10247, 0.0
    %v10264 = vmax.f32 %v10248, 0.0
    %s10265 = scalar_lea.vmem [#allocation19], 640
    %v10266 = vld [vmem:[%s10265] sm:$0xff]
    %v10267 = vld [vmem:[%s10265 + $0x8] sm:$0xff]
    %v10268 = vld [vmem:[%s10265 + $0x10] sm:$0xff]
    %v10269 = vld [vmem:[%s10265 + $0x18] sm:$0xff]
    %v10270 = vld [vmem:[%s10265 + $0x20] sm:$0xff]
    %v10271 = vld [vmem:[%s10265 + $0x28] sm:$0xff]
    %v10272 = vld [vmem:[%s10265 + $0x30] sm:$0xff]
    %v10273 = vld [vmem:[%s10265 + $0x38] sm:$0xff]
    %v10274 = vld [vmem:[%s10265 + $0x40] sm:$0xff]
    %v10275 = vld [vmem:[%s10265 + $0x48] sm:$0xff]
    %v10276 = vld [vmem:[%s10265 + $0x50] sm:$0xff]
    %v10277 = vld [vmem:[%s10265 + $0x58] sm:$0xff]
    %v10278 = vld [vmem:[%s10265 + $0x60] sm:$0xff]
    %v10279 = vld [vmem:[%s10265 + $0x68] sm:$0xff]
    %v10280 = vld [vmem:[%s10265 + $0x70] sm:$0xff]
    %v10281 = vld [vmem:[%s10265 + $0x78] sm:$0xff]
    %v10282 = vld [vmem:[%s16 + $0x5] sm:$0x1]
    %v10283 = vlaneseq
    %v10284 = vshrl.u32 %v10283, 7
    %v10285 = vsub.s32 0, %v10284
    %v10286 = vrot.slane %v10282, %v10285
    %10287 = vmatprep.subr.mxu0 0.0
    %10288 = vmatpush1.msra.mxu0 %v10281
    %10289 = vmatprep.subr.mxu0 0.0
    %10290 = vmatpush1.msra.mxu0 %v10280
    %10291 = vmatprep.subr.mxu0 0.0
    %10292 = vmatpush1.msra.mxu0 %v10279
    %10293 = vmatprep.subr.mxu0 0.0
    %10294 = vmatpush1.msra.mxu0 %v10278
    %10295 = vmatprep.subr.mxu0 0.0
    %10296 = vmatpush1.msra.mxu0 %v10277
    %10297 = vmatprep.subr.mxu0 0.0
    %10298 = vmatpush1.msra.mxu0 %v10276
    %10299 = vmatprep.subr.mxu0 0.0
    %10300 = vmatpush1.msra.mxu0 %v10275
    %10301 = vmatprep.subr.mxu0 0.0
    %10302 = vmatpush1.msra.mxu0 %v10274
    %10303 = vmatprep.subr.mxu0 0.0
    %10304 = vmatpush1.msra.mxu0 %v10273
    %10305 = vmatprep.subr.mxu0 0.0
    %10306 = vmatpush1.msra.mxu0 %v10272
    %10307 = vmatprep.subr.mxu0 0.0
    %10308 = vmatpush1.msra.mxu0 %v10271
    %10309 = vmatprep.subr.mxu0 0.0
    %10310 = vmatpush1.msra.mxu0 %v10270
    %10311 = vmatprep.subr.mxu0 0.0
    %10312 = vmatpush1.msra.mxu0 %v10269
    %10313 = vmatprep.subr.mxu0 0.0
    %10314 = vmatpush1.msra.mxu0 %v10268
    %10315 = vmatprep.subr.mxu0 0.0
    %10316 = vmatpush1.msra.mxu0 %v10267
    %10317 = vmatprep.subr.mxu0 0.0
    %10318 = vmatpush1.msra.mxu0 %v10266
    %10319 = vmatprep.subr.mxu0 0.0
    %10320 = vmatpush2.msra.mxu0 0.0
    %10321 = vmatprep.subr.mxu0 0.0
    %10322 = vmatpush2.msra.mxu0 0.0
    %10323 = vmatprep.subr.mxu0 0.0
    %10324 = vmatpush2.msra.mxu0 0.0
    %10325 = vmatprep.subr.mxu0 0.0
    %10326 = vmatpush2.msra.mxu0 0.0
    %10327 = vmatprep.subr.mxu0 0.0
    %10328 = vmatpush2.msra.mxu0 0.0
    %10329 = vmatprep.subr.mxu0 0.0
    %10330 = vmatpush2.msra.mxu0 0.0
    %10331 = vmatprep.subr.mxu0 0.0
    %10332 = vmatpush2.msra.mxu0 0.0
    %10333 = vmatprep.subr.mxu0 0.0
    %10334 = vmatpush2.msra.mxu0 0.0
    %10335 = vmatprep.subr.mxu0 0.0
    %10336 = vmatpush2.msra.mxu0 0.0
    %10337 = vmatprep.subr.mxu0 0.0
    %10338 = vmatpush2.msra.mxu0 0.0
    %10339 = vmatprep.subr.mxu0 0.0
    %10340 = vmatpush2.msra.mxu0 0.0
    %10341 = vmatprep.subr.mxu0 0.0
    %10342 = vmatpush2.msra.mxu0 0.0
    %10343 = vmatprep.subr.mxu0 0.0
    %10344 = vmatpush2.msra.mxu0 0.0
    %10345 = vmatprep.subr.mxu0 0.0
    %10346 = vmatpush2.msra.mxu0 0.0
    %10347 = vmatprep.subr.mxu0 0.0
    %10348 = vmatpush2.msra.mxu0 0.0
    %10349 = vmatprep.subr.mxu0 0.0
    %10350 = vmatpush2.msra.mxu0 0.0
    %10351 = vmatprep.mubr.f32.mxu0 0.0
    %10352 = vmatmul.mubr.f32.gmra.mxu0 %v10249
    %v10353 = vpop.f32.mrf.mxu0
    %v10354 = vadd.f32 %v10286, %v10353
    %v10355 = vpop.f32.mrf.mxu0
    %10356 = vmatprep.mubr.f32.mxu0 0.0
    %10357 = vmatmul.mubr.f32.gmra.mxu0 %v10250
    %v10358 = vpop.f32.mrf.mxu0
    %v10359 = vadd.f32 %v10286, %v10358
    %v10360 = vpop.f32.mrf.mxu0
    %10361 = vmatprep.mubr.f32.mxu0 0.0
    %10362 = vmatmul.mubr.f32.gmra.mxu0 %v10251
    %v10363 = vpop.f32.mrf.mxu0
    %v10364 = vadd.f32 %v10286, %v10363
    %v10365 = vpop.f32.mrf.mxu0
    %10366 = vmatprep.mubr.f32.mxu0 0.0
    %10367 = vmatmul.mubr.f32.gmra.mxu0 %v10252
    %v10368 = vpop.f32.mrf.mxu0
    %v10369 = vadd.f32 %v10286, %v10368
    %v10370 = vpop.f32.mrf.mxu0
    %10371 = vmatprep.mubr.f32.mxu0 0.0
    %10372 = vmatmul.mubr.f32.gmra.mxu0 %v10253
    %v10373 = vpop.f32.mrf.mxu0
    %v10374 = vadd.f32 %v10286, %v10373
    %v10375 = vpop.f32.mrf.mxu0
    %10376 = vmatprep.mubr.f32.mxu0 0.0
    %10377 = vmatmul.mubr.f32.gmra.mxu0 %v10254
    %v10378 = vpop.f32.mrf.mxu0
    %v10379 = vadd.f32 %v10286, %v10378
    %v10380 = vpop.f32.mrf.mxu0
    %10381 = vmatprep.mubr.f32.mxu0 0.0
    %10382 = vmatmul.mubr.f32.gmra.mxu0 %v10255
    %v10383 = vpop.f32.mrf.mxu0
    %v10384 = vadd.f32 %v10286, %v10383
    %v10385 = vpop.f32.mrf.mxu0
    %10386 = vmatprep.mubr.f32.mxu0 0.0
    %10387 = vmatmul.mubr.f32.gmra.mxu0 %v10256
    %v10388 = vpop.f32.mrf.mxu0
    %v10389 = vadd.f32 %v10286, %v10388
    %v10390 = vpop.f32.mrf.mxu0
    %10391 = vmatprep.mubr.f32.mxu0 0.0
    %10392 = vmatmul.mubr.f32.gmra.mxu0 %v10257
    %v10393 = vpop.f32.mrf.mxu0
    %v10394 = vadd.f32 %v10286, %v10393
    %v10395 = vpop.f32.mrf.mxu0
    %10396 = vmatprep.mubr.f32.mxu0 0.0
    %10397 = vmatmul.mubr.f32.gmra.mxu0 %v10258
    %v10398 = vpop.f32.mrf.mxu0
    %v10399 = vadd.f32 %v10286, %v10398
    %v10400 = vpop.f32.mrf.mxu0
    %10401 = vmatprep.mubr.f32.mxu0 0.0
    %10402 = vmatmul.mubr.f32.gmra.mxu0 %v10259
    %v10403 = vpop.f32.mrf.mxu0
    %v10404 = vadd.f32 %v10286, %v10403
    %v10405 = vpop.f32.mrf.mxu0
    %10406 = vmatprep.mubr.f32.mxu0 0.0
    %10407 = vmatmul.mubr.f32.gmra.mxu0 %v10260
    %v10408 = vpop.f32.mrf.mxu0
    %v10409 = vadd.f32 %v10286, %v10408
    %v10410 = vpop.f32.mrf.mxu0
    %10411 = vmatprep.mubr.f32.mxu0 0.0
    %10412 = vmatmul.mubr.f32.gmra.mxu0 %v10261
    %v10413 = vpop.f32.mrf.mxu0
    %v10414 = vadd.f32 %v10286, %v10413
    %v10415 = vpop.f32.mrf.mxu0
    %10416 = vmatprep.mubr.f32.mxu0 0.0
    %10417 = vmatmul.mubr.f32.gmra.mxu0 %v10262
    %v10418 = vpop.f32.mrf.mxu0
    %v10419 = vadd.f32 %v10286, %v10418
    %v10420 = vpop.f32.mrf.mxu0
    %10421 = vmatprep.mubr.f32.mxu0 0.0
    %10422 = vmatmul.mubr.f32.gmra.mxu0 %v10263
    %v10423 = vpop.f32.mrf.mxu0
    %v10424 = vadd.f32 %v10286, %v10423
    %v10425 = vpop.f32.mrf.mxu0
    %10426 = vmatprep.mubr.f32.mxu0 0.0
    %10427 = vmatmul.mubr.f32.gmra.mxu0 %v10264
    %v10428 = vpop.f32.mrf.mxu0
    %v10429 = vadd.f32 %v10286, %v10428
    %v10430 = vpop.f32.mrf.mxu0
    %10431 = vdwg.mxu0
    %v10432 = vmul.f32 %v10354, %v1418
    %v10433 = vmul.f32 %v10359, %v1423
    %v10434 = vmul.f32 %v10364, %v1428
    %v10435 = vmul.f32 %v10369, %v1433
    %v10436 = vmul.f32 %v10374, %v1438
    %v10437 = vmul.f32 %v10379, %v1443
    %v10438 = vmul.f32 %v10384, %v1448
    %v10439 = vmul.f32 %v10389, %v1453
    %v10440 = vmul.f32 %v10394, %v1458
    %v10441 = vmul.f32 %v10399, %v1463
    %v10442 = vmul.f32 %v10404, %v1468
    %v10443 = vmul.f32 %v10409, %v1473
    %v10444 = vmul.f32 %v10414, %v1478
    %v10445 = vmul.f32 %v10419, %v1483
    %v10446 = vmul.f32 %v10424, %v1488
    %v10447 = vmul.f32 %v10429, %v1493
    %v10448 = vlaneseq
    %v10449 = vand.u32 %v10448, 127
    %vm10450 = vcmp.eq.s32.totalorder %v10449, 0
    %v10451 = vsel %vm10450, 1, 0
    %v10452 = vcvt.s32.f32 %v10451
    %10453 = vmatprep.subr.mxu0 0.0
    %10454 = vmatpush1.xpose.msra.mxu0 %v10447
    %10455 = vmatprep.subr.mxu0 0.0
    %10456 = vmatpush1.xpose.msra.mxu0 %v10446
    %10457 = vmatprep.subr.mxu0 0.0
    %10458 = vmatpush1.xpose.msra.mxu0 %v10445
    %10459 = vmatprep.subr.mxu0 0.0
    %10460 = vmatpush1.xpose.msra.mxu0 %v10444
    %10461 = vmatprep.subr.mxu0 0.0
    %10462 = vmatpush1.xpose.msra.mxu0 %v10443
    %10463 = vmatprep.subr.mxu0 0.0
    %10464 = vmatpush1.xpose.msra.mxu0 %v10442
    %10465 = vmatprep.subr.mxu0 0.0
    %10466 = vmatpush1.xpose.msra.mxu0 %v10441
    %10467 = vmatprep.subr.mxu0 0.0
    %10468 = vmatpush1.xpose.msra.mxu0 %v10440
    %10469 = vmatprep.subr.mxu0 0.0
    %10470 = vmatpush1.xpose.msra.mxu0 %v10439
    %10471 = vmatprep.subr.mxu0 0.0
    %10472 = vmatpush1.xpose.msra.mxu0 %v10438
    %10473 = vmatprep.subr.mxu0 0.0
    %10474 = vmatpush1.xpose.msra.mxu0 %v10437
    %10475 = vmatprep.subr.mxu0 0.0
    %10476 = vmatpush1.xpose.msra.mxu0 %v10436
    %10477 = vmatprep.subr.mxu0 0.0
    %10478 = vmatpush1.xpose.msra.mxu0 %v10435
    %10479 = vmatprep.subr.mxu0 0.0
    %10480 = vmatpush1.xpose.msra.mxu0 %v10434
    %10481 = vmatprep.subr.mxu0 0.0
    %10482 = vmatpush1.xpose.msra.mxu0 %v10433
    %10483 = vmatprep.subr.mxu0 0.0
    %10484 = vmatpush1.xpose.msra.mxu0 %v10432
    %10485 = vmatprep.subr.mxu0 0.0
    %10486 = vmatpush2.xpose.msra.mxu0 0.0
    %10487 = vmatprep.subr.mxu0 0.0
    %10488 = vmatpush2.xpose.msra.mxu0 0.0
    %10489 = vmatprep.subr.mxu0 0.0
    %10490 = vmatpush2.xpose.msra.mxu0 0.0
    %10491 = vmatprep.subr.mxu0 0.0
    %10492 = vmatpush2.xpose.msra.mxu0 0.0
    %10493 = vmatprep.subr.mxu0 0.0
    %10494 = vmatpush2.xpose.msra.mxu0 0.0
    %10495 = vmatprep.subr.mxu0 0.0
    %10496 = vmatpush2.xpose.msra.mxu0 0.0
    %10497 = vmatprep.subr.mxu0 0.0
    %10498 = vmatpush2.xpose.msra.mxu0 0.0
    %10499 = vmatprep.subr.mxu0 0.0
    %10500 = vmatpush2.xpose.msra.mxu0 0.0
    %10501 = vmatprep.subr.mxu0 0.0
    %10502 = vmatpush2.xpose.msra.mxu0 0.0
    %10503 = vmatprep.subr.mxu0 0.0
    %10504 = vmatpush2.xpose.msra.mxu0 0.0
    %10505 = vmatprep.subr.mxu0 0.0
    %10506 = vmatpush2.xpose.msra.mxu0 0.0
    %10507 = vmatprep.subr.mxu0 0.0
    %10508 = vmatpush2.xpose.msra.mxu0 0.0
    %10509 = vmatprep.subr.mxu0 0.0
    %10510 = vmatpush2.xpose.msra.mxu0 0.0
    %10511 = vmatprep.subr.mxu0 0.0
    %10512 = vmatpush2.xpose.msra.mxu0 0.0
    %10513 = vmatprep.subr.mxu0 0.0
    %10514 = vmatpush2.xpose.msra.mxu0 0.0
    %10515 = vmatprep.subr.mxu0 0.0
    %10516 = vmatpush2.xpose.msra.mxu0 0.0
    %10517 = vmatprep.mubr.f32.mxu0 0.0
    %10518 = vmatmul.mubr.f32.gmra.mxu0 %v10452
    %v10519 = vpop.f32.mrf.mxu0
    %v10520 = vadd.f32 0.0, %v10519
    %v10521 = vpop.f32.mrf.mxu0
    %10522 = vdwg.mxu0
    %v10523 = vmax.f32 %v10520, 0.0
    %v10524 = vand.u32 2147483647, %v10520
    %v10525 = vsub.f32 0.0, %v10524
    %v10526 = vmul.f32 %v10525, 1.442695
    %v10527 = vpow.pop %v10526
    %v10528 = vadd.f32 %v10527, 1.0
    %v10529 = vlog2.pop %v10528
    %v10530 = vmul.f32 %v10529, 0.6931472
    %v10531 = vmul.f32 -0.5, %v10527
    %v10532 = vadd.f32 %v10531, 1.0
    %v10533 = vmul.f32 %v10532, %v10527
    %v10534 = vand.u32 2147483647, %v10527
    %vm10535 = vcmp.lt.f32.partialorder %v10534, 0.0004427343
    %v10536 = vsel %vm10535, %v10533, %v10530
    %v10537 = vadd.f32 %v10523, %v10536
    %v10538 = vld [vmem:[%s8] sm:$0x1]
    %vm10539 = vcmp.gt.f32.partialorder %v10538, 0.5
    %v10540 = vadd.f32 %v10537, 0.001
    %v10541 = vsel %vm10539, %v10540, %v10520
    %v10542 = vld [vmem:[#allocation13] sm:$0x1]
    %v10543 = vmul.f32 %v10541, %v10542
    %10544 = vst [vmem:[#allocation25] sm:$0x1] %v10543
    %v10545 = vand.u32 2147483647, %v10543
    %vm10546 = vcmask 1040384
    %v10547 = vsel %vm10546, %v10545, 0.0
    %10548 = vadd.xlane.f32.xlu0 %v10547
    %v10549 = vpop.xlane.xlu0 %10548
    %vm10550 = vcmask 0
    %10551 = vst.msk [vmem:[#allocation26] sm:$0x1] %vm10550, %v10549
    // Predicated region
    $region146: #{tpu_custom_call.1} parent=1 // pred_check
      _
    $region147: #{tpu_custom_call.1} parent=1 // pred_check_branch
      %10553 = sbr.rel (0) target = $region149
    $region148: #{tpu_custom_call.1} parent=1 // pred_region
      %s10555 = ssub.s32 16, 16
      %10556 = vsyncadd [#allocation4], %s10555
      %s10558 = sshll.u32 [#allocation25], 4
      %s10559 = int_to_ptr.vmem [resolvable:$true] %s10558
      %10561 = dma.vmem_to_hbm [thread:$0]  %s10559, 16, %s22, [#allocation4]
    $region149: #{tpu_custom_call.1} parent=1 // pred_fallthru
      _
    // Predicated region
    $region150: #{tpu_custom_call.1} parent=1 // pred_check
      _
    $region151: #{tpu_custom_call.1} parent=1 // pred_check_branch
      %10563 = sbr.rel (0) target = $region153
    $region152: #{tpu_custom_call.1} parent=1 // pred_region
      %s10565 = ssub.s32 16, 16
      %10566 = vsyncadd [#allocation27], %s10565
      %s10568 = sshll.u32 [#allocation26], 4
      %s10569 = int_to_ptr.vmem [resolvable:$true] %s10568
      %10571 = dma.vmem_to_hbm [thread:$0]  %s10569, 16, %s23, [#allocation27]
    $region153: #{tpu_custom_call.1} parent=1 // pred_fallthru
      _
    // Predicated region
    $region154: #{tpu_custom_call.1} parent=1 // pred_check
      _
    $region155: #{tpu_custom_call.1} parent=1 // pred_check_branch
      %10573 = sbr.rel (0) target = $region157
    $region156: #{tpu_custom_call.1} parent=1 // pred_region
      %10574 = dma.done [#allocation4], 16
    $region157: #{tpu_custom_call.1} parent=1 // pred_fallthru
      _
    // Predicated region
    $region158: #{tpu_custom_call.1} parent=1 // pred_check
      _
    $region159: #{tpu_custom_call.1} parent=1 // pred_check_branch
      %10576 = sbr.rel (0) target = $region161
    $region160: #{tpu_custom_call.1} parent=1 // pred_region
      %10577 = dma.done [#allocation27], 16
    $region161: #{tpu_custom_call.1} parent=1 // pred_fallthru
      _
    %10578 = vsyncpa [#allocation3], 1
    %10579 = vsyncpa [#allocation6], 1
    %10580 = vsyncpa [#allocation9], 1
    %10581 = vsyncpa [#allocation12], 1
    %10582 = vsyncpa [#allocation15], 1
    %10583 = vsyncpa [#allocation18], 1
    %10584 = vsyncpa [#allocation21], 1
    %10585 = vsyncpa [#allocation24], 1
    %10586 = vsyncpa [#allocation4], 1
    %10587 = vsyncpa [#allocation27], 1

</llo_original>
